<compile_context>
chip_gen: v7x
topology: tpu7x:2x2x1
jax: 0.10.0
libtpu: 0.0.40
codegen_flags: <defaults>
</compile_context>

<pallas_src>
import jax
import jax.numpy as jnp
from jax import lax
from jax.experimental import pallas as pl
from jax.experimental.pallas import tpu as pltpu

# ----- synthetic (small) configuration consistent with the module defaults -----
B = 2            # batch
V = 256          # vertices (real model: 6890) - kept small per instructions
N_LAT = 16       # number of latent tokens produced by the conv encoder
EMB_DIM = 9      # embedding_dim (module default)
NUM_EMB = 512    # num_embeddings (module default)
COMMIT = 0.25    # commitment_cost (module default)

LAT = N_LAT * EMB_DIM   # 144
V3 = V * 3              # 768


# ----------------------------- fused Pallas kernel -----------------------------
def _mesh_vqvae_kernel(x_ref, w_enc_ref, b_enc_ref, e_ref, et_ref, e2_ref,
                       w_dec_ref, b_dec_ref,
                       recon_ref, stats_ref,
                       z_scr, q_scr):
    """Encoder -> VQ (nearest codebook, commitment loss, perplexity) -> Decoder,
    fully resident in VMEM."""
    f32 = jnp.float32
    bsz, lat = z_scr.shape
    n_tok = lat // EMB_DIM
    n_codes = e_ref.shape[0]
    m_tok = bsz * n_tok

    # ---- Encoder: z = x @ W_enc + b_enc (bf16 weights, f32 accumulation) ----
    x = x_ref[...]                                                   # (B, V*3) f32
    z = jnp.dot(x.astype(jnp.bfloat16), w_enc_ref[...],
                preferred_element_type=f32) + b_enc_ref[...]         # (B, N*D) f32
    z_scr[...] = z

    # ---- Vector quantization, one D-wide token lane-block at a time ----
    e = e_ref[...]                     # (K, D) f32  exact codebook rows (gather)
    e_t = et_ref[...]                  # (D, K) f32  hoisted transpose (distances)
    e2 = e2_ref[...]                   # (1, K) f32  hoisted ||e_k||^2
    probs = jnp.zeros((1, n_codes), f32)

    for n in range(n_tok):             # static unroll (N=16 tokens)
        lo = n * EMB_DIM
        hi = lo + EMB_DIM
        z_blk = z_scr[:, lo:hi]                                      # (B, D)
        # distance up to a per-row constant:  ||e||^2 - 2 * z.e
        xe = jnp.dot(z_blk, e_t, preferred_element_type=f32)         # (B, K)
        dist = e2 - 2.0 * xe
        # first-argmin over codes (matches torch.argmin tie-breaking)
        min_d = jnp.min(dist, axis=1, keepdims=True)                 # (B, 1)
        col = lax.broadcasted_iota(jnp.int32, dist.shape, 1)         # (B, K)
        idx = jnp.min(jnp.where(dist <= min_d, col, n_codes),
                      axis=1, keepdims=True)                         # (B, 1)
        onehot = (col == idx).astype(f32)                            # (B, K)
        probs = probs + jnp.sum(onehot, axis=0, keepdims=True)       # (1, K)
        # gather codebook rows: quantized = onehot @ codebook
        q_blk = jnp.dot(onehot, e, preferred_element_type=f32)       # (B, D)
        q_scr[:, lo:hi] = q_blk

    q = q_scr[...]                                                   # (B, N*D) f32

    # commitment loss = commitment_cost * mse(quantized, inputs)
    diff = q - z
    loss = (COMMIT / (bsz * lat)) * jnp.sum(diff * diff, keepdims=True)   # (1, 1)

    # perplexity = exp(-sum p log p), p = mean one-hot over tokens
    avg = probs * (1.0 / m_tok)                                      # (1, K)
    ent = jnp.sum(avg * jnp.log(avg + 1e-10), axis=1, keepdims=True) # (1, 1)
    perp = jnp.exp(-ent)

    # ---- Decoder: x_recon = q @ W_dec + b_dec (straight-through forward) ----
    recon_ref[...] = (
        jnp.dot(q.astype(jnp.bfloat16), w_dec_ref[...],
                preferred_element_type=f32) + b_dec_ref[...])

    # ---- merged scalar outputs: lane 0 = loss, lane 1 = perplexity ----
    lane = lax.broadcasted_iota(jnp.int32, stats_ref.shape, 1)       # (1, 128)
    stats_ref[...] = jnp.where(lane == 0, loss,
                               jnp.where(lane == 1, perp, 0.0))


# ------------------------------ wrapper ----------------------------------------
_VMEM = pl.BlockSpec(memory_space=pltpu.MemorySpace.VMEM)


@jax.jit
def mesh_vq_vae_forward(x, params):
    """MeshVQVAE.forward(x): returns (loss, x_recon, perplexity)."""
    bsz, v, c = x.shape
    x_flat = x.reshape(bsz, v * c).astype(jnp.float32)               # (B, V*3)

    # Hoisted codebook-side constants (computed once per call, outside the kernel).
    codebook = params["codebook"]                                    # (K, D) f32
    e_t = codebook.T                                                 # (D, K)
    e2 = jnp.sum(codebook * codebook, axis=1, keepdims=True).T       # (1, K)

    recon_flat, stats = pl.pallas_call(
        _mesh_vqvae_kernel,
        out_shape=(
            jax.ShapeDtypeStruct((bsz, v * c), jnp.float32),
            jax.ShapeDtypeStruct((1, 128), jnp.float32),
        ),
        in_specs=[_VMEM] * 8,
        out_specs=(_VMEM, _VMEM),
        scratch_shapes=[
            pltpu.VMEM((bsz, LAT), jnp.float32),   # z (encoder output)
            pltpu.VMEM((bsz, LAT), jnp.float32),   # quantized latents
        ],
        # TODO(synk): for the real V=6890 model, tile the V*3 weight axis with a
        # grid (dimension_semantics="parallel" to use both v7x TensorCores) and
        # set vmem_limit_bytes explicitly; v5e/v6e (128 MiB VMEM) can stay fully
        # resident.
    )(x_flat, params["w_enc"], params["b_enc"], codebook, e_t, e2,
      params["w_dec"], params["b_dec"])

    loss = stats[0, 0]
    perplexity = stats[0, 1]
    x_recon = recon_flat.reshape(bsz, v, c)
    return loss, x_recon, perplexity


def init_params(key):
    k_enc, k_cb, k_dec = jax.random.split(key, 3)
    in_dim = V3
    lat_dim = LAT
    return {
        # weights stored in bf16 (halves weight HBM traffic; f32 accumulation in-kernel)
        "w_enc": (jax.random.normal(k_enc, (in_dim, lat_dim), jnp.float32)
                  * (1.0 / jnp.sqrt(in_dim))).astype(jnp.bfloat16),
        "b_enc": jnp.zeros((1, lat_dim), jnp.float32),
        "codebook": jax.random.normal(k_cb, (NUM_EMB, EMB_DIM), jnp.float32),
        "w_dec": (jax.random.normal(k_dec, (lat_dim, in_dim), jnp.float32)
                  * (1.0 / jnp.sqrt(lat_dim))).astype(jnp.bfloat16),
        "b_dec": jnp.zeros((1, in_dim), jnp.float32),
    }


if __name__ == "__main__":
    key = jax.random.PRNGKey(0)
    pkey, xkey = jax.random.split(key)
    params = init_params(pkey)
    x = jax.random.normal(xkey, (B, V, 3), jnp.float32)

    loss, x_recon, perplexity = mesh_vq_vae_forward(x, params)
    jax.block_until_ready((loss, x_recon, perplexity))

    assert x_recon.shape == (B, V, 3)
    assert loss.shape == () and perplexity.shape == ()
    assert bool(jnp.isfinite(loss)) and bool(jnp.isfinite(perplexity))
    assert bool(jnp.all(jnp.isfinite(x_recon)))
    assert float(loss) >= 0.0
    assert 1.0 <= float(perplexity) <= float(NUM_EMB)
    print("KERNEL_OK")
</pallas_src>

<mosaic_0001>
module attributes {stable_mosaic.version = 11 : i64} {
  func.func @_mesh_vqvae_kernel(%arg0: memref<2x768xf32, #tpu.memory_space<vmem>>, %arg1: memref<768x144xbf16, #tpu.memory_space<vmem>>, %arg2: memref<1x144xf32, #tpu.memory_space<vmem>>, %arg3: memref<512x9xf32, #tpu.memory_space<vmem>>, %arg4: memref<9x512xf32, #tpu.memory_space<vmem>>, %arg5: memref<1x512xf32, #tpu.memory_space<vmem>>, %arg6: memref<144x768xbf16, #tpu.memory_space<vmem>>, %arg7: memref<1x768xf32, #tpu.memory_space<vmem>>, %arg8: memref<2x768xf32, #tpu.memory_space<vmem>>, %arg9: memref<1x128xf32, #tpu.memory_space<vmem>>, %arg10: memref<2x144xf32, #tpu.memory_space<vmem>>, %arg11: memref<2x144xf32, #tpu.memory_space<vmem>>) attributes {dimension_semantics = [], scalar_prefetch = 0 : i64, scratch_operands = 2 : i64, tpu.core_type = #tpu.core_type<tc>} {
    %c0 = arith.constant 0 : index
    %c0_0 = arith.constant 0 : index
    %0 = vector.load %arg0[%c0, %c0_0] : memref<2x768xf32, #tpu.memory_space<vmem>>, vector<2x768xf32>
    %1 = arith.truncf %0 : vector<2x768xf32> to vector<2x768xbf16>
    %c0_1 = arith.constant 0 : index
    %c0_2 = arith.constant 0 : index
    %2 = vector.load %arg1[%c0_1, %c0_2] : memref<768x144xbf16, #tpu.memory_space<vmem>>, vector<768x144xbf16>
    %cst = arith.constant dense<0.000000e+00> : vector<2x144xf32>
    %3 = tpu.matmul %1, %2, %cst {dimension_numbers = #tpu.dot_dimension_numbers<[1], [0], [0], [1], [0, 0, 1, 1], [], []>} : vector<2x768xbf16>, vector<768x144xbf16>, vector<2x144xf32> -> vector<2x144xf32>
    %c0_3 = arith.constant 0 : index
    %c0_4 = arith.constant 0 : index
    %4 = vector.load %arg2[%c0_3, %c0_4] : memref<1x144xf32, #tpu.memory_space<vmem>>, vector<1x144xf32>
    %5 = vector.broadcast %4 : vector<1x144xf32> to vector<2x144xf32>
    %6 = arith.addf %3, %5 : vector<2x144xf32>
    %c0_5 = arith.constant 0 : index
    %c0_6 = arith.constant 0 : index
    %7 = vector.load %arg10[%c0_5, %c0_6] : memref<2x144xf32, #tpu.memory_space<vmem>>, vector<2x144xf32>
    tpu.vector_store %arg10[%c0_5, %c0_6], %6 {strides = array<i32>} : memref<2x144xf32, #tpu.memory_space<vmem>>, vector<2x144xf32>,
    %c0_7 = arith.constant 0 : index
    %c0_8 = arith.constant 0 : index
    %8 = vector.load %arg3[%c0_7, %c0_8] : memref<512x9xf32, #tpu.memory_space<vmem>>, vector<512x9xf32>
    %c0_9 = arith.constant 0 : index
    %c0_10 = arith.constant 0 : index
    %9 = vector.load %arg4[%c0_9, %c0_10] : memref<9x512xf32, #tpu.memory_space<vmem>>, vector<9x512xf32>
    %c0_11 = arith.constant 0 : index
    %c0_12 = arith.constant 0 : index
    %10 = vector.load %arg5[%c0_11, %c0_12] : memref<1x512xf32, #tpu.memory_space<vmem>>, vector<1x512xf32>
    %cst_13 = arith.constant 0.000000e+00 : f32
    %11 = vector.broadcast %cst_13 : f32 to vector<1x512xf32>
    %c0_14 = arith.constant 0 : index
    %c0_15 = arith.constant 0 : index
    %12 = vector.load %arg10[%c0_14, %c0_15] : memref<2x144xf32, #tpu.memory_space<vmem>>, vector<2x9xf32>
    %cst_16 = arith.constant dense<0.000000e+00> : vector<2x512xf32>
    %13 = tpu.matmul %12, %9, %cst_16 {dimension_numbers = #tpu.dot_dimension_numbers<[1], [0], [0], [1], [0, 0, 1, 1], [], []>} : vector<2x9xf32>, vector<9x512xf32>, vector<2x512xf32> -> vector<2x512xf32>
    %cst_17 = arith.constant 2.000000e+00 : f32
    %14 = vector.broadcast %cst_17 : f32 to vector<2x512xf32>
    %15 = arith.mulf %14, %13 : vector<2x512xf32>
    %16 = vector.broadcast %10 : vector<1x512xf32> to vector<2x512xf32>
    %17 = arith.subf %16, %15 : vector<2x512xf32>
    %cst_18 = arith.constant dense<0x7F800000> : vector<2xf32>
    %18 = vector.multi_reduction <minimumf>, %17, %cst_18 [1] : vector<2x512xf32> to vector<2xf32>
    %19 = vector.shape_cast %18 : vector<2xf32> to vector<2x1xf32>
    %20 = tpu.iota {dimensions = array<i32: 1>} : vector<2x512xi32>
    %21 = vector.broadcast %19 : vector<2x1xf32> to vector<2x512xf32>
    %22 = arith.cmpf ole, %17, %21 : vector<2x512xf32>
    %c512_i32 = arith.constant 512 : i32
    %23 = vector.broadcast %c512_i32 : i32 to vector<2x512xi32>
    %24 = arith.select %22, %20, %23 : vector<2x512xi1>, vector<2x512xi32>
    %cst_19 = arith.constant dense<2147483647> : vector<2xi32>
    %25 = vector.multi_reduction <minsi>, %24, %cst_19 [1] : vector<2x512xi32> to vector<2xi32>
    %26 = vector.shape_cast %25 : vector<2xi32> to vector<2x1xi32>
    %27 = vector.broadcast %26 : vector<2x1xi32> to vector<2x512xi32>
    %28 = arith.cmpi eq, %20, %27 : vector<2x512xi32>
    %29 = arith.extui %28 : vector<2x512xi1> to vector<2x512xi32>
    %30 = arith.sitofp %29 : vector<2x512xi32> to vector<2x512xf32>
    %cst_20 = arith.constant dense<0.000000e+00> : vector<512xf32>
    %31 = vector.multi_reduction <add>, %30, %cst_20 [0] : vector<2x512xf32> to vector<512xf32>
    %32 = vector.shape_cast %31 : vector<512xf32> to vector<1x512xf32>
    %33 = arith.addf %11, %32 : vector<1x512xf32>
    %cst_21 = arith.constant dense<0.000000e+00> : vector<2x9xf32>
    %34 = tpu.matmul %30, %8, %cst_21 {dimension_numbers = #tpu.dot_dimension_numbers<[1], [0], [0], [1], [0, 0, 1, 1], [], []>} : vector<2x512xf32>, vector<512x9xf32>, vector<2x9xf32> -> vector<2x9xf32>
    %c0_22 = arith.constant 0 : index
    %c0_23 = arith.constant 0 : index
    %35 = vector.load %arg11[%c0_22, %c0_23] : memref<2x144xf32, #tpu.memory_space<vmem>>, vector<2x9xf32>
    tpu.vector_store %arg11[%c0_22, %c0_23], %34 {strides = array<i32>} : memref<2x144xf32, #tpu.memory_space<vmem>>, vector<2x9xf32>,
    %c0_24 = arith.constant 0 : index
    %c9 = arith.constant 9 : index
    %36 = vector.load %arg10[%c0_24, %c9] : memref<2x144xf32, #tpu.memory_space<vmem>>, vector<2x9xf32>
    %cst_25 = arith.constant dense<0.000000e+00> : vector<2x512xf32>
    %37 = tpu.matmul %36, %9, %cst_25 {dimension_numbers = #tpu.dot_dimension_numbers<[1], [0], [0], [1], [0, 0, 1, 1], [], []>} : vector<2x9xf32>, vector<9x512xf32>, vector<2x512xf32> -> vector<2x512xf32>
    %cst_26 = arith.constant 2.000000e+00 : f32
    %38 = vector.broadcast %cst_26 : f32 to vector<2x512xf32>
    %39 = arith.mulf %38, %37 : vector<2x512xf32>
    %40 = vector.broadcast %10 : vector<1x512xf32> to vector<2x512xf32>
    %41 = arith.subf %40, %39 : vector<2x512xf32>
    %cst_27 = arith.constant dense<0x7F800000> : vector<2xf32>
    %42 = vector.multi_reduction <minimumf>, %41, %cst_27 [1] : vector<2x512xf32> to vector<2xf32>
    %43 = vector.shape_cast %42 : vector<2xf32> to vector<2x1xf32>
    %44 = tpu.iota {dimensions = array<i32: 1>} : vector<2x512xi32>
    %45 = vector.broadcast %43 : vector<2x1xf32> to vector<2x512xf32>
    %46 = arith.cmpf ole, %41, %45 : vector<2x512xf32>
    %c512_i32_28 = arith.constant 512 : i32
    %47 = vector.broadcast %c512_i32_28 : i32 to vector<2x512xi32>
    %48 = arith.select %46, %44, %47 : vector<2x512xi1>, vector<2x512xi32>
    %cst_29 = arith.constant dense<2147483647> : vector<2xi32>
    %49 = vector.multi_reduction <minsi>, %48, %cst_29 [1] : vector<2x512xi32> to vector<2xi32>
    %50 = vector.shape_cast %49 : vector<2xi32> to vector<2x1xi32>
    %51 = vector.broadcast %50 : vector<2x1xi32> to vector<2x512xi32>
    %52 = arith.cmpi eq, %44, %51 : vector<2x512xi32>
    %53 = arith.extui %52 : vector<2x512xi1> to vector<2x512xi32>
    %54 = arith.sitofp %53 : vector<2x512xi32> to vector<2x512xf32>
    %cst_30 = arith.constant dense<0.000000e+00> : vector<512xf32>
    %55 = vector.multi_reduction <add>, %54, %cst_30 [0] : vector<2x512xf32> to vector<512xf32>
    %56 = vector.shape_cast %55 : vector<512xf32> to vector<1x512xf32>
    %57 = arith.addf %33, %56 : vector<1x512xf32>
    %cst_31 = arith.constant dense<0.000000e+00> : vector<2x9xf32>
    %58 = tpu.matmul %54, %8, %cst_31 {dimension_numbers = #tpu.dot_dimension_numbers<[1], [0], [0], [1], [0, 0, 1, 1], [], []>} : vector<2x512xf32>, vector<512x9xf32>, vector<2x9xf32> -> vector<2x9xf32>
    %c0_32 = arith.constant 0 : index
    %c9_33 = arith.constant 9 : index
    %59 = vector.load %arg11[%c0_32, %c9_33] : memref<2x144xf32, #tpu.memory_space<vmem>>, vector<2x9xf32>
    tpu.vector_store %arg11[%c0_32, %c9_33], %58 {strides = array<i32>} : memref<2x144xf32, #tpu.memory_space<vmem>>, vector<2x9xf32>,
    %c0_34 = arith.constant 0 : index
    %c18 = arith.constant 18 : index
    %60 = vector.load %arg10[%c0_34, %c18] : memref<2x144xf32, #tpu.memory_space<vmem>>, vector<2x9xf32>
    %cst_35 = arith.constant dense<0.000000e+00> : vector<2x512xf32>
    %61 = tpu.matmul %60, %9, %cst_35 {dimension_numbers = #tpu.dot_dimension_numbers<[1], [0], [0], [1], [0, 0, 1, 1], [], []>} : vector<2x9xf32>, vector<9x512xf32>, vector<2x512xf32> -> vector<2x512xf32>
    %cst_36 = arith.constant 2.000000e+00 : f32
    %62 = vector.broadcast %cst_36 : f32 to vector<2x512xf32>
    %63 = arith.mulf %62, %61 : vector<2x512xf32>
    %64 = vector.broadcast %10 : vector<1x512xf32> to vector<2x512xf32>
    %65 = arith.subf %64, %63 : vector<2x512xf32>
    %cst_37 = arith.constant dense<0x7F800000> : vector<2xf32>
    %66 = vector.multi_reduction <minimumf>, %65, %cst_37 [1] : vector<2x512xf32> to vector<2xf32>
    %67 = vector.shape_cast %66 : vector<2xf32> to vector<2x1xf32>
    %68 = tpu.iota {dimensions = array<i32: 1>} : vector<2x512xi32>
    %69 = vector.broadcast %67 : vector<2x1xf32> to vector<2x512xf32>
    %70 = arith.cmpf ole, %65, %69 : vector<2x512xf32>
    %c512_i32_38 = arith.constant 512 : i32
    %71 = vector.broadcast %c512_i32_38 : i32 to vector<2x512xi32>
    %72 = arith.select %70, %68, %71 : vector<2x512xi1>, vector<2x512xi32>
    %cst_39 = arith.constant dense<2147483647> : vector<2xi32>
    %73 = vector.multi_reduction <minsi>, %72, %cst_39 [1] : vector<2x512xi32> to vector<2xi32>
    %74 = vector.shape_cast %73 : vector<2xi32> to vector<2x1xi32>
    %75 = vector.broadcast %74 : vector<2x1xi32> to vector<2x512xi32>
    %76 = arith.cmpi eq, %68, %75 : vector<2x512xi32>
    %77 = arith.extui %76 : vector<2x512xi1> to vector<2x512xi32>
    %78 = arith.sitofp %77 : vector<2x512xi32> to vector<2x512xf32>
    %cst_40 = arith.constant dense<0.000000e+00> : vector<512xf32>
    %79 = vector.multi_reduction <add>, %78, %cst_40 [0] : vector<2x512xf32> to vector<512xf32>
    %80 = vector.shape_cast %79 : vector<512xf32> to vector<1x512xf32>
    %81 = arith.addf %57, %80 : vector<1x512xf32>
    %cst_41 = arith.constant dense<0.000000e+00> : vector<2x9xf32>
    %82 = tpu.matmul %78, %8, %cst_41 {dimension_numbers = #tpu.dot_dimension_numbers<[1], [0], [0], [1], [0, 0, 1, 1], [], []>} : vector<2x512xf32>, vector<512x9xf32>, vector<2x9xf32> -> vector<2x9xf32>
    %c0_42 = arith.constant 0 : index
    %c18_43 = arith.constant 18 : index
    %83 = vector.load %arg11[%c0_42, %c18_43] : memref<2x144xf32, #tpu.memory_space<vmem>>, vector<2x9xf32>
    tpu.vector_store %arg11[%c0_42, %c18_43], %82 {strides = array<i32>} : memref<2x144xf32, #tpu.memory_space<vmem>>, vector<2x9xf32>,
    %c0_44 = arith.constant 0 : index
    %c27 = arith.constant 27 : index
    %84 = vector.load %arg10[%c0_44, %c27] : memref<2x144xf32, #tpu.memory_space<vmem>>, vector<2x9xf32>
    %cst_45 = arith.constant dense<0.000000e+00> : vector<2x512xf32>
    %85 = tpu.matmul %84, %9, %cst_45 {dimension_numbers = #tpu.dot_dimension_numbers<[1], [0], [0], [1], [0, 0, 1, 1], [], []>} : vector<2x9xf32>, vector<9x512xf32>, vector<2x512xf32> -> vector<2x512xf32>
    %cst_46 = arith.constant 2.000000e+00 : f32
    %86 = vector.broadcast %cst_46 : f32 to vector<2x512xf32>
    %87 = arith.mulf %86, %85 : vector<2x512xf32>
    %88 = vector.broadcast %10 : vector<1x512xf32> to vector<2x512xf32>
    %89 = arith.subf %88, %87 : vector<2x512xf32>
    %cst_47 = arith.constant dense<0x7F800000> : vector<2xf32>
    %90 = vector.multi_reduction <minimumf>, %89, %cst_47 [1] : vector<2x512xf32> to vector<2xf32>
    %91 = vector.shape_cast %90 : vector<2xf32> to vector<2x1xf32>
    %92 = tpu.iota {dimensions = array<i32: 1>} : vector<2x512xi32>
    %93 = vector.broadcast %91 : vector<2x1xf32> to vector<2x512xf32>
    %94 = arith.cmpf ole, %89, %93 : vector<2x512xf32>
    %c512_i32_48 = arith.constant 512 : i32
    %95 = vector.broadcast %c512_i32_48 : i32 to vector<2x512xi32>
    %96 = arith.select %94, %92, %95 : vector<2x512xi1>, vector<2x512xi32>
    %cst_49 = arith.constant dense<2147483647> : vector<2xi32>
    %97 = vector.multi_reduction <minsi>, %96, %cst_49 [1] : vector<2x512xi32> to vector<2xi32>
    %98 = vector.shape_cast %97 : vector<2xi32> to vector<2x1xi32>
    %99 = vector.broadcast %98 : vector<2x1xi32> to vector<2x512xi32>
    %100 = arith.cmpi eq, %92, %99 : vector<2x512xi32>
    %101 = arith.extui %100 : vector<2x512xi1> to vector<2x512xi32>
    %102 = arith.sitofp %101 : vector<2x512xi32> to vector<2x512xf32>
    %cst_50 = arith.constant dense<0.000000e+00> : vector<512xf32>
    %103 = vector.multi_reduction <add>, %102, %cst_50 [0] : vector<2x512xf32> to vector<512xf32>
    %104 = vector.shape_cast %103 : vector<512xf32> to vector<1x512xf32>
    %105 = arith.addf %81, %104 : vector<1x512xf32>
    %cst_51 = arith.constant dense<0.000000e+00> : vector<2x9xf32>
    %106 = tpu.matmul %102, %8, %cst_51 {dimension_numbers = #tpu.dot_dimension_numbers<[1], [0], [0], [1], [0, 0, 1, 1], [], []>} : vector<2x512xf32>, vector<512x9xf32>, vector<2x9xf32> -> vector<2x9xf32>
    %c0_52 = arith.constant 0 : index
    %c27_53 = arith.constant 27 : index
    %107 = vector.load %arg11[%c0_52, %c27_53] : memref<2x144xf32, #tpu.memory_space<vmem>>, vector<2x9xf32>
    tpu.vector_store %arg11[%c0_52, %c27_53], %106 {strides = array<i32>} : memref<2x144xf32, #tpu.memory_space<vmem>>, vector<2x9xf32>,
    %c0_54 = arith.constant 0 : index
    %c36 = arith.constant 36 : index
    %108 = vector.load %arg10[%c0_54, %c36] : memref<2x144xf32, #tpu.memory_space<vmem>>, vector<2x9xf32>
    %cst_55 = arith.constant dense<0.000000e+00> : vector<2x512xf32>
    %109 = tpu.matmul %108, %9, %cst_55 {dimension_numbers = #tpu.dot_dimension_numbers<[1], [0], [0], [1], [0, 0, 1, 1], [], []>} : vector<2x9xf32>, vector<9x512xf32>, vector<2x512xf32> -> vector<2x512xf32>
    %cst_56 = arith.constant 2.000000e+00 : f32
    %110 = vector.broadcast %cst_56 : f32 to vector<2x512xf32>
    %111 = arith.mulf %110, %109 : vector<2x512xf32>
    %112 = vector.broadcast %10 : vector<1x512xf32> to vector<2x512xf32>
    %113 = arith.subf %112, %111 : vector<2x512xf32>
    %cst_57 = arith.constant dense<0x7F800000> : vector<2xf32>
    %114 = vector.multi_reduction <minimumf>, %113, %cst_57 [1] : vector<2x512xf32> to vector<2xf32>
    %115 = vector.shape_cast %114 : vector<2xf32> to vector<2x1xf32>
    %116 = tpu.iota {dimensions = array<i32: 1>} : vector<2x512xi32>
    %117 = vector.broadcast %115 : vector<2x1xf32> to vector<2x512xf32>
    %118 = arith.cmpf ole, %113, %117 : vector<2x512xf32>
    %c512_i32_58 = arith.constant 512 : i32
    %119 = vector.broadcast %c512_i32_58 : i32 to vector<2x512xi32>
    %120 = arith.select %118, %116, %119 : vector<2x512xi1>, vector<2x512xi32>
    %cst_59 = arith.constant dense<2147483647> : vector<2xi32>
    %121 = vector.multi_reduction <minsi>, %120, %cst_59 [1] : vector<2x512xi32> to vector<2xi32>
    %122 = vector.shape_cast %121 : vector<2xi32> to vector<2x1xi32>
    %123 = vector.broadcast %122 : vector<2x1xi32> to vector<2x512xi32>
    %124 = arith.cmpi eq, %116, %123 : vector<2x512xi32>
    %125 = arith.extui %124 : vector<2x512xi1> to vector<2x512xi32>
    %126 = arith.sitofp %125 : vector<2x512xi32> to vector<2x512xf32>
    %cst_60 = arith.constant dense<0.000000e+00> : vector<512xf32>
    %127 = vector.multi_reduction <add>, %126, %cst_60 [0] : vector<2x512xf32> to vector<512xf32>
    %128 = vector.shape_cast %127 : vector<512xf32> to vector<1x512xf32>
    %129 = arith.addf %105, %128 : vector<1x512xf32>
    %cst_61 = arith.constant dense<0.000000e+00> : vector<2x9xf32>
    %130 = tpu.matmul %126, %8, %cst_61 {dimension_numbers = #tpu.dot_dimension_numbers<[1], [0], [0], [1], [0, 0, 1, 1], [], []>} : vector<2x512xf32>, vector<512x9xf32>, vector<2x9xf32> -> vector<2x9xf32>
    %c0_62 = arith.constant 0 : index
    %c36_63 = arith.constant 36 : index
    %131 = vector.load %arg11[%c0_62, %c36_63] : memref<2x144xf32, #tpu.memory_space<vmem>>, vector<2x9xf32>
    tpu.vector_store %arg11[%c0_62, %c36_63], %130 {strides = array<i32>} : memref<2x144xf32, #tpu.memory_space<vmem>>, vector<2x9xf32>,
    %c0_64 = arith.constant 0 : index
    %c45 = arith.constant 45 : index
    %132 = vector.load %arg10[%c0_64, %c45] : memref<2x144xf32, #tpu.memory_space<vmem>>, vector<2x9xf32>
    %cst_65 = arith.constant dense<0.000000e+00> : vector<2x512xf32>
    %133 = tpu.matmul %132, %9, %cst_65 {dimension_numbers = #tpu.dot_dimension_numbers<[1], [0], [0], [1], [0, 0, 1, 1], [], []>} : vector<2x9xf32>, vector<9x512xf32>, vector<2x512xf32> -> vector<2x512xf32>
    %cst_66 = arith.constant 2.000000e+00 : f32
    %134 = vector.broadcast %cst_66 : f32 to vector<2x512xf32>
    %135 = arith.mulf %134, %133 : vector<2x512xf32>
    %136 = vector.broadcast %10 : vector<1x512xf32> to vector<2x512xf32>
    %137 = arith.subf %136, %135 : vector<2x512xf32>
    %cst_67 = arith.constant dense<0x7F800000> : vector<2xf32>
    %138 = vector.multi_reduction <minimumf>, %137, %cst_67 [1] : vector<2x512xf32> to vector<2xf32>
    %139 = vector.shape_cast %138 : vector<2xf32> to vector<2x1xf32>
    %140 = tpu.iota {dimensions = array<i32: 1>} : vector<2x512xi32>
    %141 = vector.broadcast %139 : vector<2x1xf32> to vector<2x512xf32>
    %142 = arith.cmpf ole, %137, %141 : vector<2x512xf32>
    %c512_i32_68 = arith.constant 512 : i32
    %143 = vector.broadcast %c512_i32_68 : i32 to vector<2x512xi32>
    %144 = arith.select %142, %140, %143 : vector<2x512xi1>, vector<2x512xi32>
    %cst_69 = arith.constant dense<2147483647> : vector<2xi32>
    %145 = vector.multi_reduction <minsi>, %144, %cst_69 [1] : vector<2x512xi32> to vector<2xi32>
    %146 = vector.shape_cast %145 : vector<2xi32> to vector<2x1xi32>
    %147 = vector.broadcast %146 : vector<2x1xi32> to vector<2x512xi32>
    %148 = arith.cmpi eq, %140, %147 : vector<2x512xi32>
    %149 = arith.extui %148 : vector<2x512xi1> to vector<2x512xi32>
    %150 = arith.sitofp %149 : vector<2x512xi32> to vector<2x512xf32>
    %cst_70 = arith.constant dense<0.000000e+00> : vector<512xf32>
    %151 = vector.multi_reduction <add>, %150, %cst_70 [0] : vector<2x512xf32> to vector<512xf32>
    %152 = vector.shape_cast %151 : vector<512xf32> to vector<1x512xf32>
    %153 = arith.addf %129, %152 : vector<1x512xf32>
    %cst_71 = arith.constant dense<0.000000e+00> : vector<2x9xf32>
    %154 = tpu.matmul %150, %8, %cst_71 {dimension_numbers = #tpu.dot_dimension_numbers<[1], [0], [0], [1], [0, 0, 1, 1], [], []>} : vector<2x512xf32>, vector<512x9xf32>, vector<2x9xf32> -> vector<2x9xf32>
    %c0_72 = arith.constant 0 : index
    %c45_73 = arith.constant 45 : index
    %155 = vector.load %arg11[%c0_72, %c45_73] : memref<2x144xf32, #tpu.memory_space<vmem>>, vector<2x9xf32>
    tpu.vector_store %arg11[%c0_72, %c45_73], %154 {strides = array<i32>} : memref<2x144xf32, #tpu.memory_space<vmem>>, vector<2x9xf32>,
    %c0_74 = arith.constant 0 : index
    %c54 = arith.constant 54 : index
    %156 = vector.load %arg10[%c0_74, %c54] : memref<2x144xf32, #tpu.memory_space<vmem>>, vector<2x9xf32>
    %cst_75 = arith.constant dense<0.000000e+00> : vector<2x512xf32>
    %157 = tpu.matmul %156, %9, %cst_75 {dimension_numbers = #tpu.dot_dimension_numbers<[1], [0], [0], [1], [0, 0, 1, 1], [], []>} : vector<2x9xf32>, vector<9x512xf32>, vector<2x512xf32> -> vector<2x512xf32>
    %cst_76 = arith.constant 2.000000e+00 : f32
    %158 = vector.broadcast %cst_76 : f32 to vector<2x512xf32>
    %159 = arith.mulf %158, %157 : vector<2x512xf32>
    %160 = vector.broadcast %10 : vector<1x512xf32> to vector<2x512xf32>
    %161 = arith.subf %160, %159 : vector<2x512xf32>
    %cst_77 = arith.constant dense<0x7F800000> : vector<2xf32>
    %162 = vector.multi_reduction <minimumf>, %161, %cst_77 [1] : vector<2x512xf32> to vector<2xf32>
    %163 = vector.shape_cast %162 : vector<2xf32> to vector<2x1xf32>
    %164 = tpu.iota {dimensions = array<i32: 1>} : vector<2x512xi32>
    %165 = vector.broadcast %163 : vector<2x1xf32> to vector<2x512xf32>
    %166 = arith.cmpf ole, %161, %165 : vector<2x512xf32>
    %c512_i32_78 = arith.constant 512 : i32
    %167 = vector.broadcast %c512_i32_78 : i32 to vector<2x512xi32>
    %168 = arith.select %166, %164, %167 : vector<2x512xi1>, vector<2x512xi32>
    %cst_79 = arith.constant dense<2147483647> : vector<2xi32>
    %169 = vector.multi_reduction <minsi>, %168, %cst_79 [1] : vector<2x512xi32> to vector<2xi32>
    %170 = vector.shape_cast %169 : vector<2xi32> to vector<2x1xi32>
    %171 = vector.broadcast %170 : vector<2x1xi32> to vector<2x512xi32>
    %172 = arith.cmpi eq, %164, %171 : vector<2x512xi32>
    %173 = arith.extui %172 : vector<2x512xi1> to vector<2x512xi32>
    %174 = arith.sitofp %173 : vector<2x512xi32> to vector<2x512xf32>
    %cst_80 = arith.constant dense<0.000000e+00> : vector<512xf32>
    %175 = vector.multi_reduction <add>, %174, %cst_80 [0] : vector<2x512xf32> to vector<512xf32>
    %176 = vector.shape_cast %175 : vector<512xf32> to vector<1x512xf32>
    %177 = arith.addf %153, %176 : vector<1x512xf32>
    %cst_81 = arith.constant dense<0.000000e+00> : vector<2x9xf32>
    %178 = tpu.matmul %174, %8, %cst_81 {dimension_numbers = #tpu.dot_dimension_numbers<[1], [0], [0], [1], [0, 0, 1, 1], [], []>} : vector<2x512xf32>, vector<512x9xf32>, vector<2x9xf32> -> vector<2x9xf32>
    %c0_82 = arith.constant 0 : index
    %c54_83 = arith.constant 54 : index
    %179 = vector.load %arg11[%c0_82, %c54_83] : memref<2x144xf32, #tpu.memory_space<vmem>>, vector<2x9xf32>
    tpu.vector_store %arg11[%c0_82, %c54_83], %178 {strides = array<i32>} : memref<2x144xf32, #tpu.memory_space<vmem>>, vector<2x9xf32>,
    %c0_84 = arith.constant 0 : index
    %c63 = arith.constant 63 : index
    %180 = vector.load %arg10[%c0_84, %c63] : memref<2x144xf32, #tpu.memory_space<vmem>>, vector<2x9xf32>
    %cst_85 = arith.constant dense<0.000000e+00> : vector<2x512xf32>
    %181 = tpu.matmul %180, %9, %cst_85 {dimension_numbers = #tpu.dot_dimension_numbers<[1], [0], [0], [1], [0, 0, 1, 1], [], []>} : vector<2x9xf32>, vector<9x512xf32>, vector<2x512xf32> -> vector<2x512xf32>
    %cst_86 = arith.constant 2.000000e+00 : f32
    %182 = vector.broadcast %cst_86 : f32 to vector<2x512xf32>
    %183 = arith.mulf %182, %181 : vector<2x512xf32>
    %184 = vector.broadcast %10 : vector<1x512xf32> to vector<2x512xf32>
    %185 = arith.subf %184, %183 : vector<2x512xf32>
    %cst_87 = arith.constant dense<0x7F800000> : vector<2xf32>
    %186 = vector.multi_reduction <minimumf>, %185, %cst_87 [1] : vector<2x512xf32> to vector<2xf32>
    %187 = vector.shape_cast %186 : vector<2xf32> to vector<2x1xf32>
    %188 = tpu.iota {dimensions = array<i32: 1>} : vector<2x512xi32>
    %189 = vector.broadcast %187 : vector<2x1xf32> to vector<2x512xf32>
    %190 = arith.cmpf ole, %185, %189 : vector<2x512xf32>
    %c512_i32_88 = arith.constant 512 : i32
    %191 = vector.broadcast %c512_i32_88 : i32 to vector<2x512xi32>
    %192 = arith.select %190, %188, %191 : vector<2x512xi1>, vector<2x512xi32>
    %cst_89 = arith.constant dense<2147483647> : vector<2xi32>
    %193 = vector.multi_reduction <minsi>, %192, %cst_89 [1] : vector<2x512xi32> to vector<2xi32>
    %194 = vector.shape_cast %193 : vector<2xi32> to vector<2x1xi32>
    %195 = vector.broadcast %194 : vector<2x1xi32> to vector<2x512xi32>
    %196 = arith.cmpi eq, %188, %195 : vector<2x512xi32>
    %197 = arith.extui %196 : vector<2x512xi1> to vector<2x512xi32>
    %198 = arith.sitofp %197 : vector<2x512xi32> to vector<2x512xf32>
    %cst_90 = arith.constant dense<0.000000e+00> : vector<512xf32>
    %199 = vector.multi_reduction <add>, %198, %cst_90 [0] : vector<2x512xf32> to vector<512xf32>
    %200 = vector.shape_cast %199 : vector<512xf32> to vector<1x512xf32>
    %201 = arith.addf %177, %200 : vector<1x512xf32>
    %cst_91 = arith.constant dense<0.000000e+00> : vector<2x9xf32>
    %202 = tpu.matmul %198, %8, %cst_91 {dimension_numbers = #tpu.dot_dimension_numbers<[1], [0], [0], [1], [0, 0, 1, 1], [], []>} : vector<2x512xf32>, vector<512x9xf32>, vector<2x9xf32> -> vector<2x9xf32>
    %c0_92 = arith.constant 0 : index
    %c63_93 = arith.constant 63 : index
    %203 = vector.load %arg11[%c0_92, %c63_93] : memref<2x144xf32, #tpu.memory_space<vmem>>, vector<2x9xf32>
    tpu.vector_store %arg11[%c0_92, %c63_93], %202 {strides = array<i32>} : memref<2x144xf32, #tpu.memory_space<vmem>>, vector<2x9xf32>,
    %c0_94 = arith.constant 0 : index
    %c72 = arith.constant 72 : index
    %204 = vector.load %arg10[%c0_94, %c72] : memref<2x144xf32, #tpu.memory_space<vmem>>, vector<2x9xf32>
    %cst_95 = arith.constant dense<0.000000e+00> : vector<2x512xf32>
    %205 = tpu.matmul %204, %9, %cst_95 {dimension_numbers = #tpu.dot_dimension_numbers<[1], [0], [0], [1], [0, 0, 1, 1], [], []>} : vector<2x9xf32>, vector<9x512xf32>, vector<2x512xf32> -> vector<2x512xf32>
    %cst_96 = arith.constant 2.000000e+00 : f32
    %206 = vector.broadcast %cst_96 : f32 to vector<2x512xf32>
    %207 = arith.mulf %206, %205 : vector<2x512xf32>
    %208 = vector.broadcast %10 : vector<1x512xf32> to vector<2x512xf32>
    %209 = arith.subf %208, %207 : vector<2x512xf32>
    %cst_97 = arith.constant dense<0x7F800000> : vector<2xf32>
    %210 = vector.multi_reduction <minimumf>, %209, %cst_97 [1] : vector<2x512xf32> to vector<2xf32>
    %211 = vector.shape_cast %210 : vector<2xf32> to vector<2x1xf32>
    %212 = tpu.iota {dimensions = array<i32: 1>} : vector<2x512xi32>
    %213 = vector.broadcast %211 : vector<2x1xf32> to vector<2x512xf32>
    %214 = arith.cmpf ole, %209, %213 : vector<2x512xf32>
    %c512_i32_98 = arith.constant 512 : i32
    %215 = vector.broadcast %c512_i32_98 : i32 to vector<2x512xi32>
    %216 = arith.select %214, %212, %215 : vector<2x512xi1>, vector<2x512xi32>
    %cst_99 = arith.constant dense<2147483647> : vector<2xi32>
    %217 = vector.multi_reduction <minsi>, %216, %cst_99 [1] : vector<2x512xi32> to vector<2xi32>
    %218 = vector.shape_cast %217 : vector<2xi32> to vector<2x1xi32>
    %219 = vector.broadcast %218 : vector<2x1xi32> to vector<2x512xi32>
    %220 = arith.cmpi eq, %212, %219 : vector<2x512xi32>
    %221 = arith.extui %220 : vector<2x512xi1> to vector<2x512xi32>
    %222 = arith.sitofp %221 : vector<2x512xi32> to vector<2x512xf32>
    %cst_100 = arith.constant dense<0.000000e+00> : vector<512xf32>
    %223 = vector.multi_reduction <add>, %222, %cst_100 [0] : vector<2x512xf32> to vector<512xf32>
    %224 = vector.shape_cast %223 : vector<512xf32> to vector<1x512xf32>
    %225 = arith.addf %201, %224 : vector<1x512xf32>
    %cst_101 = arith.constant dense<0.000000e+00> : vector<2x9xf32>
    %226 = tpu.matmul %222, %8, %cst_101 {dimension_numbers = #tpu.dot_dimension_numbers<[1], [0], [0], [1], [0, 0, 1, 1], [], []>} : vector<2x512xf32>, vector<512x9xf32>, vector<2x9xf32> -> vector<2x9xf32>
    %c0_102 = arith.constant 0 : index
    %c72_103 = arith.constant 72 : index
    %227 = vector.load %arg11[%c0_102, %c72_103] : memref<2x144xf32, #tpu.memory_space<vmem>>, vector<2x9xf32>
    tpu.vector_store %arg11[%c0_102, %c72_103], %226 {strides = array<i32>} : memref<2x144xf32, #tpu.memory_space<vmem>>, vector<2x9xf32>,
    %c0_104 = arith.constant 0 : index
    %c81 = arith.constant 81 : index
    %228 = vector.load %arg10[%c0_104, %c81] : memref<2x144xf32, #tpu.memory_space<vmem>>, vector<2x9xf32>
    %cst_105 = arith.constant dense<0.000000e+00> : vector<2x512xf32>
    %229 = tpu.matmul %228, %9, %cst_105 {dimension_numbers = #tpu.dot_dimension_numbers<[1], [0], [0], [1], [0, 0, 1, 1], [], []>} : vector<2x9xf32>, vector<9x512xf32>, vector<2x512xf32> -> vector<2x512xf32>
    %cst_106 = arith.constant 2.000000e+00 : f32
    %230 = vector.broadcast %cst_106 : f32 to vector<2x512xf32>
    %231 = arith.mulf %230, %229 : vector<2x512xf32>
    %232 = vector.broadcast %10 : vector<1x512xf32> to vector<2x512xf32>
    %233 = arith.subf %232, %231 : vector<2x512xf32>
    %cst_107 = arith.constant dense<0x7F800000> : vector<2xf32>
    %234 = vector.multi_reduction <minimumf>, %233, %cst_107 [1] : vector<2x512xf32> to vector<2xf32>
    %235 = vector.shape_cast %234 : vector<2xf32> to vector<2x1xf32>
    %236 = tpu.iota {dimensions = array<i32: 1>} : vector<2x512xi32>
    %237 = vector.broadcast %235 : vector<2x1xf32> to vector<2x512xf32>
    %238 = arith.cmpf ole, %233, %237 : vector<2x512xf32>
    %c512_i32_108 = arith.constant 512 : i32
    %239 = vector.broadcast %c512_i32_108 : i32 to vector<2x512xi32>
    %240 = arith.select %238, %236, %239 : vector<2x512xi1>, vector<2x512xi32>
    %cst_109 = arith.constant dense<2147483647> : vector<2xi32>
    %241 = vector.multi_reduction <minsi>, %240, %cst_109 [1] : vector<2x512xi32> to vector<2xi32>
    %242 = vector.shape_cast %241 : vector<2xi32> to vector<2x1xi32>
    %243 = vector.broadcast %242 : vector<2x1xi32> to vector<2x512xi32>
    %244 = arith.cmpi eq, %236, %243 : vector<2x512xi32>
    %245 = arith.extui %244 : vector<2x512xi1> to vector<2x512xi32>
    %246 = arith.sitofp %245 : vector<2x512xi32> to vector<2x512xf32>
    %cst_110 = arith.constant dense<0.000000e+00> : vector<512xf32>
    %247 = vector.multi_reduction <add>, %246, %cst_110 [0] : vector<2x512xf32> to vector<512xf32>
    %248 = vector.shape_cast %247 : vector<512xf32> to vector<1x512xf32>
    %249 = arith.addf %225, %248 : vector<1x512xf32>
    %cst_111 = arith.constant dense<0.000000e+00> : vector<2x9xf32>
    %250 = tpu.matmul %246, %8, %cst_111 {dimension_numbers = #tpu.dot_dimension_numbers<[1], [0], [0], [1], [0, 0, 1, 1], [], []>} : vector<2x512xf32>, vector<512x9xf32>, vector<2x9xf32> -> vector<2x9xf32>
    %c0_112 = arith.constant 0 : index
    %c81_113 = arith.constant 81 : index
    %251 = vector.load %arg11[%c0_112, %c81_113] : memref<2x144xf32, #tpu.memory_space<vmem>>, vector<2x9xf32>
    tpu.vector_store %arg11[%c0_112, %c81_113], %250 {strides = array<i32>} : memref<2x144xf32, #tpu.memory_space<vmem>>, vector<2x9xf32>,
    %c0_114 = arith.constant 0 : index
    %c90 = arith.constant 90 : index
    %252 = vector.load %arg10[%c0_114, %c90] : memref<2x144xf32, #tpu.memory_space<vmem>>, vector<2x9xf32>
    %cst_115 = arith.constant dense<0.000000e+00> : vector<2x512xf32>
    %253 = tpu.matmul %252, %9, %cst_115 {dimension_numbers = #tpu.dot_dimension_numbers<[1], [0], [0], [1], [0, 0, 1, 1], [], []>} : vector<2x9xf32>, vector<9x512xf32>, vector<2x512xf32> -> vector<2x512xf32>
    %cst_116 = arith.constant 2.000000e+00 : f32
    %254 = vector.broadcast %cst_116 : f32 to vector<2x512xf32>
    %255 = arith.mulf %254, %253 : vector<2x512xf32>
    %256 = vector.broadcast %10 : vector<1x512xf32> to vector<2x512xf32>
    %257 = arith.subf %256, %255 : vector<2x512xf32>
    %cst_117 = arith.constant dense<0x7F800000> : vector<2xf32>
    %258 = vector.multi_reduction <minimumf>, %257, %cst_117 [1] : vector<2x512xf32> to vector<2xf32>
    %259 = vector.shape_cast %258 : vector<2xf32> to vector<2x1xf32>
    %260 = tpu.iota {dimensions = array<i32: 1>} : vector<2x512xi32>
    %261 = vector.broadcast %259 : vector<2x1xf32> to vector<2x512xf32>
    %262 = arith.cmpf ole, %257, %261 : vector<2x512xf32>
    %c512_i32_118 = arith.constant 512 : i32
    %263 = vector.broadcast %c512_i32_118 : i32 to vector<2x512xi32>
    %264 = arith.select %262, %260, %263 : vector<2x512xi1>, vector<2x512xi32>
    %cst_119 = arith.constant dense<2147483647> : vector<2xi32>
    %265 = vector.multi_reduction <minsi>, %264, %cst_119 [1] : vector<2x512xi32> to vector<2xi32>
    %266 = vector.shape_cast %265 : vector<2xi32> to vector<2x1xi32>
    %267 = vector.broadcast %266 : vector<2x1xi32> to vector<2x512xi32>
    %268 = arith.cmpi eq, %260, %267 : vector<2x512xi32>
    %269 = arith.extui %268 : vector<2x512xi1> to vector<2x512xi32>
    %270 = arith.sitofp %269 : vector<2x512xi32> to vector<2x512xf32>
    %cst_120 = arith.constant dense<0.000000e+00> : vector<512xf32>
    %271 = vector.multi_reduction <add>, %270, %cst_120 [0] : vector<2x512xf32> to vector<512xf32>
    %272 = vector.shape_cast %271 : vector<512xf32> to vector<1x512xf32>
    %273 = arith.addf %249, %272 : vector<1x512xf32>
    %cst_121 = arith.constant dense<0.000000e+00> : vector<2x9xf32>
    %274 = tpu.matmul %270, %8, %cst_121 {dimension_numbers = #tpu.dot_dimension_numbers<[1], [0], [0], [1], [0, 0, 1, 1], [], []>} : vector<2x512xf32>, vector<512x9xf32>, vector<2x9xf32> -> vector<2x9xf32>
    %c0_122 = arith.constant 0 : index
    %c90_123 = arith.constant 90 : index
    %275 = vector.load %arg11[%c0_122, %c90_123] : memref<2x144xf32, #tpu.memory_space<vmem>>, vector<2x9xf32>
    tpu.vector_store %arg11[%c0_122, %c90_123], %274 {strides = array<i32>} : memref<2x144xf32, #tpu.memory_space<vmem>>, vector<2x9xf32>,
    %c0_124 = arith.constant 0 : index
    %c99 = arith.constant 99 : index
    %276 = vector.load %arg10[%c0_124, %c99] : memref<2x144xf32, #tpu.memory_space<vmem>>, vector<2x9xf32>
    %cst_125 = arith.constant dense<0.000000e+00> : vector<2x512xf32>
    %277 = tpu.matmul %276, %9, %cst_125 {dimension_numbers = #tpu.dot_dimension_numbers<[1], [0], [0], [1], [0, 0, 1, 1], [], []>} : vector<2x9xf32>, vector<9x512xf32>, vector<2x512xf32> -> vector<2x512xf32>
    %cst_126 = arith.constant 2.000000e+00 : f32
    %278 = vector.broadcast %cst_126 : f32 to vector<2x512xf32>
    %279 = arith.mulf %278, %277 : vector<2x512xf32>
    %280 = vector.broadcast %10 : vector<1x512xf32> to vector<2x512xf32>
    %281 = arith.subf %280, %279 : vector<2x512xf32>
    %cst_127 = arith.constant dense<0x7F800000> : vector<2xf32>
    %282 = vector.multi_reduction <minimumf>, %281, %cst_127 [1] : vector<2x512xf32> to vector<2xf32>
    %283 = vector.shape_cast %282 : vector<2xf32> to vector<2x1xf32>
    %284 = tpu.iota {dimensions = array<i32: 1>} : vector<2x512xi32>
    %285 = vector.broadcast %283 : vector<2x1xf32> to vector<2x512xf32>
    %286 = arith.cmpf ole, %281, %285 : vector<2x512xf32>
    %c512_i32_128 = arith.constant 512 : i32
    %287 = vector.broadcast %c512_i32_128 : i32 to vector<2x512xi32>
    %288 = arith.select %286, %284, %287 : vector<2x512xi1>, vector<2x512xi32>
    %cst_129 = arith.constant dense<2147483647> : vector<2xi32>
    %289 = vector.multi_reduction <minsi>, %288, %cst_129 [1] : vector<2x512xi32> to vector<2xi32>
    %290 = vector.shape_cast %289 : vector<2xi32> to vector<2x1xi32>
    %291 = vector.broadcast %290 : vector<2x1xi32> to vector<2x512xi32>
    %292 = arith.cmpi eq, %284, %291 : vector<2x512xi32>
    %293 = arith.extui %292 : vector<2x512xi1> to vector<2x512xi32>
    %294 = arith.sitofp %293 : vector<2x512xi32> to vector<2x512xf32>
    %cst_130 = arith.constant dense<0.000000e+00> : vector<512xf32>
    %295 = vector.multi_reduction <add>, %294, %cst_130 [0] : vector<2x512xf32> to vector<512xf32>
    %296 = vector.shape_cast %295 : vector<512xf32> to vector<1x512xf32>
    %297 = arith.addf %273, %296 : vector<1x512xf32>
    %cst_131 = arith.constant dense<0.000000e+00> : vector<2x9xf32>
    %298 = tpu.matmul %294, %8, %cst_131 {dimension_numbers = #tpu.dot_dimension_numbers<[1], [0], [0], [1], [0, 0, 1, 1], [], []>} : vector<2x512xf32>, vector<512x9xf32>, vector<2x9xf32> -> vector<2x9xf32>
    %c0_132 = arith.constant 0 : index
    %c99_133 = arith.constant 99 : index
    %299 = vector.load %arg11[%c0_132, %c99_133] : memref<2x144xf32, #tpu.memory_space<vmem>>, vector<2x9xf32>
    tpu.vector_store %arg11[%c0_132, %c99_133], %298 {strides = array<i32>} : memref<2x144xf32, #tpu.memory_space<vmem>>, vector<2x9xf32>,
    %c0_134 = arith.constant 0 : index
    %c108 = arith.constant 108 : index
    %300 = vector.load %arg10[%c0_134, %c108] : memref<2x144xf32, #tpu.memory_space<vmem>>, vector<2x9xf32>
    %cst_135 = arith.constant dense<0.000000e+00> : vector<2x512xf32>
    %301 = tpu.matmul %300, %9, %cst_135 {dimension_numbers = #tpu.dot_dimension_numbers<[1], [0], [0], [1], [0, 0, 1, 1], [], []>} : vector<2x9xf32>, vector<9x512xf32>, vector<2x512xf32> -> vector<2x512xf32>
    %cst_136 = arith.constant 2.000000e+00 : f32
    %302 = vector.broadcast %cst_136 : f32 to vector<2x512xf32>
    %303 = arith.mulf %302, %301 : vector<2x512xf32>
    %304 = vector.broadcast %10 : vector<1x512xf32> to vector<2x512xf32>
    %305 = arith.subf %304, %303 : vector<2x512xf32>
    %cst_137 = arith.constant dense<0x7F800000> : vector<2xf32>
    %306 = vector.multi_reduction <minimumf>, %305, %cst_137 [1] : vector<2x512xf32> to vector<2xf32>
    %307 = vector.shape_cast %306 : vector<2xf32> to vector<2x1xf32>
    %308 = tpu.iota {dimensions = array<i32: 1>} : vector<2x512xi32>
    %309 = vector.broadcast %307 : vector<2x1xf32> to vector<2x512xf32>
    %310 = arith.cmpf ole, %305, %309 : vector<2x512xf32>
    %c512_i32_138 = arith.constant 512 : i32
    %311 = vector.broadcast %c512_i32_138 : i32 to vector<2x512xi32>
    %312 = arith.select %310, %308, %311 : vector<2x512xi1>, vector<2x512xi32>
    %cst_139 = arith.constant dense<2147483647> : vector<2xi32>
    %313 = vector.multi_reduction <minsi>, %312, %cst_139 [1] : vector<2x512xi32> to vector<2xi32>
    %314 = vector.shape_cast %313 : vector<2xi32> to vector<2x1xi32>
    %315 = vector.broadcast %314 : vector<2x1xi32> to vector<2x512xi32>
    %316 = arith.cmpi eq, %308, %315 : vector<2x512xi32>
    %317 = arith.extui %316 : vector<2x512xi1> to vector<2x512xi32>
    %318 = arith.sitofp %317 : vector<2x512xi32> to vector<2x512xf32>
    %cst_140 = arith.constant dense<0.000000e+00> : vector<512xf32>
    %319 = vector.multi_reduction <add>, %318, %cst_140 [0] : vector<2x512xf32> to vector<512xf32>
    %320 = vector.shape_cast %319 : vector<512xf32> to vector<1x512xf32>
    %321 = arith.addf %297, %320 : vector<1x512xf32>
    %cst_141 = arith.constant dense<0.000000e+00> : vector<2x9xf32>
    %322 = tpu.matmul %318, %8, %cst_141 {dimension_numbers = #tpu.dot_dimension_numbers<[1], [0], [0], [1], [0, 0, 1, 1], [], []>} : vector<2x512xf32>, vector<512x9xf32>, vector<2x9xf32> -> vector<2x9xf32>
    %c0_142 = arith.constant 0 : index
    %c108_143 = arith.constant 108 : index
    %323 = vector.load %arg11[%c0_142, %c108_143] : memref<2x144xf32, #tpu.memory_space<vmem>>, vector<2x9xf32>
    tpu.vector_store %arg11[%c0_142, %c108_143], %322 {strides = array<i32>} : memref<2x144xf32, #tpu.memory_space<vmem>>, vector<2x9xf32>,
    %c0_144 = arith.constant 0 : index
    %c117 = arith.constant 117 : index
    %324 = vector.load %arg10[%c0_144, %c117] : memref<2x144xf32, #tpu.memory_space<vmem>>, vector<2x9xf32>
    %cst_145 = arith.constant dense<0.000000e+00> : vector<2x512xf32>
    %325 = tpu.matmul %324, %9, %cst_145 {dimension_numbers = #tpu.dot_dimension_numbers<[1], [0], [0], [1], [0, 0, 1, 1], [], []>} : vector<2x9xf32>, vector<9x512xf32>, vector<2x512xf32> -> vector<2x512xf32>
    %cst_146 = arith.constant 2.000000e+00 : f32
    %326 = vector.broadcast %cst_146 : f32 to vector<2x512xf32>
    %327 = arith.mulf %326, %325 : vector<2x512xf32>
    %328 = vector.broadcast %10 : vector<1x512xf32> to vector<2x512xf32>
    %329 = arith.subf %328, %327 : vector<2x512xf32>
    %cst_147 = arith.constant dense<0x7F800000> : vector<2xf32>
    %330 = vector.multi_reduction <minimumf>, %329, %cst_147 [1] : vector<2x512xf32> to vector<2xf32>
    %331 = vector.shape_cast %330 : vector<2xf32> to vector<2x1xf32>
    %332 = tpu.iota {dimensions = array<i32: 1>} : vector<2x512xi32>
    %333 = vector.broadcast %331 : vector<2x1xf32> to vector<2x512xf32>
    %334 = arith.cmpf ole, %329, %333 : vector<2x512xf32>
    %c512_i32_148 = arith.constant 512 : i32
    %335 = vector.broadcast %c512_i32_148 : i32 to vector<2x512xi32>
    %336 = arith.select %334, %332, %335 : vector<2x512xi1>, vector<2x512xi32>
    %cst_149 = arith.constant dense<2147483647> : vector<2xi32>
    %337 = vector.multi_reduction <minsi>, %336, %cst_149 [1] : vector<2x512xi32> to vector<2xi32>
    %338 = vector.shape_cast %337 : vector<2xi32> to vector<2x1xi32>
    %339 = vector.broadcast %338 : vector<2x1xi32> to vector<2x512xi32>
    %340 = arith.cmpi eq, %332, %339 : vector<2x512xi32>
    %341 = arith.extui %340 : vector<2x512xi1> to vector<2x512xi32>
    %342 = arith.sitofp %341 : vector<2x512xi32> to vector<2x512xf32>
    %cst_150 = arith.constant dense<0.000000e+00> : vector<512xf32>
    %343 = vector.multi_reduction <add>, %342, %cst_150 [0] : vector<2x512xf32> to vector<512xf32>
    %344 = vector.shape_cast %343 : vector<512xf32> to vector<1x512xf32>
    %345 = arith.addf %321, %344 : vector<1x512xf32>
    %cst_151 = arith.constant dense<0.000000e+00> : vector<2x9xf32>
    %346 = tpu.matmul %342, %8, %cst_151 {dimension_numbers = #tpu.dot_dimension_numbers<[1], [0], [0], [1], [0, 0, 1, 1], [], []>} : vector<2x512xf32>, vector<512x9xf32>, vector<2x9xf32> -> vector<2x9xf32>
    %c0_152 = arith.constant 0 : index
    %c117_153 = arith.constant 117 : index
    %347 = vector.load %arg11[%c0_152, %c117_153] : memref<2x144xf32, #tpu.memory_space<vmem>>, vector<2x9xf32>
    tpu.vector_store %arg11[%c0_152, %c117_153], %346 {strides = array<i32>} : memref<2x144xf32, #tpu.memory_space<vmem>>, vector<2x9xf32>,
    %c0_154 = arith.constant 0 : index
    %c126 = arith.constant 126 : index
    %348 = vector.load %arg10[%c0_154, %c126] : memref<2x144xf32, #tpu.memory_space<vmem>>, vector<2x9xf32>
    %cst_155 = arith.constant dense<0.000000e+00> : vector<2x512xf32>
    %349 = tpu.matmul %348, %9, %cst_155 {dimension_numbers = #tpu.dot_dimension_numbers<[1], [0], [0], [1], [0, 0, 1, 1], [], []>} : vector<2x9xf32>, vector<9x512xf32>, vector<2x512xf32> -> vector<2x512xf32>
    %cst_156 = arith.constant 2.000000e+00 : f32
    %350 = vector.broadcast %cst_156 : f32 to vector<2x512xf32>
    %351 = arith.mulf %350, %349 : vector<2x512xf32>
    %352 = vector.broadcast %10 : vector<1x512xf32> to vector<2x512xf32>
    %353 = arith.subf %352, %351 : vector<2x512xf32>
    %cst_157 = arith.constant dense<0x7F800000> : vector<2xf32>
    %354 = vector.multi_reduction <minimumf>, %353, %cst_157 [1] : vector<2x512xf32> to vector<2xf32>
    %355 = vector.shape_cast %354 : vector<2xf32> to vector<2x1xf32>
    %356 = tpu.iota {dimensions = array<i32: 1>} : vector<2x512xi32>
    %357 = vector.broadcast %355 : vector<2x1xf32> to vector<2x512xf32>
    %358 = arith.cmpf ole, %353, %357 : vector<2x512xf32>
    %c512_i32_158 = arith.constant 512 : i32
    %359 = vector.broadcast %c512_i32_158 : i32 to vector<2x512xi32>
    %360 = arith.select %358, %356, %359 : vector<2x512xi1>, vector<2x512xi32>
    %cst_159 = arith.constant dense<2147483647> : vector<2xi32>
    %361 = vector.multi_reduction <minsi>, %360, %cst_159 [1] : vector<2x512xi32> to vector<2xi32>
    %362 = vector.shape_cast %361 : vector<2xi32> to vector<2x1xi32>
    %363 = vector.broadcast %362 : vector<2x1xi32> to vector<2x512xi32>
    %364 = arith.cmpi eq, %356, %363 : vector<2x512xi32>
    %365 = arith.extui %364 : vector<2x512xi1> to vector<2x512xi32>
    %366 = arith.sitofp %365 : vector<2x512xi32> to vector<2x512xf32>
    %cst_160 = arith.constant dense<0.000000e+00> : vector<512xf32>
    %367 = vector.multi_reduction <add>, %366, %cst_160 [0] : vector<2x512xf32> to vector<512xf32>
    %368 = vector.shape_cast %367 : vector<512xf32> to vector<1x512xf32>
    %369 = arith.addf %345, %368 : vector<1x512xf32>
    %cst_161 = arith.constant dense<0.000000e+00> : vector<2x9xf32>
    %370 = tpu.matmul %366, %8, %cst_161 {dimension_numbers = #tpu.dot_dimension_numbers<[1], [0], [0], [1], [0, 0, 1, 1], [], []>} : vector<2x512xf32>, vector<512x9xf32>, vector<2x9xf32> -> vector<2x9xf32>
    %c0_162 = arith.constant 0 : index
    %c126_163 = arith.constant 126 : index
    %371 = vector.load %arg11[%c0_162, %c126_163] : memref<2x144xf32, #tpu.memory_space<vmem>>, vector<2x9xf32>
    tpu.vector_store %arg11[%c0_162, %c126_163], %370 {strides = array<i32>} : memref<2x144xf32, #tpu.memory_space<vmem>>, vector<2x9xf32>,
    %c0_164 = arith.constant 0 : index
    %c135 = arith.constant 135 : index
    %372 = vector.load %arg10[%c0_164, %c135] : memref<2x144xf32, #tpu.memory_space<vmem>>, vector<2x9xf32>
    %cst_165 = arith.constant dense<0.000000e+00> : vector<2x512xf32>
    %373 = tpu.matmul %372, %9, %cst_165 {dimension_numbers = #tpu.dot_dimension_numbers<[1], [0], [0], [1], [0, 0, 1, 1], [], []>} : vector<2x9xf32>, vector<9x512xf32>, vector<2x512xf32> -> vector<2x512xf32>
    %cst_166 = arith.constant 2.000000e+00 : f32
    %374 = vector.broadcast %cst_166 : f32 to vector<2x512xf32>
    %375 = arith.mulf %374, %373 : vector<2x512xf32>
    %376 = vector.broadcast %10 : vector<1x512xf32> to vector<2x512xf32>
    %377 = arith.subf %376, %375 : vector<2x512xf32>
    %cst_167 = arith.constant dense<0x7F800000> : vector<2xf32>
    %378 = vector.multi_reduction <minimumf>, %377, %cst_167 [1] : vector<2x512xf32> to vector<2xf32>
    %379 = vector.shape_cast %378 : vector<2xf32> to vector<2x1xf32>
    %380 = tpu.iota {dimensions = array<i32: 1>} : vector<2x512xi32>
    %381 = vector.broadcast %379 : vector<2x1xf32> to vector<2x512xf32>
    %382 = arith.cmpf ole, %377, %381 : vector<2x512xf32>
    %c512_i32_168 = arith.constant 512 : i32
    %383 = vector.broadcast %c512_i32_168 : i32 to vector<2x512xi32>
    %384 = arith.select %382, %380, %383 : vector<2x512xi1>, vector<2x512xi32>
    %cst_169 = arith.constant dense<2147483647> : vector<2xi32>
    %385 = vector.multi_reduction <minsi>, %384, %cst_169 [1] : vector<2x512xi32> to vector<2xi32>
    %386 = vector.shape_cast %385 : vector<2xi32> to vector<2x1xi32>
    %387 = vector.broadcast %386 : vector<2x1xi32> to vector<2x512xi32>
    %388 = arith.cmpi eq, %380, %387 : vector<2x512xi32>
    %389 = arith.extui %388 : vector<2x512xi1> to vector<2x512xi32>
    %390 = arith.sitofp %389 : vector<2x512xi32> to vector<2x512xf32>
    %cst_170 = arith.constant dense<0.000000e+00> : vector<512xf32>
    %391 = vector.multi_reduction <add>, %390, %cst_170 [0] : vector<2x512xf32> to vector<512xf32>
    %392 = vector.shape_cast %391 : vector<512xf32> to vector<1x512xf32>
    %393 = arith.addf %369, %392 : vector<1x512xf32>
    %cst_171 = arith.constant dense<0.000000e+00> : vector<2x9xf32>
    %394 = tpu.matmul %390, %8, %cst_171 {dimension_numbers = #tpu.dot_dimension_numbers<[1], [0], [0], [1], [0, 0, 1, 1], [], []>} : vector<2x512xf32>, vector<512x9xf32>, vector<2x9xf32> -> vector<2x9xf32>
    %c0_172 = arith.constant 0 : index
    %c135_173 = arith.constant 135 : index
    %395 = vector.load %arg11[%c0_172, %c135_173] : memref<2x144xf32, #tpu.memory_space<vmem>>, vector<2x9xf32>
    tpu.vector_store %arg11[%c0_172, %c135_173], %394 {strides = array<i32>} : memref<2x144xf32, #tpu.memory_space<vmem>>, vector<2x9xf32>,
    %c0_174 = arith.constant 0 : index
    %c0_175 = arith.constant 0 : index
    %396 = vector.load %arg11[%c0_174, %c0_175] : memref<2x144xf32, #tpu.memory_space<vmem>>, vector<2x144xf32>
    %397 = arith.subf %396, %6 : vector<2x144xf32>
    %398 = arith.mulf %397, %397 : vector<2x144xf32>
    %399 = vector.shape_cast %398 : vector<2x144xf32> to vector<1x2x144xf32>
    %cst_176 = arith.constant dense<0.000000e+00> : vector<1xf32>
    %400 = vector.multi_reduction <add>, %399, %cst_176 [1, 2] : vector<1x2x144xf32> to vector<1xf32>
    %401 = vector.shape_cast %400 : vector<1xf32> to vector<1x1x1xf32>
    %402 = vector.extract %401[0, 0, 0] : f32 from vector<1x1x1xf32>
    %403 = vector.broadcast %402 : f32 to vector<1x1xf32>
    %cst_177 = arith.constant 8.68055562E-4 : f32
    %404 = vector.broadcast %cst_177 : f32 to vector<1x1xf32>
    %405 = arith.mulf %404, %403 : vector<1x1xf32>
    %cst_178 = arith.constant 3.125000e-02 : f32
    %406 = vector.broadcast %cst_178 : f32 to vector<1x512xf32>
    %407 = arith.mulf %393, %406 : vector<1x512xf32>
    %cst_179 = arith.constant 1.000000e-10 : f32
    %408 = vector.broadcast %cst_179 : f32 to vector<1x512xf32>
    %409 = arith.addf %407, %408 : vector<1x512xf32>
    %410 = math.log %409 : vector<1x512xf32>
    %411 = arith.mulf %407, %410 : vector<1x512xf32>
    %cst_180 = arith.constant dense<0.000000e+00> : vector<1xf32>
    %412 = vector.multi_reduction <add>, %411, %cst_180 [1] : vector<1x512xf32> to vector<1xf32>
    %413 = vector.shape_cast %412 : vector<1xf32> to vector<1x1xf32>
    %cst_181 = arith.constant 0.000000e+00 : f32
    %414 = vector.broadcast %cst_181 : f32 to vector<1x1xf32>
    %415 = arith.subf %414, %413 : vector<1x1xf32>
    %416 = math.exp %415 : vector<1x1xf32>
    %417 = arith.truncf %396 : vector<2x144xf32> to vector<2x144xbf16>
    %c0_182 = arith.constant 0 : index
    %c0_183 = arith.constant 0 : index
    %418 = vector.load %arg6[%c0_182, %c0_183] : memref<144x768xbf16, #tpu.memory_space<vmem>>, vector<144x768xbf16>
    %cst_184 = arith.constant dense<0.000000e+00> : vector<2x768xf32>
    %419 = tpu.matmul %417, %418, %cst_184 {dimension_numbers = #tpu.dot_dimension_numbers<[1], [0], [0], [1], [0, 0, 1, 1], [], []>} : vector<2x144xbf16>, vector<144x768xbf16>, vector<2x768xf32> -> vector<2x768xf32>
    %c0_185 = arith.constant 0 : index
    %c0_186 = arith.constant 0 : index
    %420 = vector.load %arg7[%c0_185, %c0_186] : memref<1x768xf32, #tpu.memory_space<vmem>>, vector<1x768xf32>
    %421 = vector.broadcast %420 : vector<1x768xf32> to vector<2x768xf32>
    %422 = arith.addf %419, %421 : vector<2x768xf32>
    %c0_187 = arith.constant 0 : index
    %c0_188 = arith.constant 0 : index
    %423 = vector.load %arg8[%c0_187, %c0_188] : memref<2x768xf32, #tpu.memory_space<vmem>>, vector<2x768xf32>
    tpu.vector_store %arg8[%c0_187, %c0_188], %422 {strides = array<i32>} : memref<2x768xf32, #tpu.memory_space<vmem>>, vector<2x768xf32>,
    %424 = tpu.iota {dimensions = array<i32: 1>} : vector<1x128xi32>
    %c0_i32 = arith.constant 0 : i32
    %425 = vector.broadcast %c0_i32 : i32 to vector<1x128xi32>
    %426 = arith.cmpi eq, %424, %425 : vector<1x128xi32>
    %c1_i32 = arith.constant 1 : i32
    %427 = vector.broadcast %c1_i32 : i32 to vector<1x128xi32>
    %428 = arith.cmpi eq, %424, %427 : vector<1x128xi32>
    %cst_189 = arith.constant 0.000000e+00 : f32
    %429 = vector.shape_cast %416 : vector<1x1xf32> to vector<1x1xf32>
    %430 = vector.broadcast %429 : vector<1x1xf32> to vector<1x128xf32>
    %431 = vector.broadcast %cst_189 : f32 to vector<1x128xf32>
    %432 = arith.select %428, %430, %431 : vector<1x128xi1>, vector<1x128xf32>
    %433 = vector.shape_cast %405 : vector<1x1xf32> to vector<1x1xf32>
    %434 = vector.broadcast %433 : vector<1x1xf32> to vector<1x128xf32>
    %435 = arith.select %426, %434, %432 : vector<1x128xi1>, vector<1x128xf32>
    %c0_190 = arith.constant 0 : index
    %c0_191 = arith.constant 0 : index
    %436 = vector.load %arg9[%c0_190, %c0_191] : memref<1x128xf32, #tpu.memory_space<vmem>>, vector<1x128xf32>
    tpu.vector_store %arg9[%c0_190, %c0_191], %435 {strides = array<i32>} : memref<1x128xf32, #tpu.memory_space<vmem>>, vector<1x128xf32>,
    return
  }
}

</mosaic_0001>

<llo_original>
// kernel: mesh_vq_vae_forward.1
$region0: #{mesh_vq_vae_forward.1}
  #allocation0 [shape = 'u32[]', space=smem, size = 0x4, offset = 0x4, fixed_abs, tag = 'smem constant byte address 0x4 - core index']
  #allocation1 [shape = 'u32[144,128]{1,0:T(1,128)}', space=vmem, size = 0x12000, scoped, tag = 'internal scratch']
  #allocation2 [shape = 'f32[2,144]{1,0:T(2,128)}', space=vmem, size = 0x800, scoped, tag = 'scratch operand']
  #allocation3 [shape = 'f32[2,144]{1,0:T(2,128)}', space=vmem, size = 0x800, scoped, tag = 'scratch operand']
  %s0 = inlined_call_operand.vmem [shape: f32[2,768], index: 0, kind: input, shape index: {}]
  %s1 = inlined_call_operand.vmem [shape: bf16[768,144], index: 1, kind: input, shape index: {}]
  %s2 = inlined_call_operand.vmem [shape: f32[1,144], index: 2, kind: input, shape index: {}]
  %s3 = inlined_call_operand.vmem [shape: f32[512,9], index: 3, kind: input, shape index: {}]
  %s4 = inlined_call_operand.vmem [shape: f32[9,512], index: 4, kind: input, shape index: {}]
  %s5 = inlined_call_operand.vmem [shape: f32[1,512], index: 5, kind: input, shape index: {}]
  %s6 = inlined_call_operand.vmem [shape: bf16[144,768], index: 6, kind: input, shape index: {}]
  %s7 = inlined_call_operand.vmem [shape: f32[1,768], index: 7, kind: input, shape index: {}]
  %s8 = inlined_call_operand.vmem [shape: f32[2,768], index: 8, kind: output, shape index: {0}]
  %s9 = inlined_call_operand.vmem [shape: f32[1,128], index: 9, kind: output, shape index: {1}]
  %10 = xla_tuple %s8, %s9
  %s11 = sld [smem:[#allocation0]]
  $region50: #{mesh_vq_vae_forward.1} parent=0
    _
  %s13 = ssub.s32 1, %s11
  %s14 = scalar_select 0, %s13, %s11
  // Predicated region
  $region2: #{mesh_vq_vae_forward.1} parent=0 // pred_check
    _
  $region3: #{mesh_vq_vae_forward.1} parent=0 // pred_check_branch
    %16 = sbr.rel (0) target = $region5
  $region4: #{mesh_vq_vae_forward.1} parent=0 // pred_region
    _
  $region5: #{mesh_vq_vae_forward.1} parent=0 // pred_fallthru
    _
  // Predicated region
  $region6: #{mesh_vq_vae_forward.1} parent=0 // pred_check
    _
  $region7: #{mesh_vq_vae_forward.1} parent=0 // pred_check_branch
    %18 = sbr.rel (0) target = $region9
  $region8: #{mesh_vq_vae_forward.1} parent=0 // pred_region
    _
  $region9: #{mesh_vq_vae_forward.1} parent=0 // pred_fallthru
    _
  // Predicated region
  $region10: #{mesh_vq_vae_forward.1} parent=0 // pred_check
    _
  $region11: #{mesh_vq_vae_forward.1} parent=0 // pred_check_branch
    %20 = sbr.rel (0) target = $region13
  $region12: #{mesh_vq_vae_forward.1} parent=0 // pred_region
    _
  $region13: #{mesh_vq_vae_forward.1} parent=0 // pred_fallthru
    _
  // Predicated region
  $region14: #{mesh_vq_vae_forward.1} parent=0 // pred_check
    _
  $region15: #{mesh_vq_vae_forward.1} parent=0 // pred_check_branch
    %22 = sbr.rel (0) target = $region17
  $region16: #{mesh_vq_vae_forward.1} parent=0 // pred_region
    _
  $region17: #{mesh_vq_vae_forward.1} parent=0 // pred_fallthru
    _
  // Predicated region
  $region18: #{mesh_vq_vae_forward.1} parent=0 // pred_check
    _
  $region19: #{mesh_vq_vae_forward.1} parent=0 // pred_check_branch
    %24 = sbr.rel (0) target = $region21
  $region20: #{mesh_vq_vae_forward.1} parent=0 // pred_region
    _
  $region21: #{mesh_vq_vae_forward.1} parent=0 // pred_fallthru
    _
  // Predicated region
  $region22: #{mesh_vq_vae_forward.1} parent=0 // pred_check
    _
  $region23: #{mesh_vq_vae_forward.1} parent=0 // pred_check_branch
    %26 = sbr.rel (0) target = $region25
  $region24: #{mesh_vq_vae_forward.1} parent=0 // pred_region
    _
  $region25: #{mesh_vq_vae_forward.1} parent=0 // pred_fallthru
    _
  // Predicated region
  $region26: #{mesh_vq_vae_forward.1} parent=0 // pred_check
    _
  $region27: #{mesh_vq_vae_forward.1} parent=0 // pred_check_branch
    %28 = sbr.rel (0) target = $region29
  $region28: #{mesh_vq_vae_forward.1} parent=0 // pred_region
    _
  $region29: #{mesh_vq_vae_forward.1} parent=0 // pred_fallthru
    _
  // Predicated region
  $region30: #{mesh_vq_vae_forward.1} parent=0 // pred_check
    _
  $region31: #{mesh_vq_vae_forward.1} parent=0 // pred_check_branch
    %30 = sbr.rel (0) target = $region33
  $region32: #{mesh_vq_vae_forward.1} parent=0 // pred_region
    _
  $region33: #{mesh_vq_vae_forward.1} parent=0 // pred_fallthru
    _
  %v32 = vld [vmem:[%s0] sm:$0xff]
  %v33 = vld [vmem:[%s0 + $0x8] sm:$0xf]
  %v36 = vcombine.high %v32, %v32
  %v38 = vunpack.c.l.s4 1983009808
  %v39 = vunpack.c.0.s8 %v38
  %v40 = vlaneseq
  %v41 = vshrl.u32 %v40, 7
  %v42 = vsub.s32 %v39, %v41
  %v43 = vrot.slane %v32, %v42
  %v45 = vunpack.c.l.s4 1983009808
  %v46 = vunpack.c.0.s8 %v45
  %v47 = vlaneseq
  %v48 = vshrl.u32 %v47, 7
  %v49 = vsub.s32 %v46, %v48
  %v50 = vrot.slane %v36, %v49
  %v51 = vcombine.high %v43, %v43
  %v52 = vcombine.high %v50, %v50
  %v54 = vunpack.c.l.s4 1983009808
  %v55 = vunpack.c.0.s8 %v54
  %v56 = vlaneseq
  %v57 = vshrl.u32 %v56, 7
  %v58 = vsub.s32 %v55, %v57
  %v59 = vrot.slane %v33, %v58
  %v60 = vcombine.high %v59, %v59
  %v67 = vpack.c.bf16 %v43, %v43
  %v68 = vpack.c.bf16 %v51, %v51
  %v69 = vpack.c.bf16 %v50, %v50
  %v70 = vpack.c.bf16 %v52, %v52
  %v71 = vpack.c.bf16 %v59, %v59
  %v72 = vpack.c.bf16 %v60, %v60
  %v73 = vld [vmem:[%s1] sm:$0xff]
  %v74 = vld [vmem:[%s1 + $0x8] sm:$0xff]
  %v75 = vld [vmem:[%s1 + $0x10] sm:$0xff]
  %v76 = vld [vmem:[%s1 + $0x18] sm:$0xff]
  %v77 = vld [vmem:[%s1 + $0x20] sm:$0xff]
  %v78 = vld [vmem:[%s1 + $0x28] sm:$0xff]
  %v79 = vld [vmem:[%s1 + $0x30] sm:$0xff]
  %v80 = vld [vmem:[%s1 + $0x38] sm:$0xff]
  %v81 = vld [vmem:[%s1 + $0x40] sm:$0xff]
  %v82 = vld [vmem:[%s1 + $0x48] sm:$0xff]
  %v83 = vld [vmem:[%s1 + $0x50] sm:$0xff]
  %v84 = vld [vmem:[%s1 + $0x58] sm:$0xff]
  %v85 = vld [vmem:[%s1 + $0x60] sm:$0xff]
  %v86 = vld [vmem:[%s1 + $0x68] sm:$0xff]
  %v87 = vld [vmem:[%s1 + $0x70] sm:$0xff]
  %v88 = vld [vmem:[%s1 + $0x78] sm:$0xff]
  %v89 = vld [vmem:[%s1 + $0x80] sm:$0xff]
  %v90 = vld [vmem:[%s1 + $0x88] sm:$0xff]
  %v91 = vld [vmem:[%s1 + $0x90] sm:$0xff]
  %v92 = vld [vmem:[%s1 + $0x98] sm:$0xff]
  %v93 = vld [vmem:[%s1 + $0xa0] sm:$0xff]
  %v94 = vld [vmem:[%s1 + $0xa8] sm:$0xff]
  %v95 = vld [vmem:[%s1 + $0xb0] sm:$0xff]
  %v96 = vld [vmem:[%s1 + $0xb8] sm:$0xff]
  %v97 = vld [vmem:[%s1 + $0xc0] sm:$0xff]
  %v98 = vld [vmem:[%s1 + $0xc8] sm:$0xff]
  %v99 = vld [vmem:[%s1 + $0xd0] sm:$0xff]
  %v100 = vld [vmem:[%s1 + $0xd8] sm:$0xff]
  %v101 = vld [vmem:[%s1 + $0xe0] sm:$0xff]
  %v102 = vld [vmem:[%s1 + $0xe8] sm:$0xff]
  %v103 = vld [vmem:[%s1 + $0xf0] sm:$0xff]
  %v104 = vld [vmem:[%s1 + $0xf8] sm:$0xff]
  %v105 = vld [vmem:[%s1 + $0x100] sm:$0xff]
  %v106 = vld [vmem:[%s1 + $0x108] sm:$0xff]
  %v107 = vld [vmem:[%s1 + $0x110] sm:$0xff]
  %v108 = vld [vmem:[%s1 + $0x118] sm:$0xff]
  %v109 = vld [vmem:[%s1 + $0x120] sm:$0xff]
  %v110 = vld [vmem:[%s1 + $0x128] sm:$0xff]
  %v111 = vld [vmem:[%s1 + $0x130] sm:$0xff]
  %v112 = vld [vmem:[%s1 + $0x138] sm:$0xff]
  %v113 = vld [vmem:[%s1 + $0x140] sm:$0xff]
  %v114 = vld [vmem:[%s1 + $0x148] sm:$0xff]
  %v115 = vld [vmem:[%s1 + $0x150] sm:$0xff]
  %v116 = vld [vmem:[%s1 + $0x158] sm:$0xff]
  %v117 = vld [vmem:[%s1 + $0x160] sm:$0xff]
  %v118 = vld [vmem:[%s1 + $0x168] sm:$0xff]
  %v119 = vld [vmem:[%s1 + $0x170] sm:$0xff]
  %v120 = vld [vmem:[%s1 + $0x178] sm:$0xff]
  %v121 = vld [vmem:[%s1 + $0x180] sm:$0xff]
  %v122 = vld [vmem:[%s1 + $0x188] sm:$0xff]
  %v123 = vld [vmem:[%s1 + $0x190] sm:$0xff]
  %v124 = vld [vmem:[%s1 + $0x198] sm:$0xff]
  %v125 = vld [vmem:[%s1 + $0x1a0] sm:$0xff]
  %v126 = vld [vmem:[%s1 + $0x1a8] sm:$0xff]
  %v127 = vld [vmem:[%s1 + $0x1b0] sm:$0xff]
  %v128 = vld [vmem:[%s1 + $0x1b8] sm:$0xff]
  %v129 = vld [vmem:[%s1 + $0x1c0] sm:$0xff]
  %v130 = vld [vmem:[%s1 + $0x1c8] sm:$0xff]
  %v131 = vld [vmem:[%s1 + $0x1d0] sm:$0xff]
  %v132 = vld [vmem:[%s1 + $0x1d8] sm:$0xff]
  %v133 = vld [vmem:[%s1 + $0x1e0] sm:$0xff]
  %v134 = vld [vmem:[%s1 + $0x1e8] sm:$0xff]
  %v135 = vld [vmem:[%s1 + $0x1f0] sm:$0xff]
  %v136 = vld [vmem:[%s1 + $0x1f8] sm:$0xff]
  %v137 = vld [vmem:[%s1 + $0x200] sm:$0xff]
  %v138 = vld [vmem:[%s1 + $0x208] sm:$0xff]
  %v139 = vld [vmem:[%s1 + $0x210] sm:$0xff]
  %v140 = vld [vmem:[%s1 + $0x218] sm:$0xff]
  %v141 = vld [vmem:[%s1 + $0x220] sm:$0xff]
  %v142 = vld [vmem:[%s1 + $0x228] sm:$0xff]
  %v143 = vld [vmem:[%s1 + $0x230] sm:$0xff]
  %v144 = vld [vmem:[%s1 + $0x238] sm:$0xff]
  %v145 = vld [vmem:[%s1 + $0x240] sm:$0xff]
  %v146 = vld [vmem:[%s1 + $0x248] sm:$0xff]
  %v147 = vld [vmem:[%s1 + $0x250] sm:$0xff]
  %v148 = vld [vmem:[%s1 + $0x258] sm:$0xff]
  %v149 = vld [vmem:[%s1 + $0x260] sm:$0xff]
  %v150 = vld [vmem:[%s1 + $0x268] sm:$0xff]
  %v151 = vld [vmem:[%s1 + $0x270] sm:$0xff]
  %v152 = vld [vmem:[%s1 + $0x278] sm:$0xff]
  %v153 = vld [vmem:[%s1 + $0x280] sm:$0xff]
  %v154 = vld [vmem:[%s1 + $0x288] sm:$0xff]
  %v155 = vld [vmem:[%s1 + $0x290] sm:$0xff]
  %v156 = vld [vmem:[%s1 + $0x298] sm:$0xff]
  %v157 = vld [vmem:[%s1 + $0x2a0] sm:$0xff]
  %v158 = vld [vmem:[%s1 + $0x2a8] sm:$0xff]
  %v159 = vld [vmem:[%s1 + $0x2b0] sm:$0xff]
  %v160 = vld [vmem:[%s1 + $0x2b8] sm:$0xff]
  %v161 = vld [vmem:[%s1 + $0x2c0] sm:$0xff]
  %v162 = vld [vmem:[%s1 + $0x2c8] sm:$0xff]
  %v163 = vld [vmem:[%s1 + $0x2d0] sm:$0xff]
  %v164 = vld [vmem:[%s1 + $0x2d8] sm:$0xff]
  %v165 = vld [vmem:[%s1 + $0x2e0] sm:$0xff]
  %v166 = vld [vmem:[%s1 + $0x2e8] sm:$0xff]
  %v167 = vld [vmem:[%s1 + $0x2f0] sm:$0xff]
  %v168 = vld [vmem:[%s1 + $0x2f8] sm:$0xff]
  %v169 = vld [vmem:[%s2] sm:$0x3]
  %v171 = vlaneseq
  %v172 = vshrl.u32 %v171, 7
  %v173 = vsub.s32 0, %v172
  %v174 = vrot.slane %v169, %v173
  %v175 = vlaneseq
  %v176 = vshrl.u32 %v175, 7
  %v177 = vsub.s32 1, %v176
  %v178 = vrot.slane %v169, %v177
  %v277 = vunpack.c.l.b16 %v73
  %v278 = vunpack.c.h.b16 %v73
  %v279 = vunpack.c.l.b16 %v74
  %v280 = vunpack.c.h.b16 %v74
  %v281 = vunpack.c.l.b16 %v75
  %v282 = vunpack.c.h.b16 %v75
  %v283 = vunpack.c.l.b16 %v76
  %v284 = vunpack.c.h.b16 %v76
  %v285 = vunpack.c.l.b16 %v77
  %v286 = vunpack.c.h.b16 %v77
  %v287 = vunpack.c.l.b16 %v78
  %v288 = vunpack.c.h.b16 %v78
  %v289 = vunpack.c.l.b16 %v79
  %v290 = vunpack.c.h.b16 %v79
  %v291 = vunpack.c.l.b16 %v80
  %v292 = vunpack.c.h.b16 %v80
  %v293 = vunpack.c.l.b16 %v81
  %v294 = vunpack.c.h.b16 %v81
  %v295 = vunpack.c.l.b16 %v82
  %v296 = vunpack.c.h.b16 %v82
  %v297 = vunpack.c.l.b16 %v83
  %v298 = vunpack.c.h.b16 %v83
  %v299 = vunpack.c.l.b16 %v84
  %v300 = vunpack.c.h.b16 %v84
  %v301 = vunpack.c.l.b16 %v85
  %v302 = vunpack.c.h.b16 %v85
  %v303 = vunpack.c.l.b16 %v86
  %v304 = vunpack.c.h.b16 %v86
  %v305 = vunpack.c.l.b16 %v87
  %v306 = vunpack.c.h.b16 %v87
  %v307 = vunpack.c.l.b16 %v88
  %v308 = vunpack.c.h.b16 %v88
  %v309 = vunpack.c.l.b16 %v89
  %v310 = vunpack.c.h.b16 %v89
  %v311 = vunpack.c.l.b16 %v90
  %v312 = vunpack.c.h.b16 %v90
  %v313 = vunpack.c.l.b16 %v91
  %v314 = vunpack.c.h.b16 %v91
  %v315 = vunpack.c.l.b16 %v92
  %v316 = vunpack.c.h.b16 %v92
  %v317 = vunpack.c.l.b16 %v93
  %v318 = vunpack.c.h.b16 %v93
  %v319 = vunpack.c.l.b16 %v94
  %v320 = vunpack.c.h.b16 %v94
  %v321 = vunpack.c.l.b16 %v95
  %v322 = vunpack.c.h.b16 %v95
  %v323 = vunpack.c.l.b16 %v96
  %v324 = vunpack.c.h.b16 %v96
  %v325 = vunpack.c.l.b16 %v97
  %v326 = vunpack.c.h.b16 %v97
  %v327 = vunpack.c.l.b16 %v98
  %v328 = vunpack.c.h.b16 %v98
  %v329 = vunpack.c.l.b16 %v99
  %v330 = vunpack.c.h.b16 %v99
  %v331 = vunpack.c.l.b16 %v100
  %v332 = vunpack.c.h.b16 %v100
  %v333 = vunpack.c.l.b16 %v101
  %v334 = vunpack.c.h.b16 %v101
  %v335 = vunpack.c.l.b16 %v102
  %v336 = vunpack.c.h.b16 %v102
  %v337 = vunpack.c.l.b16 %v103
  %v338 = vunpack.c.h.b16 %v103
  %v339 = vunpack.c.l.b16 %v104
  %v340 = vunpack.c.h.b16 %v104
  %v341 = vunpack.c.l.b16 %v105
  %v342 = vunpack.c.h.b16 %v105
  %v343 = vunpack.c.l.b16 %v106
  %v344 = vunpack.c.h.b16 %v106
  %v345 = vunpack.c.l.b16 %v107
  %v346 = vunpack.c.h.b16 %v107
  %v347 = vunpack.c.l.b16 %v108
  %v348 = vunpack.c.h.b16 %v108
  %v349 = vunpack.c.l.b16 %v109
  %v350 = vunpack.c.h.b16 %v109
  %v351 = vunpack.c.l.b16 %v110
  %v352 = vunpack.c.h.b16 %v110
  %v353 = vunpack.c.l.b16 %v111
  %v354 = vunpack.c.h.b16 %v111
  %v355 = vunpack.c.l.b16 %v112
  %v356 = vunpack.c.h.b16 %v112
  %v357 = vunpack.c.l.b16 %v113
  %v358 = vunpack.c.h.b16 %v113
  %v359 = vunpack.c.l.b16 %v114
  %v360 = vunpack.c.h.b16 %v114
  %v361 = vunpack.c.l.b16 %v115
  %v362 = vunpack.c.h.b16 %v115
  %v363 = vunpack.c.l.b16 %v116
  %v364 = vunpack.c.h.b16 %v116
  %v365 = vunpack.c.l.b16 %v117
  %v366 = vunpack.c.h.b16 %v117
  %v367 = vunpack.c.l.b16 %v118
  %v368 = vunpack.c.h.b16 %v118
  %v369 = vunpack.c.l.b16 %v119
  %v370 = vunpack.c.h.b16 %v119
  %v371 = vunpack.c.l.b16 %v120
  %v372 = vunpack.c.h.b16 %v120
  %v373 = vunpack.c.l.b16 %v121
  %v374 = vunpack.c.h.b16 %v121
  %v375 = vunpack.c.l.b16 %v122
  %v376 = vunpack.c.h.b16 %v122
  %v377 = vunpack.c.l.b16 %v123
  %v378 = vunpack.c.h.b16 %v123
  %v379 = vunpack.c.l.b16 %v124
  %v380 = vunpack.c.h.b16 %v124
  %v381 = vunpack.c.l.b16 %v125
  %v382 = vunpack.c.h.b16 %v125
  %v383 = vunpack.c.l.b16 %v126
  %v384 = vunpack.c.h.b16 %v126
  %v385 = vunpack.c.l.b16 %v127
  %v386 = vunpack.c.h.b16 %v127
  %v387 = vunpack.c.l.b16 %v128
  %v388 = vunpack.c.h.b16 %v128
  %v389 = vunpack.c.l.b16 %v129
  %v390 = vunpack.c.h.b16 %v129
  %v391 = vunpack.c.l.b16 %v130
  %v392 = vunpack.c.h.b16 %v130
  %v393 = vunpack.c.l.b16 %v131
  %v394 = vunpack.c.h.b16 %v131
  %v395 = vunpack.c.l.b16 %v132
  %v396 = vunpack.c.h.b16 %v132
  %v397 = vunpack.c.l.b16 %v133
  %v398 = vunpack.c.h.b16 %v133
  %v399 = vunpack.c.l.b16 %v134
  %v400 = vunpack.c.h.b16 %v134
  %v401 = vunpack.c.l.b16 %v135
  %v402 = vunpack.c.h.b16 %v135
  %v403 = vunpack.c.l.b16 %v136
  %v404 = vunpack.c.h.b16 %v136
  %v405 = vunpack.c.l.b16 %v137
  %v406 = vunpack.c.h.b16 %v137
  %v407 = vunpack.c.l.b16 %v138
  %v408 = vunpack.c.h.b16 %v138
  %v409 = vunpack.c.l.b16 %v139
  %v410 = vunpack.c.h.b16 %v139
  %v411 = vunpack.c.l.b16 %v140
  %v412 = vunpack.c.h.b16 %v140
  %v413 = vunpack.c.l.b16 %v141
  %v414 = vunpack.c.h.b16 %v141
  %v415 = vunpack.c.l.b16 %v142
  %v416 = vunpack.c.h.b16 %v142
  %v417 = vunpack.c.l.b16 %v143
  %v418 = vunpack.c.h.b16 %v143
  %v419 = vunpack.c.l.b16 %v144
  %v420 = vunpack.c.h.b16 %v144
  %v421 = vunpack.c.l.b16 %v145
  %v422 = vunpack.c.h.b16 %v145
  %v423 = vunpack.c.l.b16 %v146
  %v424 = vunpack.c.h.b16 %v146
  %v425 = vunpack.c.l.b16 %v147
  %v426 = vunpack.c.h.b16 %v147
  %v427 = vunpack.c.l.b16 %v148
  %v428 = vunpack.c.h.b16 %v148
  %v429 = vunpack.c.l.b16 %v149
  %v430 = vunpack.c.h.b16 %v149
  %v431 = vunpack.c.l.b16 %v150
  %v432 = vunpack.c.h.b16 %v150
  %v433 = vunpack.c.l.b16 %v151
  %v434 = vunpack.c.h.b16 %v151
  %v435 = vunpack.c.l.b16 %v152
  %v436 = vunpack.c.h.b16 %v152
  %v437 = vunpack.c.l.b16 %v153
  %v438 = vunpack.c.h.b16 %v153
  %v439 = vunpack.c.l.b16 %v154
  %v440 = vunpack.c.h.b16 %v154
  %v441 = vunpack.c.l.b16 %v155
  %v442 = vunpack.c.h.b16 %v155
  %v443 = vunpack.c.l.b16 %v156
  %v444 = vunpack.c.h.b16 %v156
  %v445 = vunpack.c.l.b16 %v157
  %v446 = vunpack.c.h.b16 %v157
  %v447 = vunpack.c.l.b16 %v158
  %v448 = vunpack.c.h.b16 %v158
  %v449 = vunpack.c.l.b16 %v159
  %v450 = vunpack.c.h.b16 %v159
  %v451 = vunpack.c.l.b16 %v160
  %v452 = vunpack.c.h.b16 %v160
  %v453 = vunpack.c.l.b16 %v161
  %v454 = vunpack.c.h.b16 %v161
  %v455 = vunpack.c.l.b16 %v162
  %v456 = vunpack.c.h.b16 %v162
  %v457 = vunpack.c.l.b16 %v163
  %v458 = vunpack.c.h.b16 %v163
  %v459 = vunpack.c.l.b16 %v164
  %v460 = vunpack.c.h.b16 %v164
  %v461 = vunpack.c.l.b16 %v165
  %v462 = vunpack.c.h.b16 %v165
  %v463 = vunpack.c.l.b16 %v166
  %v464 = vunpack.c.h.b16 %v166
  %v465 = vunpack.c.l.b16 %v167
  %v466 = vunpack.c.h.b16 %v167
  %v467 = vunpack.c.l.b16 %v168
  %v468 = vunpack.c.h.b16 %v168
  %v469 = vpack.c.b16 %v279, %v277
  %v470 = vpack.c.b16 %v280, %v278
  %v471 = vpack.c.b16 %v283, %v281
  %v472 = vpack.c.b16 %v284, %v282
  %v473 = vpack.c.b16 %v287, %v285
  %v474 = vpack.c.b16 %v288, %v286
  %v475 = vpack.c.b16 %v291, %v289
  %v476 = vpack.c.b16 %v292, %v290
  %v477 = vpack.c.b16 %v295, %v293
  %v478 = vpack.c.b16 %v296, %v294
  %v479 = vpack.c.b16 %v299, %v297
  %v480 = vpack.c.b16 %v300, %v298
  %v481 = vpack.c.b16 %v303, %v301
  %v482 = vpack.c.b16 %v304, %v302
  %v483 = vpack.c.b16 %v307, %v305
  %v484 = vpack.c.b16 %v308, %v306
  %v485 = vpack.c.b16 %v311, %v309
  %v486 = vpack.c.b16 %v312, %v310
  %v487 = vpack.c.b16 %v315, %v313
  %v488 = vpack.c.b16 %v316, %v314
  %v489 = vpack.c.b16 %v319, %v317
  %v490 = vpack.c.b16 %v320, %v318
  %v491 = vpack.c.b16 %v323, %v321
  %v492 = vpack.c.b16 %v324, %v322
  %v493 = vpack.c.b16 %v327, %v325
  %v494 = vpack.c.b16 %v328, %v326
  %v495 = vpack.c.b16 %v331, %v329
  %v496 = vpack.c.b16 %v332, %v330
  %v497 = vpack.c.b16 %v335, %v333
  %v498 = vpack.c.b16 %v336, %v334
  %v499 = vpack.c.b16 %v339, %v337
  %v500 = vpack.c.b16 %v340, %v338
  %v501 = vpack.c.b16 %v343, %v341
  %v502 = vpack.c.b16 %v344, %v342
  %v503 = vpack.c.b16 %v347, %v345
  %v504 = vpack.c.b16 %v348, %v346
  %v505 = vpack.c.b16 %v351, %v349
  %v506 = vpack.c.b16 %v352, %v350
  %v507 = vpack.c.b16 %v355, %v353
  %v508 = vpack.c.b16 %v356, %v354
  %v509 = vpack.c.b16 %v359, %v357
  %v510 = vpack.c.b16 %v360, %v358
  %v511 = vpack.c.b16 %v363, %v361
  %v512 = vpack.c.b16 %v364, %v362
  %v513 = vpack.c.b16 %v367, %v365
  %v514 = vpack.c.b16 %v368, %v366
  %v515 = vpack.c.b16 %v371, %v369
  %v516 = vpack.c.b16 %v372, %v370
  %v517 = vpack.c.b16 %v375, %v373
  %v518 = vpack.c.b16 %v376, %v374
  %v519 = vpack.c.b16 %v379, %v377
  %v520 = vpack.c.b16 %v380, %v378
  %v521 = vpack.c.b16 %v383, %v381
  %v522 = vpack.c.b16 %v384, %v382
  %v523 = vpack.c.b16 %v387, %v385
  %v524 = vpack.c.b16 %v388, %v386
  %v525 = vpack.c.b16 %v391, %v389
  %v526 = vpack.c.b16 %v392, %v390
  %v527 = vpack.c.b16 %v395, %v393
  %v528 = vpack.c.b16 %v396, %v394
  %v529 = vpack.c.b16 %v399, %v397
  %v530 = vpack.c.b16 %v400, %v398
  %v531 = vpack.c.b16 %v403, %v401
  %v532 = vpack.c.b16 %v404, %v402
  %v533 = vpack.c.b16 %v407, %v405
  %v534 = vpack.c.b16 %v408, %v406
  %v535 = vpack.c.b16 %v411, %v409
  %v536 = vpack.c.b16 %v412, %v410
  %v537 = vpack.c.b16 %v415, %v413
  %v538 = vpack.c.b16 %v416, %v414
  %v539 = vpack.c.b16 %v419, %v417
  %v540 = vpack.c.b16 %v420, %v418
  %v541 = vpack.c.b16 %v423, %v421
  %v542 = vpack.c.b16 %v424, %v422
  %v543 = vpack.c.b16 %v427, %v425
  %v544 = vpack.c.b16 %v428, %v426
  %v545 = vpack.c.b16 %v431, %v429
  %v546 = vpack.c.b16 %v432, %v430
  %v547 = vpack.c.b16 %v435, %v433
  %v548 = vpack.c.b16 %v436, %v434
  %v549 = vpack.c.b16 %v439, %v437
  %v550 = vpack.c.b16 %v440, %v438
  %v551 = vpack.c.b16 %v443, %v441
  %v552 = vpack.c.b16 %v444, %v442
  %v553 = vpack.c.b16 %v447, %v445
  %v554 = vpack.c.b16 %v448, %v446
  %v555 = vpack.c.b16 %v451, %v449
  %v556 = vpack.c.b16 %v452, %v450
  %v557 = vpack.c.b16 %v455, %v453
  %v558 = vpack.c.b16 %v456, %v454
  %v559 = vpack.c.b16 %v459, %v457
  %v560 = vpack.c.b16 %v460, %v458
  %v561 = vpack.c.b16 %v463, %v461
  %v562 = vpack.c.b16 %v464, %v462
  %v563 = vpack.c.b16 %v467, %v465
  %v564 = vpack.c.b16 %v468, %v466
  %661 = vmatprep.subr.bf16.mxu0 %v470
  %662 = vmatpush1.bf16.msra.mxu0 %v469
  %663 = vmatprep.subr.bf16.mxu0 %v472
  %664 = vmatpush1.bf16.msra.mxu0 %v471
  %665 = vmatprep.subr.bf16.mxu0 %v474
  %666 = vmatpush1.bf16.msra.mxu0 %v473
  %667 = vmatprep.subr.bf16.mxu0 %v476
  %668 = vmatpush1.bf16.msra.mxu0 %v475
  %669 = vmatprep.subr.bf16.mxu0 %v478
  %670 = vmatpush1.bf16.msra.mxu0 %v477
  %671 = vmatprep.subr.bf16.mxu0 %v480
  %672 = vmatpush1.bf16.msra.mxu0 %v479
  %673 = vmatprep.subr.bf16.mxu0 %v482
  %674 = vmatpush1.bf16.msra.mxu0 %v481
  %675 = vmatprep.subr.bf16.mxu0 %v484
  %676 = vmatpush1.bf16.msra.mxu0 %v483
  %677 = vmatprep.subr.bf16.mxu0 %v486
  %678 = vmatpush1.bf16.msra.mxu0 %v485
  %679 = vmatprep.subr.bf16.mxu0 %v488
  %680 = vmatpush1.bf16.msra.mxu0 %v487
  %681 = vmatprep.subr.bf16.mxu0 %v490
  %682 = vmatpush1.bf16.msra.mxu0 %v489
  %683 = vmatprep.subr.bf16.mxu0 %v492
  %684 = vmatpush1.bf16.msra.mxu0 %v491
  %685 = vmatprep.subr.bf16.mxu0 %v494
  %686 = vmatpush1.bf16.msra.mxu0 %v493
  %687 = vmatprep.subr.bf16.mxu0 %v496
  %688 = vmatpush1.bf16.msra.mxu0 %v495
  %689 = vmatprep.subr.bf16.mxu0 %v498
  %690 = vmatpush1.bf16.msra.mxu0 %v497
  %691 = vmatprep.subr.bf16.mxu0 %v500
  %692 = vmatpush1.bf16.msra.mxu0 %v499
  %693 = vmatprep.mubr.bf16.mxu0 %v68
  %694 = vmatmul.mubr.bf16.gmra.mrb[0].mxu0 %v67
  %v695 = vpop.f32.mrb[0].mxu0
  %v696 = vadd.f32 %v174, %v695
  %v697 = vpop.f32.mrb[0].mxu0
  %v698 = vadd.f32 %v178, %v697
  %v699 = vpop.f32.mrb[0].mxu0
  %v700 = vpop.f32.mrb[0].mxu0
  %701 = vdwg.mxu0
  %702 = vmatprep.subr.bf16.mxu0 %v502
  %703 = vmatpush1.bf16.msra.mxu0 %v501
  %704 = vmatprep.subr.bf16.mxu0 %v504
  %705 = vmatpush1.bf16.msra.mxu0 %v503
  %706 = vmatprep.subr.bf16.mxu0 %v506
  %707 = vmatpush1.bf16.msra.mxu0 %v505
  %708 = vmatprep.subr.bf16.mxu0 %v508
  %709 = vmatpush1.bf16.msra.mxu0 %v507
  %710 = vmatprep.subr.bf16.mxu0 %v510
  %711 = vmatpush1.bf16.msra.mxu0 %v509
  %712 = vmatprep.subr.bf16.mxu0 %v512
  %713 = vmatpush1.bf16.msra.mxu0 %v511
  %714 = vmatprep.subr.bf16.mxu0 %v514
  %715 = vmatpush1.bf16.msra.mxu0 %v513
  %716 = vmatprep.subr.bf16.mxu0 %v516
  %717 = vmatpush1.bf16.msra.mxu0 %v515
  %718 = vmatprep.subr.bf16.mxu0 %v518
  %719 = vmatpush1.bf16.msra.mxu0 %v517
  %720 = vmatprep.subr.bf16.mxu0 %v520
  %721 = vmatpush1.bf16.msra.mxu0 %v519
  %722 = vmatprep.subr.bf16.mxu0 %v522
  %723 = vmatpush1.bf16.msra.mxu0 %v521
  %724 = vmatprep.subr.bf16.mxu0 %v524
  %725 = vmatpush1.bf16.msra.mxu0 %v523
  %726 = vmatprep.subr.bf16.mxu0 %v526
  %727 = vmatpush1.bf16.msra.mxu0 %v525
  %728 = vmatprep.subr.bf16.mxu0 %v528
  %729 = vmatpush1.bf16.msra.mxu0 %v527
  %730 = vmatprep.subr.bf16.mxu0 %v530
  %731 = vmatpush1.bf16.msra.mxu0 %v529
  %732 = vmatprep.subr.bf16.mxu0 %v532
  %733 = vmatpush1.bf16.msra.mxu0 %v531
  %734 = vmatprep.mubr.bf16.mxu0 %v70
  %735 = vmatmul.mubr.bf16.gmra.mrb[0].mxu0 %v69
  %v736 = vpop.f32.mrb[0].mxu0
  %v737 = vadd.f32 %v696, %v736
  %v738 = vpop.f32.mrb[0].mxu0
  %v739 = vadd.f32 %v698, %v738
  %v740 = vpop.f32.mrb[0].mxu0
  %v741 = vpop.f32.mrb[0].mxu0
  %742 = vdwg.mxu0
  %743 = vmatprep.subr.bf16.mxu0 %v534
  %744 = vmatpush1.bf16.msra.mxu0 %v533
  %745 = vmatprep.subr.bf16.mxu0 %v536
  %746 = vmatpush1.bf16.msra.mxu0 %v535
  %747 = vmatprep.subr.bf16.mxu0 %v538
  %748 = vmatpush1.bf16.msra.mxu0 %v537
  %749 = vmatprep.subr.bf16.mxu0 %v540
  %750 = vmatpush1.bf16.msra.mxu0 %v539
  %751 = vmatprep.subr.bf16.mxu0 %v542
  %752 = vmatpush1.bf16.msra.mxu0 %v541
  %753 = vmatprep.subr.bf16.mxu0 %v544
  %754 = vmatpush1.bf16.msra.mxu0 %v543
  %755 = vmatprep.subr.bf16.mxu0 %v546
  %756 = vmatpush1.bf16.msra.mxu0 %v545
  %757 = vmatprep.subr.bf16.mxu0 %v548
  %758 = vmatpush1.bf16.msra.mxu0 %v547
  %759 = vmatprep.subr.bf16.mxu0 %v550
  %760 = vmatpush1.bf16.msra.mxu0 %v549
  %761 = vmatprep.subr.bf16.mxu0 %v552
  %762 = vmatpush1.bf16.msra.mxu0 %v551
  %763 = vmatprep.subr.bf16.mxu0 %v554
  %764 = vmatpush1.bf16.msra.mxu0 %v553
  %765 = vmatprep.subr.bf16.mxu0 %v556
  %766 = vmatpush1.bf16.msra.mxu0 %v555
  %767 = vmatprep.subr.bf16.mxu0 %v558
  %768 = vmatpush1.bf16.msra.mxu0 %v557
  %769 = vmatprep.subr.bf16.mxu0 %v560
  %770 = vmatpush1.bf16.msra.mxu0 %v559
  %771 = vmatprep.subr.bf16.mxu0 %v562
  %772 = vmatpush1.bf16.msra.mxu0 %v561
  %773 = vmatprep.subr.bf16.mxu0 %v564
  %774 = vmatpush1.bf16.msra.mxu0 %v563
  %775 = vmatprep.mubr.bf16.mxu0 %v72
  %776 = vmatmul.mubr.bf16.gmra.mrb[0].mxu0 %v71
  %v777 = vpop.f32.mrb[0].mxu0
  %v778 = vadd.f32 %v737, %v777
  %v779 = vpop.f32.mrb[0].mxu0
  %v780 = vadd.f32 %v739, %v779
  %v781 = vpop.f32.mrb[0].mxu0
  %v782 = vpop.f32.mrb[0].mxu0
  %783 = vdwg.mxu0
  %v786 = vcombine.low %v778, %v780
  %v788 = vunpack.c.l.s4 1983009808
  %v789 = vunpack.c.0.s8 %v788
  %v790 = vlaneseq
  %v791 = vshrl.u32 %v790, 7
  %v792 = vsub.s32 %v789, %v791
  %v793 = vrot.slane %v786, %v792
  %vm795 = vcmask 1041408
  %vm796 = vcmask 125954
  %vm797 = vmor %vm796, %vm795
  %798 = vst.msk [vmem:[#allocation2] sm:$0xf] %vm797, %v793
  %v799 = vld [vmem:[%s3] sm:$0xff]
  %v800 = vld [vmem:[%s3 + $0x8] sm:$0xff]
  %v801 = vld [vmem:[%s3 + $0x10] sm:$0xff]
  %v802 = vld [vmem:[%s3 + $0x18] sm:$0xff]
  %v803 = vld [vmem:[%s3 + $0x20] sm:$0xff]
  %v804 = vld [vmem:[%s3 + $0x28] sm:$0xff]
  %v805 = vld [vmem:[%s3 + $0x30] sm:$0xff]
  %v806 = vld [vmem:[%s3 + $0x38] sm:$0xff]
  %v807 = vld [vmem:[%s3 + $0x40] sm:$0xff]
  %v808 = vld [vmem:[%s3 + $0x48] sm:$0xff]
  %v809 = vld [vmem:[%s3 + $0x50] sm:$0xff]
  %v810 = vld [vmem:[%s3 + $0x58] sm:$0xff]
  %v811 = vld [vmem:[%s3 + $0x60] sm:$0xff]
  %v812 = vld [vmem:[%s3 + $0x68] sm:$0xff]
  %v813 = vld [vmem:[%s3 + $0x70] sm:$0xff]
  %v814 = vld [vmem:[%s3 + $0x78] sm:$0xff]
  %v815 = vld [vmem:[%s3 + $0x80] sm:$0xff]
  %v816 = vld [vmem:[%s3 + $0x88] sm:$0xff]
  %v817 = vld [vmem:[%s3 + $0x90] sm:$0xff]
  %v818 = vld [vmem:[%s3 + $0x98] sm:$0xff]
  %v819 = vld [vmem:[%s3 + $0xa0] sm:$0xff]
  %v820 = vld [vmem:[%s3 + $0xa8] sm:$0xff]
  %v821 = vld [vmem:[%s3 + $0xb0] sm:$0xff]
  %v822 = vld [vmem:[%s3 + $0xb8] sm:$0xff]
  %v823 = vld [vmem:[%s3 + $0xc0] sm:$0xff]
  %v824 = vld [vmem:[%s3 + $0xc8] sm:$0xff]
  %v825 = vld [vmem:[%s3 + $0xd0] sm:$0xff]
  %v826 = vld [vmem:[%s3 + $0xd8] sm:$0xff]
  %v827 = vld [vmem:[%s3 + $0xe0] sm:$0xff]
  %v828 = vld [vmem:[%s3 + $0xe8] sm:$0xff]
  %v829 = vld [vmem:[%s3 + $0xf0] sm:$0xff]
  %v830 = vld [vmem:[%s3 + $0xf8] sm:$0xff]
  %v831 = vld [vmem:[%s3 + $0x100] sm:$0xff]
  %v832 = vld [vmem:[%s3 + $0x108] sm:$0xff]
  %v833 = vld [vmem:[%s3 + $0x110] sm:$0xff]
  %v834 = vld [vmem:[%s3 + $0x118] sm:$0xff]
  %v835 = vld [vmem:[%s3 + $0x120] sm:$0xff]
  %v836 = vld [vmem:[%s3 + $0x128] sm:$0xff]
  %v837 = vld [vmem:[%s3 + $0x130] sm:$0xff]
  %v838 = vld [vmem:[%s3 + $0x138] sm:$0xff]
  %v839 = vld [vmem:[%s3 + $0x140] sm:$0xff]
  %v840 = vld [vmem:[%s3 + $0x148] sm:$0xff]
  %v841 = vld [vmem:[%s3 + $0x150] sm:$0xff]
  %v842 = vld [vmem:[%s3 + $0x158] sm:$0xff]
  %v843 = vld [vmem:[%s3 + $0x160] sm:$0xff]
  %v844 = vld [vmem:[%s3 + $0x168] sm:$0xff]
  %v845 = vld [vmem:[%s3 + $0x170] sm:$0xff]
  %v846 = vld [vmem:[%s3 + $0x178] sm:$0xff]
  %v847 = vld [vmem:[%s3 + $0x180] sm:$0xff]
  %v848 = vld [vmem:[%s3 + $0x188] sm:$0xff]
  %v849 = vld [vmem:[%s3 + $0x190] sm:$0xff]
  %v850 = vld [vmem:[%s3 + $0x198] sm:$0xff]
  %v851 = vld [vmem:[%s3 + $0x1a0] sm:$0xff]
  %v852 = vld [vmem:[%s3 + $0x1a8] sm:$0xff]
  %v853 = vld [vmem:[%s3 + $0x1b0] sm:$0xff]
  %v854 = vld [vmem:[%s3 + $0x1b8] sm:$0xff]
  %v855 = vld [vmem:[%s3 + $0x1c0] sm:$0xff]
  %v856 = vld [vmem:[%s3 + $0x1c8] sm:$0xff]
  %v857 = vld [vmem:[%s3 + $0x1d0] sm:$0xff]
  %v858 = vld [vmem:[%s3 + $0x1d8] sm:$0xff]
  %v859 = vld [vmem:[%s3 + $0x1e0] sm:$0xff]
  %v860 = vld [vmem:[%s3 + $0x1e8] sm:$0xff]
  %v861 = vld [vmem:[%s3 + $0x1f0] sm:$0xff]
  %v862 = vld [vmem:[%s3 + $0x1f8] sm:$0xff]
  %v863 = vld [vmem:[%s4] sm:$0xff]
  %v864 = vld [vmem:[%s4 + $0x8] sm:$0xff]
  %v865 = vld [vmem:[%s4 + $0x10] sm:$0xff]
  %v866 = vld [vmem:[%s4 + $0x18] sm:$0xff]
  %v867 = vld [vmem:[%s4 + $0x20] sm:$0x1]
  %v868 = vld [vmem:[%s4 + $0x28] sm:$0x1]
  %v869 = vld [vmem:[%s4 + $0x30] sm:$0x1]
  %v870 = vld [vmem:[%s4 + $0x38] sm:$0x1]
  %v871 = vld [vmem:[%s5] sm:$0xf]
  %v872 = vld [vmem:[#allocation2] sm:$0x3]
  %vm873 = vcmask 72704
  %v875 = vsel %vm873, %v872, 0
  %vm877 = vcmask 1040384
  %v879 = vsel %vm877, %v867, 0
  %v882 = vsel %vm877, %v868, 0
  %v885 = vsel %vm877, %v869, 0
  %v888 = vsel %vm877, %v870, 0
  %890 = vmatprep.subr.mxu0 %v864
  %891 = vmatpush1.msra.mxu0 %v863
  %892 = vmatprep.subr.mxu0 %v882
  %893 = vmatpush1.msra.mxu0 %v879
  %894 = vmatprep.subr.mxu0 0.0
  %895 = vmatpush1.msra.mxu0 0.0
  %896 = vmatprep.subr.mxu0 0.0
  %897 = vmatpush1.msra.mxu0 0.0
  %898 = vmatprep.subr.mxu0 0.0
  %899 = vmatpush1.msra.mxu0 0.0
  %900 = vmatprep.subr.mxu0 0.0
  %901 = vmatpush1.msra.mxu0 0.0
  %902 = vmatprep.subr.mxu0 0.0
  %903 = vmatpush1.msra.mxu0 0.0
  %904 = vmatprep.subr.mxu0 0.0
  %905 = vmatpush1.msra.mxu0 0.0
  %906 = vmatprep.subr.mxu0 0.0
  %907 = vmatpush1.msra.mxu0 0.0
  %908 = vmatprep.subr.mxu0 0.0
  %909 = vmatpush1.msra.mxu0 0.0
  %910 = vmatprep.subr.mxu0 0.0
  %911 = vmatpush1.msra.mxu0 0.0
  %912 = vmatprep.subr.mxu0 0.0
  %913 = vmatpush1.msra.mxu0 0.0
  %914 = vmatprep.subr.mxu0 0.0
  %915 = vmatpush1.msra.mxu0 0.0
  %916 = vmatprep.subr.mxu0 0.0
  %917 = vmatpush1.msra.mxu0 0.0
  %918 = vmatprep.subr.mxu0 0.0
  %919 = vmatpush1.msra.mxu0 0.0
  %920 = vmatprep.subr.mxu0 0.0
  %921 = vmatpush1.msra.mxu0 0.0
  %922 = vmatprep.subr.mxu0 0.0
  %923 = vmatpush1.msra.mxu0 0.0
  %924 = vmatprep.subr.mxu0 0.0
  %925 = vmatpush1.msra.mxu0 0.0
  %926 = vmatprep.subr.mxu0 0.0
  %927 = vmatpush1.msra.mxu0 0.0
  %928 = vmatprep.subr.mxu0 0.0
  %929 = vmatpush1.msra.mxu0 0.0
  %930 = vmatprep.subr.mxu0 0.0
  %931 = vmatpush1.msra.mxu0 0.0
  %932 = vmatprep.subr.mxu0 0.0
  %933 = vmatpush1.msra.mxu0 0.0
  %934 = vmatprep.subr.mxu0 0.0
  %935 = vmatpush1.msra.mxu0 0.0
  %936 = vmatprep.subr.mxu0 0.0
  %937 = vmatpush1.msra.mxu0 0.0
  %938 = vmatprep.subr.mxu0 0.0
  %939 = vmatpush1.msra.mxu0 0.0
  %940 = vmatprep.subr.mxu0 0.0
  %941 = vmatpush1.msra.mxu0 0.0
  %942 = vmatprep.subr.mxu0 0.0
  %943 = vmatpush1.msra.mxu0 0.0
  %944 = vmatprep.subr.mxu0 0.0
  %945 = vmatpush1.msra.mxu0 0.0
  %946 = vmatprep.subr.mxu0 0.0
  %947 = vmatpush1.msra.mxu0 0.0
  %948 = vmatprep.subr.mxu0 0.0
  %949 = vmatpush1.msra.mxu0 0.0
  %950 = vmatprep.subr.mxu0 0.0
  %951 = vmatpush1.msra.mxu0 0.0
  %952 = vmatprep.subr.mxu0 0.0
  %953 = vmatpush1.msra.mxu0 0.0
  %954 = vmatprep.mubr.f32.mxu0 0.0
  %955 = vmatmul.mubr.f32.gmra.mrb[0].mxu0 %v875
  %v956 = vpop.f32.mrb[0].mxu0
  %v957 = vadd.f32 0.0, %v956
  %v958 = vpop.f32.mrb[0].mxu0
  %v959 = vadd.f32 0.0, %v958
  %960 = vdwg.mxu0
  %961 = vmatprep.subr.mxu0 %v866
  %962 = vmatpush1.msra.mxu0 %v865
  %963 = vmatprep.subr.mxu0 %v888
  %964 = vmatpush1.msra.mxu0 %v885
  %965 = vmatprep.subr.mxu0 0.0
  %966 = vmatpush1.msra.mxu0 0.0
  %967 = vmatprep.subr.mxu0 0.0
  %968 = vmatpush1.msra.mxu0 0.0
  %969 = vmatprep.subr.mxu0 0.0
  %970 = vmatpush1.msra.mxu0 0.0
  %971 = vmatprep.subr.mxu0 0.0
  %972 = vmatpush1.msra.mxu0 0.0
  %973 = vmatprep.subr.mxu0 0.0
  %974 = vmatpush1.msra.mxu0 0.0
  %975 = vmatprep.subr.mxu0 0.0
  %976 = vmatpush1.msra.mxu0 0.0
  %977 = vmatprep.subr.mxu0 0.0
  %978 = vmatpush1.msra.mxu0 0.0
  %979 = vmatprep.subr.mxu0 0.0
  %980 = vmatpush1.msra.mxu0 0.0
  %981 = vmatprep.subr.mxu0 0.0
  %982 = vmatpush1.msra.mxu0 0.0
  %983 = vmatprep.subr.mxu0 0.0
  %984 = vmatpush1.msra.mxu0 0.0
  %985 = vmatprep.subr.mxu0 0.0
  %986 = vmatpush1.msra.mxu0 0.0
  %987 = vmatprep.subr.mxu0 0.0
  %988 = vmatpush1.msra.mxu0 0.0
  %989 = vmatprep.subr.mxu0 0.0
  %990 = vmatpush1.msra.mxu0 0.0
  %991 = vmatprep.subr.mxu0 0.0
  %992 = vmatpush1.msra.mxu0 0.0
  %993 = vmatprep.subr.mxu0 0.0
  %994 = vmatpush1.msra.mxu0 0.0
  %995 = vmatprep.subr.mxu0 0.0
  %996 = vmatpush1.msra.mxu0 0.0
  %997 = vmatprep.subr.mxu0 0.0
  %998 = vmatpush1.msra.mxu0 0.0
  %999 = vmatprep.subr.mxu0 0.0
  %1000 = vmatpush1.msra.mxu0 0.0
  %1001 = vmatprep.subr.mxu0 0.0
  %1002 = vmatpush1.msra.mxu0 0.0
  %1003 = vmatprep.subr.mxu0 0.0
  %1004 = vmatpush1.msra.mxu0 0.0
  %1005 = vmatprep.subr.mxu0 0.0
  %1006 = vmatpush1.msra.mxu0 0.0
  %1007 = vmatprep.subr.mxu0 0.0
  %1008 = vmatpush1.msra.mxu0 0.0
  %1009 = vmatprep.subr.mxu0 0.0
  %1010 = vmatpush1.msra.mxu0 0.0
  %1011 = vmatprep.subr.mxu0 0.0
  %1012 = vmatpush1.msra.mxu0 0.0
  %1013 = vmatprep.subr.mxu0 0.0
  %1014 = vmatpush1.msra.mxu0 0.0
  %1015 = vmatprep.subr.mxu0 0.0
  %1016 = vmatpush1.msra.mxu0 0.0
  %1017 = vmatprep.subr.mxu0 0.0
  %1018 = vmatpush1.msra.mxu0 0.0
  %1019 = vmatprep.subr.mxu0 0.0
  %1020 = vmatpush1.msra.mxu0 0.0
  %1021 = vmatprep.subr.mxu0 0.0
  %1022 = vmatpush1.msra.mxu0 0.0
  %1023 = vmatprep.subr.mxu0 0.0
  %1024 = vmatpush1.msra.mxu0 0.0
  %1025 = vmatprep.mubr.f32.mxu0 0.0
  %1026 = vmatmul.mubr.f32.gmra.mrb[0].mxu0 %v875
  %v1027 = vpop.f32.mrb[0].mxu0
  %v1028 = vadd.f32 0.0, %v1027
  %v1029 = vpop.f32.mrb[0].mxu0
  %v1030 = vadd.f32 0.0, %v1029
  %1031 = vdwg.mxu0
  %v1032 = vmul.f32 %v957, 2.0
  %v1033 = vmul.f32 %v959, 2.0
  %v1034 = vmul.f32 %v1028, 2.0
  %v1035 = vmul.f32 %v1030, 2.0
  %v1037 = vlaneseq
  %v1038 = vshrl.u32 %v1037, 7
  %v1039 = vsub.s32 0, %v1038
  %v1040 = vrot.slane %v871, %v1039
  %v1041 = vlaneseq
  %v1042 = vshrl.u32 %v1041, 7
  %v1043 = vsub.s32 1, %v1042
  %v1044 = vrot.slane %v871, %v1043
  %v1045 = vlaneseq
  %v1046 = vshrl.u32 %v1045, 7
  %v1047 = vsub.s32 2, %v1046
  %v1048 = vrot.slane %v871, %v1047
  %v1049 = vlaneseq
  %v1050 = vshrl.u32 %v1049, 7
  %v1051 = vsub.s32 3, %v1050
  %v1052 = vrot.slane %v871, %v1051
  %v1057 = vsub.f32 %v1040, %v1032
  %v1058 = vsub.f32 %v1044, %v1033
  %v1059 = vsub.f32 %v1048, %v1034
  %v1060 = vsub.f32 %v1052, %v1035
  %v1061 = vsel %vm795, %v1057, inf
  %v1062 = vsel %vm795, %v1058, inf
  %v1063 = vsel %vm795, %v1059, inf
  %v1064 = vsel %vm795, %v1060, inf
  %v1065 = vmin.f32 %v1061, %v1062
  %v1066 = vmin.f32 %v1063, %v1064
  %v1067 = vmin.f32 %v1065, %v1066
  %1068 = vmin.xlane.f32.xlu0 %v1067
  %v1069 = vpop.xlane.xlu0 %1068
  %v1070 = vlaneseq
  %v1071 = vand.u32 %v1070, 127
  %v1072 = vadd.s32 %v1071, 128
  %v1073 = vadd.s32 %v1071, 256
  %v1074 = vadd.s32 %v1071, 384
  %vm1075 = vcmp.le.f32.partialorder %v1057, %v1069
  %vm1076 = vcmp.le.f32.partialorder %v1058, %v1069
  %vm1077 = vcmp.le.f32.partialorder %v1059, %v1069
  %vm1078 = vcmp.le.f32.partialorder %v1060, %v1069
  %v1079 = vsel %vm1075, %v1071, 512
  %v1080 = vsel %vm1076, %v1072, 512
  %v1081 = vsel %vm1077, %v1073, 512
  %v1082 = vsel %vm1078, %v1074, 512
  %v1083 = vsel %vm795, %v1079, 2147483647
  %v1084 = vsel %vm795, %v1080, 2147483647
  %v1085 = vsel %vm795, %v1081, 2147483647
  %v1086 = vsel %vm795, %v1082, 2147483647
  %vm1087 = vcmp.lt.s32.totalorder %v1083, %v1084
  %v1088 = vsel %vm1087, %v1083, %v1084
  %vm1089 = vcmp.lt.s32.totalorder %v1085, %v1086
  %v1090 = vsel %vm1089, %v1085, %v1086
  %vm1091 = vcmp.lt.s32.totalorder %v1088, %v1090
  %v1092 = vsel %vm1091, %v1088, %v1090
  %v1093 = vand.u32 %v1092, 65535
  %v1094 = vshra.s32 %v1092, 16
  %v1095 = vcvt.s32.f32 %v1093
  %v1096 = vcvt.s32.f32 %v1094
  %1097 = vmin.xlane.f32.xlu0 %v1096
  %v1098 = vpop.xlane.xlu0 %1097
  %vm1099 = vcmp.eq.f32.partialorder %v1096, %v1098
  %v1100 = vsel %vm1099, %v1095, inf
  %1101 = vmin.xlane.f32.xlu0 %v1100
  %v1102 = vpop.xlane.xlu0 %1101
  %v1103 = vcvt.f32.s32 %v1102
  %v1104 = vcvt.f32.s32 %v1098
  %v1105 = vshll.u32 %v1104, 16
  %v1106 = vadd.s32 %v1105, %v1103
  %vm1107 = vcmp.eq.s32.totalorder %v1071, %v1106
  %vm1108 = vcmp.eq.s32.totalorder %v1072, %v1106
  %vm1109 = vcmp.eq.s32.totalorder %v1073, %v1106
  %vm1110 = vcmp.eq.s32.totalorder %v1074, %v1106
  %v1111 = vsel %vm1107, 1, 0
  %v1112 = vsel %vm1108, 1, 0
  %v1113 = vsel %vm1109, 1, 0
  %v1114 = vsel %vm1110, 1, 0
  %v1115 = vcvt.s32.f32 %v1111
  %v1116 = vcvt.s32.f32 %v1112
  %v1117 = vcvt.s32.f32 %v1113
  %v1118 = vcvt.s32.f32 %v1114
  %v1119 = vsel %vm795, %v1115, 0.0
  %v1120 = vrot.slane %v1119, 4
  %v1121 = vadd.f32 %v1119, %v1120
  %v1122 = vrot.slane %v1121, 2
  %v1123 = vadd.f32 %v1121, %v1122
  %v1124 = vrot.slane %v1123, 1
  %v1125 = vadd.f32 %v1123, %v1124
  %v1126 = vsel %vm795, %v1116, 0.0
  %v1127 = vrot.slane %v1126, 4
  %v1128 = vadd.f32 %v1126, %v1127
  %v1129 = vrot.slane %v1128, 2
  %v1130 = vadd.f32 %v1128, %v1129
  %v1131 = vrot.slane %v1130, 1
  %v1132 = vadd.f32 %v1130, %v1131
  %v1133 = vsel %vm795, %v1117, 0.0
  %v1134 = vrot.slane %v1133, 4
  %v1135 = vadd.f32 %v1133, %v1134
  %v1136 = vrot.slane %v1135, 2
  %v1137 = vadd.f32 %v1135, %v1136
  %v1138 = vrot.slane %v1137, 1
  %v1139 = vadd.f32 %v1137, %v1138
  %v1140 = vsel %vm795, %v1118, 0.0
  %v1141 = vrot.slane %v1140, 4
  %v1142 = vadd.f32 %v1140, %v1141
  %v1143 = vrot.slane %v1142, 2
  %v1144 = vadd.f32 %v1142, %v1143
  %v1145 = vrot.slane %v1144, 1
  %v1146 = vadd.f32 %v1144, %v1145
  %v1147 = vadd.f32 %v1125, 0.0
  %v1148 = vadd.f32 %v1132, 0.0
  %v1149 = vadd.f32 %v1139, 0.0
  %v1150 = vadd.f32 %v1146, 0.0
  %1151 = vmatprep.subr.mxu0 0.0
  %1152 = vmatpush1.msra.mxu0 %v799
  %1153 = vmatprep.subr.mxu0 0.0
  %1154 = vmatpush1.msra.mxu0 %v800
  %1155 = vmatprep.subr.mxu0 0.0
  %1156 = vmatpush1.msra.mxu0 %v801
  %1157 = vmatprep.subr.mxu0 0.0
  %1158 = vmatpush1.msra.mxu0 %v802
  %1159 = vmatprep.subr.mxu0 0.0
  %1160 = vmatpush1.msra.mxu0 %v803
  %1161 = vmatprep.subr.mxu0 0.0
  %1162 = vmatpush1.msra.mxu0 %v804
  %1163 = vmatprep.subr.mxu0 0.0
  %1164 = vmatpush1.msra.mxu0 %v805
  %1165 = vmatprep.subr.mxu0 0.0
  %1166 = vmatpush1.msra.mxu0 %v806
  %1167 = vmatprep.subr.mxu0 0.0
  %1168 = vmatpush1.msra.mxu0 %v807
  %1169 = vmatprep.subr.mxu0 0.0
  %1170 = vmatpush1.msra.mxu0 %v808
  %1171 = vmatprep.subr.mxu0 0.0
  %1172 = vmatpush1.msra.mxu0 %v809
  %1173 = vmatprep.subr.mxu0 0.0
  %1174 = vmatpush1.msra.mxu0 %v810
  %1175 = vmatprep.subr.mxu0 0.0
  %1176 = vmatpush1.msra.mxu0 %v811
  %1177 = vmatprep.subr.mxu0 0.0
  %1178 = vmatpush1.msra.mxu0 %v812
  %1179 = vmatprep.subr.mxu0 0.0
  %1180 = vmatpush1.msra.mxu0 %v813
  %1181 = vmatprep.subr.mxu0 0.0
  %1182 = vmatpush1.msra.mxu0 %v814
  %1183 = vmatprep.subr.mxu0 0.0
  %1184 = vmatpush1.msra.mxu0 %v815
  %1185 = vmatprep.subr.mxu0 0.0
  %1186 = vmatpush1.msra.mxu0 %v816
  %1187 = vmatprep.subr.mxu0 0.0
  %1188 = vmatpush1.msra.mxu0 %v817
  %1189 = vmatprep.subr.mxu0 0.0
  %1190 = vmatpush1.msra.mxu0 %v818
  %1191 = vmatprep.subr.mxu0 0.0
  %1192 = vmatpush1.msra.mxu0 %v819
  %1193 = vmatprep.subr.mxu0 0.0
  %1194 = vmatpush1.msra.mxu0 %v820
  %1195 = vmatprep.subr.mxu0 0.0
  %1196 = vmatpush1.msra.mxu0 %v821
  %1197 = vmatprep.subr.mxu0 0.0
  %1198 = vmatpush1.msra.mxu0 %v822
  %1199 = vmatprep.subr.mxu0 0.0
  %1200 = vmatpush1.msra.mxu0 %v823
  %1201 = vmatprep.subr.mxu0 0.0
  %1202 = vmatpush1.msra.mxu0 %v824
  %1203 = vmatprep.subr.mxu0 0.0
  %1204 = vmatpush1.msra.mxu0 %v825
  %1205 = vmatprep.subr.mxu0 0.0
  %1206 = vmatpush1.msra.mxu0 %v826
  %1207 = vmatprep.subr.mxu0 0.0
  %1208 = vmatpush1.msra.mxu0 %v827
  %1209 = vmatprep.subr.mxu0 0.0
  %1210 = vmatpush1.msra.mxu0 %v828
  %1211 = vmatprep.subr.mxu0 0.0
  %1212 = vmatpush1.msra.mxu0 %v829
  %1213 = vmatprep.subr.mxu0 0.0
  %1214 = vmatpush1.msra.mxu0 %v830
  %1215 = vmatprep.mubr.f32.mxu0 %v1116
  %1216 = vmatmul.mubr.f32.gmra.mrb[0].mxu0 %v1115
  %v1217 = vpop.f32.mrb[0].mxu0
  %v1218 = vadd.f32 0.0, %v1217
  %v1219 = vpop.f32.mrb[0].mxu0
  %1220 = vdwg.mxu0
  %1221 = vmatprep.subr.mxu0 0.0
  %1222 = vmatpush1.msra.mxu0 %v831
  %1223 = vmatprep.subr.mxu0 0.0
  %1224 = vmatpush1.msra.mxu0 %v832
  %1225 = vmatprep.subr.mxu0 0.0
  %1226 = vmatpush1.msra.mxu0 %v833
  %1227 = vmatprep.subr.mxu0 0.0
  %1228 = vmatpush1.msra.mxu0 %v834
  %1229 = vmatprep.subr.mxu0 0.0
  %1230 = vmatpush1.msra.mxu0 %v835
  %1231 = vmatprep.subr.mxu0 0.0
  %1232 = vmatpush1.msra.mxu0 %v836
  %1233 = vmatprep.subr.mxu0 0.0
  %1234 = vmatpush1.msra.mxu0 %v837
  %1235 = vmatprep.subr.mxu0 0.0
  %1236 = vmatpush1.msra.mxu0 %v838
  %1237 = vmatprep.subr.mxu0 0.0
  %1238 = vmatpush1.msra.mxu0 %v839
  %1239 = vmatprep.subr.mxu0 0.0
  %1240 = vmatpush1.msra.mxu0 %v840
  %1241 = vmatprep.subr.mxu0 0.0
  %1242 = vmatpush1.msra.mxu0 %v841
  %1243 = vmatprep.subr.mxu0 0.0
  %1244 = vmatpush1.msra.mxu0 %v842
  %1245 = vmatprep.subr.mxu0 0.0
  %1246 = vmatpush1.msra.mxu0 %v843
  %1247 = vmatprep.subr.mxu0 0.0
  %1248 = vmatpush1.msra.mxu0 %v844
  %1249 = vmatprep.subr.mxu0 0.0
  %1250 = vmatpush1.msra.mxu0 %v845
  %1251 = vmatprep.subr.mxu0 0.0
  %1252 = vmatpush1.msra.mxu0 %v846
  %1253 = vmatprep.subr.mxu0 0.0
  %1254 = vmatpush1.msra.mxu0 %v847
  %1255 = vmatprep.subr.mxu0 0.0
  %1256 = vmatpush1.msra.mxu0 %v848
  %1257 = vmatprep.subr.mxu0 0.0
  %1258 = vmatpush1.msra.mxu0 %v849
  %1259 = vmatprep.subr.mxu0 0.0
  %1260 = vmatpush1.msra.mxu0 %v850
  %1261 = vmatprep.subr.mxu0 0.0
  %1262 = vmatpush1.msra.mxu0 %v851
  %1263 = vmatprep.subr.mxu0 0.0
  %1264 = vmatpush1.msra.mxu0 %v852
  %1265 = vmatprep.subr.mxu0 0.0
  %1266 = vmatpush1.msra.mxu0 %v853
  %1267 = vmatprep.subr.mxu0 0.0
  %1268 = vmatpush1.msra.mxu0 %v854
  %1269 = vmatprep.subr.mxu0 0.0
  %1270 = vmatpush1.msra.mxu0 %v855
  %1271 = vmatprep.subr.mxu0 0.0
  %1272 = vmatpush1.msra.mxu0 %v856
  %1273 = vmatprep.subr.mxu0 0.0
  %1274 = vmatpush1.msra.mxu0 %v857
  %1275 = vmatprep.subr.mxu0 0.0
  %1276 = vmatpush1.msra.mxu0 %v858
  %1277 = vmatprep.subr.mxu0 0.0
  %1278 = vmatpush1.msra.mxu0 %v859
  %1279 = vmatprep.subr.mxu0 0.0
  %1280 = vmatpush1.msra.mxu0 %v860
  %1281 = vmatprep.subr.mxu0 0.0
  %1282 = vmatpush1.msra.mxu0 %v861
  %1283 = vmatprep.subr.mxu0 0.0
  %1284 = vmatpush1.msra.mxu0 %v862
  %1285 = vmatprep.mubr.f32.mxu0 %v1118
  %1286 = vmatmul.mubr.f32.gmra.mrb[0].mxu0 %v1117
  %v1287 = vpop.f32.mrb[0].mxu0
  %v1288 = vadd.f32 %v1218, %v1287
  %v1289 = vpop.f32.mrb[0].mxu0
  %1290 = vdwg.mxu0
  %vm1291 = vcmask 66560
  %1292 = vst.msk [vmem:[#allocation3] sm:$0x3] %vm1291, %v1288
  %v1293 = vld [vmem:[#allocation2] sm:$0x3]
  %v1296 = vunpack.c.l.s4 1983009808
  %v1297 = vunpack.c.0.s8 %v1296
  %v1298 = vlaneseq
  %v1299 = vshrl.u32 %v1298, 7
  %v1300 = vsub.s32 %v1297, %v1299
  %v1301 = vrot.slane %v1293, %v1300
  %1302 = vrot.lane.b32.xlu0 %v1301, 119
  %v1303 = vpop.permute.xlu0 %1302
  %v1304 = vsel %vm873, %v1303, 0
  %1306 = vmatprep.subr.mxu0 %v864
  %1307 = vmatpush1.msra.mxu0 %v863
  %1308 = vmatprep.subr.mxu0 %v882
  %1309 = vmatpush1.msra.mxu0 %v879
  %1310 = vmatprep.subr.mxu0 0.0
  %1311 = vmatpush1.msra.mxu0 0.0
  %1312 = vmatprep.subr.mxu0 0.0
  %1313 = vmatpush1.msra.mxu0 0.0
  %1314 = vmatprep.subr.mxu0 0.0
  %1315 = vmatpush1.msra.mxu0 0.0
  %1316 = vmatprep.subr.mxu0 0.0
  %1317 = vmatpush1.msra.mxu0 0.0
  %1318 = vmatprep.subr.mxu0 0.0
  %1319 = vmatpush1.msra.mxu0 0.0
  %1320 = vmatprep.subr.mxu0 0.0
  %1321 = vmatpush1.msra.mxu0 0.0
  %1322 = vmatprep.subr.mxu0 0.0
  %1323 = vmatpush1.msra.mxu0 0.0
  %1324 = vmatprep.subr.mxu0 0.0
  %1325 = vmatpush1.msra.mxu0 0.0
  %1326 = vmatprep.subr.mxu0 0.0
  %1327 = vmatpush1.msra.mxu0 0.0
  %1328 = vmatprep.subr.mxu0 0.0
  %1329 = vmatpush1.msra.mxu0 0.0
  %1330 = vmatprep.subr.mxu0 0.0
  %1331 = vmatpush1.msra.mxu0 0.0
  %1332 = vmatprep.subr.mxu0 0.0
  %1333 = vmatpush1.msra.mxu0 0.0
  %1334 = vmatprep.subr.mxu0 0.0
  %1335 = vmatpush1.msra.mxu0 0.0
  %1336 = vmatprep.subr.mxu0 0.0
  %1337 = vmatpush1.msra.mxu0 0.0
  %1338 = vmatprep.subr.mxu0 0.0
  %1339 = vmatpush1.msra.mxu0 0.0
  %1340 = vmatprep.subr.mxu0 0.0
  %1341 = vmatpush1.msra.mxu0 0.0
  %1342 = vmatprep.subr.mxu0 0.0
  %1343 = vmatpush1.msra.mxu0 0.0
  %1344 = vmatprep.subr.mxu0 0.0
  %1345 = vmatpush1.msra.mxu0 0.0
  %1346 = vmatprep.subr.mxu0 0.0
  %1347 = vmatpush1.msra.mxu0 0.0
  %1348 = vmatprep.subr.mxu0 0.0
  %1349 = vmatpush1.msra.mxu0 0.0
  %1350 = vmatprep.subr.mxu0 0.0
  %1351 = vmatpush1.msra.mxu0 0.0
  %1352 = vmatprep.subr.mxu0 0.0
  %1353 = vmatpush1.msra.mxu0 0.0
  %1354 = vmatprep.subr.mxu0 0.0
  %1355 = vmatpush1.msra.mxu0 0.0
  %1356 = vmatprep.subr.mxu0 0.0
  %1357 = vmatpush1.msra.mxu0 0.0
  %1358 = vmatprep.subr.mxu0 0.0
  %1359 = vmatpush1.msra.mxu0 0.0
  %1360 = vmatprep.subr.mxu0 0.0
  %1361 = vmatpush1.msra.mxu0 0.0
  %1362 = vmatprep.subr.mxu0 0.0
  %1363 = vmatpush1.msra.mxu0 0.0
  %1364 = vmatprep.subr.mxu0 0.0
  %1365 = vmatpush1.msra.mxu0 0.0
  %1366 = vmatprep.subr.mxu0 0.0
  %1367 = vmatpush1.msra.mxu0 0.0
  %1368 = vmatprep.subr.mxu0 0.0
  %1369 = vmatpush1.msra.mxu0 0.0
  %1370 = vmatprep.mubr.f32.mxu0 0.0
  %1371 = vmatmul.mubr.f32.gmra.mrb[0].mxu0 %v1304
  %v1372 = vpop.f32.mrb[0].mxu0
  %v1373 = vadd.f32 0.0, %v1372
  %v1374 = vpop.f32.mrb[0].mxu0
  %v1375 = vadd.f32 0.0, %v1374
  %1376 = vdwg.mxu0
  %1377 = vmatprep.subr.mxu0 %v866
  %1378 = vmatpush1.msra.mxu0 %v865
  %1379 = vmatprep.subr.mxu0 %v888
  %1380 = vmatpush1.msra.mxu0 %v885
  %1381 = vmatprep.subr.mxu0 0.0
  %1382 = vmatpush1.msra.mxu0 0.0
  %1383 = vmatprep.subr.mxu0 0.0
  %1384 = vmatpush1.msra.mxu0 0.0
  %1385 = vmatprep.subr.mxu0 0.0
  %1386 = vmatpush1.msra.mxu0 0.0
  %1387 = vmatprep.subr.mxu0 0.0
  %1388 = vmatpush1.msra.mxu0 0.0
  %1389 = vmatprep.subr.mxu0 0.0
  %1390 = vmatpush1.msra.mxu0 0.0
  %1391 = vmatprep.subr.mxu0 0.0
  %1392 = vmatpush1.msra.mxu0 0.0
  %1393 = vmatprep.subr.mxu0 0.0
  %1394 = vmatpush1.msra.mxu0 0.0
  %1395 = vmatprep.subr.mxu0 0.0
  %1396 = vmatpush1.msra.mxu0 0.0
  %1397 = vmatprep.subr.mxu0 0.0
  %1398 = vmatpush1.msra.mxu0 0.0
  %1399 = vmatprep.subr.mxu0 0.0
  %1400 = vmatpush1.msra.mxu0 0.0
  %1401 = vmatprep.subr.mxu0 0.0
  %1402 = vmatpush1.msra.mxu0 0.0
  %1403 = vmatprep.subr.mxu0 0.0
  %1404 = vmatpush1.msra.mxu0 0.0
  %1405 = vmatprep.subr.mxu0 0.0
  %1406 = vmatpush1.msra.mxu0 0.0
  %1407 = vmatprep.subr.mxu0 0.0
  %1408 = vmatpush1.msra.mxu0 0.0
  %1409 = vmatprep.subr.mxu0 0.0
  %1410 = vmatpush1.msra.mxu0 0.0
  %1411 = vmatprep.subr.mxu0 0.0
  %1412 = vmatpush1.msra.mxu0 0.0
  %1413 = vmatprep.subr.mxu0 0.0
  %1414 = vmatpush1.msra.mxu0 0.0
  %1415 = vmatprep.subr.mxu0 0.0
  %1416 = vmatpush1.msra.mxu0 0.0
  %1417 = vmatprep.subr.mxu0 0.0
  %1418 = vmatpush1.msra.mxu0 0.0
  %1419 = vmatprep.subr.mxu0 0.0
  %1420 = vmatpush1.msra.mxu0 0.0
  %1421 = vmatprep.subr.mxu0 0.0
  %1422 = vmatpush1.msra.mxu0 0.0
  %1423 = vmatprep.subr.mxu0 0.0
  %1424 = vmatpush1.msra.mxu0 0.0
  %1425 = vmatprep.subr.mxu0 0.0
  %1426 = vmatpush1.msra.mxu0 0.0
  %1427 = vmatprep.subr.mxu0 0.0
  %1428 = vmatpush1.msra.mxu0 0.0
  %1429 = vmatprep.subr.mxu0 0.0
  %1430 = vmatpush1.msra.mxu0 0.0
  %1431 = vmatprep.subr.mxu0 0.0
  %1432 = vmatpush1.msra.mxu0 0.0
  %1433 = vmatprep.subr.mxu0 0.0
  %1434 = vmatpush1.msra.mxu0 0.0
  %1435 = vmatprep.subr.mxu0 0.0
  %1436 = vmatpush1.msra.mxu0 0.0
  %1437 = vmatprep.subr.mxu0 0.0
  %1438 = vmatpush1.msra.mxu0 0.0
  %1439 = vmatprep.subr.mxu0 0.0
  %1440 = vmatpush1.msra.mxu0 0.0
  %1441 = vmatprep.mubr.f32.mxu0 0.0
  %1442 = vmatmul.mubr.f32.gmra.mrb[0].mxu0 %v1304
  %v1443 = vpop.f32.mrb[0].mxu0
  %v1444 = vadd.f32 0.0, %v1443
  %v1445 = vpop.f32.mrb[0].mxu0
  %v1446 = vadd.f32 0.0, %v1445
  %1447 = vdwg.mxu0
  %v1448 = vmul.f32 %v1373, 2.0
  %v1449 = vmul.f32 %v1375, 2.0
  %v1450 = vmul.f32 %v1444, 2.0
  %v1451 = vmul.f32 %v1446, 2.0
  %v1452 = vsub.f32 %v1040, %v1448
  %v1453 = vsub.f32 %v1044, %v1449
  %v1454 = vsub.f32 %v1048, %v1450
  %v1455 = vsub.f32 %v1052, %v1451
  %v1456 = vsel %vm795, %v1452, inf
  %v1457 = vsel %vm795, %v1453, inf
  %v1458 = vsel %vm795, %v1454, inf
  %v1459 = vsel %vm795, %v1455, inf
  %v1460 = vmin.f32 %v1456, %v1457
  %v1461 = vmin.f32 %v1458, %v1459
  %v1462 = vmin.f32 %v1460, %v1461
  %1463 = vmin.xlane.f32.xlu0 %v1462
  %v1464 = vpop.xlane.xlu0 %1463
  %vm1465 = vcmp.le.f32.partialorder %v1452, %v1464
  %vm1466 = vcmp.le.f32.partialorder %v1453, %v1464
  %vm1467 = vcmp.le.f32.partialorder %v1454, %v1464
  %vm1468 = vcmp.le.f32.partialorder %v1455, %v1464
  %v1469 = vsel %vm1465, %v1071, 512
  %v1470 = vsel %vm1466, %v1072, 512
  %v1471 = vsel %vm1467, %v1073, 512
  %v1472 = vsel %vm1468, %v1074, 512
  %v1473 = vsel %vm795, %v1469, 2147483647
  %v1474 = vsel %vm795, %v1470, 2147483647
  %v1475 = vsel %vm795, %v1471, 2147483647
  %v1476 = vsel %vm795, %v1472, 2147483647
  %vm1477 = vcmp.lt.s32.totalorder %v1473, %v1474
  %v1478 = vsel %vm1477, %v1473, %v1474
  %vm1479 = vcmp.lt.s32.totalorder %v1475, %v1476
  %v1480 = vsel %vm1479, %v1475, %v1476
  %vm1481 = vcmp.lt.s32.totalorder %v1478, %v1480
  %v1482 = vsel %vm1481, %v1478, %v1480
  %v1483 = vand.u32 %v1482, 65535
  %v1484 = vshra.s32 %v1482, 16
  %v1485 = vcvt.s32.f32 %v1483
  %v1486 = vcvt.s32.f32 %v1484
  %1487 = vmin.xlane.f32.xlu0 %v1486
  %v1488 = vpop.xlane.xlu0 %1487
  %vm1489 = vcmp.eq.f32.partialorder %v1486, %v1488
  %v1490 = vsel %vm1489, %v1485, inf
  %1491 = vmin.xlane.f32.xlu0 %v1490
  %v1492 = vpop.xlane.xlu0 %1491
  %v1493 = vcvt.f32.s32 %v1492
  %v1494 = vcvt.f32.s32 %v1488
  %v1495 = vshll.u32 %v1494, 16
  %v1496 = vadd.s32 %v1495, %v1493
  %vm1497 = vcmp.eq.s32.totalorder %v1071, %v1496
  %vm1498 = vcmp.eq.s32.totalorder %v1072, %v1496
  %vm1499 = vcmp.eq.s32.totalorder %v1073, %v1496
  %vm1500 = vcmp.eq.s32.totalorder %v1074, %v1496
  %v1501 = vsel %vm1497, 1, 0
  %v1502 = vsel %vm1498, 1, 0
  %v1503 = vsel %vm1499, 1, 0
  %v1504 = vsel %vm1500, 1, 0
  %v1505 = vcvt.s32.f32 %v1501
  %v1506 = vcvt.s32.f32 %v1502
  %v1507 = vcvt.s32.f32 %v1503
  %v1508 = vcvt.s32.f32 %v1504
  %v1509 = vsel %vm795, %v1505, 0.0
  %v1510 = vrot.slane %v1509, 4
  %v1511 = vadd.f32 %v1509, %v1510
  %v1512 = vrot.slane %v1511, 2
  %v1513 = vadd.f32 %v1511, %v1512
  %v1514 = vrot.slane %v1513, 1
  %v1515 = vadd.f32 %v1513, %v1514
  %v1516 = vsel %vm795, %v1506, 0.0
  %v1517 = vrot.slane %v1516, 4
  %v1518 = vadd.f32 %v1516, %v1517
  %v1519 = vrot.slane %v1518, 2
  %v1520 = vadd.f32 %v1518, %v1519
  %v1521 = vrot.slane %v1520, 1
  %v1522 = vadd.f32 %v1520, %v1521
  %v1523 = vsel %vm795, %v1507, 0.0
  %v1524 = vrot.slane %v1523, 4
  %v1525 = vadd.f32 %v1523, %v1524
  %v1526 = vrot.slane %v1525, 2
  %v1527 = vadd.f32 %v1525, %v1526
  %v1528 = vrot.slane %v1527, 1
  %v1529 = vadd.f32 %v1527, %v1528
  %v1530 = vsel %vm795, %v1508, 0.0
  %v1531 = vrot.slane %v1530, 4
  %v1532 = vadd.f32 %v1530, %v1531
  %v1533 = vrot.slane %v1532, 2
  %v1534 = vadd.f32 %v1532, %v1533
  %v1535 = vrot.slane %v1534, 1
  %v1536 = vadd.f32 %v1534, %v1535
  %v1537 = vadd.f32 %v1147, %v1515
  %v1538 = vadd.f32 %v1148, %v1522
  %v1539 = vadd.f32 %v1149, %v1529
  %v1540 = vadd.f32 %v1150, %v1536
  %1541 = vmatprep.subr.mxu0 0.0
  %1542 = vmatpush1.msra.mxu0 %v799
  %1543 = vmatprep.subr.mxu0 0.0
  %1544 = vmatpush1.msra.mxu0 %v800
  %1545 = vmatprep.subr.mxu0 0.0
  %1546 = vmatpush1.msra.mxu0 %v801
  %1547 = vmatprep.subr.mxu0 0.0
  %1548 = vmatpush1.msra.mxu0 %v802
  %1549 = vmatprep.subr.mxu0 0.0
  %1550 = vmatpush1.msra.mxu0 %v803
  %1551 = vmatprep.subr.mxu0 0.0
  %1552 = vmatpush1.msra.mxu0 %v804
  %1553 = vmatprep.subr.mxu0 0.0
  %1554 = vmatpush1.msra.mxu0 %v805
  %1555 = vmatprep.subr.mxu0 0.0
  %1556 = vmatpush1.msra.mxu0 %v806
  %1557 = vmatprep.subr.mxu0 0.0
  %1558 = vmatpush1.msra.mxu0 %v807
  %1559 = vmatprep.subr.mxu0 0.0
  %1560 = vmatpush1.msra.mxu0 %v808
  %1561 = vmatprep.subr.mxu0 0.0
  %1562 = vmatpush1.msra.mxu0 %v809
  %1563 = vmatprep.subr.mxu0 0.0
  %1564 = vmatpush1.msra.mxu0 %v810
  %1565 = vmatprep.subr.mxu0 0.0
  %1566 = vmatpush1.msra.mxu0 %v811
  %1567 = vmatprep.subr.mxu0 0.0
  %1568 = vmatpush1.msra.mxu0 %v812
  %1569 = vmatprep.subr.mxu0 0.0
  %1570 = vmatpush1.msra.mxu0 %v813
  %1571 = vmatprep.subr.mxu0 0.0
  %1572 = vmatpush1.msra.mxu0 %v814
  %1573 = vmatprep.subr.mxu0 0.0
  %1574 = vmatpush1.msra.mxu0 %v815
  %1575 = vmatprep.subr.mxu0 0.0
  %1576 = vmatpush1.msra.mxu0 %v816
  %1577 = vmatprep.subr.mxu0 0.0
  %1578 = vmatpush1.msra.mxu0 %v817
  %1579 = vmatprep.subr.mxu0 0.0
  %1580 = vmatpush1.msra.mxu0 %v818
  %1581 = vmatprep.subr.mxu0 0.0
  %1582 = vmatpush1.msra.mxu0 %v819
  %1583 = vmatprep.subr.mxu0 0.0
  %1584 = vmatpush1.msra.mxu0 %v820
  %1585 = vmatprep.subr.mxu0 0.0
  %1586 = vmatpush1.msra.mxu0 %v821
  %1587 = vmatprep.subr.mxu0 0.0
  %1588 = vmatpush1.msra.mxu0 %v822
  %1589 = vmatprep.subr.mxu0 0.0
  %1590 = vmatpush1.msra.mxu0 %v823
  %1591 = vmatprep.subr.mxu0 0.0
  %1592 = vmatpush1.msra.mxu0 %v824
  %1593 = vmatprep.subr.mxu0 0.0
  %1594 = vmatpush1.msra.mxu0 %v825
  %1595 = vmatprep.subr.mxu0 0.0
  %1596 = vmatpush1.msra.mxu0 %v826
  %1597 = vmatprep.subr.mxu0 0.0
  %1598 = vmatpush1.msra.mxu0 %v827
  %1599 = vmatprep.subr.mxu0 0.0
  %1600 = vmatpush1.msra.mxu0 %v828
  %1601 = vmatprep.subr.mxu0 0.0
  %1602 = vmatpush1.msra.mxu0 %v829
  %1603 = vmatprep.subr.mxu0 0.0
  %1604 = vmatpush1.msra.mxu0 %v830
  %1605 = vmatprep.mubr.f32.mxu0 %v1506
  %1606 = vmatmul.mubr.f32.gmra.mrb[0].mxu0 %v1505
  %v1607 = vpop.f32.mrb[0].mxu0
  %v1608 = vadd.f32 0.0, %v1607
  %v1609 = vpop.f32.mrb[0].mxu0
  %1610 = vdwg.mxu0
  %1611 = vmatprep.subr.mxu0 0.0
  %1612 = vmatpush1.msra.mxu0 %v831
  %1613 = vmatprep.subr.mxu0 0.0
  %1614 = vmatpush1.msra.mxu0 %v832
  %1615 = vmatprep.subr.mxu0 0.0
  %1616 = vmatpush1.msra.mxu0 %v833
  %1617 = vmatprep.subr.mxu0 0.0
  %1618 = vmatpush1.msra.mxu0 %v834
  %1619 = vmatprep.subr.mxu0 0.0
  %1620 = vmatpush1.msra.mxu0 %v835
  %1621 = vmatprep.subr.mxu0 0.0
  %1622 = vmatpush1.msra.mxu0 %v836
  %1623 = vmatprep.subr.mxu0 0.0
  %1624 = vmatpush1.msra.mxu0 %v837
  %1625 = vmatprep.subr.mxu0 0.0
  %1626 = vmatpush1.msra.mxu0 %v838
  %1627 = vmatprep.subr.mxu0 0.0
  %1628 = vmatpush1.msra.mxu0 %v839
  %1629 = vmatprep.subr.mxu0 0.0
  %1630 = vmatpush1.msra.mxu0 %v840
  %1631 = vmatprep.subr.mxu0 0.0
  %1632 = vmatpush1.msra.mxu0 %v841
  %1633 = vmatprep.subr.mxu0 0.0
  %1634 = vmatpush1.msra.mxu0 %v842
  %1635 = vmatprep.subr.mxu0 0.0
  %1636 = vmatpush1.msra.mxu0 %v843
  %1637 = vmatprep.subr.mxu0 0.0
  %1638 = vmatpush1.msra.mxu0 %v844
  %1639 = vmatprep.subr.mxu0 0.0
  %1640 = vmatpush1.msra.mxu0 %v845
  %1641 = vmatprep.subr.mxu0 0.0
  %1642 = vmatpush1.msra.mxu0 %v846
  %1643 = vmatprep.subr.mxu0 0.0
  %1644 = vmatpush1.msra.mxu0 %v847
  %1645 = vmatprep.subr.mxu0 0.0
  %1646 = vmatpush1.msra.mxu0 %v848
  %1647 = vmatprep.subr.mxu0 0.0
  %1648 = vmatpush1.msra.mxu0 %v849
  %1649 = vmatprep.subr.mxu0 0.0
  %1650 = vmatpush1.msra.mxu0 %v850
  %1651 = vmatprep.subr.mxu0 0.0
  %1652 = vmatpush1.msra.mxu0 %v851
  %1653 = vmatprep.subr.mxu0 0.0
  %1654 = vmatpush1.msra.mxu0 %v852
  %1655 = vmatprep.subr.mxu0 0.0
  %1656 = vmatpush1.msra.mxu0 %v853
  %1657 = vmatprep.subr.mxu0 0.0
  %1658 = vmatpush1.msra.mxu0 %v854
  %1659 = vmatprep.subr.mxu0 0.0
  %1660 = vmatpush1.msra.mxu0 %v855
  %1661 = vmatprep.subr.mxu0 0.0
  %1662 = vmatpush1.msra.mxu0 %v856
  %1663 = vmatprep.subr.mxu0 0.0
  %1664 = vmatpush1.msra.mxu0 %v857
  %1665 = vmatprep.subr.mxu0 0.0
  %1666 = vmatpush1.msra.mxu0 %v858
  %1667 = vmatprep.subr.mxu0 0.0
  %1668 = vmatpush1.msra.mxu0 %v859
  %1669 = vmatprep.subr.mxu0 0.0
  %1670 = vmatpush1.msra.mxu0 %v860
  %1671 = vmatprep.subr.mxu0 0.0
  %1672 = vmatpush1.msra.mxu0 %v861
  %1673 = vmatprep.subr.mxu0 0.0
  %1674 = vmatpush1.msra.mxu0 %v862
  %1675 = vmatprep.mubr.f32.mxu0 %v1508
  %1676 = vmatmul.mubr.f32.gmra.mrb[0].mxu0 %v1507
  %v1677 = vpop.f32.mrb[0].mxu0
  %v1678 = vadd.f32 %v1608, %v1677
  %v1679 = vpop.f32.mrb[0].mxu0
  %1680 = vdwg.mxu0
  %v1683 = vunpack.c.l.s4 1983009808
  %v1684 = vunpack.c.0.s8 %v1683
  %v1685 = vlaneseq
  %v1686 = vshrl.u32 %v1685, 7
  %v1687 = vsub.s32 %v1684, %v1686
  %v1688 = vrot.slane %v1678, %v1687
  %1689 = vrot.lane.b32.xlu0 %v1688, 9
  %v1690 = vpop.permute.xlu0 %1689
  %vm1692 = vcmask 140360
  %1693 = vst.msk [vmem:[#allocation3] sm:$0x3] %vm1692, %v1690
  %v1694 = vld [vmem:[#allocation2] sm:$0x3]
  %v1697 = vunpack.c.l.s4 1983009808
  %v1698 = vunpack.c.0.s8 %v1697
  %v1699 = vlaneseq
  %v1700 = vshrl.u32 %v1699, 7
  %v1701 = vsub.s32 %v1698, %v1700
  %v1702 = vrot.slane %v1694, %v1701
  %1703 = vrot.lane.b32.xlu0 %v1702, 110
  %v1704 = vpop.permute.xlu0 %1703
  %v1705 = vsel %vm873, %v1704, 0
  %1707 = vmatprep.subr.mxu0 %v864
  %1708 = vmatpush1.msra.mxu0 %v863
  %1709 = vmatprep.subr.mxu0 %v882
  %1710 = vmatpush1.msra.mxu0 %v879
  %1711 = vmatprep.subr.mxu0 0.0
  %1712 = vmatpush1.msra.mxu0 0.0
  %1713 = vmatprep.subr.mxu0 0.0
  %1714 = vmatpush1.msra.mxu0 0.0
  %1715 = vmatprep.subr.mxu0 0.0
  %1716 = vmatpush1.msra.mxu0 0.0
  %1717 = vmatprep.subr.mxu0 0.0
  %1718 = vmatpush1.msra.mxu0 0.0
  %1719 = vmatprep.subr.mxu0 0.0
  %1720 = vmatpush1.msra.mxu0 0.0
  %1721 = vmatprep.subr.mxu0 0.0
  %1722 = vmatpush1.msra.mxu0 0.0
  %1723 = vmatprep.subr.mxu0 0.0
  %1724 = vmatpush1.msra.mxu0 0.0
  %1725 = vmatprep.subr.mxu0 0.0
  %1726 = vmatpush1.msra.mxu0 0.0
  %1727 = vmatprep.subr.mxu0 0.0
  %1728 = vmatpush1.msra.mxu0 0.0
  %1729 = vmatprep.subr.mxu0 0.0
  %1730 = vmatpush1.msra.mxu0 0.0
  %1731 = vmatprep.subr.mxu0 0.0
  %1732 = vmatpush1.msra.mxu0 0.0
  %1733 = vmatprep.subr.mxu0 0.0
  %1734 = vmatpush1.msra.mxu0 0.0
  %1735 = vmatprep.subr.mxu0 0.0
  %1736 = vmatpush1.msra.mxu0 0.0
  %1737 = vmatprep.subr.mxu0 0.0
  %1738 = vmatpush1.msra.mxu0 0.0
  %1739 = vmatprep.subr.mxu0 0.0
  %1740 = vmatpush1.msra.mxu0 0.0
  %1741 = vmatprep.subr.mxu0 0.0
  %1742 = vmatpush1.msra.mxu0 0.0
  %1743 = vmatprep.subr.mxu0 0.0
  %1744 = vmatpush1.msra.mxu0 0.0
  %1745 = vmatprep.subr.mxu0 0.0
  %1746 = vmatpush1.msra.mxu0 0.0
  %1747 = vmatprep.subr.mxu0 0.0
  %1748 = vmatpush1.msra.mxu0 0.0
  %1749 = vmatprep.subr.mxu0 0.0
  %1750 = vmatpush1.msra.mxu0 0.0
  %1751 = vmatprep.subr.mxu0 0.0
  %1752 = vmatpush1.msra.mxu0 0.0
  %1753 = vmatprep.subr.mxu0 0.0
  %1754 = vmatpush1.msra.mxu0 0.0
  %1755 = vmatprep.subr.mxu0 0.0
  %1756 = vmatpush1.msra.mxu0 0.0
  %1757 = vmatprep.subr.mxu0 0.0
  %1758 = vmatpush1.msra.mxu0 0.0
  %1759 = vmatprep.subr.mxu0 0.0
  %1760 = vmatpush1.msra.mxu0 0.0
  %1761 = vmatprep.subr.mxu0 0.0
  %1762 = vmatpush1.msra.mxu0 0.0
  %1763 = vmatprep.subr.mxu0 0.0
  %1764 = vmatpush1.msra.mxu0 0.0
  %1765 = vmatprep.subr.mxu0 0.0
  %1766 = vmatpush1.msra.mxu0 0.0
  %1767 = vmatprep.subr.mxu0 0.0
  %1768 = vmatpush1.msra.mxu0 0.0
  %1769 = vmatprep.subr.mxu0 0.0
  %1770 = vmatpush1.msra.mxu0 0.0
  %1771 = vmatprep.mubr.f32.mxu0 0.0
  %1772 = vmatmul.mubr.f32.gmra.mrb[0].mxu0 %v1705
  %v1773 = vpop.f32.mrb[0].mxu0
  %v1774 = vadd.f32 0.0, %v1773
  %v1775 = vpop.f32.mrb[0].mxu0
  %v1776 = vadd.f32 0.0, %v1775
  %1777 = vdwg.mxu0
  %1778 = vmatprep.subr.mxu0 %v866
  %1779 = vmatpush1.msra.mxu0 %v865
  %1780 = vmatprep.subr.mxu0 %v888
  %1781 = vmatpush1.msra.mxu0 %v885
  %1782 = vmatprep.subr.mxu0 0.0
  %1783 = vmatpush1.msra.mxu0 0.0
  %1784 = vmatprep.subr.mxu0 0.0
  %1785 = vmatpush1.msra.mxu0 0.0
  %1786 = vmatprep.subr.mxu0 0.0
  %1787 = vmatpush1.msra.mxu0 0.0
  %1788 = vmatprep.subr.mxu0 0.0
  %1789 = vmatpush1.msra.mxu0 0.0
  %1790 = vmatprep.subr.mxu0 0.0
  %1791 = vmatpush1.msra.mxu0 0.0
  %1792 = vmatprep.subr.mxu0 0.0
  %1793 = vmatpush1.msra.mxu0 0.0
  %1794 = vmatprep.subr.mxu0 0.0
  %1795 = vmatpush1.msra.mxu0 0.0
  %1796 = vmatprep.subr.mxu0 0.0
  %1797 = vmatpush1.msra.mxu0 0.0
  %1798 = vmatprep.subr.mxu0 0.0
  %1799 = vmatpush1.msra.mxu0 0.0
  %1800 = vmatprep.subr.mxu0 0.0
  %1801 = vmatpush1.msra.mxu0 0.0
  %1802 = vmatprep.subr.mxu0 0.0
  %1803 = vmatpush1.msra.mxu0 0.0
  %1804 = vmatprep.subr.mxu0 0.0
  %1805 = vmatpush1.msra.mxu0 0.0
  %1806 = vmatprep.subr.mxu0 0.0
  %1807 = vmatpush1.msra.mxu0 0.0
  %1808 = vmatprep.subr.mxu0 0.0
  %1809 = vmatpush1.msra.mxu0 0.0
  %1810 = vmatprep.subr.mxu0 0.0
  %1811 = vmatpush1.msra.mxu0 0.0
  %1812 = vmatprep.subr.mxu0 0.0
  %1813 = vmatpush1.msra.mxu0 0.0
  %1814 = vmatprep.subr.mxu0 0.0
  %1815 = vmatpush1.msra.mxu0 0.0
  %1816 = vmatprep.subr.mxu0 0.0
  %1817 = vmatpush1.msra.mxu0 0.0
  %1818 = vmatprep.subr.mxu0 0.0
  %1819 = vmatpush1.msra.mxu0 0.0
  %1820 = vmatprep.subr.mxu0 0.0
  %1821 = vmatpush1.msra.mxu0 0.0
  %1822 = vmatprep.subr.mxu0 0.0
  %1823 = vmatpush1.msra.mxu0 0.0
  %1824 = vmatprep.subr.mxu0 0.0
  %1825 = vmatpush1.msra.mxu0 0.0
  %1826 = vmatprep.subr.mxu0 0.0
  %1827 = vmatpush1.msra.mxu0 0.0
  %1828 = vmatprep.subr.mxu0 0.0
  %1829 = vmatpush1.msra.mxu0 0.0
  %1830 = vmatprep.subr.mxu0 0.0
  %1831 = vmatpush1.msra.mxu0 0.0
  %1832 = vmatprep.subr.mxu0 0.0
  %1833 = vmatpush1.msra.mxu0 0.0
  %1834 = vmatprep.subr.mxu0 0.0
  %1835 = vmatpush1.msra.mxu0 0.0
  %1836 = vmatprep.subr.mxu0 0.0
  %1837 = vmatpush1.msra.mxu0 0.0
  %1838 = vmatprep.subr.mxu0 0.0
  %1839 = vmatpush1.msra.mxu0 0.0
  %1840 = vmatprep.subr.mxu0 0.0
  %1841 = vmatpush1.msra.mxu0 0.0
  %1842 = vmatprep.mubr.f32.mxu0 0.0
  %1843 = vmatmul.mubr.f32.gmra.mrb[0].mxu0 %v1705
  %v1844 = vpop.f32.mrb[0].mxu0
  %v1845 = vadd.f32 0.0, %v1844
  %v1846 = vpop.f32.mrb[0].mxu0
  %v1847 = vadd.f32 0.0, %v1846
  %1848 = vdwg.mxu0
  %v1849 = vmul.f32 %v1774, 2.0
  %v1850 = vmul.f32 %v1776, 2.0
  %v1851 = vmul.f32 %v1845, 2.0
  %v1852 = vmul.f32 %v1847, 2.0
  %v1853 = vsub.f32 %v1040, %v1849
  %v1854 = vsub.f32 %v1044, %v1850
  %v1855 = vsub.f32 %v1048, %v1851
  %v1856 = vsub.f32 %v1052, %v1852
  %v1857 = vsel %vm795, %v1853, inf
  %v1858 = vsel %vm795, %v1854, inf
  %v1859 = vsel %vm795, %v1855, inf
  %v1860 = vsel %vm795, %v1856, inf
  %v1861 = vmin.f32 %v1857, %v1858
  %v1862 = vmin.f32 %v1859, %v1860
  %v1863 = vmin.f32 %v1861, %v1862
  %1864 = vmin.xlane.f32.xlu0 %v1863
  %v1865 = vpop.xlane.xlu0 %1864
  %vm1866 = vcmp.le.f32.partialorder %v1853, %v1865
  %vm1867 = vcmp.le.f32.partialorder %v1854, %v1865
  %vm1868 = vcmp.le.f32.partialorder %v1855, %v1865
  %vm1869 = vcmp.le.f32.partialorder %v1856, %v1865
  %v1870 = vsel %vm1866, %v1071, 512
  %v1871 = vsel %vm1867, %v1072, 512
  %v1872 = vsel %vm1868, %v1073, 512
  %v1873 = vsel %vm1869, %v1074, 512
  %v1874 = vsel %vm795, %v1870, 2147483647
  %v1875 = vsel %vm795, %v1871, 2147483647
  %v1876 = vsel %vm795, %v1872, 2147483647
  %v1877 = vsel %vm795, %v1873, 2147483647
  %vm1878 = vcmp.lt.s32.totalorder %v1874, %v1875
  %v1879 = vsel %vm1878, %v1874, %v1875
  %vm1880 = vcmp.lt.s32.totalorder %v1876, %v1877
  %v1881 = vsel %vm1880, %v1876, %v1877
  %vm1882 = vcmp.lt.s32.totalorder %v1879, %v1881
  %v1883 = vsel %vm1882, %v1879, %v1881
  %v1884 = vand.u32 %v1883, 65535
  %v1885 = vshra.s32 %v1883, 16
  %v1886 = vcvt.s32.f32 %v1884
  %v1887 = vcvt.s32.f32 %v1885
  %1888 = vmin.xlane.f32.xlu0 %v1887
  %v1889 = vpop.xlane.xlu0 %1888
  %vm1890 = vcmp.eq.f32.partialorder %v1887, %v1889
  %v1891 = vsel %vm1890, %v1886, inf
  %1892 = vmin.xlane.f32.xlu0 %v1891
  %v1893 = vpop.xlane.xlu0 %1892
  %v1894 = vcvt.f32.s32 %v1893
  %v1895 = vcvt.f32.s32 %v1889
  %v1896 = vshll.u32 %v1895, 16
  %v1897 = vadd.s32 %v1896, %v1894
  %vm1898 = vcmp.eq.s32.totalorder %v1071, %v1897
  %vm1899 = vcmp.eq.s32.totalorder %v1072, %v1897
  %vm1900 = vcmp.eq.s32.totalorder %v1073, %v1897
  %vm1901 = vcmp.eq.s32.totalorder %v1074, %v1897
  %v1902 = vsel %vm1898, 1, 0
  %v1903 = vsel %vm1899, 1, 0
  %v1904 = vsel %vm1900, 1, 0
  %v1905 = vsel %vm1901, 1, 0
  %v1906 = vcvt.s32.f32 %v1902
  %v1907 = vcvt.s32.f32 %v1903
  %v1908 = vcvt.s32.f32 %v1904
  %v1909 = vcvt.s32.f32 %v1905
  %v1910 = vsel %vm795, %v1906, 0.0
  %v1911 = vrot.slane %v1910, 4
  %v1912 = vadd.f32 %v1910, %v1911
  %v1913 = vrot.slane %v1912, 2
  %v1914 = vadd.f32 %v1912, %v1913
  %v1915 = vrot.slane %v1914, 1
  %v1916 = vadd.f32 %v1914, %v1915
  %v1917 = vsel %vm795, %v1907, 0.0
  %v1918 = vrot.slane %v1917, 4
  %v1919 = vadd.f32 %v1917, %v1918
  %v1920 = vrot.slane %v1919, 2
  %v1921 = vadd.f32 %v1919, %v1920
  %v1922 = vrot.slane %v1921, 1
  %v1923 = vadd.f32 %v1921, %v1922
  %v1924 = vsel %vm795, %v1908, 0.0
  %v1925 = vrot.slane %v1924, 4
  %v1926 = vadd.f32 %v1924, %v1925
  %v1927 = vrot.slane %v1926, 2
  %v1928 = vadd.f32 %v1926, %v1927
  %v1929 = vrot.slane %v1928, 1
  %v1930 = vadd.f32 %v1928, %v1929
  %v1931 = vsel %vm795, %v1909, 0.0
  %v1932 = vrot.slane %v1931, 4
  %v1933 = vadd.f32 %v1931, %v1932
  %v1934 = vrot.slane %v1933, 2
  %v1935 = vadd.f32 %v1933, %v1934
  %v1936 = vrot.slane %v1935, 1
  %v1937 = vadd.f32 %v1935, %v1936
  %v1938 = vadd.f32 %v1537, %v1916
  %v1939 = vadd.f32 %v1538, %v1923
  %v1940 = vadd.f32 %v1539, %v1930
  %v1941 = vadd.f32 %v1540, %v1937
  %1942 = vmatprep.subr.mxu0 0.0
  %1943 = vmatpush1.msra.mxu0 %v799
  %1944 = vmatprep.subr.mxu0 0.0
  %1945 = vmatpush1.msra.mxu0 %v800
  %1946 = vmatprep.subr.mxu0 0.0
  %1947 = vmatpush1.msra.mxu0 %v801
  %1948 = vmatprep.subr.mxu0 0.0
  %1949 = vmatpush1.msra.mxu0 %v802
  %1950 = vmatprep.subr.mxu0 0.0
  %1951 = vmatpush1.msra.mxu0 %v803
  %1952 = vmatprep.subr.mxu0 0.0
  %1953 = vmatpush1.msra.mxu0 %v804
  %1954 = vmatprep.subr.mxu0 0.0
  %1955 = vmatpush1.msra.mxu0 %v805
  %1956 = vmatprep.subr.mxu0 0.0
  %1957 = vmatpush1.msra.mxu0 %v806
  %1958 = vmatprep.subr.mxu0 0.0
  %1959 = vmatpush1.msra.mxu0 %v807
  %1960 = vmatprep.subr.mxu0 0.0
  %1961 = vmatpush1.msra.mxu0 %v808
  %1962 = vmatprep.subr.mxu0 0.0
  %1963 = vmatpush1.msra.mxu0 %v809
  %1964 = vmatprep.subr.mxu0 0.0
  %1965 = vmatpush1.msra.mxu0 %v810
  %1966 = vmatprep.subr.mxu0 0.0
  %1967 = vmatpush1.msra.mxu0 %v811
  %1968 = vmatprep.subr.mxu0 0.0
  %1969 = vmatpush1.msra.mxu0 %v812
  %1970 = vmatprep.subr.mxu0 0.0
  %1971 = vmatpush1.msra.mxu0 %v813
  %1972 = vmatprep.subr.mxu0 0.0
  %1973 = vmatpush1.msra.mxu0 %v814
  %1974 = vmatprep.subr.mxu0 0.0
  %1975 = vmatpush1.msra.mxu0 %v815
  %1976 = vmatprep.subr.mxu0 0.0
  %1977 = vmatpush1.msra.mxu0 %v816
  %1978 = vmatprep.subr.mxu0 0.0
  %1979 = vmatpush1.msra.mxu0 %v817
  %1980 = vmatprep.subr.mxu0 0.0
  %1981 = vmatpush1.msra.mxu0 %v818
  %1982 = vmatprep.subr.mxu0 0.0
  %1983 = vmatpush1.msra.mxu0 %v819
  %1984 = vmatprep.subr.mxu0 0.0
  %1985 = vmatpush1.msra.mxu0 %v820
  %1986 = vmatprep.subr.mxu0 0.0
  %1987 = vmatpush1.msra.mxu0 %v821
  %1988 = vmatprep.subr.mxu0 0.0
  %1989 = vmatpush1.msra.mxu0 %v822
  %1990 = vmatprep.subr.mxu0 0.0
  %1991 = vmatpush1.msra.mxu0 %v823
  %1992 = vmatprep.subr.mxu0 0.0
  %1993 = vmatpush1.msra.mxu0 %v824
  %1994 = vmatprep.subr.mxu0 0.0
  %1995 = vmatpush1.msra.mxu0 %v825
  %1996 = vmatprep.subr.mxu0 0.0
  %1997 = vmatpush1.msra.mxu0 %v826
  %1998 = vmatprep.subr.mxu0 0.0
  %1999 = vmatpush1.msra.mxu0 %v827
  %2000 = vmatprep.subr.mxu0 0.0
  %2001 = vmatpush1.msra.mxu0 %v828
  %2002 = vmatprep.subr.mxu0 0.0
  %2003 = vmatpush1.msra.mxu0 %v829
  %2004 = vmatprep.subr.mxu0 0.0
  %2005 = vmatpush1.msra.mxu0 %v830
  %2006 = vmatprep.mubr.f32.mxu0 %v1907
  %2007 = vmatmul.mubr.f32.gmra.mrb[0].mxu0 %v1906
  %v2008 = vpop.f32.mrb[0].mxu0
  %v2009 = vadd.f32 0.0, %v2008
  %v2010 = vpop.f32.mrb[0].mxu0
  %2011 = vdwg.mxu0
  %2012 = vmatprep.subr.mxu0 0.0
  %2013 = vmatpush1.msra.mxu0 %v831
  %2014 = vmatprep.subr.mxu0 0.0
  %2015 = vmatpush1.msra.mxu0 %v832
  %2016 = vmatprep.subr.mxu0 0.0
  %2017 = vmatpush1.msra.mxu0 %v833
  %2018 = vmatprep.subr.mxu0 0.0
  %2019 = vmatpush1.msra.mxu0 %v834
  %2020 = vmatprep.subr.mxu0 0.0
  %2021 = vmatpush1.msra.mxu0 %v835
  %2022 = vmatprep.subr.mxu0 0.0
  %2023 = vmatpush1.msra.mxu0 %v836
  %2024 = vmatprep.subr.mxu0 0.0
  %2025 = vmatpush1.msra.mxu0 %v837
  %2026 = vmatprep.subr.mxu0 0.0
  %2027 = vmatpush1.msra.mxu0 %v838
  %2028 = vmatprep.subr.mxu0 0.0
  %2029 = vmatpush1.msra.mxu0 %v839
  %2030 = vmatprep.subr.mxu0 0.0
  %2031 = vmatpush1.msra.mxu0 %v840
  %2032 = vmatprep.subr.mxu0 0.0
  %2033 = vmatpush1.msra.mxu0 %v841
  %2034 = vmatprep.subr.mxu0 0.0
  %2035 = vmatpush1.msra.mxu0 %v842
  %2036 = vmatprep.subr.mxu0 0.0
  %2037 = vmatpush1.msra.mxu0 %v843
  %2038 = vmatprep.subr.mxu0 0.0
  %2039 = vmatpush1.msra.mxu0 %v844
  %2040 = vmatprep.subr.mxu0 0.0
  %2041 = vmatpush1.msra.mxu0 %v845
  %2042 = vmatprep.subr.mxu0 0.0
  %2043 = vmatpush1.msra.mxu0 %v846
  %2044 = vmatprep.subr.mxu0 0.0
  %2045 = vmatpush1.msra.mxu0 %v847
  %2046 = vmatprep.subr.mxu0 0.0
  %2047 = vmatpush1.msra.mxu0 %v848
  %2048 = vmatprep.subr.mxu0 0.0
  %2049 = vmatpush1.msra.mxu0 %v849
  %2050 = vmatprep.subr.mxu0 0.0
  %2051 = vmatpush1.msra.mxu0 %v850
  %2052 = vmatprep.subr.mxu0 0.0
  %2053 = vmatpush1.msra.mxu0 %v851
  %2054 = vmatprep.subr.mxu0 0.0
  %2055 = vmatpush1.msra.mxu0 %v852
  %2056 = vmatprep.subr.mxu0 0.0
  %2057 = vmatpush1.msra.mxu0 %v853
  %2058 = vmatprep.subr.mxu0 0.0
  %2059 = vmatpush1.msra.mxu0 %v854
  %2060 = vmatprep.subr.mxu0 0.0
  %2061 = vmatpush1.msra.mxu0 %v855
  %2062 = vmatprep.subr.mxu0 0.0
  %2063 = vmatpush1.msra.mxu0 %v856
  %2064 = vmatprep.subr.mxu0 0.0
  %2065 = vmatpush1.msra.mxu0 %v857
  %2066 = vmatprep.subr.mxu0 0.0
  %2067 = vmatpush1.msra.mxu0 %v858
  %2068 = vmatprep.subr.mxu0 0.0
  %2069 = vmatpush1.msra.mxu0 %v859
  %2070 = vmatprep.subr.mxu0 0.0
  %2071 = vmatpush1.msra.mxu0 %v860
  %2072 = vmatprep.subr.mxu0 0.0
  %2073 = vmatpush1.msra.mxu0 %v861
  %2074 = vmatprep.subr.mxu0 0.0
  %2075 = vmatpush1.msra.mxu0 %v862
  %2076 = vmatprep.mubr.f32.mxu0 %v1909
  %2077 = vmatmul.mubr.f32.gmra.mrb[0].mxu0 %v1908
  %v2078 = vpop.f32.mrb[0].mxu0
  %v2079 = vadd.f32 %v2009, %v2078
  %v2080 = vpop.f32.mrb[0].mxu0
  %2081 = vdwg.mxu0
  %v2084 = vunpack.c.l.s4 1983009808
  %v2085 = vunpack.c.0.s8 %v2084
  %v2086 = vlaneseq
  %v2087 = vshrl.u32 %v2086, 7
  %v2088 = vsub.s32 %v2085, %v2087
  %v2089 = vrot.slane %v2079, %v2088
  %2090 = vrot.lane.b32.xlu0 %v2089, 18
  %v2091 = vpop.permute.xlu0 %2090
  %vm2093 = vcmask 214160
  %2094 = vst.msk [vmem:[#allocation3] sm:$0x3] %vm2093, %v2091
  %v2095 = vld [vmem:[#allocation2] sm:$0x3]
  %v2098 = vunpack.c.l.s4 1983009808
  %v2099 = vunpack.c.0.s8 %v2098
  %v2100 = vlaneseq
  %v2101 = vshrl.u32 %v2100, 7
  %v2102 = vsub.s32 %v2099, %v2101
  %v2103 = vrot.slane %v2095, %v2102
  %2104 = vrot.lane.b32.xlu0 %v2103, 101
  %v2105 = vpop.permute.xlu0 %2104
  %v2106 = vsel %vm873, %v2105, 0
  %2108 = vmatprep.subr.mxu0 %v864
  %2109 = vmatpush1.msra.mxu0 %v863
  %2110 = vmatprep.subr.mxu0 %v882
  %2111 = vmatpush1.msra.mxu0 %v879
  %2112 = vmatprep.subr.mxu0 0.0
  %2113 = vmatpush1.msra.mxu0 0.0
  %2114 = vmatprep.subr.mxu0 0.0
  %2115 = vmatpush1.msra.mxu0 0.0
  %2116 = vmatprep.subr.mxu0 0.0
  %2117 = vmatpush1.msra.mxu0 0.0
  %2118 = vmatprep.subr.mxu0 0.0
  %2119 = vmatpush1.msra.mxu0 0.0
  %2120 = vmatprep.subr.mxu0 0.0
  %2121 = vmatpush1.msra.mxu0 0.0
  %2122 = vmatprep.subr.mxu0 0.0
  %2123 = vmatpush1.msra.mxu0 0.0
  %2124 = vmatprep.subr.mxu0 0.0
  %2125 = vmatpush1.msra.mxu0 0.0
  %2126 = vmatprep.subr.mxu0 0.0
  %2127 = vmatpush1.msra.mxu0 0.0
  %2128 = vmatprep.subr.mxu0 0.0
  %2129 = vmatpush1.msra.mxu0 0.0
  %2130 = vmatprep.subr.mxu0 0.0
  %2131 = vmatpush1.msra.mxu0 0.0
  %2132 = vmatprep.subr.mxu0 0.0
  %2133 = vmatpush1.msra.mxu0 0.0
  %2134 = vmatprep.subr.mxu0 0.0
  %2135 = vmatpush1.msra.mxu0 0.0
  %2136 = vmatprep.subr.mxu0 0.0
  %2137 = vmatpush1.msra.mxu0 0.0
  %2138 = vmatprep.subr.mxu0 0.0
  %2139 = vmatpush1.msra.mxu0 0.0
  %2140 = vmatprep.subr.mxu0 0.0
  %2141 = vmatpush1.msra.mxu0 0.0
  %2142 = vmatprep.subr.mxu0 0.0
  %2143 = vmatpush1.msra.mxu0 0.0
  %2144 = vmatprep.subr.mxu0 0.0
  %2145 = vmatpush1.msra.mxu0 0.0
  %2146 = vmatprep.subr.mxu0 0.0
  %2147 = vmatpush1.msra.mxu0 0.0
  %2148 = vmatprep.subr.mxu0 0.0
  %2149 = vmatpush1.msra.mxu0 0.0
  %2150 = vmatprep.subr.mxu0 0.0
  %2151 = vmatpush1.msra.mxu0 0.0
  %2152 = vmatprep.subr.mxu0 0.0
  %2153 = vmatpush1.msra.mxu0 0.0
  %2154 = vmatprep.subr.mxu0 0.0
  %2155 = vmatpush1.msra.mxu0 0.0
  %2156 = vmatprep.subr.mxu0 0.0
  %2157 = vmatpush1.msra.mxu0 0.0
  %2158 = vmatprep.subr.mxu0 0.0
  %2159 = vmatpush1.msra.mxu0 0.0
  %2160 = vmatprep.subr.mxu0 0.0
  %2161 = vmatpush1.msra.mxu0 0.0
  %2162 = vmatprep.subr.mxu0 0.0
  %2163 = vmatpush1.msra.mxu0 0.0
  %2164 = vmatprep.subr.mxu0 0.0
  %2165 = vmatpush1.msra.mxu0 0.0
  %2166 = vmatprep.subr.mxu0 0.0
  %2167 = vmatpush1.msra.mxu0 0.0
  %2168 = vmatprep.subr.mxu0 0.0
  %2169 = vmatpush1.msra.mxu0 0.0
  %2170 = vmatprep.subr.mxu0 0.0
  %2171 = vmatpush1.msra.mxu0 0.0
  %2172 = vmatprep.mubr.f32.mxu0 0.0
  %2173 = vmatmul.mubr.f32.gmra.mrb[0].mxu0 %v2106
  %v2174 = vpop.f32.mrb[0].mxu0
  %v2175 = vadd.f32 0.0, %v2174
  %v2176 = vpop.f32.mrb[0].mxu0
  %v2177 = vadd.f32 0.0, %v2176
  %2178 = vdwg.mxu0
  %2179 = vmatprep.subr.mxu0 %v866
  %2180 = vmatpush1.msra.mxu0 %v865
  %2181 = vmatprep.subr.mxu0 %v888
  %2182 = vmatpush1.msra.mxu0 %v885
  %2183 = vmatprep.subr.mxu0 0.0
  %2184 = vmatpush1.msra.mxu0 0.0
  %2185 = vmatprep.subr.mxu0 0.0
  %2186 = vmatpush1.msra.mxu0 0.0
  %2187 = vmatprep.subr.mxu0 0.0
  %2188 = vmatpush1.msra.mxu0 0.0
  %2189 = vmatprep.subr.mxu0 0.0
  %2190 = vmatpush1.msra.mxu0 0.0
  %2191 = vmatprep.subr.mxu0 0.0
  %2192 = vmatpush1.msra.mxu0 0.0
  %2193 = vmatprep.subr.mxu0 0.0
  %2194 = vmatpush1.msra.mxu0 0.0
  %2195 = vmatprep.subr.mxu0 0.0
  %2196 = vmatpush1.msra.mxu0 0.0
  %2197 = vmatprep.subr.mxu0 0.0
  %2198 = vmatpush1.msra.mxu0 0.0
  %2199 = vmatprep.subr.mxu0 0.0
  %2200 = vmatpush1.msra.mxu0 0.0
  %2201 = vmatprep.subr.mxu0 0.0
  %2202 = vmatpush1.msra.mxu0 0.0
  %2203 = vmatprep.subr.mxu0 0.0
  %2204 = vmatpush1.msra.mxu0 0.0
  %2205 = vmatprep.subr.mxu0 0.0
  %2206 = vmatpush1.msra.mxu0 0.0
  %2207 = vmatprep.subr.mxu0 0.0
  %2208 = vmatpush1.msra.mxu0 0.0
  %2209 = vmatprep.subr.mxu0 0.0
  %2210 = vmatpush1.msra.mxu0 0.0
  %2211 = vmatprep.subr.mxu0 0.0
  %2212 = vmatpush1.msra.mxu0 0.0
  %2213 = vmatprep.subr.mxu0 0.0
  %2214 = vmatpush1.msra.mxu0 0.0
  %2215 = vmatprep.subr.mxu0 0.0
  %2216 = vmatpush1.msra.mxu0 0.0
  %2217 = vmatprep.subr.mxu0 0.0
  %2218 = vmatpush1.msra.mxu0 0.0
  %2219 = vmatprep.subr.mxu0 0.0
  %2220 = vmatpush1.msra.mxu0 0.0
  %2221 = vmatprep.subr.mxu0 0.0
  %2222 = vmatpush1.msra.mxu0 0.0
  %2223 = vmatprep.subr.mxu0 0.0
  %2224 = vmatpush1.msra.mxu0 0.0
  %2225 = vmatprep.subr.mxu0 0.0
  %2226 = vmatpush1.msra.mxu0 0.0
  %2227 = vmatprep.subr.mxu0 0.0
  %2228 = vmatpush1.msra.mxu0 0.0
  %2229 = vmatprep.subr.mxu0 0.0
  %2230 = vmatpush1.msra.mxu0 0.0
  %2231 = vmatprep.subr.mxu0 0.0
  %2232 = vmatpush1.msra.mxu0 0.0
  %2233 = vmatprep.subr.mxu0 0.0
  %2234 = vmatpush1.msra.mxu0 0.0
  %2235 = vmatprep.subr.mxu0 0.0
  %2236 = vmatpush1.msra.mxu0 0.0
  %2237 = vmatprep.subr.mxu0 0.0
  %2238 = vmatpush1.msra.mxu0 0.0
  %2239 = vmatprep.subr.mxu0 0.0
  %2240 = vmatpush1.msra.mxu0 0.0
  %2241 = vmatprep.subr.mxu0 0.0
  %2242 = vmatpush1.msra.mxu0 0.0
  %2243 = vmatprep.mubr.f32.mxu0 0.0
  %2244 = vmatmul.mubr.f32.gmra.mrb[0].mxu0 %v2106
  %v2245 = vpop.f32.mrb[0].mxu0
  %v2246 = vadd.f32 0.0, %v2245
  %v2247 = vpop.f32.mrb[0].mxu0
  %v2248 = vadd.f32 0.0, %v2247
  %2249 = vdwg.mxu0
  %v2250 = vmul.f32 %v2175, 2.0
  %v2251 = vmul.f32 %v2177, 2.0
  %v2252 = vmul.f32 %v2246, 2.0
  %v2253 = vmul.f32 %v2248, 2.0
  %v2254 = vsub.f32 %v1040, %v2250
  %v2255 = vsub.f32 %v1044, %v2251
  %v2256 = vsub.f32 %v1048, %v2252
  %v2257 = vsub.f32 %v1052, %v2253
  %v2258 = vsel %vm795, %v2254, inf
  %v2259 = vsel %vm795, %v2255, inf
  %v2260 = vsel %vm795, %v2256, inf
  %v2261 = vsel %vm795, %v2257, inf
  %v2262 = vmin.f32 %v2258, %v2259
  %v2263 = vmin.f32 %v2260, %v2261
  %v2264 = vmin.f32 %v2262, %v2263
  %2265 = vmin.xlane.f32.xlu0 %v2264
  %v2266 = vpop.xlane.xlu0 %2265
  %vm2267 = vcmp.le.f32.partialorder %v2254, %v2266
  %vm2268 = vcmp.le.f32.partialorder %v2255, %v2266
  %vm2269 = vcmp.le.f32.partialorder %v2256, %v2266
  %vm2270 = vcmp.le.f32.partialorder %v2257, %v2266
  %v2271 = vsel %vm2267, %v1071, 512
  %v2272 = vsel %vm2268, %v1072, 512
  %v2273 = vsel %vm2269, %v1073, 512
  %v2274 = vsel %vm2270, %v1074, 512
  %v2275 = vsel %vm795, %v2271, 2147483647
  %v2276 = vsel %vm795, %v2272, 2147483647
  %v2277 = vsel %vm795, %v2273, 2147483647
  %v2278 = vsel %vm795, %v2274, 2147483647
  %vm2279 = vcmp.lt.s32.totalorder %v2275, %v2276
  %v2280 = vsel %vm2279, %v2275, %v2276
  %vm2281 = vcmp.lt.s32.totalorder %v2277, %v2278
  %v2282 = vsel %vm2281, %v2277, %v2278
  %vm2283 = vcmp.lt.s32.totalorder %v2280, %v2282
  %v2284 = vsel %vm2283, %v2280, %v2282
  %v2285 = vand.u32 %v2284, 65535
  %v2286 = vshra.s32 %v2284, 16
  %v2287 = vcvt.s32.f32 %v2285
  %v2288 = vcvt.s32.f32 %v2286
  %2289 = vmin.xlane.f32.xlu0 %v2288
  %v2290 = vpop.xlane.xlu0 %2289
  %vm2291 = vcmp.eq.f32.partialorder %v2288, %v2290
  %v2292 = vsel %vm2291, %v2287, inf
  %2293 = vmin.xlane.f32.xlu0 %v2292
  %v2294 = vpop.xlane.xlu0 %2293
  %v2295 = vcvt.f32.s32 %v2294
  %v2296 = vcvt.f32.s32 %v2290
  %v2297 = vshll.u32 %v2296, 16
  %v2298 = vadd.s32 %v2297, %v2295
  %vm2299 = vcmp.eq.s32.totalorder %v1071, %v2298
  %vm2300 = vcmp.eq.s32.totalorder %v1072, %v2298
  %vm2301 = vcmp.eq.s32.totalorder %v1073, %v2298
  %vm2302 = vcmp.eq.s32.totalorder %v1074, %v2298
  %v2303 = vsel %vm2299, 1, 0
  %v2304 = vsel %vm2300, 1, 0
  %v2305 = vsel %vm2301, 1, 0
  %v2306 = vsel %vm2302, 1, 0
  %v2307 = vcvt.s32.f32 %v2303
  %v2308 = vcvt.s32.f32 %v2304
  %v2309 = vcvt.s32.f32 %v2305
  %v2310 = vcvt.s32.f32 %v2306
  %v2311 = vsel %vm795, %v2307, 0.0
  %v2312 = vrot.slane %v2311, 4
  %v2313 = vadd.f32 %v2311, %v2312
  %v2314 = vrot.slane %v2313, 2
  %v2315 = vadd.f32 %v2313, %v2314
  %v2316 = vrot.slane %v2315, 1
  %v2317 = vadd.f32 %v2315, %v2316
  %v2318 = vsel %vm795, %v2308, 0.0
  %v2319 = vrot.slane %v2318, 4
  %v2320 = vadd.f32 %v2318, %v2319
  %v2321 = vrot.slane %v2320, 2
  %v2322 = vadd.f32 %v2320, %v2321
  %v2323 = vrot.slane %v2322, 1
  %v2324 = vadd.f32 %v2322, %v2323
  %v2325 = vsel %vm795, %v2309, 0.0
  %v2326 = vrot.slane %v2325, 4
  %v2327 = vadd.f32 %v2325, %v2326
  %v2328 = vrot.slane %v2327, 2
  %v2329 = vadd.f32 %v2327, %v2328
  %v2330 = vrot.slane %v2329, 1
  %v2331 = vadd.f32 %v2329, %v2330
  %v2332 = vsel %vm795, %v2310, 0.0
  %v2333 = vrot.slane %v2332, 4
  %v2334 = vadd.f32 %v2332, %v2333
  %v2335 = vrot.slane %v2334, 2
  %v2336 = vadd.f32 %v2334, %v2335
  %v2337 = vrot.slane %v2336, 1
  %v2338 = vadd.f32 %v2336, %v2337
  %v2339 = vadd.f32 %v1938, %v2317
  %v2340 = vadd.f32 %v1939, %v2324
  %v2341 = vadd.f32 %v1940, %v2331
  %v2342 = vadd.f32 %v1941, %v2338
  %2343 = vmatprep.subr.mxu0 0.0
  %2344 = vmatpush1.msra.mxu0 %v799
  %2345 = vmatprep.subr.mxu0 0.0
  %2346 = vmatpush1.msra.mxu0 %v800
  %2347 = vmatprep.subr.mxu0 0.0
  %2348 = vmatpush1.msra.mxu0 %v801
  %2349 = vmatprep.subr.mxu0 0.0
  %2350 = vmatpush1.msra.mxu0 %v802
  %2351 = vmatprep.subr.mxu0 0.0
  %2352 = vmatpush1.msra.mxu0 %v803
  %2353 = vmatprep.subr.mxu0 0.0
  %2354 = vmatpush1.msra.mxu0 %v804
  %2355 = vmatprep.subr.mxu0 0.0
  %2356 = vmatpush1.msra.mxu0 %v805
  %2357 = vmatprep.subr.mxu0 0.0
  %2358 = vmatpush1.msra.mxu0 %v806
  %2359 = vmatprep.subr.mxu0 0.0
  %2360 = vmatpush1.msra.mxu0 %v807
  %2361 = vmatprep.subr.mxu0 0.0
  %2362 = vmatpush1.msra.mxu0 %v808
  %2363 = vmatprep.subr.mxu0 0.0
  %2364 = vmatpush1.msra.mxu0 %v809
  %2365 = vmatprep.subr.mxu0 0.0
  %2366 = vmatpush1.msra.mxu0 %v810
  %2367 = vmatprep.subr.mxu0 0.0
  %2368 = vmatpush1.msra.mxu0 %v811
  %2369 = vmatprep.subr.mxu0 0.0
  %2370 = vmatpush1.msra.mxu0 %v812
  %2371 = vmatprep.subr.mxu0 0.0
  %2372 = vmatpush1.msra.mxu0 %v813
  %2373 = vmatprep.subr.mxu0 0.0
  %2374 = vmatpush1.msra.mxu0 %v814
  %2375 = vmatprep.subr.mxu0 0.0
  %2376 = vmatpush1.msra.mxu0 %v815
  %2377 = vmatprep.subr.mxu0 0.0
  %2378 = vmatpush1.msra.mxu0 %v816
  %2379 = vmatprep.subr.mxu0 0.0
  %2380 = vmatpush1.msra.mxu0 %v817
  %2381 = vmatprep.subr.mxu0 0.0
  %2382 = vmatpush1.msra.mxu0 %v818
  %2383 = vmatprep.subr.mxu0 0.0
  %2384 = vmatpush1.msra.mxu0 %v819
  %2385 = vmatprep.subr.mxu0 0.0
  %2386 = vmatpush1.msra.mxu0 %v820
  %2387 = vmatprep.subr.mxu0 0.0
  %2388 = vmatpush1.msra.mxu0 %v821
  %2389 = vmatprep.subr.mxu0 0.0
  %2390 = vmatpush1.msra.mxu0 %v822
  %2391 = vmatprep.subr.mxu0 0.0
  %2392 = vmatpush1.msra.mxu0 %v823
  %2393 = vmatprep.subr.mxu0 0.0
  %2394 = vmatpush1.msra.mxu0 %v824
  %2395 = vmatprep.subr.mxu0 0.0
  %2396 = vmatpush1.msra.mxu0 %v825
  %2397 = vmatprep.subr.mxu0 0.0
  %2398 = vmatpush1.msra.mxu0 %v826
  %2399 = vmatprep.subr.mxu0 0.0
  %2400 = vmatpush1.msra.mxu0 %v827
  %2401 = vmatprep.subr.mxu0 0.0
  %2402 = vmatpush1.msra.mxu0 %v828
  %2403 = vmatprep.subr.mxu0 0.0
  %2404 = vmatpush1.msra.mxu0 %v829
  %2405 = vmatprep.subr.mxu0 0.0
  %2406 = vmatpush1.msra.mxu0 %v830
  %2407 = vmatprep.mubr.f32.mxu0 %v2308
  %2408 = vmatmul.mubr.f32.gmra.mrb[0].mxu0 %v2307
  %v2409 = vpop.f32.mrb[0].mxu0
  %v2410 = vadd.f32 0.0, %v2409
  %v2411 = vpop.f32.mrb[0].mxu0
  %2412 = vdwg.mxu0
  %2413 = vmatprep.subr.mxu0 0.0
  %2414 = vmatpush1.msra.mxu0 %v831
  %2415 = vmatprep.subr.mxu0 0.0
  %2416 = vmatpush1.msra.mxu0 %v832
  %2417 = vmatprep.subr.mxu0 0.0
  %2418 = vmatpush1.msra.mxu0 %v833
  %2419 = vmatprep.subr.mxu0 0.0
  %2420 = vmatpush1.msra.mxu0 %v834
  %2421 = vmatprep.subr.mxu0 0.0
  %2422 = vmatpush1.msra.mxu0 %v835
  %2423 = vmatprep.subr.mxu0 0.0
  %2424 = vmatpush1.msra.mxu0 %v836
  %2425 = vmatprep.subr.mxu0 0.0
  %2426 = vmatpush1.msra.mxu0 %v837
  %2427 = vmatprep.subr.mxu0 0.0
  %2428 = vmatpush1.msra.mxu0 %v838
  %2429 = vmatprep.subr.mxu0 0.0
  %2430 = vmatpush1.msra.mxu0 %v839
  %2431 = vmatprep.subr.mxu0 0.0
  %2432 = vmatpush1.msra.mxu0 %v840
  %2433 = vmatprep.subr.mxu0 0.0
  %2434 = vmatpush1.msra.mxu0 %v841
  %2435 = vmatprep.subr.mxu0 0.0
  %2436 = vmatpush1.msra.mxu0 %v842
  %2437 = vmatprep.subr.mxu0 0.0
  %2438 = vmatpush1.msra.mxu0 %v843
  %2439 = vmatprep.subr.mxu0 0.0
  %2440 = vmatpush1.msra.mxu0 %v844
  %2441 = vmatprep.subr.mxu0 0.0
  %2442 = vmatpush1.msra.mxu0 %v845
  %2443 = vmatprep.subr.mxu0 0.0
  %2444 = vmatpush1.msra.mxu0 %v846
  %2445 = vmatprep.subr.mxu0 0.0
  %2446 = vmatpush1.msra.mxu0 %v847
  %2447 = vmatprep.subr.mxu0 0.0
  %2448 = vmatpush1.msra.mxu0 %v848
  %2449 = vmatprep.subr.mxu0 0.0
  %2450 = vmatpush1.msra.mxu0 %v849
  %2451 = vmatprep.subr.mxu0 0.0
  %2452 = vmatpush1.msra.mxu0 %v850
  %2453 = vmatprep.subr.mxu0 0.0
  %2454 = vmatpush1.msra.mxu0 %v851
  %2455 = vmatprep.subr.mxu0 0.0
  %2456 = vmatpush1.msra.mxu0 %v852
  %2457 = vmatprep.subr.mxu0 0.0
  %2458 = vmatpush1.msra.mxu0 %v853
  %2459 = vmatprep.subr.mxu0 0.0
  %2460 = vmatpush1.msra.mxu0 %v854
  %2461 = vmatprep.subr.mxu0 0.0
  %2462 = vmatpush1.msra.mxu0 %v855
  %2463 = vmatprep.subr.mxu0 0.0
  %2464 = vmatpush1.msra.mxu0 %v856
  %2465 = vmatprep.subr.mxu0 0.0
  %2466 = vmatpush1.msra.mxu0 %v857
  %2467 = vmatprep.subr.mxu0 0.0
  %2468 = vmatpush1.msra.mxu0 %v858
  %2469 = vmatprep.subr.mxu0 0.0
  %2470 = vmatpush1.msra.mxu0 %v859
  %2471 = vmatprep.subr.mxu0 0.0
  %2472 = vmatpush1.msra.mxu0 %v860
  %2473 = vmatprep.subr.mxu0 0.0
  %2474 = vmatpush1.msra.mxu0 %v861
  %2475 = vmatprep.subr.mxu0 0.0
  %2476 = vmatpush1.msra.mxu0 %v862
  %2477 = vmatprep.mubr.f32.mxu0 %v2310
  %2478 = vmatmul.mubr.f32.gmra.mrb[0].mxu0 %v2309
  %v2479 = vpop.f32.mrb[0].mxu0
  %v2480 = vadd.f32 %v2410, %v2479
  %v2481 = vpop.f32.mrb[0].mxu0
  %2482 = vdwg.mxu0
  %v2485 = vunpack.c.l.s4 1983009808
  %v2486 = vunpack.c.0.s8 %v2485
  %v2487 = vlaneseq
  %v2488 = vshrl.u32 %v2487, 7
  %v2489 = vsub.s32 %v2486, %v2488
  %v2490 = vrot.slane %v2480, %v2489
  %2491 = vrot.lane.b32.xlu0 %v2490, 27
  %v2492 = vpop.permute.xlu0 %2491
  %vm2494 = vcmask 287960
  %2495 = vst.msk [vmem:[#allocation3] sm:$0x3] %vm2494, %v2492
  %v2496 = vld [vmem:[#allocation2] sm:$0x3]
  %v2499 = vunpack.c.l.s4 1983009808
  %v2500 = vunpack.c.0.s8 %v2499
  %v2501 = vlaneseq
  %v2502 = vshrl.u32 %v2501, 7
  %v2503 = vsub.s32 %v2500, %v2502
  %v2504 = vrot.slane %v2496, %v2503
  %2505 = vrot.lane.b32.xlu0 %v2504, 92
  %v2506 = vpop.permute.xlu0 %2505
  %v2507 = vsel %vm873, %v2506, 0
  %2509 = vmatprep.subr.mxu0 %v864
  %2510 = vmatpush1.msra.mxu0 %v863
  %2511 = vmatprep.subr.mxu0 %v882
  %2512 = vmatpush1.msra.mxu0 %v879
  %2513 = vmatprep.subr.mxu0 0.0
  %2514 = vmatpush1.msra.mxu0 0.0
  %2515 = vmatprep.subr.mxu0 0.0
  %2516 = vmatpush1.msra.mxu0 0.0
  %2517 = vmatprep.subr.mxu0 0.0
  %2518 = vmatpush1.msra.mxu0 0.0
  %2519 = vmatprep.subr.mxu0 0.0
  %2520 = vmatpush1.msra.mxu0 0.0
  %2521 = vmatprep.subr.mxu0 0.0
  %2522 = vmatpush1.msra.mxu0 0.0
  %2523 = vmatprep.subr.mxu0 0.0
  %2524 = vmatpush1.msra.mxu0 0.0
  %2525 = vmatprep.subr.mxu0 0.0
  %2526 = vmatpush1.msra.mxu0 0.0
  %2527 = vmatprep.subr.mxu0 0.0
  %2528 = vmatpush1.msra.mxu0 0.0
  %2529 = vmatprep.subr.mxu0 0.0
  %2530 = vmatpush1.msra.mxu0 0.0
  %2531 = vmatprep.subr.mxu0 0.0
  %2532 = vmatpush1.msra.mxu0 0.0
  %2533 = vmatprep.subr.mxu0 0.0
  %2534 = vmatpush1.msra.mxu0 0.0
  %2535 = vmatprep.subr.mxu0 0.0
  %2536 = vmatpush1.msra.mxu0 0.0
  %2537 = vmatprep.subr.mxu0 0.0
  %2538 = vmatpush1.msra.mxu0 0.0
  %2539 = vmatprep.subr.mxu0 0.0
  %2540 = vmatpush1.msra.mxu0 0.0
  %2541 = vmatprep.subr.mxu0 0.0
  %2542 = vmatpush1.msra.mxu0 0.0
  %2543 = vmatprep.subr.mxu0 0.0
  %2544 = vmatpush1.msra.mxu0 0.0
  %2545 = vmatprep.subr.mxu0 0.0
  %2546 = vmatpush1.msra.mxu0 0.0
  %2547 = vmatprep.subr.mxu0 0.0
  %2548 = vmatpush1.msra.mxu0 0.0
  %2549 = vmatprep.subr.mxu0 0.0
  %2550 = vmatpush1.msra.mxu0 0.0
  %2551 = vmatprep.subr.mxu0 0.0
  %2552 = vmatpush1.msra.mxu0 0.0
  %2553 = vmatprep.subr.mxu0 0.0
  %2554 = vmatpush1.msra.mxu0 0.0
  %2555 = vmatprep.subr.mxu0 0.0
  %2556 = vmatpush1.msra.mxu0 0.0
  %2557 = vmatprep.subr.mxu0 0.0
  %2558 = vmatpush1.msra.mxu0 0.0
  %2559 = vmatprep.subr.mxu0 0.0
  %2560 = vmatpush1.msra.mxu0 0.0
  %2561 = vmatprep.subr.mxu0 0.0
  %2562 = vmatpush1.msra.mxu0 0.0
  %2563 = vmatprep.subr.mxu0 0.0
  %2564 = vmatpush1.msra.mxu0 0.0
  %2565 = vmatprep.subr.mxu0 0.0
  %2566 = vmatpush1.msra.mxu0 0.0
  %2567 = vmatprep.subr.mxu0 0.0
  %2568 = vmatpush1.msra.mxu0 0.0
  %2569 = vmatprep.subr.mxu0 0.0
  %2570 = vmatpush1.msra.mxu0 0.0
  %2571 = vmatprep.subr.mxu0 0.0
  %2572 = vmatpush1.msra.mxu0 0.0
  %2573 = vmatprep.mubr.f32.mxu0 0.0
  %2574 = vmatmul.mubr.f32.gmra.mrb[0].mxu0 %v2507
  %v2575 = vpop.f32.mrb[0].mxu0
  %v2576 = vadd.f32 0.0, %v2575
  %v2577 = vpop.f32.mrb[0].mxu0
  %v2578 = vadd.f32 0.0, %v2577
  %2579 = vdwg.mxu0
  %2580 = vmatprep.subr.mxu0 %v866
  %2581 = vmatpush1.msra.mxu0 %v865
  %2582 = vmatprep.subr.mxu0 %v888
  %2583 = vmatpush1.msra.mxu0 %v885
  %2584 = vmatprep.subr.mxu0 0.0
  %2585 = vmatpush1.msra.mxu0 0.0
  %2586 = vmatprep.subr.mxu0 0.0
  %2587 = vmatpush1.msra.mxu0 0.0
  %2588 = vmatprep.subr.mxu0 0.0
  %2589 = vmatpush1.msra.mxu0 0.0
  %2590 = vmatprep.subr.mxu0 0.0
  %2591 = vmatpush1.msra.mxu0 0.0
  %2592 = vmatprep.subr.mxu0 0.0
  %2593 = vmatpush1.msra.mxu0 0.0
  %2594 = vmatprep.subr.mxu0 0.0
  %2595 = vmatpush1.msra.mxu0 0.0
  %2596 = vmatprep.subr.mxu0 0.0
  %2597 = vmatpush1.msra.mxu0 0.0
  %2598 = vmatprep.subr.mxu0 0.0
  %2599 = vmatpush1.msra.mxu0 0.0
  %2600 = vmatprep.subr.mxu0 0.0
  %2601 = vmatpush1.msra.mxu0 0.0
  %2602 = vmatprep.subr.mxu0 0.0
  %2603 = vmatpush1.msra.mxu0 0.0
  %2604 = vmatprep.subr.mxu0 0.0
  %2605 = vmatpush1.msra.mxu0 0.0
  %2606 = vmatprep.subr.mxu0 0.0
  %2607 = vmatpush1.msra.mxu0 0.0
  %2608 = vmatprep.subr.mxu0 0.0
  %2609 = vmatpush1.msra.mxu0 0.0
  %2610 = vmatprep.subr.mxu0 0.0
  %2611 = vmatpush1.msra.mxu0 0.0
  %2612 = vmatprep.subr.mxu0 0.0
  %2613 = vmatpush1.msra.mxu0 0.0
  %2614 = vmatprep.subr.mxu0 0.0
  %2615 = vmatpush1.msra.mxu0 0.0
  %2616 = vmatprep.subr.mxu0 0.0
  %2617 = vmatpush1.msra.mxu0 0.0
  %2618 = vmatprep.subr.mxu0 0.0
  %2619 = vmatpush1.msra.mxu0 0.0
  %2620 = vmatprep.subr.mxu0 0.0
  %2621 = vmatpush1.msra.mxu0 0.0
  %2622 = vmatprep.subr.mxu0 0.0
  %2623 = vmatpush1.msra.mxu0 0.0
  %2624 = vmatprep.subr.mxu0 0.0
  %2625 = vmatpush1.msra.mxu0 0.0
  %2626 = vmatprep.subr.mxu0 0.0
  %2627 = vmatpush1.msra.mxu0 0.0
  %2628 = vmatprep.subr.mxu0 0.0
  %2629 = vmatpush1.msra.mxu0 0.0
  %2630 = vmatprep.subr.mxu0 0.0
  %2631 = vmatpush1.msra.mxu0 0.0
  %2632 = vmatprep.subr.mxu0 0.0
  %2633 = vmatpush1.msra.mxu0 0.0
  %2634 = vmatprep.subr.mxu0 0.0
  %2635 = vmatpush1.msra.mxu0 0.0
  %2636 = vmatprep.subr.mxu0 0.0
  %2637 = vmatpush1.msra.mxu0 0.0
  %2638 = vmatprep.subr.mxu0 0.0
  %2639 = vmatpush1.msra.mxu0 0.0
  %2640 = vmatprep.subr.mxu0 0.0
  %2641 = vmatpush1.msra.mxu0 0.0
  %2642 = vmatprep.subr.mxu0 0.0
  %2643 = vmatpush1.msra.mxu0 0.0
  %2644 = vmatprep.mubr.f32.mxu0 0.0
  %2645 = vmatmul.mubr.f32.gmra.mrb[0].mxu0 %v2507
  %v2646 = vpop.f32.mrb[0].mxu0
  %v2647 = vadd.f32 0.0, %v2646
  %v2648 = vpop.f32.mrb[0].mxu0
  %v2649 = vadd.f32 0.0, %v2648
  %2650 = vdwg.mxu0
  %v2651 = vmul.f32 %v2576, 2.0
  %v2652 = vmul.f32 %v2578, 2.0
  %v2653 = vmul.f32 %v2647, 2.0
  %v2654 = vmul.f32 %v2649, 2.0
  %v2655 = vsub.f32 %v1040, %v2651
  %v2656 = vsub.f32 %v1044, %v2652
  %v2657 = vsub.f32 %v1048, %v2653
  %v2658 = vsub.f32 %v1052, %v2654
  %v2659 = vsel %vm795, %v2655, inf
  %v2660 = vsel %vm795, %v2656, inf
  %v2661 = vsel %vm795, %v2657, inf
  %v2662 = vsel %vm795, %v2658, inf
  %v2663 = vmin.f32 %v2659, %v2660
  %v2664 = vmin.f32 %v2661, %v2662
  %v2665 = vmin.f32 %v2663, %v2664
  %2666 = vmin.xlane.f32.xlu0 %v2665
  %v2667 = vpop.xlane.xlu0 %2666
  %vm2668 = vcmp.le.f32.partialorder %v2655, %v2667
  %vm2669 = vcmp.le.f32.partialorder %v2656, %v2667
  %vm2670 = vcmp.le.f32.partialorder %v2657, %v2667
  %vm2671 = vcmp.le.f32.partialorder %v2658, %v2667
  %v2672 = vsel %vm2668, %v1071, 512
  %v2673 = vsel %vm2669, %v1072, 512
  %v2674 = vsel %vm2670, %v1073, 512
  %v2675 = vsel %vm2671, %v1074, 512
  %v2676 = vsel %vm795, %v2672, 2147483647
  %v2677 = vsel %vm795, %v2673, 2147483647
  %v2678 = vsel %vm795, %v2674, 2147483647
  %v2679 = vsel %vm795, %v2675, 2147483647
  %vm2680 = vcmp.lt.s32.totalorder %v2676, %v2677
  %v2681 = vsel %vm2680, %v2676, %v2677
  %vm2682 = vcmp.lt.s32.totalorder %v2678, %v2679
  %v2683 = vsel %vm2682, %v2678, %v2679
  %vm2684 = vcmp.lt.s32.totalorder %v2681, %v2683
  %v2685 = vsel %vm2684, %v2681, %v2683
  %v2686 = vand.u32 %v2685, 65535
  %v2687 = vshra.s32 %v2685, 16
  %v2688 = vcvt.s32.f32 %v2686
  %v2689 = vcvt.s32.f32 %v2687
  %2690 = vmin.xlane.f32.xlu0 %v2689
  %v2691 = vpop.xlane.xlu0 %2690
  %vm2692 = vcmp.eq.f32.partialorder %v2689, %v2691
  %v2693 = vsel %vm2692, %v2688, inf
  %2694 = vmin.xlane.f32.xlu0 %v2693
  %v2695 = vpop.xlane.xlu0 %2694
  %v2696 = vcvt.f32.s32 %v2695
  %v2697 = vcvt.f32.s32 %v2691
  %v2698 = vshll.u32 %v2697, 16
  %v2699 = vadd.s32 %v2698, %v2696
  %vm2700 = vcmp.eq.s32.totalorder %v1071, %v2699
  %vm2701 = vcmp.eq.s32.totalorder %v1072, %v2699
  %vm2702 = vcmp.eq.s32.totalorder %v1073, %v2699
  %vm2703 = vcmp.eq.s32.totalorder %v1074, %v2699
  %v2704 = vsel %vm2700, 1, 0
  %v2705 = vsel %vm2701, 1, 0
  %v2706 = vsel %vm2702, 1, 0
  %v2707 = vsel %vm2703, 1, 0
  %v2708 = vcvt.s32.f32 %v2704
  %v2709 = vcvt.s32.f32 %v2705
  %v2710 = vcvt.s32.f32 %v2706
  %v2711 = vcvt.s32.f32 %v2707
  %v2712 = vsel %vm795, %v2708, 0.0
  %v2713 = vrot.slane %v2712, 4
  %v2714 = vadd.f32 %v2712, %v2713
  %v2715 = vrot.slane %v2714, 2
  %v2716 = vadd.f32 %v2714, %v2715
  %v2717 = vrot.slane %v2716, 1
  %v2718 = vadd.f32 %v2716, %v2717
  %v2719 = vsel %vm795, %v2709, 0.0
  %v2720 = vrot.slane %v2719, 4
  %v2721 = vadd.f32 %v2719, %v2720
  %v2722 = vrot.slane %v2721, 2
  %v2723 = vadd.f32 %v2721, %v2722
  %v2724 = vrot.slane %v2723, 1
  %v2725 = vadd.f32 %v2723, %v2724
  %v2726 = vsel %vm795, %v2710, 0.0
  %v2727 = vrot.slane %v2726, 4
  %v2728 = vadd.f32 %v2726, %v2727
  %v2729 = vrot.slane %v2728, 2
  %v2730 = vadd.f32 %v2728, %v2729
  %v2731 = vrot.slane %v2730, 1
  %v2732 = vadd.f32 %v2730, %v2731
  %v2733 = vsel %vm795, %v2711, 0.0
  %v2734 = vrot.slane %v2733, 4
  %v2735 = vadd.f32 %v2733, %v2734
  %v2736 = vrot.slane %v2735, 2
  %v2737 = vadd.f32 %v2735, %v2736
  %v2738 = vrot.slane %v2737, 1
  %v2739 = vadd.f32 %v2737, %v2738
  %v2740 = vadd.f32 %v2339, %v2718
  %v2741 = vadd.f32 %v2340, %v2725
  %v2742 = vadd.f32 %v2341, %v2732
  %v2743 = vadd.f32 %v2342, %v2739
  %2744 = vmatprep.subr.mxu0 0.0
  %2745 = vmatpush1.msra.mxu0 %v799
  %2746 = vmatprep.subr.mxu0 0.0
  %2747 = vmatpush1.msra.mxu0 %v800
  %2748 = vmatprep.subr.mxu0 0.0
  %2749 = vmatpush1.msra.mxu0 %v801
  %2750 = vmatprep.subr.mxu0 0.0
  %2751 = vmatpush1.msra.mxu0 %v802
  %2752 = vmatprep.subr.mxu0 0.0
  %2753 = vmatpush1.msra.mxu0 %v803
  %2754 = vmatprep.subr.mxu0 0.0
  %2755 = vmatpush1.msra.mxu0 %v804
  %2756 = vmatprep.subr.mxu0 0.0
  %2757 = vmatpush1.msra.mxu0 %v805
  %2758 = vmatprep.subr.mxu0 0.0
  %2759 = vmatpush1.msra.mxu0 %v806
  %2760 = vmatprep.subr.mxu0 0.0
  %2761 = vmatpush1.msra.mxu0 %v807
  %2762 = vmatprep.subr.mxu0 0.0
  %2763 = vmatpush1.msra.mxu0 %v808
  %2764 = vmatprep.subr.mxu0 0.0
  %2765 = vmatpush1.msra.mxu0 %v809
  %2766 = vmatprep.subr.mxu0 0.0
  %2767 = vmatpush1.msra.mxu0 %v810
  %2768 = vmatprep.subr.mxu0 0.0
  %2769 = vmatpush1.msra.mxu0 %v811
  %2770 = vmatprep.subr.mxu0 0.0
  %2771 = vmatpush1.msra.mxu0 %v812
  %2772 = vmatprep.subr.mxu0 0.0
  %2773 = vmatpush1.msra.mxu0 %v813
  %2774 = vmatprep.subr.mxu0 0.0
  %2775 = vmatpush1.msra.mxu0 %v814
  %2776 = vmatprep.subr.mxu0 0.0
  %2777 = vmatpush1.msra.mxu0 %v815
  %2778 = vmatprep.subr.mxu0 0.0
  %2779 = vmatpush1.msra.mxu0 %v816
  %2780 = vmatprep.subr.mxu0 0.0
  %2781 = vmatpush1.msra.mxu0 %v817
  %2782 = vmatprep.subr.mxu0 0.0
  %2783 = vmatpush1.msra.mxu0 %v818
  %2784 = vmatprep.subr.mxu0 0.0
  %2785 = vmatpush1.msra.mxu0 %v819
  %2786 = vmatprep.subr.mxu0 0.0
  %2787 = vmatpush1.msra.mxu0 %v820
  %2788 = vmatprep.subr.mxu0 0.0
  %2789 = vmatpush1.msra.mxu0 %v821
  %2790 = vmatprep.subr.mxu0 0.0
  %2791 = vmatpush1.msra.mxu0 %v822
  %2792 = vmatprep.subr.mxu0 0.0
  %2793 = vmatpush1.msra.mxu0 %v823
  %2794 = vmatprep.subr.mxu0 0.0
  %2795 = vmatpush1.msra.mxu0 %v824
  %2796 = vmatprep.subr.mxu0 0.0
  %2797 = vmatpush1.msra.mxu0 %v825
  %2798 = vmatprep.subr.mxu0 0.0
  %2799 = vmatpush1.msra.mxu0 %v826
  %2800 = vmatprep.subr.mxu0 0.0
  %2801 = vmatpush1.msra.mxu0 %v827
  %2802 = vmatprep.subr.mxu0 0.0
  %2803 = vmatpush1.msra.mxu0 %v828
  %2804 = vmatprep.subr.mxu0 0.0
  %2805 = vmatpush1.msra.mxu0 %v829
  %2806 = vmatprep.subr.mxu0 0.0
  %2807 = vmatpush1.msra.mxu0 %v830
  %2808 = vmatprep.mubr.f32.mxu0 %v2709
  %2809 = vmatmul.mubr.f32.gmra.mrb[0].mxu0 %v2708
  %v2810 = vpop.f32.mrb[0].mxu0
  %v2811 = vadd.f32 0.0, %v2810
  %v2812 = vpop.f32.mrb[0].mxu0
  %2813 = vdwg.mxu0
  %2814 = vmatprep.subr.mxu0 0.0
  %2815 = vmatpush1.msra.mxu0 %v831
  %2816 = vmatprep.subr.mxu0 0.0
  %2817 = vmatpush1.msra.mxu0 %v832
  %2818 = vmatprep.subr.mxu0 0.0
  %2819 = vmatpush1.msra.mxu0 %v833
  %2820 = vmatprep.subr.mxu0 0.0
  %2821 = vmatpush1.msra.mxu0 %v834
  %2822 = vmatprep.subr.mxu0 0.0
  %2823 = vmatpush1.msra.mxu0 %v835
  %2824 = vmatprep.subr.mxu0 0.0
  %2825 = vmatpush1.msra.mxu0 %v836
  %2826 = vmatprep.subr.mxu0 0.0
  %2827 = vmatpush1.msra.mxu0 %v837
  %2828 = vmatprep.subr.mxu0 0.0
  %2829 = vmatpush1.msra.mxu0 %v838
  %2830 = vmatprep.subr.mxu0 0.0
  %2831 = vmatpush1.msra.mxu0 %v839
  %2832 = vmatprep.subr.mxu0 0.0
  %2833 = vmatpush1.msra.mxu0 %v840
  %2834 = vmatprep.subr.mxu0 0.0
  %2835 = vmatpush1.msra.mxu0 %v841
  %2836 = vmatprep.subr.mxu0 0.0
  %2837 = vmatpush1.msra.mxu0 %v842
  %2838 = vmatprep.subr.mxu0 0.0
  %2839 = vmatpush1.msra.mxu0 %v843
  %2840 = vmatprep.subr.mxu0 0.0
  %2841 = vmatpush1.msra.mxu0 %v844
  %2842 = vmatprep.subr.mxu0 0.0
  %2843 = vmatpush1.msra.mxu0 %v845
  %2844 = vmatprep.subr.mxu0 0.0
  %2845 = vmatpush1.msra.mxu0 %v846
  %2846 = vmatprep.subr.mxu0 0.0
  %2847 = vmatpush1.msra.mxu0 %v847
  %2848 = vmatprep.subr.mxu0 0.0
  %2849 = vmatpush1.msra.mxu0 %v848
  %2850 = vmatprep.subr.mxu0 0.0
  %2851 = vmatpush1.msra.mxu0 %v849
  %2852 = vmatprep.subr.mxu0 0.0
  %2853 = vmatpush1.msra.mxu0 %v850
  %2854 = vmatprep.subr.mxu0 0.0
  %2855 = vmatpush1.msra.mxu0 %v851
  %2856 = vmatprep.subr.mxu0 0.0
  %2857 = vmatpush1.msra.mxu0 %v852
  %2858 = vmatprep.subr.mxu0 0.0
  %2859 = vmatpush1.msra.mxu0 %v853
  %2860 = vmatprep.subr.mxu0 0.0
  %2861 = vmatpush1.msra.mxu0 %v854
  %2862 = vmatprep.subr.mxu0 0.0
  %2863 = vmatpush1.msra.mxu0 %v855
  %2864 = vmatprep.subr.mxu0 0.0
  %2865 = vmatpush1.msra.mxu0 %v856
  %2866 = vmatprep.subr.mxu0 0.0
  %2867 = vmatpush1.msra.mxu0 %v857
  %2868 = vmatprep.subr.mxu0 0.0
  %2869 = vmatpush1.msra.mxu0 %v858
  %2870 = vmatprep.subr.mxu0 0.0
  %2871 = vmatpush1.msra.mxu0 %v859
  %2872 = vmatprep.subr.mxu0 0.0
  %2873 = vmatpush1.msra.mxu0 %v860
  %2874 = vmatprep.subr.mxu0 0.0
  %2875 = vmatpush1.msra.mxu0 %v861
  %2876 = vmatprep.subr.mxu0 0.0
  %2877 = vmatpush1.msra.mxu0 %v862
  %2878 = vmatprep.mubr.f32.mxu0 %v2711
  %2879 = vmatmul.mubr.f32.gmra.mrb[0].mxu0 %v2710
  %v2880 = vpop.f32.mrb[0].mxu0
  %v2881 = vadd.f32 %v2811, %v2880
  %v2882 = vpop.f32.mrb[0].mxu0
  %2883 = vdwg.mxu0
  %v2886 = vunpack.c.l.s4 1983009808
  %v2887 = vunpack.c.0.s8 %v2886
  %v2888 = vlaneseq
  %v2889 = vshrl.u32 %v2888, 7
  %v2890 = vsub.s32 %v2887, %v2889
  %v2891 = vrot.slane %v2881, %v2890
  %2892 = vrot.lane.b32.xlu0 %v2891, 36
  %v2893 = vpop.permute.xlu0 %2892
  %vm2895 = vcmask 361760
  %2896 = vst.msk [vmem:[#allocation3] sm:$0x3] %vm2895, %v2893
  %v2897 = vld [vmem:[#allocation2] sm:$0x3]
  %v2900 = vunpack.c.l.s4 1983009808
  %v2901 = vunpack.c.0.s8 %v2900
  %v2902 = vlaneseq
  %v2903 = vshrl.u32 %v2902, 7
  %v2904 = vsub.s32 %v2901, %v2903
  %v2905 = vrot.slane %v2897, %v2904
  %2906 = vrot.lane.b32.xlu0 %v2905, 83
  %v2907 = vpop.permute.xlu0 %2906
  %v2908 = vsel %vm873, %v2907, 0
  %2910 = vmatprep.subr.mxu0 %v864
  %2911 = vmatpush1.msra.mxu0 %v863
  %2912 = vmatprep.subr.mxu0 %v882
  %2913 = vmatpush1.msra.mxu0 %v879
  %2914 = vmatprep.subr.mxu0 0.0
  %2915 = vmatpush1.msra.mxu0 0.0
  %2916 = vmatprep.subr.mxu0 0.0
  %2917 = vmatpush1.msra.mxu0 0.0
  %2918 = vmatprep.subr.mxu0 0.0
  %2919 = vmatpush1.msra.mxu0 0.0
  %2920 = vmatprep.subr.mxu0 0.0
  %2921 = vmatpush1.msra.mxu0 0.0
  %2922 = vmatprep.subr.mxu0 0.0
  %2923 = vmatpush1.msra.mxu0 0.0
  %2924 = vmatprep.subr.mxu0 0.0
  %2925 = vmatpush1.msra.mxu0 0.0
  %2926 = vmatprep.subr.mxu0 0.0
  %2927 = vmatpush1.msra.mxu0 0.0
  %2928 = vmatprep.subr.mxu0 0.0
  %2929 = vmatpush1.msra.mxu0 0.0
  %2930 = vmatprep.subr.mxu0 0.0
  %2931 = vmatpush1.msra.mxu0 0.0
  %2932 = vmatprep.subr.mxu0 0.0
  %2933 = vmatpush1.msra.mxu0 0.0
  %2934 = vmatprep.subr.mxu0 0.0
  %2935 = vmatpush1.msra.mxu0 0.0
  %2936 = vmatprep.subr.mxu0 0.0
  %2937 = vmatpush1.msra.mxu0 0.0
  %2938 = vmatprep.subr.mxu0 0.0
  %2939 = vmatpush1.msra.mxu0 0.0
  %2940 = vmatprep.subr.mxu0 0.0
  %2941 = vmatpush1.msra.mxu0 0.0
  %2942 = vmatprep.subr.mxu0 0.0
  %2943 = vmatpush1.msra.mxu0 0.0
  %2944 = vmatprep.subr.mxu0 0.0
  %2945 = vmatpush1.msra.mxu0 0.0
  %2946 = vmatprep.subr.mxu0 0.0
  %2947 = vmatpush1.msra.mxu0 0.0
  %2948 = vmatprep.subr.mxu0 0.0
  %2949 = vmatpush1.msra.mxu0 0.0
  %2950 = vmatprep.subr.mxu0 0.0
  %2951 = vmatpush1.msra.mxu0 0.0
  %2952 = vmatprep.subr.mxu0 0.0
  %2953 = vmatpush1.msra.mxu0 0.0
  %2954 = vmatprep.subr.mxu0 0.0
  %2955 = vmatpush1.msra.mxu0 0.0
  %2956 = vmatprep.subr.mxu0 0.0
  %2957 = vmatpush1.msra.mxu0 0.0
  %2958 = vmatprep.subr.mxu0 0.0
  %2959 = vmatpush1.msra.mxu0 0.0
  %2960 = vmatprep.subr.mxu0 0.0
  %2961 = vmatpush1.msra.mxu0 0.0
  %2962 = vmatprep.subr.mxu0 0.0
  %2963 = vmatpush1.msra.mxu0 0.0
  %2964 = vmatprep.subr.mxu0 0.0
  %2965 = vmatpush1.msra.mxu0 0.0
  %2966 = vmatprep.subr.mxu0 0.0
  %2967 = vmatpush1.msra.mxu0 0.0
  %2968 = vmatprep.subr.mxu0 0.0
  %2969 = vmatpush1.msra.mxu0 0.0
  %2970 = vmatprep.subr.mxu0 0.0
  %2971 = vmatpush1.msra.mxu0 0.0
  %2972 = vmatprep.subr.mxu0 0.0
  %2973 = vmatpush1.msra.mxu0 0.0
  %2974 = vmatprep.mubr.f32.mxu0 0.0
  %2975 = vmatmul.mubr.f32.gmra.mrb[0].mxu0 %v2908
  %v2976 = vpop.f32.mrb[0].mxu0
  %v2977 = vadd.f32 0.0, %v2976
  %v2978 = vpop.f32.mrb[0].mxu0
  %v2979 = vadd.f32 0.0, %v2978
  %2980 = vdwg.mxu0
  %2981 = vmatprep.subr.mxu0 %v866
  %2982 = vmatpush1.msra.mxu0 %v865
  %2983 = vmatprep.subr.mxu0 %v888
  %2984 = vmatpush1.msra.mxu0 %v885
  %2985 = vmatprep.subr.mxu0 0.0
  %2986 = vmatpush1.msra.mxu0 0.0
  %2987 = vmatprep.subr.mxu0 0.0
  %2988 = vmatpush1.msra.mxu0 0.0
  %2989 = vmatprep.subr.mxu0 0.0
  %2990 = vmatpush1.msra.mxu0 0.0
  %2991 = vmatprep.subr.mxu0 0.0
  %2992 = vmatpush1.msra.mxu0 0.0
  %2993 = vmatprep.subr.mxu0 0.0
  %2994 = vmatpush1.msra.mxu0 0.0
  %2995 = vmatprep.subr.mxu0 0.0
  %2996 = vmatpush1.msra.mxu0 0.0
  %2997 = vmatprep.subr.mxu0 0.0
  %2998 = vmatpush1.msra.mxu0 0.0
  %2999 = vmatprep.subr.mxu0 0.0
  %3000 = vmatpush1.msra.mxu0 0.0
  %3001 = vmatprep.subr.mxu0 0.0
  %3002 = vmatpush1.msra.mxu0 0.0
  %3003 = vmatprep.subr.mxu0 0.0
  %3004 = vmatpush1.msra.mxu0 0.0
  %3005 = vmatprep.subr.mxu0 0.0
  %3006 = vmatpush1.msra.mxu0 0.0
  %3007 = vmatprep.subr.mxu0 0.0
  %3008 = vmatpush1.msra.mxu0 0.0
  %3009 = vmatprep.subr.mxu0 0.0
  %3010 = vmatpush1.msra.mxu0 0.0
  %3011 = vmatprep.subr.mxu0 0.0
  %3012 = vmatpush1.msra.mxu0 0.0
  %3013 = vmatprep.subr.mxu0 0.0
  %3014 = vmatpush1.msra.mxu0 0.0
  %3015 = vmatprep.subr.mxu0 0.0
  %3016 = vmatpush1.msra.mxu0 0.0
  %3017 = vmatprep.subr.mxu0 0.0
  %3018 = vmatpush1.msra.mxu0 0.0
  %3019 = vmatprep.subr.mxu0 0.0
  %3020 = vmatpush1.msra.mxu0 0.0
  %3021 = vmatprep.subr.mxu0 0.0
  %3022 = vmatpush1.msra.mxu0 0.0
  %3023 = vmatprep.subr.mxu0 0.0
  %3024 = vmatpush1.msra.mxu0 0.0
  %3025 = vmatprep.subr.mxu0 0.0
  %3026 = vmatpush1.msra.mxu0 0.0
  %3027 = vmatprep.subr.mxu0 0.0
  %3028 = vmatpush1.msra.mxu0 0.0
  %3029 = vmatprep.subr.mxu0 0.0
  %3030 = vmatpush1.msra.mxu0 0.0
  %3031 = vmatprep.subr.mxu0 0.0
  %3032 = vmatpush1.msra.mxu0 0.0
  %3033 = vmatprep.subr.mxu0 0.0
  %3034 = vmatpush1.msra.mxu0 0.0
  %3035 = vmatprep.subr.mxu0 0.0
  %3036 = vmatpush1.msra.mxu0 0.0
  %3037 = vmatprep.subr.mxu0 0.0
  %3038 = vmatpush1.msra.mxu0 0.0
  %3039 = vmatprep.subr.mxu0 0.0
  %3040 = vmatpush1.msra.mxu0 0.0
  %3041 = vmatprep.subr.mxu0 0.0
  %3042 = vmatpush1.msra.mxu0 0.0
  %3043 = vmatprep.subr.mxu0 0.0
  %3044 = vmatpush1.msra.mxu0 0.0
  %3045 = vmatprep.mubr.f32.mxu0 0.0
  %3046 = vmatmul.mubr.f32.gmra.mrb[0].mxu0 %v2908
  %v3047 = vpop.f32.mrb[0].mxu0
  %v3048 = vadd.f32 0.0, %v3047
  %v3049 = vpop.f32.mrb[0].mxu0
  %v3050 = vadd.f32 0.0, %v3049
  %3051 = vdwg.mxu0
  %v3052 = vmul.f32 %v2977, 2.0
  %v3053 = vmul.f32 %v2979, 2.0
  %v3054 = vmul.f32 %v3048, 2.0
  %v3055 = vmul.f32 %v3050, 2.0
  %v3056 = vsub.f32 %v1040, %v3052
  %v3057 = vsub.f32 %v1044, %v3053
  %v3058 = vsub.f32 %v1048, %v3054
  %v3059 = vsub.f32 %v1052, %v3055
  %v3060 = vsel %vm795, %v3056, inf
  %v3061 = vsel %vm795, %v3057, inf
  %v3062 = vsel %vm795, %v3058, inf
  %v3063 = vsel %vm795, %v3059, inf
  %v3064 = vmin.f32 %v3060, %v3061
  %v3065 = vmin.f32 %v3062, %v3063
  %v3066 = vmin.f32 %v3064, %v3065
  %3067 = vmin.xlane.f32.xlu0 %v3066
  %v3068 = vpop.xlane.xlu0 %3067
  %vm3069 = vcmp.le.f32.partialorder %v3056, %v3068
  %vm3070 = vcmp.le.f32.partialorder %v3057, %v3068
  %vm3071 = vcmp.le.f32.partialorder %v3058, %v3068
  %vm3072 = vcmp.le.f32.partialorder %v3059, %v3068
  %v3073 = vsel %vm3069, %v1071, 512
  %v3074 = vsel %vm3070, %v1072, 512
  %v3075 = vsel %vm3071, %v1073, 512
  %v3076 = vsel %vm3072, %v1074, 512
  %v3077 = vsel %vm795, %v3073, 2147483647
  %v3078 = vsel %vm795, %v3074, 2147483647
  %v3079 = vsel %vm795, %v3075, 2147483647
  %v3080 = vsel %vm795, %v3076, 2147483647
  %vm3081 = vcmp.lt.s32.totalorder %v3077, %v3078
  %v3082 = vsel %vm3081, %v3077, %v3078
  %vm3083 = vcmp.lt.s32.totalorder %v3079, %v3080
  %v3084 = vsel %vm3083, %v3079, %v3080
  %vm3085 = vcmp.lt.s32.totalorder %v3082, %v3084
  %v3086 = vsel %vm3085, %v3082, %v3084
  %v3087 = vand.u32 %v3086, 65535
  %v3088 = vshra.s32 %v3086, 16
  %v3089 = vcvt.s32.f32 %v3087
  %v3090 = vcvt.s32.f32 %v3088
  %3091 = vmin.xlane.f32.xlu0 %v3090
  %v3092 = vpop.xlane.xlu0 %3091
  %vm3093 = vcmp.eq.f32.partialorder %v3090, %v3092
  %v3094 = vsel %vm3093, %v3089, inf
  %3095 = vmin.xlane.f32.xlu0 %v3094
  %v3096 = vpop.xlane.xlu0 %3095
  %v3097 = vcvt.f32.s32 %v3096
  %v3098 = vcvt.f32.s32 %v3092
  %v3099 = vshll.u32 %v3098, 16
  %v3100 = vadd.s32 %v3099, %v3097
  %vm3101 = vcmp.eq.s32.totalorder %v1071, %v3100
  %vm3102 = vcmp.eq.s32.totalorder %v1072, %v3100
  %vm3103 = vcmp.eq.s32.totalorder %v1073, %v3100
  %vm3104 = vcmp.eq.s32.totalorder %v1074, %v3100
  %v3105 = vsel %vm3101, 1, 0
  %v3106 = vsel %vm3102, 1, 0
  %v3107 = vsel %vm3103, 1, 0
  %v3108 = vsel %vm3104, 1, 0
  %v3109 = vcvt.s32.f32 %v3105
  %v3110 = vcvt.s32.f32 %v3106
  %v3111 = vcvt.s32.f32 %v3107
  %v3112 = vcvt.s32.f32 %v3108
  %v3113 = vsel %vm795, %v3109, 0.0
  %v3114 = vrot.slane %v3113, 4
  %v3115 = vadd.f32 %v3113, %v3114
  %v3116 = vrot.slane %v3115, 2
  %v3117 = vadd.f32 %v3115, %v3116
  %v3118 = vrot.slane %v3117, 1
  %v3119 = vadd.f32 %v3117, %v3118
  %v3120 = vsel %vm795, %v3110, 0.0
  %v3121 = vrot.slane %v3120, 4
  %v3122 = vadd.f32 %v3120, %v3121
  %v3123 = vrot.slane %v3122, 2
  %v3124 = vadd.f32 %v3122, %v3123
  %v3125 = vrot.slane %v3124, 1
  %v3126 = vadd.f32 %v3124, %v3125
  %v3127 = vsel %vm795, %v3111, 0.0
  %v3128 = vrot.slane %v3127, 4
  %v3129 = vadd.f32 %v3127, %v3128
  %v3130 = vrot.slane %v3129, 2
  %v3131 = vadd.f32 %v3129, %v3130
  %v3132 = vrot.slane %v3131, 1
  %v3133 = vadd.f32 %v3131, %v3132
  %v3134 = vsel %vm795, %v3112, 0.0
  %v3135 = vrot.slane %v3134, 4
  %v3136 = vadd.f32 %v3134, %v3135
  %v3137 = vrot.slane %v3136, 2
  %v3138 = vadd.f32 %v3136, %v3137
  %v3139 = vrot.slane %v3138, 1
  %v3140 = vadd.f32 %v3138, %v3139
  %v3141 = vadd.f32 %v2740, %v3119
  %v3142 = vadd.f32 %v2741, %v3126
  %v3143 = vadd.f32 %v2742, %v3133
  %v3144 = vadd.f32 %v2743, %v3140
  %3145 = vmatprep.subr.mxu0 0.0
  %3146 = vmatpush1.msra.mxu0 %v799
  %3147 = vmatprep.subr.mxu0 0.0
  %3148 = vmatpush1.msra.mxu0 %v800
  %3149 = vmatprep.subr.mxu0 0.0
  %3150 = vmatpush1.msra.mxu0 %v801
  %3151 = vmatprep.subr.mxu0 0.0
  %3152 = vmatpush1.msra.mxu0 %v802
  %3153 = vmatprep.subr.mxu0 0.0
  %3154 = vmatpush1.msra.mxu0 %v803
  %3155 = vmatprep.subr.mxu0 0.0
  %3156 = vmatpush1.msra.mxu0 %v804
  %3157 = vmatprep.subr.mxu0 0.0
  %3158 = vmatpush1.msra.mxu0 %v805
  %3159 = vmatprep.subr.mxu0 0.0
  %3160 = vmatpush1.msra.mxu0 %v806
  %3161 = vmatprep.subr.mxu0 0.0
  %3162 = vmatpush1.msra.mxu0 %v807
  %3163 = vmatprep.subr.mxu0 0.0
  %3164 = vmatpush1.msra.mxu0 %v808
  %3165 = vmatprep.subr.mxu0 0.0
  %3166 = vmatpush1.msra.mxu0 %v809
  %3167 = vmatprep.subr.mxu0 0.0
  %3168 = vmatpush1.msra.mxu0 %v810
  %3169 = vmatprep.subr.mxu0 0.0
  %3170 = vmatpush1.msra.mxu0 %v811
  %3171 = vmatprep.subr.mxu0 0.0
  %3172 = vmatpush1.msra.mxu0 %v812
  %3173 = vmatprep.subr.mxu0 0.0
  %3174 = vmatpush1.msra.mxu0 %v813
  %3175 = vmatprep.subr.mxu0 0.0
  %3176 = vmatpush1.msra.mxu0 %v814
  %3177 = vmatprep.subr.mxu0 0.0
  %3178 = vmatpush1.msra.mxu0 %v815
  %3179 = vmatprep.subr.mxu0 0.0
  %3180 = vmatpush1.msra.mxu0 %v816
  %3181 = vmatprep.subr.mxu0 0.0
  %3182 = vmatpush1.msra.mxu0 %v817
  %3183 = vmatprep.subr.mxu0 0.0
  %3184 = vmatpush1.msra.mxu0 %v818
  %3185 = vmatprep.subr.mxu0 0.0
  %3186 = vmatpush1.msra.mxu0 %v819
  %3187 = vmatprep.subr.mxu0 0.0
  %3188 = vmatpush1.msra.mxu0 %v820
  %3189 = vmatprep.subr.mxu0 0.0
  %3190 = vmatpush1.msra.mxu0 %v821
  %3191 = vmatprep.subr.mxu0 0.0
  %3192 = vmatpush1.msra.mxu0 %v822
  %3193 = vmatprep.subr.mxu0 0.0
  %3194 = vmatpush1.msra.mxu0 %v823
  %3195 = vmatprep.subr.mxu0 0.0
  %3196 = vmatpush1.msra.mxu0 %v824
  %3197 = vmatprep.subr.mxu0 0.0
  %3198 = vmatpush1.msra.mxu0 %v825
  %3199 = vmatprep.subr.mxu0 0.0
  %3200 = vmatpush1.msra.mxu0 %v826
  %3201 = vmatprep.subr.mxu0 0.0
  %3202 = vmatpush1.msra.mxu0 %v827
  %3203 = vmatprep.subr.mxu0 0.0
  %3204 = vmatpush1.msra.mxu0 %v828
  %3205 = vmatprep.subr.mxu0 0.0
  %3206 = vmatpush1.msra.mxu0 %v829
  %3207 = vmatprep.subr.mxu0 0.0
  %3208 = vmatpush1.msra.mxu0 %v830
  %3209 = vmatprep.mubr.f32.mxu0 %v3110
  %3210 = vmatmul.mubr.f32.gmra.mrb[0].mxu0 %v3109
  %v3211 = vpop.f32.mrb[0].mxu0
  %v3212 = vadd.f32 0.0, %v3211
  %v3213 = vpop.f32.mrb[0].mxu0
  %3214 = vdwg.mxu0
  %3215 = vmatprep.subr.mxu0 0.0
  %3216 = vmatpush1.msra.mxu0 %v831
  %3217 = vmatprep.subr.mxu0 0.0
  %3218 = vmatpush1.msra.mxu0 %v832
  %3219 = vmatprep.subr.mxu0 0.0
  %3220 = vmatpush1.msra.mxu0 %v833
  %3221 = vmatprep.subr.mxu0 0.0
  %3222 = vmatpush1.msra.mxu0 %v834
  %3223 = vmatprep.subr.mxu0 0.0
  %3224 = vmatpush1.msra.mxu0 %v835
  %3225 = vmatprep.subr.mxu0 0.0
  %3226 = vmatpush1.msra.mxu0 %v836
  %3227 = vmatprep.subr.mxu0 0.0
  %3228 = vmatpush1.msra.mxu0 %v837
  %3229 = vmatprep.subr.mxu0 0.0
  %3230 = vmatpush1.msra.mxu0 %v838
  %3231 = vmatprep.subr.mxu0 0.0
  %3232 = vmatpush1.msra.mxu0 %v839
  %3233 = vmatprep.subr.mxu0 0.0
  %3234 = vmatpush1.msra.mxu0 %v840
  %3235 = vmatprep.subr.mxu0 0.0
  %3236 = vmatpush1.msra.mxu0 %v841
  %3237 = vmatprep.subr.mxu0 0.0
  %3238 = vmatpush1.msra.mxu0 %v842
  %3239 = vmatprep.subr.mxu0 0.0
  %3240 = vmatpush1.msra.mxu0 %v843
  %3241 = vmatprep.subr.mxu0 0.0
  %3242 = vmatpush1.msra.mxu0 %v844
  %3243 = vmatprep.subr.mxu0 0.0
  %3244 = vmatpush1.msra.mxu0 %v845
  %3245 = vmatprep.subr.mxu0 0.0
  %3246 = vmatpush1.msra.mxu0 %v846
  %3247 = vmatprep.subr.mxu0 0.0
  %3248 = vmatpush1.msra.mxu0 %v847
  %3249 = vmatprep.subr.mxu0 0.0
  %3250 = vmatpush1.msra.mxu0 %v848
  %3251 = vmatprep.subr.mxu0 0.0
  %3252 = vmatpush1.msra.mxu0 %v849
  %3253 = vmatprep.subr.mxu0 0.0
  %3254 = vmatpush1.msra.mxu0 %v850
  %3255 = vmatprep.subr.mxu0 0.0
  %3256 = vmatpush1.msra.mxu0 %v851
  %3257 = vmatprep.subr.mxu0 0.0
  %3258 = vmatpush1.msra.mxu0 %v852
  %3259 = vmatprep.subr.mxu0 0.0
  %3260 = vmatpush1.msra.mxu0 %v853
  %3261 = vmatprep.subr.mxu0 0.0
  %3262 = vmatpush1.msra.mxu0 %v854
  %3263 = vmatprep.subr.mxu0 0.0
  %3264 = vmatpush1.msra.mxu0 %v855
  %3265 = vmatprep.subr.mxu0 0.0
  %3266 = vmatpush1.msra.mxu0 %v856
  %3267 = vmatprep.subr.mxu0 0.0
  %3268 = vmatpush1.msra.mxu0 %v857
  %3269 = vmatprep.subr.mxu0 0.0
  %3270 = vmatpush1.msra.mxu0 %v858
  %3271 = vmatprep.subr.mxu0 0.0
  %3272 = vmatpush1.msra.mxu0 %v859
  %3273 = vmatprep.subr.mxu0 0.0
  %3274 = vmatpush1.msra.mxu0 %v860
  %3275 = vmatprep.subr.mxu0 0.0
  %3276 = vmatpush1.msra.mxu0 %v861
  %3277 = vmatprep.subr.mxu0 0.0
  %3278 = vmatpush1.msra.mxu0 %v862
  %3279 = vmatprep.mubr.f32.mxu0 %v3112
  %3280 = vmatmul.mubr.f32.gmra.mrb[0].mxu0 %v3111
  %v3281 = vpop.f32.mrb[0].mxu0
  %v3282 = vadd.f32 %v3212, %v3281
  %v3283 = vpop.f32.mrb[0].mxu0
  %3284 = vdwg.mxu0
  %v3287 = vunpack.c.l.s4 1983009808
  %v3288 = vunpack.c.0.s8 %v3287
  %v3289 = vlaneseq
  %v3290 = vshrl.u32 %v3289, 7
  %v3291 = vsub.s32 %v3288, %v3290
  %v3292 = vrot.slane %v3282, %v3291
  %3293 = vrot.lane.b32.xlu0 %v3292, 45
  %v3294 = vpop.permute.xlu0 %3293
  %vm3296 = vcmask 435560
  %3297 = vst.msk [vmem:[#allocation3] sm:$0x3] %vm3296, %v3294
  %v3298 = vld [vmem:[#allocation2] sm:$0x3]
  %v3301 = vunpack.c.l.s4 1983009808
  %v3302 = vunpack.c.0.s8 %v3301
  %v3303 = vlaneseq
  %v3304 = vshrl.u32 %v3303, 7
  %v3305 = vsub.s32 %v3302, %v3304
  %v3306 = vrot.slane %v3298, %v3305
  %3307 = vrot.lane.b32.xlu0 %v3306, 74
  %v3308 = vpop.permute.xlu0 %3307
  %v3309 = vsel %vm873, %v3308, 0
  %3311 = vmatprep.subr.mxu0 %v864
  %3312 = vmatpush1.msra.mxu0 %v863
  %3313 = vmatprep.subr.mxu0 %v882
  %3314 = vmatpush1.msra.mxu0 %v879
  %3315 = vmatprep.subr.mxu0 0.0
  %3316 = vmatpush1.msra.mxu0 0.0
  %3317 = vmatprep.subr.mxu0 0.0
  %3318 = vmatpush1.msra.mxu0 0.0
  %3319 = vmatprep.subr.mxu0 0.0
  %3320 = vmatpush1.msra.mxu0 0.0
  %3321 = vmatprep.subr.mxu0 0.0
  %3322 = vmatpush1.msra.mxu0 0.0
  %3323 = vmatprep.subr.mxu0 0.0
  %3324 = vmatpush1.msra.mxu0 0.0
  %3325 = vmatprep.subr.mxu0 0.0
  %3326 = vmatpush1.msra.mxu0 0.0
  %3327 = vmatprep.subr.mxu0 0.0
  %3328 = vmatpush1.msra.mxu0 0.0
  %3329 = vmatprep.subr.mxu0 0.0
  %3330 = vmatpush1.msra.mxu0 0.0
  %3331 = vmatprep.subr.mxu0 0.0
  %3332 = vmatpush1.msra.mxu0 0.0
  %3333 = vmatprep.subr.mxu0 0.0
  %3334 = vmatpush1.msra.mxu0 0.0
  %3335 = vmatprep.subr.mxu0 0.0
  %3336 = vmatpush1.msra.mxu0 0.0
  %3337 = vmatprep.subr.mxu0 0.0
  %3338 = vmatpush1.msra.mxu0 0.0
  %3339 = vmatprep.subr.mxu0 0.0
  %3340 = vmatpush1.msra.mxu0 0.0
  %3341 = vmatprep.subr.mxu0 0.0
  %3342 = vmatpush1.msra.mxu0 0.0
  %3343 = vmatprep.subr.mxu0 0.0
  %3344 = vmatpush1.msra.mxu0 0.0
  %3345 = vmatprep.subr.mxu0 0.0
  %3346 = vmatpush1.msra.mxu0 0.0
  %3347 = vmatprep.subr.mxu0 0.0
  %3348 = vmatpush1.msra.mxu0 0.0
  %3349 = vmatprep.subr.mxu0 0.0
  %3350 = vmatpush1.msra.mxu0 0.0
  %3351 = vmatprep.subr.mxu0 0.0
  %3352 = vmatpush1.msra.mxu0 0.0
  %3353 = vmatprep.subr.mxu0 0.0
  %3354 = vmatpush1.msra.mxu0 0.0
  %3355 = vmatprep.subr.mxu0 0.0
  %3356 = vmatpush1.msra.mxu0 0.0
  %3357 = vmatprep.subr.mxu0 0.0
  %3358 = vmatpush1.msra.mxu0 0.0
  %3359 = vmatprep.subr.mxu0 0.0
  %3360 = vmatpush1.msra.mxu0 0.0
  %3361 = vmatprep.subr.mxu0 0.0
  %3362 = vmatpush1.msra.mxu0 0.0
  %3363 = vmatprep.subr.mxu0 0.0
  %3364 = vmatpush1.msra.mxu0 0.0
  %3365 = vmatprep.subr.mxu0 0.0
  %3366 = vmatpush1.msra.mxu0 0.0
  %3367 = vmatprep.subr.mxu0 0.0
  %3368 = vmatpush1.msra.mxu0 0.0
  %3369 = vmatprep.subr.mxu0 0.0
  %3370 = vmatpush1.msra.mxu0 0.0
  %3371 = vmatprep.subr.mxu0 0.0
  %3372 = vmatpush1.msra.mxu0 0.0
  %3373 = vmatprep.subr.mxu0 0.0
  %3374 = vmatpush1.msra.mxu0 0.0
  %3375 = vmatprep.mubr.f32.mxu0 0.0
  %3376 = vmatmul.mubr.f32.gmra.mrb[0].mxu0 %v3309
  %v3377 = vpop.f32.mrb[0].mxu0
  %v3378 = vadd.f32 0.0, %v3377
  %v3379 = vpop.f32.mrb[0].mxu0
  %v3380 = vadd.f32 0.0, %v3379
  %3381 = vdwg.mxu0
  %3382 = vmatprep.subr.mxu0 %v866
  %3383 = vmatpush1.msra.mxu0 %v865
  %3384 = vmatprep.subr.mxu0 %v888
  %3385 = vmatpush1.msra.mxu0 %v885
  %3386 = vmatprep.subr.mxu0 0.0
  %3387 = vmatpush1.msra.mxu0 0.0
  %3388 = vmatprep.subr.mxu0 0.0
  %3389 = vmatpush1.msra.mxu0 0.0
  %3390 = vmatprep.subr.mxu0 0.0
  %3391 = vmatpush1.msra.mxu0 0.0
  %3392 = vmatprep.subr.mxu0 0.0
  %3393 = vmatpush1.msra.mxu0 0.0
  %3394 = vmatprep.subr.mxu0 0.0
  %3395 = vmatpush1.msra.mxu0 0.0
  %3396 = vmatprep.subr.mxu0 0.0
  %3397 = vmatpush1.msra.mxu0 0.0
  %3398 = vmatprep.subr.mxu0 0.0
  %3399 = vmatpush1.msra.mxu0 0.0
  %3400 = vmatprep.subr.mxu0 0.0
  %3401 = vmatpush1.msra.mxu0 0.0
  %3402 = vmatprep.subr.mxu0 0.0
  %3403 = vmatpush1.msra.mxu0 0.0
  %3404 = vmatprep.subr.mxu0 0.0
  %3405 = vmatpush1.msra.mxu0 0.0
  %3406 = vmatprep.subr.mxu0 0.0
  %3407 = vmatpush1.msra.mxu0 0.0
  %3408 = vmatprep.subr.mxu0 0.0
  %3409 = vmatpush1.msra.mxu0 0.0
  %3410 = vmatprep.subr.mxu0 0.0
  %3411 = vmatpush1.msra.mxu0 0.0
  %3412 = vmatprep.subr.mxu0 0.0
  %3413 = vmatpush1.msra.mxu0 0.0
  %3414 = vmatprep.subr.mxu0 0.0
  %3415 = vmatpush1.msra.mxu0 0.0
  %3416 = vmatprep.subr.mxu0 0.0
  %3417 = vmatpush1.msra.mxu0 0.0
  %3418 = vmatprep.subr.mxu0 0.0
  %3419 = vmatpush1.msra.mxu0 0.0
  %3420 = vmatprep.subr.mxu0 0.0
  %3421 = vmatpush1.msra.mxu0 0.0
  %3422 = vmatprep.subr.mxu0 0.0
  %3423 = vmatpush1.msra.mxu0 0.0
  %3424 = vmatprep.subr.mxu0 0.0
  %3425 = vmatpush1.msra.mxu0 0.0
  %3426 = vmatprep.subr.mxu0 0.0
  %3427 = vmatpush1.msra.mxu0 0.0
  %3428 = vmatprep.subr.mxu0 0.0
  %3429 = vmatpush1.msra.mxu0 0.0
  %3430 = vmatprep.subr.mxu0 0.0
  %3431 = vmatpush1.msra.mxu0 0.0
  %3432 = vmatprep.subr.mxu0 0.0
  %3433 = vmatpush1.msra.mxu0 0.0
  %3434 = vmatprep.subr.mxu0 0.0
  %3435 = vmatpush1.msra.mxu0 0.0
  %3436 = vmatprep.subr.mxu0 0.0
  %3437 = vmatpush1.msra.mxu0 0.0
  %3438 = vmatprep.subr.mxu0 0.0
  %3439 = vmatpush1.msra.mxu0 0.0
  %3440 = vmatprep.subr.mxu0 0.0
  %3441 = vmatpush1.msra.mxu0 0.0
  %3442 = vmatprep.subr.mxu0 0.0
  %3443 = vmatpush1.msra.mxu0 0.0
  %3444 = vmatprep.subr.mxu0 0.0
  %3445 = vmatpush1.msra.mxu0 0.0
  %3446 = vmatprep.mubr.f32.mxu0 0.0
  %3447 = vmatmul.mubr.f32.gmra.mrb[0].mxu0 %v3309
  %v3448 = vpop.f32.mrb[0].mxu0
  %v3449 = vadd.f32 0.0, %v3448
  %v3450 = vpop.f32.mrb[0].mxu0
  %v3451 = vadd.f32 0.0, %v3450
  %3452 = vdwg.mxu0
  %v3453 = vmul.f32 %v3378, 2.0
  %v3454 = vmul.f32 %v3380, 2.0
  %v3455 = vmul.f32 %v3449, 2.0
  %v3456 = vmul.f32 %v3451, 2.0
  %v3457 = vsub.f32 %v1040, %v3453
  %v3458 = vsub.f32 %v1044, %v3454
  %v3459 = vsub.f32 %v1048, %v3455
  %v3460 = vsub.f32 %v1052, %v3456
  %v3461 = vsel %vm795, %v3457, inf
  %v3462 = vsel %vm795, %v3458, inf
  %v3463 = vsel %vm795, %v3459, inf
  %v3464 = vsel %vm795, %v3460, inf
  %v3465 = vmin.f32 %v3461, %v3462
  %v3466 = vmin.f32 %v3463, %v3464
  %v3467 = vmin.f32 %v3465, %v3466
  %3468 = vmin.xlane.f32.xlu0 %v3467
  %v3469 = vpop.xlane.xlu0 %3468
  %vm3470 = vcmp.le.f32.partialorder %v3457, %v3469
  %vm3471 = vcmp.le.f32.partialorder %v3458, %v3469
  %vm3472 = vcmp.le.f32.partialorder %v3459, %v3469
  %vm3473 = vcmp.le.f32.partialorder %v3460, %v3469
  %v3474 = vsel %vm3470, %v1071, 512
  %v3475 = vsel %vm3471, %v1072, 512
  %v3476 = vsel %vm3472, %v1073, 512
  %v3477 = vsel %vm3473, %v1074, 512
  %v3478 = vsel %vm795, %v3474, 2147483647
  %v3479 = vsel %vm795, %v3475, 2147483647
  %v3480 = vsel %vm795, %v3476, 2147483647
  %v3481 = vsel %vm795, %v3477, 2147483647
  %vm3482 = vcmp.lt.s32.totalorder %v3478, %v3479
  %v3483 = vsel %vm3482, %v3478, %v3479
  %vm3484 = vcmp.lt.s32.totalorder %v3480, %v3481
  %v3485 = vsel %vm3484, %v3480, %v3481
  %vm3486 = vcmp.lt.s32.totalorder %v3483, %v3485
  %v3487 = vsel %vm3486, %v3483, %v3485
  %v3488 = vand.u32 %v3487, 65535
  %v3489 = vshra.s32 %v3487, 16
  %v3490 = vcvt.s32.f32 %v3488
  %v3491 = vcvt.s32.f32 %v3489
  %3492 = vmin.xlane.f32.xlu0 %v3491
  %v3493 = vpop.xlane.xlu0 %3492
  %vm3494 = vcmp.eq.f32.partialorder %v3491, %v3493
  %v3495 = vsel %vm3494, %v3490, inf
  %3496 = vmin.xlane.f32.xlu0 %v3495
  %v3497 = vpop.xlane.xlu0 %3496
  %v3498 = vcvt.f32.s32 %v3497
  %v3499 = vcvt.f32.s32 %v3493
  %v3500 = vshll.u32 %v3499, 16
  %v3501 = vadd.s32 %v3500, %v3498
  %vm3502 = vcmp.eq.s32.totalorder %v1071, %v3501
  %vm3503 = vcmp.eq.s32.totalorder %v1072, %v3501
  %vm3504 = vcmp.eq.s32.totalorder %v1073, %v3501
  %vm3505 = vcmp.eq.s32.totalorder %v1074, %v3501
  %v3506 = vsel %vm3502, 1, 0
  %v3507 = vsel %vm3503, 1, 0
  %v3508 = vsel %vm3504, 1, 0
  %v3509 = vsel %vm3505, 1, 0
  %v3510 = vcvt.s32.f32 %v3506
  %v3511 = vcvt.s32.f32 %v3507
  %v3512 = vcvt.s32.f32 %v3508
  %v3513 = vcvt.s32.f32 %v3509
  %v3514 = vsel %vm795, %v3510, 0.0
  %v3515 = vrot.slane %v3514, 4
  %v3516 = vadd.f32 %v3514, %v3515
  %v3517 = vrot.slane %v3516, 2
  %v3518 = vadd.f32 %v3516, %v3517
  %v3519 = vrot.slane %v3518, 1
  %v3520 = vadd.f32 %v3518, %v3519
  %v3521 = vsel %vm795, %v3511, 0.0
  %v3522 = vrot.slane %v3521, 4
  %v3523 = vadd.f32 %v3521, %v3522
  %v3524 = vrot.slane %v3523, 2
  %v3525 = vadd.f32 %v3523, %v3524
  %v3526 = vrot.slane %v3525, 1
  %v3527 = vadd.f32 %v3525, %v3526
  %v3528 = vsel %vm795, %v3512, 0.0
  %v3529 = vrot.slane %v3528, 4
  %v3530 = vadd.f32 %v3528, %v3529
  %v3531 = vrot.slane %v3530, 2
  %v3532 = vadd.f32 %v3530, %v3531
  %v3533 = vrot.slane %v3532, 1
  %v3534 = vadd.f32 %v3532, %v3533
  %v3535 = vsel %vm795, %v3513, 0.0
  %v3536 = vrot.slane %v3535, 4
  %v3537 = vadd.f32 %v3535, %v3536
  %v3538 = vrot.slane %v3537, 2
  %v3539 = vadd.f32 %v3537, %v3538
  %v3540 = vrot.slane %v3539, 1
  %v3541 = vadd.f32 %v3539, %v3540
  %v3542 = vadd.f32 %v3141, %v3520
  %v3543 = vadd.f32 %v3142, %v3527
  %v3544 = vadd.f32 %v3143, %v3534
  %v3545 = vadd.f32 %v3144, %v3541
  %3546 = vmatprep.subr.mxu0 0.0
  %3547 = vmatpush1.msra.mxu0 %v799
  %3548 = vmatprep.subr.mxu0 0.0
  %3549 = vmatpush1.msra.mxu0 %v800
  %3550 = vmatprep.subr.mxu0 0.0
  %3551 = vmatpush1.msra.mxu0 %v801
  %3552 = vmatprep.subr.mxu0 0.0
  %3553 = vmatpush1.msra.mxu0 %v802
  %3554 = vmatprep.subr.mxu0 0.0
  %3555 = vmatpush1.msra.mxu0 %v803
  %3556 = vmatprep.subr.mxu0 0.0
  %3557 = vmatpush1.msra.mxu0 %v804
  %3558 = vmatprep.subr.mxu0 0.0
  %3559 = vmatpush1.msra.mxu0 %v805
  %3560 = vmatprep.subr.mxu0 0.0
  %3561 = vmatpush1.msra.mxu0 %v806
  %3562 = vmatprep.subr.mxu0 0.0
  %3563 = vmatpush1.msra.mxu0 %v807
  %3564 = vmatprep.subr.mxu0 0.0
  %3565 = vmatpush1.msra.mxu0 %v808
  %3566 = vmatprep.subr.mxu0 0.0
  %3567 = vmatpush1.msra.mxu0 %v809
  %3568 = vmatprep.subr.mxu0 0.0
  %3569 = vmatpush1.msra.mxu0 %v810
  %3570 = vmatprep.subr.mxu0 0.0
  %3571 = vmatpush1.msra.mxu0 %v811
  %3572 = vmatprep.subr.mxu0 0.0
  %3573 = vmatpush1.msra.mxu0 %v812
  %3574 = vmatprep.subr.mxu0 0.0
  %3575 = vmatpush1.msra.mxu0 %v813
  %3576 = vmatprep.subr.mxu0 0.0
  %3577 = vmatpush1.msra.mxu0 %v814
  %3578 = vmatprep.subr.mxu0 0.0
  %3579 = vmatpush1.msra.mxu0 %v815
  %3580 = vmatprep.subr.mxu0 0.0
  %3581 = vmatpush1.msra.mxu0 %v816
  %3582 = vmatprep.subr.mxu0 0.0
  %3583 = vmatpush1.msra.mxu0 %v817
  %3584 = vmatprep.subr.mxu0 0.0
  %3585 = vmatpush1.msra.mxu0 %v818
  %3586 = vmatprep.subr.mxu0 0.0
  %3587 = vmatpush1.msra.mxu0 %v819
  %3588 = vmatprep.subr.mxu0 0.0
  %3589 = vmatpush1.msra.mxu0 %v820
  %3590 = vmatprep.subr.mxu0 0.0
  %3591 = vmatpush1.msra.mxu0 %v821
  %3592 = vmatprep.subr.mxu0 0.0
  %3593 = vmatpush1.msra.mxu0 %v822
  %3594 = vmatprep.subr.mxu0 0.0
  %3595 = vmatpush1.msra.mxu0 %v823
  %3596 = vmatprep.subr.mxu0 0.0
  %3597 = vmatpush1.msra.mxu0 %v824
  %3598 = vmatprep.subr.mxu0 0.0
  %3599 = vmatpush1.msra.mxu0 %v825
  %3600 = vmatprep.subr.mxu0 0.0
  %3601 = vmatpush1.msra.mxu0 %v826
  %3602 = vmatprep.subr.mxu0 0.0
  %3603 = vmatpush1.msra.mxu0 %v827
  %3604 = vmatprep.subr.mxu0 0.0
  %3605 = vmatpush1.msra.mxu0 %v828
  %3606 = vmatprep.subr.mxu0 0.0
  %3607 = vmatpush1.msra.mxu0 %v829
  %3608 = vmatprep.subr.mxu0 0.0
  %3609 = vmatpush1.msra.mxu0 %v830
  %3610 = vmatprep.mubr.f32.mxu0 %v3511
  %3611 = vmatmul.mubr.f32.gmra.mrb[0].mxu0 %v3510
  %v3612 = vpop.f32.mrb[0].mxu0
  %v3613 = vadd.f32 0.0, %v3612
  %v3614 = vpop.f32.mrb[0].mxu0
  %3615 = vdwg.mxu0
  %3616 = vmatprep.subr.mxu0 0.0
  %3617 = vmatpush1.msra.mxu0 %v831
  %3618 = vmatprep.subr.mxu0 0.0
  %3619 = vmatpush1.msra.mxu0 %v832
  %3620 = vmatprep.subr.mxu0 0.0
  %3621 = vmatpush1.msra.mxu0 %v833
  %3622 = vmatprep.subr.mxu0 0.0
  %3623 = vmatpush1.msra.mxu0 %v834
  %3624 = vmatprep.subr.mxu0 0.0
  %3625 = vmatpush1.msra.mxu0 %v835
  %3626 = vmatprep.subr.mxu0 0.0
  %3627 = vmatpush1.msra.mxu0 %v836
  %3628 = vmatprep.subr.mxu0 0.0
  %3629 = vmatpush1.msra.mxu0 %v837
  %3630 = vmatprep.subr.mxu0 0.0
  %3631 = vmatpush1.msra.mxu0 %v838
  %3632 = vmatprep.subr.mxu0 0.0
  %3633 = vmatpush1.msra.mxu0 %v839
  %3634 = vmatprep.subr.mxu0 0.0
  %3635 = vmatpush1.msra.mxu0 %v840
  %3636 = vmatprep.subr.mxu0 0.0
  %3637 = vmatpush1.msra.mxu0 %v841
  %3638 = vmatprep.subr.mxu0 0.0
  %3639 = vmatpush1.msra.mxu0 %v842
  %3640 = vmatprep.subr.mxu0 0.0
  %3641 = vmatpush1.msra.mxu0 %v843
  %3642 = vmatprep.subr.mxu0 0.0
  %3643 = vmatpush1.msra.mxu0 %v844
  %3644 = vmatprep.subr.mxu0 0.0
  %3645 = vmatpush1.msra.mxu0 %v845
  %3646 = vmatprep.subr.mxu0 0.0
  %3647 = vmatpush1.msra.mxu0 %v846
  %3648 = vmatprep.subr.mxu0 0.0
  %3649 = vmatpush1.msra.mxu0 %v847
  %3650 = vmatprep.subr.mxu0 0.0
  %3651 = vmatpush1.msra.mxu0 %v848
  %3652 = vmatprep.subr.mxu0 0.0
  %3653 = vmatpush1.msra.mxu0 %v849
  %3654 = vmatprep.subr.mxu0 0.0
  %3655 = vmatpush1.msra.mxu0 %v850
  %3656 = vmatprep.subr.mxu0 0.0
  %3657 = vmatpush1.msra.mxu0 %v851
  %3658 = vmatprep.subr.mxu0 0.0
  %3659 = vmatpush1.msra.mxu0 %v852
  %3660 = vmatprep.subr.mxu0 0.0
  %3661 = vmatpush1.msra.mxu0 %v853
  %3662 = vmatprep.subr.mxu0 0.0
  %3663 = vmatpush1.msra.mxu0 %v854
  %3664 = vmatprep.subr.mxu0 0.0
  %3665 = vmatpush1.msra.mxu0 %v855
  %3666 = vmatprep.subr.mxu0 0.0
  %3667 = vmatpush1.msra.mxu0 %v856
  %3668 = vmatprep.subr.mxu0 0.0
  %3669 = vmatpush1.msra.mxu0 %v857
  %3670 = vmatprep.subr.mxu0 0.0
  %3671 = vmatpush1.msra.mxu0 %v858
  %3672 = vmatprep.subr.mxu0 0.0
  %3673 = vmatpush1.msra.mxu0 %v859
  %3674 = vmatprep.subr.mxu0 0.0
  %3675 = vmatpush1.msra.mxu0 %v860
  %3676 = vmatprep.subr.mxu0 0.0
  %3677 = vmatpush1.msra.mxu0 %v861
  %3678 = vmatprep.subr.mxu0 0.0
  %3679 = vmatpush1.msra.mxu0 %v862
  %3680 = vmatprep.mubr.f32.mxu0 %v3513
  %3681 = vmatmul.mubr.f32.gmra.mrb[0].mxu0 %v3512
  %v3682 = vpop.f32.mrb[0].mxu0
  %v3683 = vadd.f32 %v3613, %v3682
  %v3684 = vpop.f32.mrb[0].mxu0
  %3685 = vdwg.mxu0
  %v3688 = vunpack.c.l.s4 1983009808
  %v3689 = vunpack.c.0.s8 %v3688
  %v3690 = vlaneseq
  %v3691 = vshrl.u32 %v3690, 7
  %v3692 = vsub.s32 %v3689, %v3691
  %v3693 = vrot.slane %v3683, %v3692
  %3694 = vrot.lane.b32.xlu0 %v3693, 54
  %v3695 = vpop.permute.xlu0 %3694
  %vm3697 = vcmask 509360
  %3698 = vst.msk [vmem:[#allocation3] sm:$0x3] %vm3697, %v3695
  %v3699 = vld [vmem:[#allocation2] sm:$0x3]
  %v3702 = vunpack.c.l.s4 1983009808
  %v3703 = vunpack.c.0.s8 %v3702
  %v3704 = vlaneseq
  %v3705 = vshrl.u32 %v3704, 7
  %v3706 = vsub.s32 %v3703, %v3705
  %v3707 = vrot.slane %v3699, %v3706
  %3708 = vrot.lane.b32.xlu0 %v3707, 65
  %v3709 = vpop.permute.xlu0 %3708
  %v3710 = vsel %vm873, %v3709, 0
  %3712 = vmatprep.subr.mxu0 %v864
  %3713 = vmatpush1.msra.mxu0 %v863
  %3714 = vmatprep.subr.mxu0 %v882
  %3715 = vmatpush1.msra.mxu0 %v879
  %3716 = vmatprep.subr.mxu0 0.0
  %3717 = vmatpush1.msra.mxu0 0.0
  %3718 = vmatprep.subr.mxu0 0.0
  %3719 = vmatpush1.msra.mxu0 0.0
  %3720 = vmatprep.subr.mxu0 0.0
  %3721 = vmatpush1.msra.mxu0 0.0
  %3722 = vmatprep.subr.mxu0 0.0
  %3723 = vmatpush1.msra.mxu0 0.0
  %3724 = vmatprep.subr.mxu0 0.0
  %3725 = vmatpush1.msra.mxu0 0.0
  %3726 = vmatprep.subr.mxu0 0.0
  %3727 = vmatpush1.msra.mxu0 0.0
  %3728 = vmatprep.subr.mxu0 0.0
  %3729 = vmatpush1.msra.mxu0 0.0
  %3730 = vmatprep.subr.mxu0 0.0
  %3731 = vmatpush1.msra.mxu0 0.0
  %3732 = vmatprep.subr.mxu0 0.0
  %3733 = vmatpush1.msra.mxu0 0.0
  %3734 = vmatprep.subr.mxu0 0.0
  %3735 = vmatpush1.msra.mxu0 0.0
  %3736 = vmatprep.subr.mxu0 0.0
  %3737 = vmatpush1.msra.mxu0 0.0
  %3738 = vmatprep.subr.mxu0 0.0
  %3739 = vmatpush1.msra.mxu0 0.0
  %3740 = vmatprep.subr.mxu0 0.0
  %3741 = vmatpush1.msra.mxu0 0.0
  %3742 = vmatprep.subr.mxu0 0.0
  %3743 = vmatpush1.msra.mxu0 0.0
  %3744 = vmatprep.subr.mxu0 0.0
  %3745 = vmatpush1.msra.mxu0 0.0
  %3746 = vmatprep.subr.mxu0 0.0
  %3747 = vmatpush1.msra.mxu0 0.0
  %3748 = vmatprep.subr.mxu0 0.0
  %3749 = vmatpush1.msra.mxu0 0.0
  %3750 = vmatprep.subr.mxu0 0.0
  %3751 = vmatpush1.msra.mxu0 0.0
  %3752 = vmatprep.subr.mxu0 0.0
  %3753 = vmatpush1.msra.mxu0 0.0
  %3754 = vmatprep.subr.mxu0 0.0
  %3755 = vmatpush1.msra.mxu0 0.0
  %3756 = vmatprep.subr.mxu0 0.0
  %3757 = vmatpush1.msra.mxu0 0.0
  %3758 = vmatprep.subr.mxu0 0.0
  %3759 = vmatpush1.msra.mxu0 0.0
  %3760 = vmatprep.subr.mxu0 0.0
  %3761 = vmatpush1.msra.mxu0 0.0
  %3762 = vmatprep.subr.mxu0 0.0
  %3763 = vmatpush1.msra.mxu0 0.0
  %3764 = vmatprep.subr.mxu0 0.0
  %3765 = vmatpush1.msra.mxu0 0.0
  %3766 = vmatprep.subr.mxu0 0.0
  %3767 = vmatpush1.msra.mxu0 0.0
  %3768 = vmatprep.subr.mxu0 0.0
  %3769 = vmatpush1.msra.mxu0 0.0
  %3770 = vmatprep.subr.mxu0 0.0
  %3771 = vmatpush1.msra.mxu0 0.0
  %3772 = vmatprep.subr.mxu0 0.0
  %3773 = vmatpush1.msra.mxu0 0.0
  %3774 = vmatprep.subr.mxu0 0.0
  %3775 = vmatpush1.msra.mxu0 0.0
  %3776 = vmatprep.mubr.f32.mxu0 0.0
  %3777 = vmatmul.mubr.f32.gmra.mrb[0].mxu0 %v3710
  %v3778 = vpop.f32.mrb[0].mxu0
  %v3779 = vadd.f32 0.0, %v3778
  %v3780 = vpop.f32.mrb[0].mxu0
  %v3781 = vadd.f32 0.0, %v3780
  %3782 = vdwg.mxu0
  %3783 = vmatprep.subr.mxu0 %v866
  %3784 = vmatpush1.msra.mxu0 %v865
  %3785 = vmatprep.subr.mxu0 %v888
  %3786 = vmatpush1.msra.mxu0 %v885
  %3787 = vmatprep.subr.mxu0 0.0
  %3788 = vmatpush1.msra.mxu0 0.0
  %3789 = vmatprep.subr.mxu0 0.0
  %3790 = vmatpush1.msra.mxu0 0.0
  %3791 = vmatprep.subr.mxu0 0.0
  %3792 = vmatpush1.msra.mxu0 0.0
  %3793 = vmatprep.subr.mxu0 0.0
  %3794 = vmatpush1.msra.mxu0 0.0
  %3795 = vmatprep.subr.mxu0 0.0
  %3796 = vmatpush1.msra.mxu0 0.0
  %3797 = vmatprep.subr.mxu0 0.0
  %3798 = vmatpush1.msra.mxu0 0.0
  %3799 = vmatprep.subr.mxu0 0.0
  %3800 = vmatpush1.msra.mxu0 0.0
  %3801 = vmatprep.subr.mxu0 0.0
  %3802 = vmatpush1.msra.mxu0 0.0
  %3803 = vmatprep.subr.mxu0 0.0
  %3804 = vmatpush1.msra.mxu0 0.0
  %3805 = vmatprep.subr.mxu0 0.0
  %3806 = vmatpush1.msra.mxu0 0.0
  %3807 = vmatprep.subr.mxu0 0.0
  %3808 = vmatpush1.msra.mxu0 0.0
  %3809 = vmatprep.subr.mxu0 0.0
  %3810 = vmatpush1.msra.mxu0 0.0
  %3811 = vmatprep.subr.mxu0 0.0
  %3812 = vmatpush1.msra.mxu0 0.0
  %3813 = vmatprep.subr.mxu0 0.0
  %3814 = vmatpush1.msra.mxu0 0.0
  %3815 = vmatprep.subr.mxu0 0.0
  %3816 = vmatpush1.msra.mxu0 0.0
  %3817 = vmatprep.subr.mxu0 0.0
  %3818 = vmatpush1.msra.mxu0 0.0
  %3819 = vmatprep.subr.mxu0 0.0
  %3820 = vmatpush1.msra.mxu0 0.0
  %3821 = vmatprep.subr.mxu0 0.0
  %3822 = vmatpush1.msra.mxu0 0.0
  %3823 = vmatprep.subr.mxu0 0.0
  %3824 = vmatpush1.msra.mxu0 0.0
  %3825 = vmatprep.subr.mxu0 0.0
  %3826 = vmatpush1.msra.mxu0 0.0
  %3827 = vmatprep.subr.mxu0 0.0
  %3828 = vmatpush1.msra.mxu0 0.0
  %3829 = vmatprep.subr.mxu0 0.0
  %3830 = vmatpush1.msra.mxu0 0.0
  %3831 = vmatprep.subr.mxu0 0.0
  %3832 = vmatpush1.msra.mxu0 0.0
  %3833 = vmatprep.subr.mxu0 0.0
  %3834 = vmatpush1.msra.mxu0 0.0
  %3835 = vmatprep.subr.mxu0 0.0
  %3836 = vmatpush1.msra.mxu0 0.0
  %3837 = vmatprep.subr.mxu0 0.0
  %3838 = vmatpush1.msra.mxu0 0.0
  %3839 = vmatprep.subr.mxu0 0.0
  %3840 = vmatpush1.msra.mxu0 0.0
  %3841 = vmatprep.subr.mxu0 0.0
  %3842 = vmatpush1.msra.mxu0 0.0
  %3843 = vmatprep.subr.mxu0 0.0
  %3844 = vmatpush1.msra.mxu0 0.0
  %3845 = vmatprep.subr.mxu0 0.0
  %3846 = vmatpush1.msra.mxu0 0.0
  %3847 = vmatprep.mubr.f32.mxu0 0.0
  %3848 = vmatmul.mubr.f32.gmra.mrb[0].mxu0 %v3710
  %v3849 = vpop.f32.mrb[0].mxu0
  %v3850 = vadd.f32 0.0, %v3849
  %v3851 = vpop.f32.mrb[0].mxu0
  %v3852 = vadd.f32 0.0, %v3851
  %3853 = vdwg.mxu0
  %v3854 = vmul.f32 %v3779, 2.0
  %v3855 = vmul.f32 %v3781, 2.0
  %v3856 = vmul.f32 %v3850, 2.0
  %v3857 = vmul.f32 %v3852, 2.0
  %v3858 = vsub.f32 %v1040, %v3854
  %v3859 = vsub.f32 %v1044, %v3855
  %v3860 = vsub.f32 %v1048, %v3856
  %v3861 = vsub.f32 %v1052, %v3857
  %v3862 = vsel %vm795, %v3858, inf
  %v3863 = vsel %vm795, %v3859, inf
  %v3864 = vsel %vm795, %v3860, inf
  %v3865 = vsel %vm795, %v3861, inf
  %v3866 = vmin.f32 %v3862, %v3863
  %v3867 = vmin.f32 %v3864, %v3865
  %v3868 = vmin.f32 %v3866, %v3867
  %3869 = vmin.xlane.f32.xlu0 %v3868
  %v3870 = vpop.xlane.xlu0 %3869
  %vm3871 = vcmp.le.f32.partialorder %v3858, %v3870
  %vm3872 = vcmp.le.f32.partialorder %v3859, %v3870
  %vm3873 = vcmp.le.f32.partialorder %v3860, %v3870
  %vm3874 = vcmp.le.f32.partialorder %v3861, %v3870
  %v3875 = vsel %vm3871, %v1071, 512
  %v3876 = vsel %vm3872, %v1072, 512
  %v3877 = vsel %vm3873, %v1073, 512
  %v3878 = vsel %vm3874, %v1074, 512
  %v3879 = vsel %vm795, %v3875, 2147483647
  %v3880 = vsel %vm795, %v3876, 2147483647
  %v3881 = vsel %vm795, %v3877, 2147483647
  %v3882 = vsel %vm795, %v3878, 2147483647
  %vm3883 = vcmp.lt.s32.totalorder %v3879, %v3880
  %v3884 = vsel %vm3883, %v3879, %v3880
  %vm3885 = vcmp.lt.s32.totalorder %v3881, %v3882
  %v3886 = vsel %vm3885, %v3881, %v3882
  %vm3887 = vcmp.lt.s32.totalorder %v3884, %v3886
  %v3888 = vsel %vm3887, %v3884, %v3886
  %v3889 = vand.u32 %v3888, 65535
  %v3890 = vshra.s32 %v3888, 16
  %v3891 = vcvt.s32.f32 %v3889
  %v3892 = vcvt.s32.f32 %v3890
  %3893 = vmin.xlane.f32.xlu0 %v3892
  %v3894 = vpop.xlane.xlu0 %3893
  %vm3895 = vcmp.eq.f32.partialorder %v3892, %v3894
  %v3896 = vsel %vm3895, %v3891, inf
  %3897 = vmin.xlane.f32.xlu0 %v3896
  %v3898 = vpop.xlane.xlu0 %3897
  %v3899 = vcvt.f32.s32 %v3898
  %v3900 = vcvt.f32.s32 %v3894
  %v3901 = vshll.u32 %v3900, 16
  %v3902 = vadd.s32 %v3901, %v3899
  %vm3903 = vcmp.eq.s32.totalorder %v1071, %v3902
  %vm3904 = vcmp.eq.s32.totalorder %v1072, %v3902
  %vm3905 = vcmp.eq.s32.totalorder %v1073, %v3902
  %vm3906 = vcmp.eq.s32.totalorder %v1074, %v3902
  %v3907 = vsel %vm3903, 1, 0
  %v3908 = vsel %vm3904, 1, 0
  %v3909 = vsel %vm3905, 1, 0
  %v3910 = vsel %vm3906, 1, 0
  %v3911 = vcvt.s32.f32 %v3907
  %v3912 = vcvt.s32.f32 %v3908
  %v3913 = vcvt.s32.f32 %v3909
  %v3914 = vcvt.s32.f32 %v3910
  %v3915 = vsel %vm795, %v3911, 0.0
  %v3916 = vrot.slane %v3915, 4
  %v3917 = vadd.f32 %v3915, %v3916
  %v3918 = vrot.slane %v3917, 2
  %v3919 = vadd.f32 %v3917, %v3918
  %v3920 = vrot.slane %v3919, 1
  %v3921 = vadd.f32 %v3919, %v3920
  %v3922 = vsel %vm795, %v3912, 0.0
  %v3923 = vrot.slane %v3922, 4
  %v3924 = vadd.f32 %v3922, %v3923
  %v3925 = vrot.slane %v3924, 2
  %v3926 = vadd.f32 %v3924, %v3925
  %v3927 = vrot.slane %v3926, 1
  %v3928 = vadd.f32 %v3926, %v3927
  %v3929 = vsel %vm795, %v3913, 0.0
  %v3930 = vrot.slane %v3929, 4
  %v3931 = vadd.f32 %v3929, %v3930
  %v3932 = vrot.slane %v3931, 2
  %v3933 = vadd.f32 %v3931, %v3932
  %v3934 = vrot.slane %v3933, 1
  %v3935 = vadd.f32 %v3933, %v3934
  %v3936 = vsel %vm795, %v3914, 0.0
  %v3937 = vrot.slane %v3936, 4
  %v3938 = vadd.f32 %v3936, %v3937
  %v3939 = vrot.slane %v3938, 2
  %v3940 = vadd.f32 %v3938, %v3939
  %v3941 = vrot.slane %v3940, 1
  %v3942 = vadd.f32 %v3940, %v3941
  %v3943 = vadd.f32 %v3542, %v3921
  %v3944 = vadd.f32 %v3543, %v3928
  %v3945 = vadd.f32 %v3544, %v3935
  %v3946 = vadd.f32 %v3545, %v3942
  %3947 = vmatprep.subr.mxu0 0.0
  %3948 = vmatpush1.msra.mxu0 %v799
  %3949 = vmatprep.subr.mxu0 0.0
  %3950 = vmatpush1.msra.mxu0 %v800
  %3951 = vmatprep.subr.mxu0 0.0
  %3952 = vmatpush1.msra.mxu0 %v801
  %3953 = vmatprep.subr.mxu0 0.0
  %3954 = vmatpush1.msra.mxu0 %v802
  %3955 = vmatprep.subr.mxu0 0.0
  %3956 = vmatpush1.msra.mxu0 %v803
  %3957 = vmatprep.subr.mxu0 0.0
  %3958 = vmatpush1.msra.mxu0 %v804
  %3959 = vmatprep.subr.mxu0 0.0
  %3960 = vmatpush1.msra.mxu0 %v805
  %3961 = vmatprep.subr.mxu0 0.0
  %3962 = vmatpush1.msra.mxu0 %v806
  %3963 = vmatprep.subr.mxu0 0.0
  %3964 = vmatpush1.msra.mxu0 %v807
  %3965 = vmatprep.subr.mxu0 0.0
  %3966 = vmatpush1.msra.mxu0 %v808
  %3967 = vmatprep.subr.mxu0 0.0
  %3968 = vmatpush1.msra.mxu0 %v809
  %3969 = vmatprep.subr.mxu0 0.0
  %3970 = vmatpush1.msra.mxu0 %v810
  %3971 = vmatprep.subr.mxu0 0.0
  %3972 = vmatpush1.msra.mxu0 %v811
  %3973 = vmatprep.subr.mxu0 0.0
  %3974 = vmatpush1.msra.mxu0 %v812
  %3975 = vmatprep.subr.mxu0 0.0
  %3976 = vmatpush1.msra.mxu0 %v813
  %3977 = vmatprep.subr.mxu0 0.0
  %3978 = vmatpush1.msra.mxu0 %v814
  %3979 = vmatprep.subr.mxu0 0.0
  %3980 = vmatpush1.msra.mxu0 %v815
  %3981 = vmatprep.subr.mxu0 0.0
  %3982 = vmatpush1.msra.mxu0 %v816
  %3983 = vmatprep.subr.mxu0 0.0
  %3984 = vmatpush1.msra.mxu0 %v817
  %3985 = vmatprep.subr.mxu0 0.0
  %3986 = vmatpush1.msra.mxu0 %v818
  %3987 = vmatprep.subr.mxu0 0.0
  %3988 = vmatpush1.msra.mxu0 %v819
  %3989 = vmatprep.subr.mxu0 0.0
  %3990 = vmatpush1.msra.mxu0 %v820
  %3991 = vmatprep.subr.mxu0 0.0
  %3992 = vmatpush1.msra.mxu0 %v821
  %3993 = vmatprep.subr.mxu0 0.0
  %3994 = vmatpush1.msra.mxu0 %v822
  %3995 = vmatprep.subr.mxu0 0.0
  %3996 = vmatpush1.msra.mxu0 %v823
  %3997 = vmatprep.subr.mxu0 0.0
  %3998 = vmatpush1.msra.mxu0 %v824
  %3999 = vmatprep.subr.mxu0 0.0
  %4000 = vmatpush1.msra.mxu0 %v825
  %4001 = vmatprep.subr.mxu0 0.0
  %4002 = vmatpush1.msra.mxu0 %v826
  %4003 = vmatprep.subr.mxu0 0.0
  %4004 = vmatpush1.msra.mxu0 %v827
  %4005 = vmatprep.subr.mxu0 0.0
  %4006 = vmatpush1.msra.mxu0 %v828
  %4007 = vmatprep.subr.mxu0 0.0
  %4008 = vmatpush1.msra.mxu0 %v829
  %4009 = vmatprep.subr.mxu0 0.0
  %4010 = vmatpush1.msra.mxu0 %v830
  %4011 = vmatprep.mubr.f32.mxu0 %v3912
  %4012 = vmatmul.mubr.f32.gmra.mrb[0].mxu0 %v3911
  %v4013 = vpop.f32.mrb[0].mxu0
  %v4014 = vadd.f32 0.0, %v4013
  %v4015 = vpop.f32.mrb[0].mxu0
  %4016 = vdwg.mxu0
  %4017 = vmatprep.subr.mxu0 0.0
  %4018 = vmatpush1.msra.mxu0 %v831
  %4019 = vmatprep.subr.mxu0 0.0
  %4020 = vmatpush1.msra.mxu0 %v832
  %4021 = vmatprep.subr.mxu0 0.0
  %4022 = vmatpush1.msra.mxu0 %v833
  %4023 = vmatprep.subr.mxu0 0.0
  %4024 = vmatpush1.msra.mxu0 %v834
  %4025 = vmatprep.subr.mxu0 0.0
  %4026 = vmatpush1.msra.mxu0 %v835
  %4027 = vmatprep.subr.mxu0 0.0
  %4028 = vmatpush1.msra.mxu0 %v836
  %4029 = vmatprep.subr.mxu0 0.0
  %4030 = vmatpush1.msra.mxu0 %v837
  %4031 = vmatprep.subr.mxu0 0.0
  %4032 = vmatpush1.msra.mxu0 %v838
  %4033 = vmatprep.subr.mxu0 0.0
  %4034 = vmatpush1.msra.mxu0 %v839
  %4035 = vmatprep.subr.mxu0 0.0
  %4036 = vmatpush1.msra.mxu0 %v840
  %4037 = vmatprep.subr.mxu0 0.0
  %4038 = vmatpush1.msra.mxu0 %v841
  %4039 = vmatprep.subr.mxu0 0.0
  %4040 = vmatpush1.msra.mxu0 %v842
  %4041 = vmatprep.subr.mxu0 0.0
  %4042 = vmatpush1.msra.mxu0 %v843
  %4043 = vmatprep.subr.mxu0 0.0
  %4044 = vmatpush1.msra.mxu0 %v844
  %4045 = vmatprep.subr.mxu0 0.0
  %4046 = vmatpush1.msra.mxu0 %v845
  %4047 = vmatprep.subr.mxu0 0.0
  %4048 = vmatpush1.msra.mxu0 %v846
  %4049 = vmatprep.subr.mxu0 0.0
  %4050 = vmatpush1.msra.mxu0 %v847
  %4051 = vmatprep.subr.mxu0 0.0
  %4052 = vmatpush1.msra.mxu0 %v848
  %4053 = vmatprep.subr.mxu0 0.0
  %4054 = vmatpush1.msra.mxu0 %v849
  %4055 = vmatprep.subr.mxu0 0.0
  %4056 = vmatpush1.msra.mxu0 %v850
  %4057 = vmatprep.subr.mxu0 0.0
  %4058 = vmatpush1.msra.mxu0 %v851
  %4059 = vmatprep.subr.mxu0 0.0
  %4060 = vmatpush1.msra.mxu0 %v852
  %4061 = vmatprep.subr.mxu0 0.0
  %4062 = vmatpush1.msra.mxu0 %v853
  %4063 = vmatprep.subr.mxu0 0.0
  %4064 = vmatpush1.msra.mxu0 %v854
  %4065 = vmatprep.subr.mxu0 0.0
  %4066 = vmatpush1.msra.mxu0 %v855
  %4067 = vmatprep.subr.mxu0 0.0
  %4068 = vmatpush1.msra.mxu0 %v856
  %4069 = vmatprep.subr.mxu0 0.0
  %4070 = vmatpush1.msra.mxu0 %v857
  %4071 = vmatprep.subr.mxu0 0.0
  %4072 = vmatpush1.msra.mxu0 %v858
  %4073 = vmatprep.subr.mxu0 0.0
  %4074 = vmatpush1.msra.mxu0 %v859
  %4075 = vmatprep.subr.mxu0 0.0
  %4076 = vmatpush1.msra.mxu0 %v860
  %4077 = vmatprep.subr.mxu0 0.0
  %4078 = vmatpush1.msra.mxu0 %v861
  %4079 = vmatprep.subr.mxu0 0.0
  %4080 = vmatpush1.msra.mxu0 %v862
  %4081 = vmatprep.mubr.f32.mxu0 %v3914
  %4082 = vmatmul.mubr.f32.gmra.mrb[0].mxu0 %v3913
  %v4083 = vpop.f32.mrb[0].mxu0
  %v4084 = vadd.f32 %v4014, %v4083
  %v4085 = vpop.f32.mrb[0].mxu0
  %4086 = vdwg.mxu0
  %v4089 = vunpack.c.l.s4 1983009808
  %v4090 = vunpack.c.0.s8 %v4089
  %v4091 = vlaneseq
  %v4092 = vshrl.u32 %v4091, 7
  %v4093 = vsub.s32 %v4090, %v4092
  %v4094 = vrot.slane %v4084, %v4093
  %4095 = vrot.lane.b32.xlu0 %v4094, 63
  %v4096 = vpop.permute.xlu0 %4095
  %vm4098 = vcmask 583160
  %4099 = vst.msk [vmem:[#allocation3] sm:$0x3] %vm4098, %v4096
  %v4100 = vld [vmem:[#allocation2] sm:$0x3]
  %v4103 = vunpack.c.l.s4 1983009808
  %v4104 = vunpack.c.0.s8 %v4103
  %v4105 = vlaneseq
  %v4106 = vshrl.u32 %v4105, 7
  %v4107 = vsub.s32 %v4104, %v4106
  %v4108 = vrot.slane %v4100, %v4107
  %4109 = vrot.lane.b32.xlu0 %v4108, 56
  %v4110 = vpop.permute.xlu0 %4109
  %v4111 = vsel %vm873, %v4110, 0
  %4113 = vmatprep.subr.mxu0 %v864
  %4114 = vmatpush1.msra.mxu0 %v863
  %4115 = vmatprep.subr.mxu0 %v882
  %4116 = vmatpush1.msra.mxu0 %v879
  %4117 = vmatprep.subr.mxu0 0.0
  %4118 = vmatpush1.msra.mxu0 0.0
  %4119 = vmatprep.subr.mxu0 0.0
  %4120 = vmatpush1.msra.mxu0 0.0
  %4121 = vmatprep.subr.mxu0 0.0
  %4122 = vmatpush1.msra.mxu0 0.0
  %4123 = vmatprep.subr.mxu0 0.0
  %4124 = vmatpush1.msra.mxu0 0.0
  %4125 = vmatprep.subr.mxu0 0.0
  %4126 = vmatpush1.msra.mxu0 0.0
  %4127 = vmatprep.subr.mxu0 0.0
  %4128 = vmatpush1.msra.mxu0 0.0
  %4129 = vmatprep.subr.mxu0 0.0
  %4130 = vmatpush1.msra.mxu0 0.0
  %4131 = vmatprep.subr.mxu0 0.0
  %4132 = vmatpush1.msra.mxu0 0.0
  %4133 = vmatprep.subr.mxu0 0.0
  %4134 = vmatpush1.msra.mxu0 0.0
  %4135 = vmatprep.subr.mxu0 0.0
  %4136 = vmatpush1.msra.mxu0 0.0
  %4137 = vmatprep.subr.mxu0 0.0
  %4138 = vmatpush1.msra.mxu0 0.0
  %4139 = vmatprep.subr.mxu0 0.0
  %4140 = vmatpush1.msra.mxu0 0.0
  %4141 = vmatprep.subr.mxu0 0.0
  %4142 = vmatpush1.msra.mxu0 0.0
  %4143 = vmatprep.subr.mxu0 0.0
  %4144 = vmatpush1.msra.mxu0 0.0
  %4145 = vmatprep.subr.mxu0 0.0
  %4146 = vmatpush1.msra.mxu0 0.0
  %4147 = vmatprep.subr.mxu0 0.0
  %4148 = vmatpush1.msra.mxu0 0.0
  %4149 = vmatprep.subr.mxu0 0.0
  %4150 = vmatpush1.msra.mxu0 0.0
  %4151 = vmatprep.subr.mxu0 0.0
  %4152 = vmatpush1.msra.mxu0 0.0
  %4153 = vmatprep.subr.mxu0 0.0
  %4154 = vmatpush1.msra.mxu0 0.0
  %4155 = vmatprep.subr.mxu0 0.0
  %4156 = vmatpush1.msra.mxu0 0.0
  %4157 = vmatprep.subr.mxu0 0.0
  %4158 = vmatpush1.msra.mxu0 0.0
  %4159 = vmatprep.subr.mxu0 0.0
  %4160 = vmatpush1.msra.mxu0 0.0
  %4161 = vmatprep.subr.mxu0 0.0
  %4162 = vmatpush1.msra.mxu0 0.0
  %4163 = vmatprep.subr.mxu0 0.0
  %4164 = vmatpush1.msra.mxu0 0.0
  %4165 = vmatprep.subr.mxu0 0.0
  %4166 = vmatpush1.msra.mxu0 0.0
  %4167 = vmatprep.subr.mxu0 0.0
  %4168 = vmatpush1.msra.mxu0 0.0
  %4169 = vmatprep.subr.mxu0 0.0
  %4170 = vmatpush1.msra.mxu0 0.0
  %4171 = vmatprep.subr.mxu0 0.0
  %4172 = vmatpush1.msra.mxu0 0.0
  %4173 = vmatprep.subr.mxu0 0.0
  %4174 = vmatpush1.msra.mxu0 0.0
  %4175 = vmatprep.subr.mxu0 0.0
  %4176 = vmatpush1.msra.mxu0 0.0
  %4177 = vmatprep.mubr.f32.mxu0 0.0
  %4178 = vmatmul.mubr.f32.gmra.mrb[0].mxu0 %v4111
  %v4179 = vpop.f32.mrb[0].mxu0
  %v4180 = vadd.f32 0.0, %v4179
  %v4181 = vpop.f32.mrb[0].mxu0
  %v4182 = vadd.f32 0.0, %v4181
  %4183 = vdwg.mxu0
  %4184 = vmatprep.subr.mxu0 %v866
  %4185 = vmatpush1.msra.mxu0 %v865
  %4186 = vmatprep.subr.mxu0 %v888
  %4187 = vmatpush1.msra.mxu0 %v885
  %4188 = vmatprep.subr.mxu0 0.0
  %4189 = vmatpush1.msra.mxu0 0.0
  %4190 = vmatprep.subr.mxu0 0.0
  %4191 = vmatpush1.msra.mxu0 0.0
  %4192 = vmatprep.subr.mxu0 0.0
  %4193 = vmatpush1.msra.mxu0 0.0
  %4194 = vmatprep.subr.mxu0 0.0
  %4195 = vmatpush1.msra.mxu0 0.0
  %4196 = vmatprep.subr.mxu0 0.0
  %4197 = vmatpush1.msra.mxu0 0.0
  %4198 = vmatprep.subr.mxu0 0.0
  %4199 = vmatpush1.msra.mxu0 0.0
  %4200 = vmatprep.subr.mxu0 0.0
  %4201 = vmatpush1.msra.mxu0 0.0
  %4202 = vmatprep.subr.mxu0 0.0
  %4203 = vmatpush1.msra.mxu0 0.0
  %4204 = vmatprep.subr.mxu0 0.0
  %4205 = vmatpush1.msra.mxu0 0.0
  %4206 = vmatprep.subr.mxu0 0.0
  %4207 = vmatpush1.msra.mxu0 0.0
  %4208 = vmatprep.subr.mxu0 0.0
  %4209 = vmatpush1.msra.mxu0 0.0
  %4210 = vmatprep.subr.mxu0 0.0
  %4211 = vmatpush1.msra.mxu0 0.0
  %4212 = vmatprep.subr.mxu0 0.0
  %4213 = vmatpush1.msra.mxu0 0.0
  %4214 = vmatprep.subr.mxu0 0.0
  %4215 = vmatpush1.msra.mxu0 0.0
  %4216 = vmatprep.subr.mxu0 0.0
  %4217 = vmatpush1.msra.mxu0 0.0
  %4218 = vmatprep.subr.mxu0 0.0
  %4219 = vmatpush1.msra.mxu0 0.0
  %4220 = vmatprep.subr.mxu0 0.0
  %4221 = vmatpush1.msra.mxu0 0.0
  %4222 = vmatprep.subr.mxu0 0.0
  %4223 = vmatpush1.msra.mxu0 0.0
  %4224 = vmatprep.subr.mxu0 0.0
  %4225 = vmatpush1.msra.mxu0 0.0
  %4226 = vmatprep.subr.mxu0 0.0
  %4227 = vmatpush1.msra.mxu0 0.0
  %4228 = vmatprep.subr.mxu0 0.0
  %4229 = vmatpush1.msra.mxu0 0.0
  %4230 = vmatprep.subr.mxu0 0.0
  %4231 = vmatpush1.msra.mxu0 0.0
  %4232 = vmatprep.subr.mxu0 0.0
  %4233 = vmatpush1.msra.mxu0 0.0
  %4234 = vmatprep.subr.mxu0 0.0
  %4235 = vmatpush1.msra.mxu0 0.0
  %4236 = vmatprep.subr.mxu0 0.0
  %4237 = vmatpush1.msra.mxu0 0.0
  %4238 = vmatprep.subr.mxu0 0.0
  %4239 = vmatpush1.msra.mxu0 0.0
  %4240 = vmatprep.subr.mxu0 0.0
  %4241 = vmatpush1.msra.mxu0 0.0
  %4242 = vmatprep.subr.mxu0 0.0
  %4243 = vmatpush1.msra.mxu0 0.0
  %4244 = vmatprep.subr.mxu0 0.0
  %4245 = vmatpush1.msra.mxu0 0.0
  %4246 = vmatprep.subr.mxu0 0.0
  %4247 = vmatpush1.msra.mxu0 0.0
  %4248 = vmatprep.mubr.f32.mxu0 0.0
  %4249 = vmatmul.mubr.f32.gmra.mrb[0].mxu0 %v4111
  %v4250 = vpop.f32.mrb[0].mxu0
  %v4251 = vadd.f32 0.0, %v4250
  %v4252 = vpop.f32.mrb[0].mxu0
  %v4253 = vadd.f32 0.0, %v4252
  %4254 = vdwg.mxu0
  %v4255 = vmul.f32 %v4180, 2.0
  %v4256 = vmul.f32 %v4182, 2.0
  %v4257 = vmul.f32 %v4251, 2.0
  %v4258 = vmul.f32 %v4253, 2.0
  %v4259 = vsub.f32 %v1040, %v4255
  %v4260 = vsub.f32 %v1044, %v4256
  %v4261 = vsub.f32 %v1048, %v4257
  %v4262 = vsub.f32 %v1052, %v4258
  %v4263 = vsel %vm795, %v4259, inf
  %v4264 = vsel %vm795, %v4260, inf
  %v4265 = vsel %vm795, %v4261, inf
  %v4266 = vsel %vm795, %v4262, inf
  %v4267 = vmin.f32 %v4263, %v4264
  %v4268 = vmin.f32 %v4265, %v4266
  %v4269 = vmin.f32 %v4267, %v4268
  %4270 = vmin.xlane.f32.xlu0 %v4269
  %v4271 = vpop.xlane.xlu0 %4270
  %vm4272 = vcmp.le.f32.partialorder %v4259, %v4271
  %vm4273 = vcmp.le.f32.partialorder %v4260, %v4271
  %vm4274 = vcmp.le.f32.partialorder %v4261, %v4271
  %vm4275 = vcmp.le.f32.partialorder %v4262, %v4271
  %v4276 = vsel %vm4272, %v1071, 512
  %v4277 = vsel %vm4273, %v1072, 512
  %v4278 = vsel %vm4274, %v1073, 512
  %v4279 = vsel %vm4275, %v1074, 512
  %v4280 = vsel %vm795, %v4276, 2147483647
  %v4281 = vsel %vm795, %v4277, 2147483647
  %v4282 = vsel %vm795, %v4278, 2147483647
  %v4283 = vsel %vm795, %v4279, 2147483647
  %vm4284 = vcmp.lt.s32.totalorder %v4280, %v4281
  %v4285 = vsel %vm4284, %v4280, %v4281
  %vm4286 = vcmp.lt.s32.totalorder %v4282, %v4283
  %v4287 = vsel %vm4286, %v4282, %v4283
  %vm4288 = vcmp.lt.s32.totalorder %v4285, %v4287
  %v4289 = vsel %vm4288, %v4285, %v4287
  %v4290 = vand.u32 %v4289, 65535
  %v4291 = vshra.s32 %v4289, 16
  %v4292 = vcvt.s32.f32 %v4290
  %v4293 = vcvt.s32.f32 %v4291
  %4294 = vmin.xlane.f32.xlu0 %v4293
  %v4295 = vpop.xlane.xlu0 %4294
  %vm4296 = vcmp.eq.f32.partialorder %v4293, %v4295
  %v4297 = vsel %vm4296, %v4292, inf
  %4298 = vmin.xlane.f32.xlu0 %v4297
  %v4299 = vpop.xlane.xlu0 %4298
  %v4300 = vcvt.f32.s32 %v4299
  %v4301 = vcvt.f32.s32 %v4295
  %v4302 = vshll.u32 %v4301, 16
  %v4303 = vadd.s32 %v4302, %v4300
  %vm4304 = vcmp.eq.s32.totalorder %v1071, %v4303
  %vm4305 = vcmp.eq.s32.totalorder %v1072, %v4303
  %vm4306 = vcmp.eq.s32.totalorder %v1073, %v4303
  %vm4307 = vcmp.eq.s32.totalorder %v1074, %v4303
  %v4308 = vsel %vm4304, 1, 0
  %v4309 = vsel %vm4305, 1, 0
  %v4310 = vsel %vm4306, 1, 0
  %v4311 = vsel %vm4307, 1, 0
  %v4312 = vcvt.s32.f32 %v4308
  %v4313 = vcvt.s32.f32 %v4309
  %v4314 = vcvt.s32.f32 %v4310
  %v4315 = vcvt.s32.f32 %v4311
  %v4316 = vsel %vm795, %v4312, 0.0
  %v4317 = vrot.slane %v4316, 4
  %v4318 = vadd.f32 %v4316, %v4317
  %v4319 = vrot.slane %v4318, 2
  %v4320 = vadd.f32 %v4318, %v4319
  %v4321 = vrot.slane %v4320, 1
  %v4322 = vadd.f32 %v4320, %v4321
  %v4323 = vsel %vm795, %v4313, 0.0
  %v4324 = vrot.slane %v4323, 4
  %v4325 = vadd.f32 %v4323, %v4324
  %v4326 = vrot.slane %v4325, 2
  %v4327 = vadd.f32 %v4325, %v4326
  %v4328 = vrot.slane %v4327, 1
  %v4329 = vadd.f32 %v4327, %v4328
  %v4330 = vsel %vm795, %v4314, 0.0
  %v4331 = vrot.slane %v4330, 4
  %v4332 = vadd.f32 %v4330, %v4331
  %v4333 = vrot.slane %v4332, 2
  %v4334 = vadd.f32 %v4332, %v4333
  %v4335 = vrot.slane %v4334, 1
  %v4336 = vadd.f32 %v4334, %v4335
  %v4337 = vsel %vm795, %v4315, 0.0
  %v4338 = vrot.slane %v4337, 4
  %v4339 = vadd.f32 %v4337, %v4338
  %v4340 = vrot.slane %v4339, 2
  %v4341 = vadd.f32 %v4339, %v4340
  %v4342 = vrot.slane %v4341, 1
  %v4343 = vadd.f32 %v4341, %v4342
  %v4344 = vadd.f32 %v3943, %v4322
  %v4345 = vadd.f32 %v3944, %v4329
  %v4346 = vadd.f32 %v3945, %v4336
  %v4347 = vadd.f32 %v3946, %v4343
  %4348 = vmatprep.subr.mxu0 0.0
  %4349 = vmatpush1.msra.mxu0 %v799
  %4350 = vmatprep.subr.mxu0 0.0
  %4351 = vmatpush1.msra.mxu0 %v800
  %4352 = vmatprep.subr.mxu0 0.0
  %4353 = vmatpush1.msra.mxu0 %v801
  %4354 = vmatprep.subr.mxu0 0.0
  %4355 = vmatpush1.msra.mxu0 %v802
  %4356 = vmatprep.subr.mxu0 0.0
  %4357 = vmatpush1.msra.mxu0 %v803
  %4358 = vmatprep.subr.mxu0 0.0
  %4359 = vmatpush1.msra.mxu0 %v804
  %4360 = vmatprep.subr.mxu0 0.0
  %4361 = vmatpush1.msra.mxu0 %v805
  %4362 = vmatprep.subr.mxu0 0.0
  %4363 = vmatpush1.msra.mxu0 %v806
  %4364 = vmatprep.subr.mxu0 0.0
  %4365 = vmatpush1.msra.mxu0 %v807
  %4366 = vmatprep.subr.mxu0 0.0
  %4367 = vmatpush1.msra.mxu0 %v808
  %4368 = vmatprep.subr.mxu0 0.0
  %4369 = vmatpush1.msra.mxu0 %v809
  %4370 = vmatprep.subr.mxu0 0.0
  %4371 = vmatpush1.msra.mxu0 %v810
  %4372 = vmatprep.subr.mxu0 0.0
  %4373 = vmatpush1.msra.mxu0 %v811
  %4374 = vmatprep.subr.mxu0 0.0
  %4375 = vmatpush1.msra.mxu0 %v812
  %4376 = vmatprep.subr.mxu0 0.0
  %4377 = vmatpush1.msra.mxu0 %v813
  %4378 = vmatprep.subr.mxu0 0.0
  %4379 = vmatpush1.msra.mxu0 %v814
  %4380 = vmatprep.subr.mxu0 0.0
  %4381 = vmatpush1.msra.mxu0 %v815
  %4382 = vmatprep.subr.mxu0 0.0
  %4383 = vmatpush1.msra.mxu0 %v816
  %4384 = vmatprep.subr.mxu0 0.0
  %4385 = vmatpush1.msra.mxu0 %v817
  %4386 = vmatprep.subr.mxu0 0.0
  %4387 = vmatpush1.msra.mxu0 %v818
  %4388 = vmatprep.subr.mxu0 0.0
  %4389 = vmatpush1.msra.mxu0 %v819
  %4390 = vmatprep.subr.mxu0 0.0
  %4391 = vmatpush1.msra.mxu0 %v820
  %4392 = vmatprep.subr.mxu0 0.0
  %4393 = vmatpush1.msra.mxu0 %v821
  %4394 = vmatprep.subr.mxu0 0.0
  %4395 = vmatpush1.msra.mxu0 %v822
  %4396 = vmatprep.subr.mxu0 0.0
  %4397 = vmatpush1.msra.mxu0 %v823
  %4398 = vmatprep.subr.mxu0 0.0
  %4399 = vmatpush1.msra.mxu0 %v824
  %4400 = vmatprep.subr.mxu0 0.0
  %4401 = vmatpush1.msra.mxu0 %v825
  %4402 = vmatprep.subr.mxu0 0.0
  %4403 = vmatpush1.msra.mxu0 %v826
  %4404 = vmatprep.subr.mxu0 0.0
  %4405 = vmatpush1.msra.mxu0 %v827
  %4406 = vmatprep.subr.mxu0 0.0
  %4407 = vmatpush1.msra.mxu0 %v828
  %4408 = vmatprep.subr.mxu0 0.0
  %4409 = vmatpush1.msra.mxu0 %v829
  %4410 = vmatprep.subr.mxu0 0.0
  %4411 = vmatpush1.msra.mxu0 %v830
  %4412 = vmatprep.mubr.f32.mxu0 %v4313
  %4413 = vmatmul.mubr.f32.gmra.mrb[0].mxu0 %v4312
  %v4414 = vpop.f32.mrb[0].mxu0
  %v4415 = vadd.f32 0.0, %v4414
  %v4416 = vpop.f32.mrb[0].mxu0
  %4417 = vdwg.mxu0
  %4418 = vmatprep.subr.mxu0 0.0
  %4419 = vmatpush1.msra.mxu0 %v831
  %4420 = vmatprep.subr.mxu0 0.0
  %4421 = vmatpush1.msra.mxu0 %v832
  %4422 = vmatprep.subr.mxu0 0.0
  %4423 = vmatpush1.msra.mxu0 %v833
  %4424 = vmatprep.subr.mxu0 0.0
  %4425 = vmatpush1.msra.mxu0 %v834
  %4426 = vmatprep.subr.mxu0 0.0
  %4427 = vmatpush1.msra.mxu0 %v835
  %4428 = vmatprep.subr.mxu0 0.0
  %4429 = vmatpush1.msra.mxu0 %v836
  %4430 = vmatprep.subr.mxu0 0.0
  %4431 = vmatpush1.msra.mxu0 %v837
  %4432 = vmatprep.subr.mxu0 0.0
  %4433 = vmatpush1.msra.mxu0 %v838
  %4434 = vmatprep.subr.mxu0 0.0
  %4435 = vmatpush1.msra.mxu0 %v839
  %4436 = vmatprep.subr.mxu0 0.0
  %4437 = vmatpush1.msra.mxu0 %v840
  %4438 = vmatprep.subr.mxu0 0.0
  %4439 = vmatpush1.msra.mxu0 %v841
  %4440 = vmatprep.subr.mxu0 0.0
  %4441 = vmatpush1.msra.mxu0 %v842
  %4442 = vmatprep.subr.mxu0 0.0
  %4443 = vmatpush1.msra.mxu0 %v843
  %4444 = vmatprep.subr.mxu0 0.0
  %4445 = vmatpush1.msra.mxu0 %v844
  %4446 = vmatprep.subr.mxu0 0.0
  %4447 = vmatpush1.msra.mxu0 %v845
  %4448 = vmatprep.subr.mxu0 0.0
  %4449 = vmatpush1.msra.mxu0 %v846
  %4450 = vmatprep.subr.mxu0 0.0
  %4451 = vmatpush1.msra.mxu0 %v847
  %4452 = vmatprep.subr.mxu0 0.0
  %4453 = vmatpush1.msra.mxu0 %v848
  %4454 = vmatprep.subr.mxu0 0.0
  %4455 = vmatpush1.msra.mxu0 %v849
  %4456 = vmatprep.subr.mxu0 0.0
  %4457 = vmatpush1.msra.mxu0 %v850
  %4458 = vmatprep.subr.mxu0 0.0
  %4459 = vmatpush1.msra.mxu0 %v851
  %4460 = vmatprep.subr.mxu0 0.0
  %4461 = vmatpush1.msra.mxu0 %v852
  %4462 = vmatprep.subr.mxu0 0.0
  %4463 = vmatpush1.msra.mxu0 %v853
  %4464 = vmatprep.subr.mxu0 0.0
  %4465 = vmatpush1.msra.mxu0 %v854
  %4466 = vmatprep.subr.mxu0 0.0
  %4467 = vmatpush1.msra.mxu0 %v855
  %4468 = vmatprep.subr.mxu0 0.0
  %4469 = vmatpush1.msra.mxu0 %v856
  %4470 = vmatprep.subr.mxu0 0.0
  %4471 = vmatpush1.msra.mxu0 %v857
  %4472 = vmatprep.subr.mxu0 0.0
  %4473 = vmatpush1.msra.mxu0 %v858
  %4474 = vmatprep.subr.mxu0 0.0
  %4475 = vmatpush1.msra.mxu0 %v859
  %4476 = vmatprep.subr.mxu0 0.0
  %4477 = vmatpush1.msra.mxu0 %v860
  %4478 = vmatprep.subr.mxu0 0.0
  %4479 = vmatpush1.msra.mxu0 %v861
  %4480 = vmatprep.subr.mxu0 0.0
  %4481 = vmatpush1.msra.mxu0 %v862
  %4482 = vmatprep.mubr.f32.mxu0 %v4315
  %4483 = vmatmul.mubr.f32.gmra.mrb[0].mxu0 %v4314
  %v4484 = vpop.f32.mrb[0].mxu0
  %v4485 = vadd.f32 %v4415, %v4484
  %v4486 = vpop.f32.mrb[0].mxu0
  %4487 = vdwg.mxu0
  %v4490 = vunpack.c.l.s4 1983009808
  %v4491 = vunpack.c.0.s8 %v4490
  %v4492 = vlaneseq
  %v4493 = vshrl.u32 %v4492, 7
  %v4494 = vsub.s32 %v4491, %v4493
  %v4495 = vrot.slane %v4485, %v4494
  %4496 = vrot.lane.b32.xlu0 %v4495, 72
  %v4497 = vpop.permute.xlu0 %4496
  %vm4499 = vcmask 656960
  %4500 = vst.msk [vmem:[#allocation3] sm:$0x3] %vm4499, %v4497
  %v4501 = vld [vmem:[#allocation2] sm:$0x3]
  %v4504 = vunpack.c.l.s4 1983009808
  %v4505 = vunpack.c.0.s8 %v4504
  %v4506 = vlaneseq
  %v4507 = vshrl.u32 %v4506, 7
  %v4508 = vsub.s32 %v4505, %v4507
  %v4509 = vrot.slane %v4501, %v4508
  %4510 = vrot.lane.b32.xlu0 %v4509, 47
  %v4511 = vpop.permute.xlu0 %4510
  %v4512 = vsel %vm873, %v4511, 0
  %4514 = vmatprep.subr.mxu0 %v864
  %4515 = vmatpush1.msra.mxu0 %v863
  %4516 = vmatprep.subr.mxu0 %v882
  %4517 = vmatpush1.msra.mxu0 %v879
  %4518 = vmatprep.subr.mxu0 0.0
  %4519 = vmatpush1.msra.mxu0 0.0
  %4520 = vmatprep.subr.mxu0 0.0
  %4521 = vmatpush1.msra.mxu0 0.0
  %4522 = vmatprep.subr.mxu0 0.0
  %4523 = vmatpush1.msra.mxu0 0.0
  %4524 = vmatprep.subr.mxu0 0.0
  %4525 = vmatpush1.msra.mxu0 0.0
  %4526 = vmatprep.subr.mxu0 0.0
  %4527 = vmatpush1.msra.mxu0 0.0
  %4528 = vmatprep.subr.mxu0 0.0
  %4529 = vmatpush1.msra.mxu0 0.0
  %4530 = vmatprep.subr.mxu0 0.0
  %4531 = vmatpush1.msra.mxu0 0.0
  %4532 = vmatprep.subr.mxu0 0.0
  %4533 = vmatpush1.msra.mxu0 0.0
  %4534 = vmatprep.subr.mxu0 0.0
  %4535 = vmatpush1.msra.mxu0 0.0
  %4536 = vmatprep.subr.mxu0 0.0
  %4537 = vmatpush1.msra.mxu0 0.0
  %4538 = vmatprep.subr.mxu0 0.0
  %4539 = vmatpush1.msra.mxu0 0.0
  %4540 = vmatprep.subr.mxu0 0.0
  %4541 = vmatpush1.msra.mxu0 0.0
  %4542 = vmatprep.subr.mxu0 0.0
  %4543 = vmatpush1.msra.mxu0 0.0
  %4544 = vmatprep.subr.mxu0 0.0
  %4545 = vmatpush1.msra.mxu0 0.0
  %4546 = vmatprep.subr.mxu0 0.0
  %4547 = vmatpush1.msra.mxu0 0.0
  %4548 = vmatprep.subr.mxu0 0.0
  %4549 = vmatpush1.msra.mxu0 0.0
  %4550 = vmatprep.subr.mxu0 0.0
  %4551 = vmatpush1.msra.mxu0 0.0
  %4552 = vmatprep.subr.mxu0 0.0
  %4553 = vmatpush1.msra.mxu0 0.0
  %4554 = vmatprep.subr.mxu0 0.0
  %4555 = vmatpush1.msra.mxu0 0.0
  %4556 = vmatprep.subr.mxu0 0.0
  %4557 = vmatpush1.msra.mxu0 0.0
  %4558 = vmatprep.subr.mxu0 0.0
  %4559 = vmatpush1.msra.mxu0 0.0
  %4560 = vmatprep.subr.mxu0 0.0
  %4561 = vmatpush1.msra.mxu0 0.0
  %4562 = vmatprep.subr.mxu0 0.0
  %4563 = vmatpush1.msra.mxu0 0.0
  %4564 = vmatprep.subr.mxu0 0.0
  %4565 = vmatpush1.msra.mxu0 0.0
  %4566 = vmatprep.subr.mxu0 0.0
  %4567 = vmatpush1.msra.mxu0 0.0
  %4568 = vmatprep.subr.mxu0 0.0
  %4569 = vmatpush1.msra.mxu0 0.0
  %4570 = vmatprep.subr.mxu0 0.0
  %4571 = vmatpush1.msra.mxu0 0.0
  %4572 = vmatprep.subr.mxu0 0.0
  %4573 = vmatpush1.msra.mxu0 0.0
  %4574 = vmatprep.subr.mxu0 0.0
  %4575 = vmatpush1.msra.mxu0 0.0
  %4576 = vmatprep.subr.mxu0 0.0
  %4577 = vmatpush1.msra.mxu0 0.0
  %4578 = vmatprep.mubr.f32.mxu0 0.0
  %4579 = vmatmul.mubr.f32.gmra.mrb[0].mxu0 %v4512
  %v4580 = vpop.f32.mrb[0].mxu0
  %v4581 = vadd.f32 0.0, %v4580
  %v4582 = vpop.f32.mrb[0].mxu0
  %v4583 = vadd.f32 0.0, %v4582
  %4584 = vdwg.mxu0
  %4585 = vmatprep.subr.mxu0 %v866
  %4586 = vmatpush1.msra.mxu0 %v865
  %4587 = vmatprep.subr.mxu0 %v888
  %4588 = vmatpush1.msra.mxu0 %v885
  %4589 = vmatprep.subr.mxu0 0.0
  %4590 = vmatpush1.msra.mxu0 0.0
  %4591 = vmatprep.subr.mxu0 0.0
  %4592 = vmatpush1.msra.mxu0 0.0
  %4593 = vmatprep.subr.mxu0 0.0
  %4594 = vmatpush1.msra.mxu0 0.0
  %4595 = vmatprep.subr.mxu0 0.0
  %4596 = vmatpush1.msra.mxu0 0.0
  %4597 = vmatprep.subr.mxu0 0.0
  %4598 = vmatpush1.msra.mxu0 0.0
  %4599 = vmatprep.subr.mxu0 0.0
  %4600 = vmatpush1.msra.mxu0 0.0
  %4601 = vmatprep.subr.mxu0 0.0
  %4602 = vmatpush1.msra.mxu0 0.0
  %4603 = vmatprep.subr.mxu0 0.0
  %4604 = vmatpush1.msra.mxu0 0.0
  %4605 = vmatprep.subr.mxu0 0.0
  %4606 = vmatpush1.msra.mxu0 0.0
  %4607 = vmatprep.subr.mxu0 0.0
  %4608 = vmatpush1.msra.mxu0 0.0
  %4609 = vmatprep.subr.mxu0 0.0
  %4610 = vmatpush1.msra.mxu0 0.0
  %4611 = vmatprep.subr.mxu0 0.0
  %4612 = vmatpush1.msra.mxu0 0.0
  %4613 = vmatprep.subr.mxu0 0.0
  %4614 = vmatpush1.msra.mxu0 0.0
  %4615 = vmatprep.subr.mxu0 0.0
  %4616 = vmatpush1.msra.mxu0 0.0
  %4617 = vmatprep.subr.mxu0 0.0
  %4618 = vmatpush1.msra.mxu0 0.0
  %4619 = vmatprep.subr.mxu0 0.0
  %4620 = vmatpush1.msra.mxu0 0.0
  %4621 = vmatprep.subr.mxu0 0.0
  %4622 = vmatpush1.msra.mxu0 0.0
  %4623 = vmatprep.subr.mxu0 0.0
  %4624 = vmatpush1.msra.mxu0 0.0
  %4625 = vmatprep.subr.mxu0 0.0
  %4626 = vmatpush1.msra.mxu0 0.0
  %4627 = vmatprep.subr.mxu0 0.0
  %4628 = vmatpush1.msra.mxu0 0.0
  %4629 = vmatprep.subr.mxu0 0.0
  %4630 = vmatpush1.msra.mxu0 0.0
  %4631 = vmatprep.subr.mxu0 0.0
  %4632 = vmatpush1.msra.mxu0 0.0
  %4633 = vmatprep.subr.mxu0 0.0
  %4634 = vmatpush1.msra.mxu0 0.0
  %4635 = vmatprep.subr.mxu0 0.0
  %4636 = vmatpush1.msra.mxu0 0.0
  %4637 = vmatprep.subr.mxu0 0.0
  %4638 = vmatpush1.msra.mxu0 0.0
  %4639 = vmatprep.subr.mxu0 0.0
  %4640 = vmatpush1.msra.mxu0 0.0
  %4641 = vmatprep.subr.mxu0 0.0
  %4642 = vmatpush1.msra.mxu0 0.0
  %4643 = vmatprep.subr.mxu0 0.0
  %4644 = vmatpush1.msra.mxu0 0.0
  %4645 = vmatprep.subr.mxu0 0.0
  %4646 = vmatpush1.msra.mxu0 0.0
  %4647 = vmatprep.subr.mxu0 0.0
  %4648 = vmatpush1.msra.mxu0 0.0
  %4649 = vmatprep.mubr.f32.mxu0 0.0
  %4650 = vmatmul.mubr.f32.gmra.mrb[0].mxu0 %v4512
  %v4651 = vpop.f32.mrb[0].mxu0
  %v4652 = vadd.f32 0.0, %v4651
  %v4653 = vpop.f32.mrb[0].mxu0
  %v4654 = vadd.f32 0.0, %v4653
  %4655 = vdwg.mxu0
  %v4656 = vmul.f32 %v4581, 2.0
  %v4657 = vmul.f32 %v4583, 2.0
  %v4658 = vmul.f32 %v4652, 2.0
  %v4659 = vmul.f32 %v4654, 2.0
  %v4660 = vsub.f32 %v1040, %v4656
  %v4661 = vsub.f32 %v1044, %v4657
  %v4662 = vsub.f32 %v1048, %v4658
  %v4663 = vsub.f32 %v1052, %v4659
  %v4664 = vsel %vm795, %v4660, inf
  %v4665 = vsel %vm795, %v4661, inf
  %v4666 = vsel %vm795, %v4662, inf
  %v4667 = vsel %vm795, %v4663, inf
  %v4668 = vmin.f32 %v4664, %v4665
  %v4669 = vmin.f32 %v4666, %v4667
  %v4670 = vmin.f32 %v4668, %v4669
  %4671 = vmin.xlane.f32.xlu0 %v4670
  %v4672 = vpop.xlane.xlu0 %4671
  %vm4673 = vcmp.le.f32.partialorder %v4660, %v4672
  %vm4674 = vcmp.le.f32.partialorder %v4661, %v4672
  %vm4675 = vcmp.le.f32.partialorder %v4662, %v4672
  %vm4676 = vcmp.le.f32.partialorder %v4663, %v4672
  %v4677 = vsel %vm4673, %v1071, 512
  %v4678 = vsel %vm4674, %v1072, 512
  %v4679 = vsel %vm4675, %v1073, 512
  %v4680 = vsel %vm4676, %v1074, 512
  %v4681 = vsel %vm795, %v4677, 2147483647
  %v4682 = vsel %vm795, %v4678, 2147483647
  %v4683 = vsel %vm795, %v4679, 2147483647
  %v4684 = vsel %vm795, %v4680, 2147483647
  %vm4685 = vcmp.lt.s32.totalorder %v4681, %v4682
  %v4686 = vsel %vm4685, %v4681, %v4682
  %vm4687 = vcmp.lt.s32.totalorder %v4683, %v4684
  %v4688 = vsel %vm4687, %v4683, %v4684
  %vm4689 = vcmp.lt.s32.totalorder %v4686, %v4688
  %v4690 = vsel %vm4689, %v4686, %v4688
  %v4691 = vand.u32 %v4690, 65535
  %v4692 = vshra.s32 %v4690, 16
  %v4693 = vcvt.s32.f32 %v4691
  %v4694 = vcvt.s32.f32 %v4692
  %4695 = vmin.xlane.f32.xlu0 %v4694
  %v4696 = vpop.xlane.xlu0 %4695
  %vm4697 = vcmp.eq.f32.partialorder %v4694, %v4696
  %v4698 = vsel %vm4697, %v4693, inf
  %4699 = vmin.xlane.f32.xlu0 %v4698
  %v4700 = vpop.xlane.xlu0 %4699
  %v4701 = vcvt.f32.s32 %v4700
  %v4702 = vcvt.f32.s32 %v4696
  %v4703 = vshll.u32 %v4702, 16
  %v4704 = vadd.s32 %v4703, %v4701
  %vm4705 = vcmp.eq.s32.totalorder %v1071, %v4704
  %vm4706 = vcmp.eq.s32.totalorder %v1072, %v4704
  %vm4707 = vcmp.eq.s32.totalorder %v1073, %v4704
  %vm4708 = vcmp.eq.s32.totalorder %v1074, %v4704
  %v4709 = vsel %vm4705, 1, 0
  %v4710 = vsel %vm4706, 1, 0
  %v4711 = vsel %vm4707, 1, 0
  %v4712 = vsel %vm4708, 1, 0
  %v4713 = vcvt.s32.f32 %v4709
  %v4714 = vcvt.s32.f32 %v4710
  %v4715 = vcvt.s32.f32 %v4711
  %v4716 = vcvt.s32.f32 %v4712
  %v4717 = vsel %vm795, %v4713, 0.0
  %v4718 = vrot.slane %v4717, 4
  %v4719 = vadd.f32 %v4717, %v4718
  %v4720 = vrot.slane %v4719, 2
  %v4721 = vadd.f32 %v4719, %v4720
  %v4722 = vrot.slane %v4721, 1
  %v4723 = vadd.f32 %v4721, %v4722
  %v4724 = vsel %vm795, %v4714, 0.0
  %v4725 = vrot.slane %v4724, 4
  %v4726 = vadd.f32 %v4724, %v4725
  %v4727 = vrot.slane %v4726, 2
  %v4728 = vadd.f32 %v4726, %v4727
  %v4729 = vrot.slane %v4728, 1
  %v4730 = vadd.f32 %v4728, %v4729
  %v4731 = vsel %vm795, %v4715, 0.0
  %v4732 = vrot.slane %v4731, 4
  %v4733 = vadd.f32 %v4731, %v4732
  %v4734 = vrot.slane %v4733, 2
  %v4735 = vadd.f32 %v4733, %v4734
  %v4736 = vrot.slane %v4735, 1
  %v4737 = vadd.f32 %v4735, %v4736
  %v4738 = vsel %vm795, %v4716, 0.0
  %v4739 = vrot.slane %v4738, 4
  %v4740 = vadd.f32 %v4738, %v4739
  %v4741 = vrot.slane %v4740, 2
  %v4742 = vadd.f32 %v4740, %v4741
  %v4743 = vrot.slane %v4742, 1
  %v4744 = vadd.f32 %v4742, %v4743
  %v4745 = vadd.f32 %v4344, %v4723
  %v4746 = vadd.f32 %v4345, %v4730
  %v4747 = vadd.f32 %v4346, %v4737
  %v4748 = vadd.f32 %v4347, %v4744
  %4749 = vmatprep.subr.mxu0 0.0
  %4750 = vmatpush1.msra.mxu0 %v799
  %4751 = vmatprep.subr.mxu0 0.0
  %4752 = vmatpush1.msra.mxu0 %v800
  %4753 = vmatprep.subr.mxu0 0.0
  %4754 = vmatpush1.msra.mxu0 %v801
  %4755 = vmatprep.subr.mxu0 0.0
  %4756 = vmatpush1.msra.mxu0 %v802
  %4757 = vmatprep.subr.mxu0 0.0
  %4758 = vmatpush1.msra.mxu0 %v803
  %4759 = vmatprep.subr.mxu0 0.0
  %4760 = vmatpush1.msra.mxu0 %v804
  %4761 = vmatprep.subr.mxu0 0.0
  %4762 = vmatpush1.msra.mxu0 %v805
  %4763 = vmatprep.subr.mxu0 0.0
  %4764 = vmatpush1.msra.mxu0 %v806
  %4765 = vmatprep.subr.mxu0 0.0
  %4766 = vmatpush1.msra.mxu0 %v807
  %4767 = vmatprep.subr.mxu0 0.0
  %4768 = vmatpush1.msra.mxu0 %v808
  %4769 = vmatprep.subr.mxu0 0.0
  %4770 = vmatpush1.msra.mxu0 %v809
  %4771 = vmatprep.subr.mxu0 0.0
  %4772 = vmatpush1.msra.mxu0 %v810
  %4773 = vmatprep.subr.mxu0 0.0
  %4774 = vmatpush1.msra.mxu0 %v811
  %4775 = vmatprep.subr.mxu0 0.0
  %4776 = vmatpush1.msra.mxu0 %v812
  %4777 = vmatprep.subr.mxu0 0.0
  %4778 = vmatpush1.msra.mxu0 %v813
  %4779 = vmatprep.subr.mxu0 0.0
  %4780 = vmatpush1.msra.mxu0 %v814
  %4781 = vmatprep.subr.mxu0 0.0
  %4782 = vmatpush1.msra.mxu0 %v815
  %4783 = vmatprep.subr.mxu0 0.0
  %4784 = vmatpush1.msra.mxu0 %v816
  %4785 = vmatprep.subr.mxu0 0.0
  %4786 = vmatpush1.msra.mxu0 %v817
  %4787 = vmatprep.subr.mxu0 0.0
  %4788 = vmatpush1.msra.mxu0 %v818
  %4789 = vmatprep.subr.mxu0 0.0
  %4790 = vmatpush1.msra.mxu0 %v819
  %4791 = vmatprep.subr.mxu0 0.0
  %4792 = vmatpush1.msra.mxu0 %v820
  %4793 = vmatprep.subr.mxu0 0.0
  %4794 = vmatpush1.msra.mxu0 %v821
  %4795 = vmatprep.subr.mxu0 0.0
  %4796 = vmatpush1.msra.mxu0 %v822
  %4797 = vmatprep.subr.mxu0 0.0
  %4798 = vmatpush1.msra.mxu0 %v823
  %4799 = vmatprep.subr.mxu0 0.0
  %4800 = vmatpush1.msra.mxu0 %v824
  %4801 = vmatprep.subr.mxu0 0.0
  %4802 = vmatpush1.msra.mxu0 %v825
  %4803 = vmatprep.subr.mxu0 0.0
  %4804 = vmatpush1.msra.mxu0 %v826
  %4805 = vmatprep.subr.mxu0 0.0
  %4806 = vmatpush1.msra.mxu0 %v827
  %4807 = vmatprep.subr.mxu0 0.0
  %4808 = vmatpush1.msra.mxu0 %v828
  %4809 = vmatprep.subr.mxu0 0.0
  %4810 = vmatpush1.msra.mxu0 %v829
  %4811 = vmatprep.subr.mxu0 0.0
  %4812 = vmatpush1.msra.mxu0 %v830
  %4813 = vmatprep.mubr.f32.mxu0 %v4714
  %4814 = vmatmul.mubr.f32.gmra.mrb[0].mxu0 %v4713
  %v4815 = vpop.f32.mrb[0].mxu0
  %v4816 = vadd.f32 0.0, %v4815
  %v4817 = vpop.f32.mrb[0].mxu0
  %4818 = vdwg.mxu0
  %4819 = vmatprep.subr.mxu0 0.0
  %4820 = vmatpush1.msra.mxu0 %v831
  %4821 = vmatprep.subr.mxu0 0.0
  %4822 = vmatpush1.msra.mxu0 %v832
  %4823 = vmatprep.subr.mxu0 0.0
  %4824 = vmatpush1.msra.mxu0 %v833
  %4825 = vmatprep.subr.mxu0 0.0
  %4826 = vmatpush1.msra.mxu0 %v834
  %4827 = vmatprep.subr.mxu0 0.0
  %4828 = vmatpush1.msra.mxu0 %v835
  %4829 = vmatprep.subr.mxu0 0.0
  %4830 = vmatpush1.msra.mxu0 %v836
  %4831 = vmatprep.subr.mxu0 0.0
  %4832 = vmatpush1.msra.mxu0 %v837
  %4833 = vmatprep.subr.mxu0 0.0
  %4834 = vmatpush1.msra.mxu0 %v838
  %4835 = vmatprep.subr.mxu0 0.0
  %4836 = vmatpush1.msra.mxu0 %v839
  %4837 = vmatprep.subr.mxu0 0.0
  %4838 = vmatpush1.msra.mxu0 %v840
  %4839 = vmatprep.subr.mxu0 0.0
  %4840 = vmatpush1.msra.mxu0 %v841
  %4841 = vmatprep.subr.mxu0 0.0
  %4842 = vmatpush1.msra.mxu0 %v842
  %4843 = vmatprep.subr.mxu0 0.0
  %4844 = vmatpush1.msra.mxu0 %v843
  %4845 = vmatprep.subr.mxu0 0.0
  %4846 = vmatpush1.msra.mxu0 %v844
  %4847 = vmatprep.subr.mxu0 0.0
  %4848 = vmatpush1.msra.mxu0 %v845
  %4849 = vmatprep.subr.mxu0 0.0
  %4850 = vmatpush1.msra.mxu0 %v846
  %4851 = vmatprep.subr.mxu0 0.0
  %4852 = vmatpush1.msra.mxu0 %v847
  %4853 = vmatprep.subr.mxu0 0.0
  %4854 = vmatpush1.msra.mxu0 %v848
  %4855 = vmatprep.subr.mxu0 0.0
  %4856 = vmatpush1.msra.mxu0 %v849
  %4857 = vmatprep.subr.mxu0 0.0
  %4858 = vmatpush1.msra.mxu0 %v850
  %4859 = vmatprep.subr.mxu0 0.0
  %4860 = vmatpush1.msra.mxu0 %v851
  %4861 = vmatprep.subr.mxu0 0.0
  %4862 = vmatpush1.msra.mxu0 %v852
  %4863 = vmatprep.subr.mxu0 0.0
  %4864 = vmatpush1.msra.mxu0 %v853
  %4865 = vmatprep.subr.mxu0 0.0
  %4866 = vmatpush1.msra.mxu0 %v854
  %4867 = vmatprep.subr.mxu0 0.0
  %4868 = vmatpush1.msra.mxu0 %v855
  %4869 = vmatprep.subr.mxu0 0.0
  %4870 = vmatpush1.msra.mxu0 %v856
  %4871 = vmatprep.subr.mxu0 0.0
  %4872 = vmatpush1.msra.mxu0 %v857
  %4873 = vmatprep.subr.mxu0 0.0
  %4874 = vmatpush1.msra.mxu0 %v858
  %4875 = vmatprep.subr.mxu0 0.0
  %4876 = vmatpush1.msra.mxu0 %v859
  %4877 = vmatprep.subr.mxu0 0.0
  %4878 = vmatpush1.msra.mxu0 %v860
  %4879 = vmatprep.subr.mxu0 0.0
  %4880 = vmatpush1.msra.mxu0 %v861
  %4881 = vmatprep.subr.mxu0 0.0
  %4882 = vmatpush1.msra.mxu0 %v862
  %4883 = vmatprep.mubr.f32.mxu0 %v4716
  %4884 = vmatmul.mubr.f32.gmra.mrb[0].mxu0 %v4715
  %v4885 = vpop.f32.mrb[0].mxu0
  %v4886 = vadd.f32 %v4816, %v4885
  %v4887 = vpop.f32.mrb[0].mxu0
  %4888 = vdwg.mxu0
  %v4891 = vunpack.c.l.s4 1983009808
  %v4892 = vunpack.c.0.s8 %v4891
  %v4893 = vlaneseq
  %v4894 = vshrl.u32 %v4893, 7
  %v4895 = vsub.s32 %v4892, %v4894
  %v4896 = vrot.slane %v4886, %v4895
  %4897 = vrot.lane.b32.xlu0 %v4896, 81
  %v4898 = vpop.permute.xlu0 %4897
  %vm4900 = vcmask 730760
  %4901 = vst.msk [vmem:[#allocation3] sm:$0x3] %vm4900, %v4898
  %v4902 = vld [vmem:[#allocation2] sm:$0x3]
  %v4905 = vunpack.c.l.s4 1983009808
  %v4906 = vunpack.c.0.s8 %v4905
  %v4907 = vlaneseq
  %v4908 = vshrl.u32 %v4907, 7
  %v4909 = vsub.s32 %v4906, %v4908
  %v4910 = vrot.slane %v4902, %v4909
  %4911 = vrot.lane.b32.xlu0 %v4910, 38
  %v4912 = vpop.permute.xlu0 %4911
  %v4913 = vsel %vm873, %v4912, 0
  %4915 = vmatprep.subr.mxu0 %v864
  %4916 = vmatpush1.msra.mxu0 %v863
  %4917 = vmatprep.subr.mxu0 %v882
  %4918 = vmatpush1.msra.mxu0 %v879
  %4919 = vmatprep.subr.mxu0 0.0
  %4920 = vmatpush1.msra.mxu0 0.0
  %4921 = vmatprep.subr.mxu0 0.0
  %4922 = vmatpush1.msra.mxu0 0.0
  %4923 = vmatprep.subr.mxu0 0.0
  %4924 = vmatpush1.msra.mxu0 0.0
  %4925 = vmatprep.subr.mxu0 0.0
  %4926 = vmatpush1.msra.mxu0 0.0
  %4927 = vmatprep.subr.mxu0 0.0
  %4928 = vmatpush1.msra.mxu0 0.0
  %4929 = vmatprep.subr.mxu0 0.0
  %4930 = vmatpush1.msra.mxu0 0.0
  %4931 = vmatprep.subr.mxu0 0.0
  %4932 = vmatpush1.msra.mxu0 0.0
  %4933 = vmatprep.subr.mxu0 0.0
  %4934 = vmatpush1.msra.mxu0 0.0
  %4935 = vmatprep.subr.mxu0 0.0
  %4936 = vmatpush1.msra.mxu0 0.0
  %4937 = vmatprep.subr.mxu0 0.0
  %4938 = vmatpush1.msra.mxu0 0.0
  %4939 = vmatprep.subr.mxu0 0.0
  %4940 = vmatpush1.msra.mxu0 0.0
  %4941 = vmatprep.subr.mxu0 0.0
  %4942 = vmatpush1.msra.mxu0 0.0
  %4943 = vmatprep.subr.mxu0 0.0
  %4944 = vmatpush1.msra.mxu0 0.0
  %4945 = vmatprep.subr.mxu0 0.0
  %4946 = vmatpush1.msra.mxu0 0.0
  %4947 = vmatprep.subr.mxu0 0.0
  %4948 = vmatpush1.msra.mxu0 0.0
  %4949 = vmatprep.subr.mxu0 0.0
  %4950 = vmatpush1.msra.mxu0 0.0
  %4951 = vmatprep.subr.mxu0 0.0
  %4952 = vmatpush1.msra.mxu0 0.0
  %4953 = vmatprep.subr.mxu0 0.0
  %4954 = vmatpush1.msra.mxu0 0.0
  %4955 = vmatprep.subr.mxu0 0.0
  %4956 = vmatpush1.msra.mxu0 0.0
  %4957 = vmatprep.subr.mxu0 0.0
  %4958 = vmatpush1.msra.mxu0 0.0
  %4959 = vmatprep.subr.mxu0 0.0
  %4960 = vmatpush1.msra.mxu0 0.0
  %4961 = vmatprep.subr.mxu0 0.0
  %4962 = vmatpush1.msra.mxu0 0.0
  %4963 = vmatprep.subr.mxu0 0.0
  %4964 = vmatpush1.msra.mxu0 0.0
  %4965 = vmatprep.subr.mxu0 0.0
  %4966 = vmatpush1.msra.mxu0 0.0
  %4967 = vmatprep.subr.mxu0 0.0
  %4968 = vmatpush1.msra.mxu0 0.0
  %4969 = vmatprep.subr.mxu0 0.0
  %4970 = vmatpush1.msra.mxu0 0.0
  %4971 = vmatprep.subr.mxu0 0.0
  %4972 = vmatpush1.msra.mxu0 0.0
  %4973 = vmatprep.subr.mxu0 0.0
  %4974 = vmatpush1.msra.mxu0 0.0
  %4975 = vmatprep.subr.mxu0 0.0
  %4976 = vmatpush1.msra.mxu0 0.0
  %4977 = vmatprep.subr.mxu0 0.0
  %4978 = vmatpush1.msra.mxu0 0.0
  %4979 = vmatprep.mubr.f32.mxu0 0.0
  %4980 = vmatmul.mubr.f32.gmra.mrb[0].mxu0 %v4913
  %v4981 = vpop.f32.mrb[0].mxu0
  %v4982 = vadd.f32 0.0, %v4981
  %v4983 = vpop.f32.mrb[0].mxu0
  %v4984 = vadd.f32 0.0, %v4983
  %4985 = vdwg.mxu0
  %4986 = vmatprep.subr.mxu0 %v866
  %4987 = vmatpush1.msra.mxu0 %v865
  %4988 = vmatprep.subr.mxu0 %v888
  %4989 = vmatpush1.msra.mxu0 %v885
  %4990 = vmatprep.subr.mxu0 0.0
  %4991 = vmatpush1.msra.mxu0 0.0
  %4992 = vmatprep.subr.mxu0 0.0
  %4993 = vmatpush1.msra.mxu0 0.0
  %4994 = vmatprep.subr.mxu0 0.0
  %4995 = vmatpush1.msra.mxu0 0.0
  %4996 = vmatprep.subr.mxu0 0.0
  %4997 = vmatpush1.msra.mxu0 0.0
  %4998 = vmatprep.subr.mxu0 0.0
  %4999 = vmatpush1.msra.mxu0 0.0
  %5000 = vmatprep.subr.mxu0 0.0
  %5001 = vmatpush1.msra.mxu0 0.0
  %5002 = vmatprep.subr.mxu0 0.0
  %5003 = vmatpush1.msra.mxu0 0.0
  %5004 = vmatprep.subr.mxu0 0.0
  %5005 = vmatpush1.msra.mxu0 0.0
  %5006 = vmatprep.subr.mxu0 0.0
  %5007 = vmatpush1.msra.mxu0 0.0
  %5008 = vmatprep.subr.mxu0 0.0
  %5009 = vmatpush1.msra.mxu0 0.0
  %5010 = vmatprep.subr.mxu0 0.0
  %5011 = vmatpush1.msra.mxu0 0.0
  %5012 = vmatprep.subr.mxu0 0.0
  %5013 = vmatpush1.msra.mxu0 0.0
  %5014 = vmatprep.subr.mxu0 0.0
  %5015 = vmatpush1.msra.mxu0 0.0
  %5016 = vmatprep.subr.mxu0 0.0
  %5017 = vmatpush1.msra.mxu0 0.0
  %5018 = vmatprep.subr.mxu0 0.0
  %5019 = vmatpush1.msra.mxu0 0.0
  %5020 = vmatprep.subr.mxu0 0.0
  %5021 = vmatpush1.msra.mxu0 0.0
  %5022 = vmatprep.subr.mxu0 0.0
  %5023 = vmatpush1.msra.mxu0 0.0
  %5024 = vmatprep.subr.mxu0 0.0
  %5025 = vmatpush1.msra.mxu0 0.0
  %5026 = vmatprep.subr.mxu0 0.0
  %5027 = vmatpush1.msra.mxu0 0.0
  %5028 = vmatprep.subr.mxu0 0.0
  %5029 = vmatpush1.msra.mxu0 0.0
  %5030 = vmatprep.subr.mxu0 0.0
  %5031 = vmatpush1.msra.mxu0 0.0
  %5032 = vmatprep.subr.mxu0 0.0
  %5033 = vmatpush1.msra.mxu0 0.0
  %5034 = vmatprep.subr.mxu0 0.0
  %5035 = vmatpush1.msra.mxu0 0.0
  %5036 = vmatprep.subr.mxu0 0.0
  %5037 = vmatpush1.msra.mxu0 0.0
  %5038 = vmatprep.subr.mxu0 0.0
  %5039 = vmatpush1.msra.mxu0 0.0
  %5040 = vmatprep.subr.mxu0 0.0
  %5041 = vmatpush1.msra.mxu0 0.0
  %5042 = vmatprep.subr.mxu0 0.0
  %5043 = vmatpush1.msra.mxu0 0.0
  %5044 = vmatprep.subr.mxu0 0.0
  %5045 = vmatpush1.msra.mxu0 0.0
  %5046 = vmatprep.subr.mxu0 0.0
  %5047 = vmatpush1.msra.mxu0 0.0
  %5048 = vmatprep.subr.mxu0 0.0
  %5049 = vmatpush1.msra.mxu0 0.0
  %5050 = vmatprep.mubr.f32.mxu0 0.0
  %5051 = vmatmul.mubr.f32.gmra.mrb[0].mxu0 %v4913
  %v5052 = vpop.f32.mrb[0].mxu0
  %v5053 = vadd.f32 0.0, %v5052
  %v5054 = vpop.f32.mrb[0].mxu0
  %v5055 = vadd.f32 0.0, %v5054
  %5056 = vdwg.mxu0
  %v5057 = vmul.f32 %v4982, 2.0
  %v5058 = vmul.f32 %v4984, 2.0
  %v5059 = vmul.f32 %v5053, 2.0
  %v5060 = vmul.f32 %v5055, 2.0
  %v5061 = vsub.f32 %v1040, %v5057
  %v5062 = vsub.f32 %v1044, %v5058
  %v5063 = vsub.f32 %v1048, %v5059
  %v5064 = vsub.f32 %v1052, %v5060
  %v5065 = vsel %vm795, %v5061, inf
  %v5066 = vsel %vm795, %v5062, inf
  %v5067 = vsel %vm795, %v5063, inf
  %v5068 = vsel %vm795, %v5064, inf
  %v5069 = vmin.f32 %v5065, %v5066
  %v5070 = vmin.f32 %v5067, %v5068
  %v5071 = vmin.f32 %v5069, %v5070
  %5072 = vmin.xlane.f32.xlu0 %v5071
  %v5073 = vpop.xlane.xlu0 %5072
  %vm5074 = vcmp.le.f32.partialorder %v5061, %v5073
  %vm5075 = vcmp.le.f32.partialorder %v5062, %v5073
  %vm5076 = vcmp.le.f32.partialorder %v5063, %v5073
  %vm5077 = vcmp.le.f32.partialorder %v5064, %v5073
  %v5078 = vsel %vm5074, %v1071, 512
  %v5079 = vsel %vm5075, %v1072, 512
  %v5080 = vsel %vm5076, %v1073, 512
  %v5081 = vsel %vm5077, %v1074, 512
  %v5082 = vsel %vm795, %v5078, 2147483647
  %v5083 = vsel %vm795, %v5079, 2147483647
  %v5084 = vsel %vm795, %v5080, 2147483647
  %v5085 = vsel %vm795, %v5081, 2147483647
  %vm5086 = vcmp.lt.s32.totalorder %v5082, %v5083
  %v5087 = vsel %vm5086, %v5082, %v5083
  %vm5088 = vcmp.lt.s32.totalorder %v5084, %v5085
  %v5089 = vsel %vm5088, %v5084, %v5085
  %vm5090 = vcmp.lt.s32.totalorder %v5087, %v5089
  %v5091 = vsel %vm5090, %v5087, %v5089
  %v5092 = vand.u32 %v5091, 65535
  %v5093 = vshra.s32 %v5091, 16
  %v5094 = vcvt.s32.f32 %v5092
  %v5095 = vcvt.s32.f32 %v5093
  %5096 = vmin.xlane.f32.xlu0 %v5095
  %v5097 = vpop.xlane.xlu0 %5096
  %vm5098 = vcmp.eq.f32.partialorder %v5095, %v5097
  %v5099 = vsel %vm5098, %v5094, inf
  %5100 = vmin.xlane.f32.xlu0 %v5099
  %v5101 = vpop.xlane.xlu0 %5100
  %v5102 = vcvt.f32.s32 %v5101
  %v5103 = vcvt.f32.s32 %v5097
  %v5104 = vshll.u32 %v5103, 16
  %v5105 = vadd.s32 %v5104, %v5102
  %vm5106 = vcmp.eq.s32.totalorder %v1071, %v5105
  %vm5107 = vcmp.eq.s32.totalorder %v1072, %v5105
  %vm5108 = vcmp.eq.s32.totalorder %v1073, %v5105
  %vm5109 = vcmp.eq.s32.totalorder %v1074, %v5105
  %v5110 = vsel %vm5106, 1, 0
  %v5111 = vsel %vm5107, 1, 0
  %v5112 = vsel %vm5108, 1, 0
  %v5113 = vsel %vm5109, 1, 0
  %v5114 = vcvt.s32.f32 %v5110
  %v5115 = vcvt.s32.f32 %v5111
  %v5116 = vcvt.s32.f32 %v5112
  %v5117 = vcvt.s32.f32 %v5113
  %v5118 = vsel %vm795, %v5114, 0.0
  %v5119 = vrot.slane %v5118, 4
  %v5120 = vadd.f32 %v5118, %v5119
  %v5121 = vrot.slane %v5120, 2
  %v5122 = vadd.f32 %v5120, %v5121
  %v5123 = vrot.slane %v5122, 1
  %v5124 = vadd.f32 %v5122, %v5123
  %v5125 = vsel %vm795, %v5115, 0.0
  %v5126 = vrot.slane %v5125, 4
  %v5127 = vadd.f32 %v5125, %v5126
  %v5128 = vrot.slane %v5127, 2
  %v5129 = vadd.f32 %v5127, %v5128
  %v5130 = vrot.slane %v5129, 1
  %v5131 = vadd.f32 %v5129, %v5130
  %v5132 = vsel %vm795, %v5116, 0.0
  %v5133 = vrot.slane %v5132, 4
  %v5134 = vadd.f32 %v5132, %v5133
  %v5135 = vrot.slane %v5134, 2
  %v5136 = vadd.f32 %v5134, %v5135
  %v5137 = vrot.slane %v5136, 1
  %v5138 = vadd.f32 %v5136, %v5137
  %v5139 = vsel %vm795, %v5117, 0.0
  %v5140 = vrot.slane %v5139, 4
  %v5141 = vadd.f32 %v5139, %v5140
  %v5142 = vrot.slane %v5141, 2
  %v5143 = vadd.f32 %v5141, %v5142
  %v5144 = vrot.slane %v5143, 1
  %v5145 = vadd.f32 %v5143, %v5144
  %v5146 = vadd.f32 %v4745, %v5124
  %v5147 = vadd.f32 %v4746, %v5131
  %v5148 = vadd.f32 %v4747, %v5138
  %v5149 = vadd.f32 %v4748, %v5145
  %5150 = vmatprep.subr.mxu0 0.0
  %5151 = vmatpush1.msra.mxu0 %v799
  %5152 = vmatprep.subr.mxu0 0.0
  %5153 = vmatpush1.msra.mxu0 %v800
  %5154 = vmatprep.subr.mxu0 0.0
  %5155 = vmatpush1.msra.mxu0 %v801
  %5156 = vmatprep.subr.mxu0 0.0
  %5157 = vmatpush1.msra.mxu0 %v802
  %5158 = vmatprep.subr.mxu0 0.0
  %5159 = vmatpush1.msra.mxu0 %v803
  %5160 = vmatprep.subr.mxu0 0.0
  %5161 = vmatpush1.msra.mxu0 %v804
  %5162 = vmatprep.subr.mxu0 0.0
  %5163 = vmatpush1.msra.mxu0 %v805
  %5164 = vmatprep.subr.mxu0 0.0
  %5165 = vmatpush1.msra.mxu0 %v806
  %5166 = vmatprep.subr.mxu0 0.0
  %5167 = vmatpush1.msra.mxu0 %v807
  %5168 = vmatprep.subr.mxu0 0.0
  %5169 = vmatpush1.msra.mxu0 %v808
  %5170 = vmatprep.subr.mxu0 0.0
  %5171 = vmatpush1.msra.mxu0 %v809
  %5172 = vmatprep.subr.mxu0 0.0
  %5173 = vmatpush1.msra.mxu0 %v810
  %5174 = vmatprep.subr.mxu0 0.0
  %5175 = vmatpush1.msra.mxu0 %v811
  %5176 = vmatprep.subr.mxu0 0.0
  %5177 = vmatpush1.msra.mxu0 %v812
  %5178 = vmatprep.subr.mxu0 0.0
  %5179 = vmatpush1.msra.mxu0 %v813
  %5180 = vmatprep.subr.mxu0 0.0
  %5181 = vmatpush1.msra.mxu0 %v814
  %5182 = vmatprep.subr.mxu0 0.0
  %5183 = vmatpush1.msra.mxu0 %v815
  %5184 = vmatprep.subr.mxu0 0.0
  %5185 = vmatpush1.msra.mxu0 %v816
  %5186 = vmatprep.subr.mxu0 0.0
  %5187 = vmatpush1.msra.mxu0 %v817
  %5188 = vmatprep.subr.mxu0 0.0
  %5189 = vmatpush1.msra.mxu0 %v818
  %5190 = vmatprep.subr.mxu0 0.0
  %5191 = vmatpush1.msra.mxu0 %v819
  %5192 = vmatprep.subr.mxu0 0.0
  %5193 = vmatpush1.msra.mxu0 %v820
  %5194 = vmatprep.subr.mxu0 0.0
  %5195 = vmatpush1.msra.mxu0 %v821
  %5196 = vmatprep.subr.mxu0 0.0
  %5197 = vmatpush1.msra.mxu0 %v822
  %5198 = vmatprep.subr.mxu0 0.0
  %5199 = vmatpush1.msra.mxu0 %v823
  %5200 = vmatprep.subr.mxu0 0.0
  %5201 = vmatpush1.msra.mxu0 %v824
  %5202 = vmatprep.subr.mxu0 0.0
  %5203 = vmatpush1.msra.mxu0 %v825
  %5204 = vmatprep.subr.mxu0 0.0
  %5205 = vmatpush1.msra.mxu0 %v826
  %5206 = vmatprep.subr.mxu0 0.0
  %5207 = vmatpush1.msra.mxu0 %v827
  %5208 = vmatprep.subr.mxu0 0.0
  %5209 = vmatpush1.msra.mxu0 %v828
  %5210 = vmatprep.subr.mxu0 0.0
  %5211 = vmatpush1.msra.mxu0 %v829
  %5212 = vmatprep.subr.mxu0 0.0
  %5213 = vmatpush1.msra.mxu0 %v830
  %5214 = vmatprep.mubr.f32.mxu0 %v5115
  %5215 = vmatmul.mubr.f32.gmra.mrb[0].mxu0 %v5114
  %v5216 = vpop.f32.mrb[0].mxu0
  %v5217 = vadd.f32 0.0, %v5216
  %v5218 = vpop.f32.mrb[0].mxu0
  %5219 = vdwg.mxu0
  %5220 = vmatprep.subr.mxu0 0.0
  %5221 = vmatpush1.msra.mxu0 %v831
  %5222 = vmatprep.subr.mxu0 0.0
  %5223 = vmatpush1.msra.mxu0 %v832
  %5224 = vmatprep.subr.mxu0 0.0
  %5225 = vmatpush1.msra.mxu0 %v833
  %5226 = vmatprep.subr.mxu0 0.0
  %5227 = vmatpush1.msra.mxu0 %v834
  %5228 = vmatprep.subr.mxu0 0.0
  %5229 = vmatpush1.msra.mxu0 %v835
  %5230 = vmatprep.subr.mxu0 0.0
  %5231 = vmatpush1.msra.mxu0 %v836
  %5232 = vmatprep.subr.mxu0 0.0
  %5233 = vmatpush1.msra.mxu0 %v837
  %5234 = vmatprep.subr.mxu0 0.0
  %5235 = vmatpush1.msra.mxu0 %v838
  %5236 = vmatprep.subr.mxu0 0.0
  %5237 = vmatpush1.msra.mxu0 %v839
  %5238 = vmatprep.subr.mxu0 0.0
  %5239 = vmatpush1.msra.mxu0 %v840
  %5240 = vmatprep.subr.mxu0 0.0
  %5241 = vmatpush1.msra.mxu0 %v841
  %5242 = vmatprep.subr.mxu0 0.0
  %5243 = vmatpush1.msra.mxu0 %v842
  %5244 = vmatprep.subr.mxu0 0.0
  %5245 = vmatpush1.msra.mxu0 %v843
  %5246 = vmatprep.subr.mxu0 0.0
  %5247 = vmatpush1.msra.mxu0 %v844
  %5248 = vmatprep.subr.mxu0 0.0
  %5249 = vmatpush1.msra.mxu0 %v845
  %5250 = vmatprep.subr.mxu0 0.0
  %5251 = vmatpush1.msra.mxu0 %v846
  %5252 = vmatprep.subr.mxu0 0.0
  %5253 = vmatpush1.msra.mxu0 %v847
  %5254 = vmatprep.subr.mxu0 0.0
  %5255 = vmatpush1.msra.mxu0 %v848
  %5256 = vmatprep.subr.mxu0 0.0
  %5257 = vmatpush1.msra.mxu0 %v849
  %5258 = vmatprep.subr.mxu0 0.0
  %5259 = vmatpush1.msra.mxu0 %v850
  %5260 = vmatprep.subr.mxu0 0.0
  %5261 = vmatpush1.msra.mxu0 %v851
  %5262 = vmatprep.subr.mxu0 0.0
  %5263 = vmatpush1.msra.mxu0 %v852
  %5264 = vmatprep.subr.mxu0 0.0
  %5265 = vmatpush1.msra.mxu0 %v853
  %5266 = vmatprep.subr.mxu0 0.0
  %5267 = vmatpush1.msra.mxu0 %v854
  %5268 = vmatprep.subr.mxu0 0.0
  %5269 = vmatpush1.msra.mxu0 %v855
  %5270 = vmatprep.subr.mxu0 0.0
  %5271 = vmatpush1.msra.mxu0 %v856
  %5272 = vmatprep.subr.mxu0 0.0
  %5273 = vmatpush1.msra.mxu0 %v857
  %5274 = vmatprep.subr.mxu0 0.0
  %5275 = vmatpush1.msra.mxu0 %v858
  %5276 = vmatprep.subr.mxu0 0.0
  %5277 = vmatpush1.msra.mxu0 %v859
  %5278 = vmatprep.subr.mxu0 0.0
  %5279 = vmatpush1.msra.mxu0 %v860
  %5280 = vmatprep.subr.mxu0 0.0
  %5281 = vmatpush1.msra.mxu0 %v861
  %5282 = vmatprep.subr.mxu0 0.0
  %5283 = vmatpush1.msra.mxu0 %v862
  %5284 = vmatprep.mubr.f32.mxu0 %v5117
  %5285 = vmatmul.mubr.f32.gmra.mrb[0].mxu0 %v5116
  %v5286 = vpop.f32.mrb[0].mxu0
  %v5287 = vadd.f32 %v5217, %v5286
  %v5288 = vpop.f32.mrb[0].mxu0
  %5289 = vdwg.mxu0
  %v5292 = vunpack.c.l.s4 1983009808
  %v5293 = vunpack.c.0.s8 %v5292
  %v5294 = vlaneseq
  %v5295 = vshrl.u32 %v5294, 7
  %v5296 = vsub.s32 %v5293, %v5295
  %v5297 = vrot.slane %v5287, %v5296
  %5298 = vrot.lane.b32.xlu0 %v5297, 90
  %v5299 = vpop.permute.xlu0 %5298
  %vm5301 = vcmask 804560
  %5302 = vst.msk [vmem:[#allocation3] sm:$0x3] %vm5301, %v5299
  %v5303 = vld [vmem:[#allocation2] sm:$0x3]
  %v5306 = vunpack.c.l.s4 1983009808
  %v5307 = vunpack.c.0.s8 %v5306
  %v5308 = vlaneseq
  %v5309 = vshrl.u32 %v5308, 7
  %v5310 = vsub.s32 %v5307, %v5309
  %v5311 = vrot.slane %v5303, %v5310
  %5312 = vrot.lane.b32.xlu0 %v5311, 29
  %v5313 = vpop.permute.xlu0 %5312
  %v5314 = vsel %vm873, %v5313, 0
  %5316 = vmatprep.subr.mxu0 %v864
  %5317 = vmatpush1.msra.mxu0 %v863
  %5318 = vmatprep.subr.mxu0 %v882
  %5319 = vmatpush1.msra.mxu0 %v879
  %5320 = vmatprep.subr.mxu0 0.0
  %5321 = vmatpush1.msra.mxu0 0.0
  %5322 = vmatprep.subr.mxu0 0.0
  %5323 = vmatpush1.msra.mxu0 0.0
  %5324 = vmatprep.subr.mxu0 0.0
  %5325 = vmatpush1.msra.mxu0 0.0
  %5326 = vmatprep.subr.mxu0 0.0
  %5327 = vmatpush1.msra.mxu0 0.0
  %5328 = vmatprep.subr.mxu0 0.0
  %5329 = vmatpush1.msra.mxu0 0.0
  %5330 = vmatprep.subr.mxu0 0.0
  %5331 = vmatpush1.msra.mxu0 0.0
  %5332 = vmatprep.subr.mxu0 0.0
  %5333 = vmatpush1.msra.mxu0 0.0
  %5334 = vmatprep.subr.mxu0 0.0
  %5335 = vmatpush1.msra.mxu0 0.0
  %5336 = vmatprep.subr.mxu0 0.0
  %5337 = vmatpush1.msra.mxu0 0.0
  %5338 = vmatprep.subr.mxu0 0.0
  %5339 = vmatpush1.msra.mxu0 0.0
  %5340 = vmatprep.subr.mxu0 0.0
  %5341 = vmatpush1.msra.mxu0 0.0
  %5342 = vmatprep.subr.mxu0 0.0
  %5343 = vmatpush1.msra.mxu0 0.0
  %5344 = vmatprep.subr.mxu0 0.0
  %5345 = vmatpush1.msra.mxu0 0.0
  %5346 = vmatprep.subr.mxu0 0.0
  %5347 = vmatpush1.msra.mxu0 0.0
  %5348 = vmatprep.subr.mxu0 0.0
  %5349 = vmatpush1.msra.mxu0 0.0
  %5350 = vmatprep.subr.mxu0 0.0
  %5351 = vmatpush1.msra.mxu0 0.0
  %5352 = vmatprep.subr.mxu0 0.0
  %5353 = vmatpush1.msra.mxu0 0.0
  %5354 = vmatprep.subr.mxu0 0.0
  %5355 = vmatpush1.msra.mxu0 0.0
  %5356 = vmatprep.subr.mxu0 0.0
  %5357 = vmatpush1.msra.mxu0 0.0
  %5358 = vmatprep.subr.mxu0 0.0
  %5359 = vmatpush1.msra.mxu0 0.0
  %5360 = vmatprep.subr.mxu0 0.0
  %5361 = vmatpush1.msra.mxu0 0.0
  %5362 = vmatprep.subr.mxu0 0.0
  %5363 = vmatpush1.msra.mxu0 0.0
  %5364 = vmatprep.subr.mxu0 0.0
  %5365 = vmatpush1.msra.mxu0 0.0
  %5366 = vmatprep.subr.mxu0 0.0
  %5367 = vmatpush1.msra.mxu0 0.0
  %5368 = vmatprep.subr.mxu0 0.0
  %5369 = vmatpush1.msra.mxu0 0.0
  %5370 = vmatprep.subr.mxu0 0.0
  %5371 = vmatpush1.msra.mxu0 0.0
  %5372 = vmatprep.subr.mxu0 0.0
  %5373 = vmatpush1.msra.mxu0 0.0
  %5374 = vmatprep.subr.mxu0 0.0
  %5375 = vmatpush1.msra.mxu0 0.0
  %5376 = vmatprep.subr.mxu0 0.0
  %5377 = vmatpush1.msra.mxu0 0.0
  %5378 = vmatprep.subr.mxu0 0.0
  %5379 = vmatpush1.msra.mxu0 0.0
  %5380 = vmatprep.mubr.f32.mxu0 0.0
  %5381 = vmatmul.mubr.f32.gmra.mrb[0].mxu0 %v5314
  %v5382 = vpop.f32.mrb[0].mxu0
  %v5383 = vadd.f32 0.0, %v5382
  %v5384 = vpop.f32.mrb[0].mxu0
  %v5385 = vadd.f32 0.0, %v5384
  %5386 = vdwg.mxu0
  %5387 = vmatprep.subr.mxu0 %v866
  %5388 = vmatpush1.msra.mxu0 %v865
  %5389 = vmatprep.subr.mxu0 %v888
  %5390 = vmatpush1.msra.mxu0 %v885
  %5391 = vmatprep.subr.mxu0 0.0
  %5392 = vmatpush1.msra.mxu0 0.0
  %5393 = vmatprep.subr.mxu0 0.0
  %5394 = vmatpush1.msra.mxu0 0.0
  %5395 = vmatprep.subr.mxu0 0.0
  %5396 = vmatpush1.msra.mxu0 0.0
  %5397 = vmatprep.subr.mxu0 0.0
  %5398 = vmatpush1.msra.mxu0 0.0
  %5399 = vmatprep.subr.mxu0 0.0
  %5400 = vmatpush1.msra.mxu0 0.0
  %5401 = vmatprep.subr.mxu0 0.0
  %5402 = vmatpush1.msra.mxu0 0.0
  %5403 = vmatprep.subr.mxu0 0.0
  %5404 = vmatpush1.msra.mxu0 0.0
  %5405 = vmatprep.subr.mxu0 0.0
  %5406 = vmatpush1.msra.mxu0 0.0
  %5407 = vmatprep.subr.mxu0 0.0
  %5408 = vmatpush1.msra.mxu0 0.0
  %5409 = vmatprep.subr.mxu0 0.0
  %5410 = vmatpush1.msra.mxu0 0.0
  %5411 = vmatprep.subr.mxu0 0.0
  %5412 = vmatpush1.msra.mxu0 0.0
  %5413 = vmatprep.subr.mxu0 0.0
  %5414 = vmatpush1.msra.mxu0 0.0
  %5415 = vmatprep.subr.mxu0 0.0
  %5416 = vmatpush1.msra.mxu0 0.0
  %5417 = vmatprep.subr.mxu0 0.0
  %5418 = vmatpush1.msra.mxu0 0.0
  %5419 = vmatprep.subr.mxu0 0.0
  %5420 = vmatpush1.msra.mxu0 0.0
  %5421 = vmatprep.subr.mxu0 0.0
  %5422 = vmatpush1.msra.mxu0 0.0
  %5423 = vmatprep.subr.mxu0 0.0
  %5424 = vmatpush1.msra.mxu0 0.0
  %5425 = vmatprep.subr.mxu0 0.0
  %5426 = vmatpush1.msra.mxu0 0.0
  %5427 = vmatprep.subr.mxu0 0.0
  %5428 = vmatpush1.msra.mxu0 0.0
  %5429 = vmatprep.subr.mxu0 0.0
  %5430 = vmatpush1.msra.mxu0 0.0
  %5431 = vmatprep.subr.mxu0 0.0
  %5432 = vmatpush1.msra.mxu0 0.0
  %5433 = vmatprep.subr.mxu0 0.0
  %5434 = vmatpush1.msra.mxu0 0.0
  %5435 = vmatprep.subr.mxu0 0.0
  %5436 = vmatpush1.msra.mxu0 0.0
  %5437 = vmatprep.subr.mxu0 0.0
  %5438 = vmatpush1.msra.mxu0 0.0
  %5439 = vmatprep.subr.mxu0 0.0
  %5440 = vmatpush1.msra.mxu0 0.0
  %5441 = vmatprep.subr.mxu0 0.0
  %5442 = vmatpush1.msra.mxu0 0.0
  %5443 = vmatprep.subr.mxu0 0.0
  %5444 = vmatpush1.msra.mxu0 0.0
  %5445 = vmatprep.subr.mxu0 0.0
  %5446 = vmatpush1.msra.mxu0 0.0
  %5447 = vmatprep.subr.mxu0 0.0
  %5448 = vmatpush1.msra.mxu0 0.0
  %5449 = vmatprep.subr.mxu0 0.0
  %5450 = vmatpush1.msra.mxu0 0.0
  %5451 = vmatprep.mubr.f32.mxu0 0.0
  %5452 = vmatmul.mubr.f32.gmra.mrb[0].mxu0 %v5314
  %v5453 = vpop.f32.mrb[0].mxu0
  %v5454 = vadd.f32 0.0, %v5453
  %v5455 = vpop.f32.mrb[0].mxu0
  %v5456 = vadd.f32 0.0, %v5455
  %5457 = vdwg.mxu0
  %v5458 = vmul.f32 %v5383, 2.0
  %v5459 = vmul.f32 %v5385, 2.0
  %v5460 = vmul.f32 %v5454, 2.0
  %v5461 = vmul.f32 %v5456, 2.0
  %v5462 = vsub.f32 %v1040, %v5458
  %v5463 = vsub.f32 %v1044, %v5459
  %v5464 = vsub.f32 %v1048, %v5460
  %v5465 = vsub.f32 %v1052, %v5461
  %v5466 = vsel %vm795, %v5462, inf
  %v5467 = vsel %vm795, %v5463, inf
  %v5468 = vsel %vm795, %v5464, inf
  %v5469 = vsel %vm795, %v5465, inf
  %v5470 = vmin.f32 %v5466, %v5467
  %v5471 = vmin.f32 %v5468, %v5469
  %v5472 = vmin.f32 %v5470, %v5471
  %5473 = vmin.xlane.f32.xlu0 %v5472
  %v5474 = vpop.xlane.xlu0 %5473
  %vm5475 = vcmp.le.f32.partialorder %v5462, %v5474
  %vm5476 = vcmp.le.f32.partialorder %v5463, %v5474
  %vm5477 = vcmp.le.f32.partialorder %v5464, %v5474
  %vm5478 = vcmp.le.f32.partialorder %v5465, %v5474
  %v5479 = vsel %vm5475, %v1071, 512
  %v5480 = vsel %vm5476, %v1072, 512
  %v5481 = vsel %vm5477, %v1073, 512
  %v5482 = vsel %vm5478, %v1074, 512
  %v5483 = vsel %vm795, %v5479, 2147483647
  %v5484 = vsel %vm795, %v5480, 2147483647
  %v5485 = vsel %vm795, %v5481, 2147483647
  %v5486 = vsel %vm795, %v5482, 2147483647
  %vm5487 = vcmp.lt.s32.totalorder %v5483, %v5484
  %v5488 = vsel %vm5487, %v5483, %v5484
  %vm5489 = vcmp.lt.s32.totalorder %v5485, %v5486
  %v5490 = vsel %vm5489, %v5485, %v5486
  %vm5491 = vcmp.lt.s32.totalorder %v5488, %v5490
  %v5492 = vsel %vm5491, %v5488, %v5490
  %v5493 = vand.u32 %v5492, 65535
  %v5494 = vshra.s32 %v5492, 16
  %v5495 = vcvt.s32.f32 %v5493
  %v5496 = vcvt.s32.f32 %v5494
  %5497 = vmin.xlane.f32.xlu0 %v5496
  %v5498 = vpop.xlane.xlu0 %5497
  %vm5499 = vcmp.eq.f32.partialorder %v5496, %v5498
  %v5500 = vsel %vm5499, %v5495, inf
  %5501 = vmin.xlane.f32.xlu0 %v5500
  %v5502 = vpop.xlane.xlu0 %5501
  %v5503 = vcvt.f32.s32 %v5502
  %v5504 = vcvt.f32.s32 %v5498
  %v5505 = vshll.u32 %v5504, 16
  %v5506 = vadd.s32 %v5505, %v5503
  %vm5507 = vcmp.eq.s32.totalorder %v1071, %v5506
  %vm5508 = vcmp.eq.s32.totalorder %v1072, %v5506
  %vm5509 = vcmp.eq.s32.totalorder %v1073, %v5506
  %vm5510 = vcmp.eq.s32.totalorder %v1074, %v5506
  %v5511 = vsel %vm5507, 1, 0
  %v5512 = vsel %vm5508, 1, 0
  %v5513 = vsel %vm5509, 1, 0
  %v5514 = vsel %vm5510, 1, 0
  %v5515 = vcvt.s32.f32 %v5511
  %v5516 = vcvt.s32.f32 %v5512
  %v5517 = vcvt.s32.f32 %v5513
  %v5518 = vcvt.s32.f32 %v5514
  %v5519 = vsel %vm795, %v5515, 0.0
  %v5520 = vrot.slane %v5519, 4
  %v5521 = vadd.f32 %v5519, %v5520
  %v5522 = vrot.slane %v5521, 2
  %v5523 = vadd.f32 %v5521, %v5522
  %v5524 = vrot.slane %v5523, 1
  %v5525 = vadd.f32 %v5523, %v5524
  %v5526 = vsel %vm795, %v5516, 0.0
  %v5527 = vrot.slane %v5526, 4
  %v5528 = vadd.f32 %v5526, %v5527
  %v5529 = vrot.slane %v5528, 2
  %v5530 = vadd.f32 %v5528, %v5529
  %v5531 = vrot.slane %v5530, 1
  %v5532 = vadd.f32 %v5530, %v5531
  %v5533 = vsel %vm795, %v5517, 0.0
  %v5534 = vrot.slane %v5533, 4
  %v5535 = vadd.f32 %v5533, %v5534
  %v5536 = vrot.slane %v5535, 2
  %v5537 = vadd.f32 %v5535, %v5536
  %v5538 = vrot.slane %v5537, 1
  %v5539 = vadd.f32 %v5537, %v5538
  %v5540 = vsel %vm795, %v5518, 0.0
  %v5541 = vrot.slane %v5540, 4
  %v5542 = vadd.f32 %v5540, %v5541
  %v5543 = vrot.slane %v5542, 2
  %v5544 = vadd.f32 %v5542, %v5543
  %v5545 = vrot.slane %v5544, 1
  %v5546 = vadd.f32 %v5544, %v5545
  %v5547 = vadd.f32 %v5146, %v5525
  %v5548 = vadd.f32 %v5147, %v5532
  %v5549 = vadd.f32 %v5148, %v5539
  %v5550 = vadd.f32 %v5149, %v5546
  %5551 = vmatprep.subr.mxu0 0.0
  %5552 = vmatpush1.msra.mxu0 %v799
  %5553 = vmatprep.subr.mxu0 0.0
  %5554 = vmatpush1.msra.mxu0 %v800
  %5555 = vmatprep.subr.mxu0 0.0
  %5556 = vmatpush1.msra.mxu0 %v801
  %5557 = vmatprep.subr.mxu0 0.0
  %5558 = vmatpush1.msra.mxu0 %v802
  %5559 = vmatprep.subr.mxu0 0.0
  %5560 = vmatpush1.msra.mxu0 %v803
  %5561 = vmatprep.subr.mxu0 0.0
  %5562 = vmatpush1.msra.mxu0 %v804
  %5563 = vmatprep.subr.mxu0 0.0
  %5564 = vmatpush1.msra.mxu0 %v805
  %5565 = vmatprep.subr.mxu0 0.0
  %5566 = vmatpush1.msra.mxu0 %v806
  %5567 = vmatprep.subr.mxu0 0.0
  %5568 = vmatpush1.msra.mxu0 %v807
  %5569 = vmatprep.subr.mxu0 0.0
  %5570 = vmatpush1.msra.mxu0 %v808
  %5571 = vmatprep.subr.mxu0 0.0
  %5572 = vmatpush1.msra.mxu0 %v809
  %5573 = vmatprep.subr.mxu0 0.0
  %5574 = vmatpush1.msra.mxu0 %v810
  %5575 = vmatprep.subr.mxu0 0.0
  %5576 = vmatpush1.msra.mxu0 %v811
  %5577 = vmatprep.subr.mxu0 0.0
  %5578 = vmatpush1.msra.mxu0 %v812
  %5579 = vmatprep.subr.mxu0 0.0
  %5580 = vmatpush1.msra.mxu0 %v813
  %5581 = vmatprep.subr.mxu0 0.0
  %5582 = vmatpush1.msra.mxu0 %v814
  %5583 = vmatprep.subr.mxu0 0.0
  %5584 = vmatpush1.msra.mxu0 %v815
  %5585 = vmatprep.subr.mxu0 0.0
  %5586 = vmatpush1.msra.mxu0 %v816
  %5587 = vmatprep.subr.mxu0 0.0
  %5588 = vmatpush1.msra.mxu0 %v817
  %5589 = vmatprep.subr.mxu0 0.0
  %5590 = vmatpush1.msra.mxu0 %v818
  %5591 = vmatprep.subr.mxu0 0.0
  %5592 = vmatpush1.msra.mxu0 %v819
  %5593 = vmatprep.subr.mxu0 0.0
  %5594 = vmatpush1.msra.mxu0 %v820
  %5595 = vmatprep.subr.mxu0 0.0
  %5596 = vmatpush1.msra.mxu0 %v821
  %5597 = vmatprep.subr.mxu0 0.0
  %5598 = vmatpush1.msra.mxu0 %v822
  %5599 = vmatprep.subr.mxu0 0.0
  %5600 = vmatpush1.msra.mxu0 %v823
  %5601 = vmatprep.subr.mxu0 0.0
  %5602 = vmatpush1.msra.mxu0 %v824
  %5603 = vmatprep.subr.mxu0 0.0
  %5604 = vmatpush1.msra.mxu0 %v825
  %5605 = vmatprep.subr.mxu0 0.0
  %5606 = vmatpush1.msra.mxu0 %v826
  %5607 = vmatprep.subr.mxu0 0.0
  %5608 = vmatpush1.msra.mxu0 %v827
  %5609 = vmatprep.subr.mxu0 0.0
  %5610 = vmatpush1.msra.mxu0 %v828
  %5611 = vmatprep.subr.mxu0 0.0
  %5612 = vmatpush1.msra.mxu0 %v829
  %5613 = vmatprep.subr.mxu0 0.0
  %5614 = vmatpush1.msra.mxu0 %v830
  %5615 = vmatprep.mubr.f32.mxu0 %v5516
  %5616 = vmatmul.mubr.f32.gmra.mrb[0].mxu0 %v5515
  %v5617 = vpop.f32.mrb[0].mxu0
  %v5618 = vadd.f32 0.0, %v5617
  %v5619 = vpop.f32.mrb[0].mxu0
  %5620 = vdwg.mxu0
  %5621 = vmatprep.subr.mxu0 0.0
  %5622 = vmatpush1.msra.mxu0 %v831
  %5623 = vmatprep.subr.mxu0 0.0
  %5624 = vmatpush1.msra.mxu0 %v832
  %5625 = vmatprep.subr.mxu0 0.0
  %5626 = vmatpush1.msra.mxu0 %v833
  %5627 = vmatprep.subr.mxu0 0.0
  %5628 = vmatpush1.msra.mxu0 %v834
  %5629 = vmatprep.subr.mxu0 0.0
  %5630 = vmatpush1.msra.mxu0 %v835
  %5631 = vmatprep.subr.mxu0 0.0
  %5632 = vmatpush1.msra.mxu0 %v836
  %5633 = vmatprep.subr.mxu0 0.0
  %5634 = vmatpush1.msra.mxu0 %v837
  %5635 = vmatprep.subr.mxu0 0.0
  %5636 = vmatpush1.msra.mxu0 %v838
  %5637 = vmatprep.subr.mxu0 0.0
  %5638 = vmatpush1.msra.mxu0 %v839
  %5639 = vmatprep.subr.mxu0 0.0
  %5640 = vmatpush1.msra.mxu0 %v840
  %5641 = vmatprep.subr.mxu0 0.0
  %5642 = vmatpush1.msra.mxu0 %v841
  %5643 = vmatprep.subr.mxu0 0.0
  %5644 = vmatpush1.msra.mxu0 %v842
  %5645 = vmatprep.subr.mxu0 0.0
  %5646 = vmatpush1.msra.mxu0 %v843
  %5647 = vmatprep.subr.mxu0 0.0
  %5648 = vmatpush1.msra.mxu0 %v844
  %5649 = vmatprep.subr.mxu0 0.0
  %5650 = vmatpush1.msra.mxu0 %v845
  %5651 = vmatprep.subr.mxu0 0.0
  %5652 = vmatpush1.msra.mxu0 %v846
  %5653 = vmatprep.subr.mxu0 0.0
  %5654 = vmatpush1.msra.mxu0 %v847
  %5655 = vmatprep.subr.mxu0 0.0
  %5656 = vmatpush1.msra.mxu0 %v848
  %5657 = vmatprep.subr.mxu0 0.0
  %5658 = vmatpush1.msra.mxu0 %v849
  %5659 = vmatprep.subr.mxu0 0.0
  %5660 = vmatpush1.msra.mxu0 %v850
  %5661 = vmatprep.subr.mxu0 0.0
  %5662 = vmatpush1.msra.mxu0 %v851
  %5663 = vmatprep.subr.mxu0 0.0
  %5664 = vmatpush1.msra.mxu0 %v852
  %5665 = vmatprep.subr.mxu0 0.0
  %5666 = vmatpush1.msra.mxu0 %v853
  %5667 = vmatprep.subr.mxu0 0.0
  %5668 = vmatpush1.msra.mxu0 %v854
  %5669 = vmatprep.subr.mxu0 0.0
  %5670 = vmatpush1.msra.mxu0 %v855
  %5671 = vmatprep.subr.mxu0 0.0
  %5672 = vmatpush1.msra.mxu0 %v856
  %5673 = vmatprep.subr.mxu0 0.0
  %5674 = vmatpush1.msra.mxu0 %v857
  %5675 = vmatprep.subr.mxu0 0.0
  %5676 = vmatpush1.msra.mxu0 %v858
  %5677 = vmatprep.subr.mxu0 0.0
  %5678 = vmatpush1.msra.mxu0 %v859
  %5679 = vmatprep.subr.mxu0 0.0
  %5680 = vmatpush1.msra.mxu0 %v860
  %5681 = vmatprep.subr.mxu0 0.0
  %5682 = vmatpush1.msra.mxu0 %v861
  %5683 = vmatprep.subr.mxu0 0.0
  %5684 = vmatpush1.msra.mxu0 %v862
  %5685 = vmatprep.mubr.f32.mxu0 %v5518
  %5686 = vmatmul.mubr.f32.gmra.mrb[0].mxu0 %v5517
  %v5687 = vpop.f32.mrb[0].mxu0
  %v5688 = vadd.f32 %v5618, %v5687
  %v5689 = vpop.f32.mrb[0].mxu0
  %5690 = vdwg.mxu0
  %v5693 = vunpack.c.l.s4 1983009808
  %v5694 = vunpack.c.0.s8 %v5693
  %v5695 = vlaneseq
  %v5696 = vshrl.u32 %v5695, 7
  %v5697 = vsub.s32 %v5694, %v5696
  %v5698 = vrot.slane %v5688, %v5697
  %5699 = vrot.lane.b32.xlu0 %v5698, 99
  %v5700 = vpop.permute.xlu0 %5699
  %vm5702 = vcmask 878360
  %5703 = vst.msk [vmem:[#allocation3] sm:$0x3] %vm5702, %v5700
  %v5704 = vld [vmem:[#allocation2] sm:$0x3]
  %v5707 = vunpack.c.l.s4 1983009808
  %v5708 = vunpack.c.0.s8 %v5707
  %v5709 = vlaneseq
  %v5710 = vshrl.u32 %v5709, 7
  %v5711 = vsub.s32 %v5708, %v5710
  %v5712 = vrot.slane %v5704, %v5711
  %5713 = vrot.lane.b32.xlu0 %v5712, 20
  %v5714 = vpop.permute.xlu0 %5713
  %v5715 = vsel %vm873, %v5714, 0
  %5717 = vmatprep.subr.mxu0 %v864
  %5718 = vmatpush1.msra.mxu0 %v863
  %5719 = vmatprep.subr.mxu0 %v882
  %5720 = vmatpush1.msra.mxu0 %v879
  %5721 = vmatprep.subr.mxu0 0.0
  %5722 = vmatpush1.msra.mxu0 0.0
  %5723 = vmatprep.subr.mxu0 0.0
  %5724 = vmatpush1.msra.mxu0 0.0
  %5725 = vmatprep.subr.mxu0 0.0
  %5726 = vmatpush1.msra.mxu0 0.0
  %5727 = vmatprep.subr.mxu0 0.0
  %5728 = vmatpush1.msra.mxu0 0.0
  %5729 = vmatprep.subr.mxu0 0.0
  %5730 = vmatpush1.msra.mxu0 0.0
  %5731 = vmatprep.subr.mxu0 0.0
  %5732 = vmatpush1.msra.mxu0 0.0
  %5733 = vmatprep.subr.mxu0 0.0
  %5734 = vmatpush1.msra.mxu0 0.0
  %5735 = vmatprep.subr.mxu0 0.0
  %5736 = vmatpush1.msra.mxu0 0.0
  %5737 = vmatprep.subr.mxu0 0.0
  %5738 = vmatpush1.msra.mxu0 0.0
  %5739 = vmatprep.subr.mxu0 0.0
  %5740 = vmatpush1.msra.mxu0 0.0
  %5741 = vmatprep.subr.mxu0 0.0
  %5742 = vmatpush1.msra.mxu0 0.0
  %5743 = vmatprep.subr.mxu0 0.0
  %5744 = vmatpush1.msra.mxu0 0.0
  %5745 = vmatprep.subr.mxu0 0.0
  %5746 = vmatpush1.msra.mxu0 0.0
  %5747 = vmatprep.subr.mxu0 0.0
  %5748 = vmatpush1.msra.mxu0 0.0
  %5749 = vmatprep.subr.mxu0 0.0
  %5750 = vmatpush1.msra.mxu0 0.0
  %5751 = vmatprep.subr.mxu0 0.0
  %5752 = vmatpush1.msra.mxu0 0.0
  %5753 = vmatprep.subr.mxu0 0.0
  %5754 = vmatpush1.msra.mxu0 0.0
  %5755 = vmatprep.subr.mxu0 0.0
  %5756 = vmatpush1.msra.mxu0 0.0
  %5757 = vmatprep.subr.mxu0 0.0
  %5758 = vmatpush1.msra.mxu0 0.0
  %5759 = vmatprep.subr.mxu0 0.0
  %5760 = vmatpush1.msra.mxu0 0.0
  %5761 = vmatprep.subr.mxu0 0.0
  %5762 = vmatpush1.msra.mxu0 0.0
  %5763 = vmatprep.subr.mxu0 0.0
  %5764 = vmatpush1.msra.mxu0 0.0
  %5765 = vmatprep.subr.mxu0 0.0
  %5766 = vmatpush1.msra.mxu0 0.0
  %5767 = vmatprep.subr.mxu0 0.0
  %5768 = vmatpush1.msra.mxu0 0.0
  %5769 = vmatprep.subr.mxu0 0.0
  %5770 = vmatpush1.msra.mxu0 0.0
  %5771 = vmatprep.subr.mxu0 0.0
  %5772 = vmatpush1.msra.mxu0 0.0
  %5773 = vmatprep.subr.mxu0 0.0
  %5774 = vmatpush1.msra.mxu0 0.0
  %5775 = vmatprep.subr.mxu0 0.0
  %5776 = vmatpush1.msra.mxu0 0.0
  %5777 = vmatprep.subr.mxu0 0.0
  %5778 = vmatpush1.msra.mxu0 0.0
  %5779 = vmatprep.subr.mxu0 0.0
  %5780 = vmatpush1.msra.mxu0 0.0
  %5781 = vmatprep.mubr.f32.mxu0 0.0
  %5782 = vmatmul.mubr.f32.gmra.mrb[0].mxu0 %v5715
  %v5783 = vpop.f32.mrb[0].mxu0
  %v5784 = vadd.f32 0.0, %v5783
  %v5785 = vpop.f32.mrb[0].mxu0
  %v5786 = vadd.f32 0.0, %v5785
  %5787 = vdwg.mxu0
  %5788 = vmatprep.subr.mxu0 %v866
  %5789 = vmatpush1.msra.mxu0 %v865
  %5790 = vmatprep.subr.mxu0 %v888
  %5791 = vmatpush1.msra.mxu0 %v885
  %5792 = vmatprep.subr.mxu0 0.0
  %5793 = vmatpush1.msra.mxu0 0.0
  %5794 = vmatprep.subr.mxu0 0.0
  %5795 = vmatpush1.msra.mxu0 0.0
  %5796 = vmatprep.subr.mxu0 0.0
  %5797 = vmatpush1.msra.mxu0 0.0
  %5798 = vmatprep.subr.mxu0 0.0
  %5799 = vmatpush1.msra.mxu0 0.0
  %5800 = vmatprep.subr.mxu0 0.0
  %5801 = vmatpush1.msra.mxu0 0.0
  %5802 = vmatprep.subr.mxu0 0.0
  %5803 = vmatpush1.msra.mxu0 0.0
  %5804 = vmatprep.subr.mxu0 0.0
  %5805 = vmatpush1.msra.mxu0 0.0
  %5806 = vmatprep.subr.mxu0 0.0
  %5807 = vmatpush1.msra.mxu0 0.0
  %5808 = vmatprep.subr.mxu0 0.0
  %5809 = vmatpush1.msra.mxu0 0.0
  %5810 = vmatprep.subr.mxu0 0.0
  %5811 = vmatpush1.msra.mxu0 0.0
  %5812 = vmatprep.subr.mxu0 0.0
  %5813 = vmatpush1.msra.mxu0 0.0
  %5814 = vmatprep.subr.mxu0 0.0
  %5815 = vmatpush1.msra.mxu0 0.0
  %5816 = vmatprep.subr.mxu0 0.0
  %5817 = vmatpush1.msra.mxu0 0.0
  %5818 = vmatprep.subr.mxu0 0.0
  %5819 = vmatpush1.msra.mxu0 0.0
  %5820 = vmatprep.subr.mxu0 0.0
  %5821 = vmatpush1.msra.mxu0 0.0
  %5822 = vmatprep.subr.mxu0 0.0
  %5823 = vmatpush1.msra.mxu0 0.0
  %5824 = vmatprep.subr.mxu0 0.0
  %5825 = vmatpush1.msra.mxu0 0.0
  %5826 = vmatprep.subr.mxu0 0.0
  %5827 = vmatpush1.msra.mxu0 0.0
  %5828 = vmatprep.subr.mxu0 0.0
  %5829 = vmatpush1.msra.mxu0 0.0
  %5830 = vmatprep.subr.mxu0 0.0
  %5831 = vmatpush1.msra.mxu0 0.0
  %5832 = vmatprep.subr.mxu0 0.0
  %5833 = vmatpush1.msra.mxu0 0.0
  %5834 = vmatprep.subr.mxu0 0.0
  %5835 = vmatpush1.msra.mxu0 0.0
  %5836 = vmatprep.subr.mxu0 0.0
  %5837 = vmatpush1.msra.mxu0 0.0
  %5838 = vmatprep.subr.mxu0 0.0
  %5839 = vmatpush1.msra.mxu0 0.0
  %5840 = vmatprep.subr.mxu0 0.0
  %5841 = vmatpush1.msra.mxu0 0.0
  %5842 = vmatprep.subr.mxu0 0.0
  %5843 = vmatpush1.msra.mxu0 0.0
  %5844 = vmatprep.subr.mxu0 0.0
  %5845 = vmatpush1.msra.mxu0 0.0
  %5846 = vmatprep.subr.mxu0 0.0
  %5847 = vmatpush1.msra.mxu0 0.0
  %5848 = vmatprep.subr.mxu0 0.0
  %5849 = vmatpush1.msra.mxu0 0.0
  %5850 = vmatprep.subr.mxu0 0.0
  %5851 = vmatpush1.msra.mxu0 0.0
  %5852 = vmatprep.mubr.f32.mxu0 0.0
  %5853 = vmatmul.mubr.f32.gmra.mrb[0].mxu0 %v5715
  %v5854 = vpop.f32.mrb[0].mxu0
  %v5855 = vadd.f32 0.0, %v5854
  %v5856 = vpop.f32.mrb[0].mxu0
  %v5857 = vadd.f32 0.0, %v5856
  %5858 = vdwg.mxu0
  %v5859 = vmul.f32 %v5784, 2.0
  %v5860 = vmul.f32 %v5786, 2.0
  %v5861 = vmul.f32 %v5855, 2.0
  %v5862 = vmul.f32 %v5857, 2.0
  %v5863 = vsub.f32 %v1040, %v5859
  %v5864 = vsub.f32 %v1044, %v5860
  %v5865 = vsub.f32 %v1048, %v5861
  %v5866 = vsub.f32 %v1052, %v5862
  %v5867 = vsel %vm795, %v5863, inf
  %v5868 = vsel %vm795, %v5864, inf
  %v5869 = vsel %vm795, %v5865, inf
  %v5870 = vsel %vm795, %v5866, inf
  %v5871 = vmin.f32 %v5867, %v5868
  %v5872 = vmin.f32 %v5869, %v5870
  %v5873 = vmin.f32 %v5871, %v5872
  %5874 = vmin.xlane.f32.xlu0 %v5873
  %v5875 = vpop.xlane.xlu0 %5874
  %vm5876 = vcmp.le.f32.partialorder %v5863, %v5875
  %vm5877 = vcmp.le.f32.partialorder %v5864, %v5875
  %vm5878 = vcmp.le.f32.partialorder %v5865, %v5875
  %vm5879 = vcmp.le.f32.partialorder %v5866, %v5875
  %v5880 = vsel %vm5876, %v1071, 512
  %v5881 = vsel %vm5877, %v1072, 512
  %v5882 = vsel %vm5878, %v1073, 512
  %v5883 = vsel %vm5879, %v1074, 512
  %v5884 = vsel %vm795, %v5880, 2147483647
  %v5885 = vsel %vm795, %v5881, 2147483647
  %v5886 = vsel %vm795, %v5882, 2147483647
  %v5887 = vsel %vm795, %v5883, 2147483647
  %vm5888 = vcmp.lt.s32.totalorder %v5884, %v5885
  %v5889 = vsel %vm5888, %v5884, %v5885
  %vm5890 = vcmp.lt.s32.totalorder %v5886, %v5887
  %v5891 = vsel %vm5890, %v5886, %v5887
  %vm5892 = vcmp.lt.s32.totalorder %v5889, %v5891
  %v5893 = vsel %vm5892, %v5889, %v5891
  %v5894 = vand.u32 %v5893, 65535
  %v5895 = vshra.s32 %v5893, 16
  %v5896 = vcvt.s32.f32 %v5894
  %v5897 = vcvt.s32.f32 %v5895
  %5898 = vmin.xlane.f32.xlu0 %v5897
  %v5899 = vpop.xlane.xlu0 %5898
  %vm5900 = vcmp.eq.f32.partialorder %v5897, %v5899
  %v5901 = vsel %vm5900, %v5896, inf
  %5902 = vmin.xlane.f32.xlu0 %v5901
  %v5903 = vpop.xlane.xlu0 %5902
  %v5904 = vcvt.f32.s32 %v5903
  %v5905 = vcvt.f32.s32 %v5899
  %v5906 = vshll.u32 %v5905, 16
  %v5907 = vadd.s32 %v5906, %v5904
  %vm5908 = vcmp.eq.s32.totalorder %v1071, %v5907
  %vm5909 = vcmp.eq.s32.totalorder %v1072, %v5907
  %vm5910 = vcmp.eq.s32.totalorder %v1073, %v5907
  %vm5911 = vcmp.eq.s32.totalorder %v1074, %v5907
  %v5912 = vsel %vm5908, 1, 0
  %v5913 = vsel %vm5909, 1, 0
  %v5914 = vsel %vm5910, 1, 0
  %v5915 = vsel %vm5911, 1, 0
  %v5916 = vcvt.s32.f32 %v5912
  %v5917 = vcvt.s32.f32 %v5913
  %v5918 = vcvt.s32.f32 %v5914
  %v5919 = vcvt.s32.f32 %v5915
  %v5920 = vsel %vm795, %v5916, 0.0
  %v5921 = vrot.slane %v5920, 4
  %v5922 = vadd.f32 %v5920, %v5921
  %v5923 = vrot.slane %v5922, 2
  %v5924 = vadd.f32 %v5922, %v5923
  %v5925 = vrot.slane %v5924, 1
  %v5926 = vadd.f32 %v5924, %v5925
  %v5927 = vsel %vm795, %v5917, 0.0
  %v5928 = vrot.slane %v5927, 4
  %v5929 = vadd.f32 %v5927, %v5928
  %v5930 = vrot.slane %v5929, 2
  %v5931 = vadd.f32 %v5929, %v5930
  %v5932 = vrot.slane %v5931, 1
  %v5933 = vadd.f32 %v5931, %v5932
  %v5934 = vsel %vm795, %v5918, 0.0
  %v5935 = vrot.slane %v5934, 4
  %v5936 = vadd.f32 %v5934, %v5935
  %v5937 = vrot.slane %v5936, 2
  %v5938 = vadd.f32 %v5936, %v5937
  %v5939 = vrot.slane %v5938, 1
  %v5940 = vadd.f32 %v5938, %v5939
  %v5941 = vsel %vm795, %v5919, 0.0
  %v5942 = vrot.slane %v5941, 4
  %v5943 = vadd.f32 %v5941, %v5942
  %v5944 = vrot.slane %v5943, 2
  %v5945 = vadd.f32 %v5943, %v5944
  %v5946 = vrot.slane %v5945, 1
  %v5947 = vadd.f32 %v5945, %v5946
  %v5948 = vadd.f32 %v5547, %v5926
  %v5949 = vadd.f32 %v5548, %v5933
  %v5950 = vadd.f32 %v5549, %v5940
  %v5951 = vadd.f32 %v5550, %v5947
  %5952 = vmatprep.subr.mxu0 0.0
  %5953 = vmatpush1.msra.mxu0 %v799
  %5954 = vmatprep.subr.mxu0 0.0
  %5955 = vmatpush1.msra.mxu0 %v800
  %5956 = vmatprep.subr.mxu0 0.0
  %5957 = vmatpush1.msra.mxu0 %v801
  %5958 = vmatprep.subr.mxu0 0.0
  %5959 = vmatpush1.msra.mxu0 %v802
  %5960 = vmatprep.subr.mxu0 0.0
  %5961 = vmatpush1.msra.mxu0 %v803
  %5962 = vmatprep.subr.mxu0 0.0
  %5963 = vmatpush1.msra.mxu0 %v804
  %5964 = vmatprep.subr.mxu0 0.0
  %5965 = vmatpush1.msra.mxu0 %v805
  %5966 = vmatprep.subr.mxu0 0.0
  %5967 = vmatpush1.msra.mxu0 %v806
  %5968 = vmatprep.subr.mxu0 0.0
  %5969 = vmatpush1.msra.mxu0 %v807
  %5970 = vmatprep.subr.mxu0 0.0
  %5971 = vmatpush1.msra.mxu0 %v808
  %5972 = vmatprep.subr.mxu0 0.0
  %5973 = vmatpush1.msra.mxu0 %v809
  %5974 = vmatprep.subr.mxu0 0.0
  %5975 = vmatpush1.msra.mxu0 %v810
  %5976 = vmatprep.subr.mxu0 0.0
  %5977 = vmatpush1.msra.mxu0 %v811
  %5978 = vmatprep.subr.mxu0 0.0
  %5979 = vmatpush1.msra.mxu0 %v812
  %5980 = vmatprep.subr.mxu0 0.0
  %5981 = vmatpush1.msra.mxu0 %v813
  %5982 = vmatprep.subr.mxu0 0.0
  %5983 = vmatpush1.msra.mxu0 %v814
  %5984 = vmatprep.subr.mxu0 0.0
  %5985 = vmatpush1.msra.mxu0 %v815
  %5986 = vmatprep.subr.mxu0 0.0
  %5987 = vmatpush1.msra.mxu0 %v816
  %5988 = vmatprep.subr.mxu0 0.0
  %5989 = vmatpush1.msra.mxu0 %v817
  %5990 = vmatprep.subr.mxu0 0.0
  %5991 = vmatpush1.msra.mxu0 %v818
  %5992 = vmatprep.subr.mxu0 0.0
  %5993 = vmatpush1.msra.mxu0 %v819
  %5994 = vmatprep.subr.mxu0 0.0
  %5995 = vmatpush1.msra.mxu0 %v820
  %5996 = vmatprep.subr.mxu0 0.0
  %5997 = vmatpush1.msra.mxu0 %v821
  %5998 = vmatprep.subr.mxu0 0.0
  %5999 = vmatpush1.msra.mxu0 %v822
  %6000 = vmatprep.subr.mxu0 0.0
  %6001 = vmatpush1.msra.mxu0 %v823
  %6002 = vmatprep.subr.mxu0 0.0
  %6003 = vmatpush1.msra.mxu0 %v824
  %6004 = vmatprep.subr.mxu0 0.0
  %6005 = vmatpush1.msra.mxu0 %v825
  %6006 = vmatprep.subr.mxu0 0.0
  %6007 = vmatpush1.msra.mxu0 %v826
  %6008 = vmatprep.subr.mxu0 0.0
  %6009 = vmatpush1.msra.mxu0 %v827
  %6010 = vmatprep.subr.mxu0 0.0
  %6011 = vmatpush1.msra.mxu0 %v828
  %6012 = vmatprep.subr.mxu0 0.0
  %6013 = vmatpush1.msra.mxu0 %v829
  %6014 = vmatprep.subr.mxu0 0.0
  %6015 = vmatpush1.msra.mxu0 %v830
  %6016 = vmatprep.mubr.f32.mxu0 %v5917
  %6017 = vmatmul.mubr.f32.gmra.mrb[0].mxu0 %v5916
  %v6018 = vpop.f32.mrb[0].mxu0
  %v6019 = vadd.f32 0.0, %v6018
  %v6020 = vpop.f32.mrb[0].mxu0
  %6021 = vdwg.mxu0
  %6022 = vmatprep.subr.mxu0 0.0
  %6023 = vmatpush1.msra.mxu0 %v831
  %6024 = vmatprep.subr.mxu0 0.0
  %6025 = vmatpush1.msra.mxu0 %v832
  %6026 = vmatprep.subr.mxu0 0.0
  %6027 = vmatpush1.msra.mxu0 %v833
  %6028 = vmatprep.subr.mxu0 0.0
  %6029 = vmatpush1.msra.mxu0 %v834
  %6030 = vmatprep.subr.mxu0 0.0
  %6031 = vmatpush1.msra.mxu0 %v835
  %6032 = vmatprep.subr.mxu0 0.0
  %6033 = vmatpush1.msra.mxu0 %v836
  %6034 = vmatprep.subr.mxu0 0.0
  %6035 = vmatpush1.msra.mxu0 %v837
  %6036 = vmatprep.subr.mxu0 0.0
  %6037 = vmatpush1.msra.mxu0 %v838
  %6038 = vmatprep.subr.mxu0 0.0
  %6039 = vmatpush1.msra.mxu0 %v839
  %6040 = vmatprep.subr.mxu0 0.0
  %6041 = vmatpush1.msra.mxu0 %v840
  %6042 = vmatprep.subr.mxu0 0.0
  %6043 = vmatpush1.msra.mxu0 %v841
  %6044 = vmatprep.subr.mxu0 0.0
  %6045 = vmatpush1.msra.mxu0 %v842
  %6046 = vmatprep.subr.mxu0 0.0
  %6047 = vmatpush1.msra.mxu0 %v843
  %6048 = vmatprep.subr.mxu0 0.0
  %6049 = vmatpush1.msra.mxu0 %v844
  %6050 = vmatprep.subr.mxu0 0.0
  %6051 = vmatpush1.msra.mxu0 %v845
  %6052 = vmatprep.subr.mxu0 0.0
  %6053 = vmatpush1.msra.mxu0 %v846
  %6054 = vmatprep.subr.mxu0 0.0
  %6055 = vmatpush1.msra.mxu0 %v847
  %6056 = vmatprep.subr.mxu0 0.0
  %6057 = vmatpush1.msra.mxu0 %v848
  %6058 = vmatprep.subr.mxu0 0.0
  %6059 = vmatpush1.msra.mxu0 %v849
  %6060 = vmatprep.subr.mxu0 0.0
  %6061 = vmatpush1.msra.mxu0 %v850
  %6062 = vmatprep.subr.mxu0 0.0
  %6063 = vmatpush1.msra.mxu0 %v851
  %6064 = vmatprep.subr.mxu0 0.0
  %6065 = vmatpush1.msra.mxu0 %v852
  %6066 = vmatprep.subr.mxu0 0.0
  %6067 = vmatpush1.msra.mxu0 %v853
  %6068 = vmatprep.subr.mxu0 0.0
  %6069 = vmatpush1.msra.mxu0 %v854
  %6070 = vmatprep.subr.mxu0 0.0
  %6071 = vmatpush1.msra.mxu0 %v855
  %6072 = vmatprep.subr.mxu0 0.0
  %6073 = vmatpush1.msra.mxu0 %v856
  %6074 = vmatprep.subr.mxu0 0.0
  %6075 = vmatpush1.msra.mxu0 %v857
  %6076 = vmatprep.subr.mxu0 0.0
  %6077 = vmatpush1.msra.mxu0 %v858
  %6078 = vmatprep.subr.mxu0 0.0
  %6079 = vmatpush1.msra.mxu0 %v859
  %6080 = vmatprep.subr.mxu0 0.0
  %6081 = vmatpush1.msra.mxu0 %v860
  %6082 = vmatprep.subr.mxu0 0.0
  %6083 = vmatpush1.msra.mxu0 %v861
  %6084 = vmatprep.subr.mxu0 0.0
  %6085 = vmatpush1.msra.mxu0 %v862
  %6086 = vmatprep.mubr.f32.mxu0 %v5919
  %6087 = vmatmul.mubr.f32.gmra.mrb[0].mxu0 %v5918
  %v6088 = vpop.f32.mrb[0].mxu0
  %v6089 = vadd.f32 %v6019, %v6088
  %v6090 = vpop.f32.mrb[0].mxu0
  %6091 = vdwg.mxu0
  %v6094 = vunpack.c.l.s4 1983009808
  %v6095 = vunpack.c.0.s8 %v6094
  %v6096 = vlaneseq
  %v6097 = vshrl.u32 %v6096, 7
  %v6098 = vsub.s32 %v6095, %v6097
  %v6099 = vrot.slane %v6089, %v6098
  %6100 = vrot.lane.b32.xlu0 %v6099, 108
  %v6101 = vpop.permute.xlu0 %6100
  %vm6103 = vcmask 952160
  %6104 = vst.msk [vmem:[#allocation3] sm:$0x3] %vm6103, %v6101
  %v6105 = vld [vmem:[#allocation2] sm:$0x3]
  %v6108 = vunpack.c.l.s4 1983009808
  %v6109 = vunpack.c.0.s8 %v6108
  %v6110 = vlaneseq
  %v6111 = vshrl.u32 %v6110, 7
  %v6112 = vsub.s32 %v6109, %v6111
  %v6113 = vrot.slane %v6105, %v6112
  %6114 = vrot.lane.b32.xlu0 %v6113, 11
  %v6115 = vpop.permute.xlu0 %6114
  %v6116 = vsel %vm873, %v6115, 0
  %6118 = vmatprep.subr.mxu0 %v864
  %6119 = vmatpush1.msra.mxu0 %v863
  %6120 = vmatprep.subr.mxu0 %v882
  %6121 = vmatpush1.msra.mxu0 %v879
  %6122 = vmatprep.subr.mxu0 0.0
  %6123 = vmatpush1.msra.mxu0 0.0
  %6124 = vmatprep.subr.mxu0 0.0
  %6125 = vmatpush1.msra.mxu0 0.0
  %6126 = vmatprep.subr.mxu0 0.0
  %6127 = vmatpush1.msra.mxu0 0.0
  %6128 = vmatprep.subr.mxu0 0.0
  %6129 = vmatpush1.msra.mxu0 0.0
  %6130 = vmatprep.subr.mxu0 0.0
  %6131 = vmatpush1.msra.mxu0 0.0
  %6132 = vmatprep.subr.mxu0 0.0
  %6133 = vmatpush1.msra.mxu0 0.0
  %6134 = vmatprep.subr.mxu0 0.0
  %6135 = vmatpush1.msra.mxu0 0.0
  %6136 = vmatprep.subr.mxu0 0.0
  %6137 = vmatpush1.msra.mxu0 0.0
  %6138 = vmatprep.subr.mxu0 0.0
  %6139 = vmatpush1.msra.mxu0 0.0
  %6140 = vmatprep.subr.mxu0 0.0
  %6141 = vmatpush1.msra.mxu0 0.0
  %6142 = vmatprep.subr.mxu0 0.0
  %6143 = vmatpush1.msra.mxu0 0.0
  %6144 = vmatprep.subr.mxu0 0.0
  %6145 = vmatpush1.msra.mxu0 0.0
  %6146 = vmatprep.subr.mxu0 0.0
  %6147 = vmatpush1.msra.mxu0 0.0
  %6148 = vmatprep.subr.mxu0 0.0
  %6149 = vmatpush1.msra.mxu0 0.0
  %6150 = vmatprep.subr.mxu0 0.0
  %6151 = vmatpush1.msra.mxu0 0.0
  %6152 = vmatprep.subr.mxu0 0.0
  %6153 = vmatpush1.msra.mxu0 0.0
  %6154 = vmatprep.subr.mxu0 0.0
  %6155 = vmatpush1.msra.mxu0 0.0
  %6156 = vmatprep.subr.mxu0 0.0
  %6157 = vmatpush1.msra.mxu0 0.0
  %6158 = vmatprep.subr.mxu0 0.0
  %6159 = vmatpush1.msra.mxu0 0.0
  %6160 = vmatprep.subr.mxu0 0.0
  %6161 = vmatpush1.msra.mxu0 0.0
  %6162 = vmatprep.subr.mxu0 0.0
  %6163 = vmatpush1.msra.mxu0 0.0
  %6164 = vmatprep.subr.mxu0 0.0
  %6165 = vmatpush1.msra.mxu0 0.0
  %6166 = vmatprep.subr.mxu0 0.0
  %6167 = vmatpush1.msra.mxu0 0.0
  %6168 = vmatprep.subr.mxu0 0.0
  %6169 = vmatpush1.msra.mxu0 0.0
  %6170 = vmatprep.subr.mxu0 0.0
  %6171 = vmatpush1.msra.mxu0 0.0
  %6172 = vmatprep.subr.mxu0 0.0
  %6173 = vmatpush1.msra.mxu0 0.0
  %6174 = vmatprep.subr.mxu0 0.0
  %6175 = vmatpush1.msra.mxu0 0.0
  %6176 = vmatprep.subr.mxu0 0.0
  %6177 = vmatpush1.msra.mxu0 0.0
  %6178 = vmatprep.subr.mxu0 0.0
  %6179 = vmatpush1.msra.mxu0 0.0
  %6180 = vmatprep.subr.mxu0 0.0
  %6181 = vmatpush1.msra.mxu0 0.0
  %6182 = vmatprep.mubr.f32.mxu0 0.0
  %6183 = vmatmul.mubr.f32.gmra.mrb[0].mxu0 %v6116
  %v6184 = vpop.f32.mrb[0].mxu0
  %v6185 = vadd.f32 0.0, %v6184
  %v6186 = vpop.f32.mrb[0].mxu0
  %v6187 = vadd.f32 0.0, %v6186
  %6188 = vdwg.mxu0
  %6189 = vmatprep.subr.mxu0 %v866
  %6190 = vmatpush1.msra.mxu0 %v865
  %6191 = vmatprep.subr.mxu0 %v888
  %6192 = vmatpush1.msra.mxu0 %v885
  %6193 = vmatprep.subr.mxu0 0.0
  %6194 = vmatpush1.msra.mxu0 0.0
  %6195 = vmatprep.subr.mxu0 0.0
  %6196 = vmatpush1.msra.mxu0 0.0
  %6197 = vmatprep.subr.mxu0 0.0
  %6198 = vmatpush1.msra.mxu0 0.0
  %6199 = vmatprep.subr.mxu0 0.0
  %6200 = vmatpush1.msra.mxu0 0.0
  %6201 = vmatprep.subr.mxu0 0.0
  %6202 = vmatpush1.msra.mxu0 0.0
  %6203 = vmatprep.subr.mxu0 0.0
  %6204 = vmatpush1.msra.mxu0 0.0
  %6205 = vmatprep.subr.mxu0 0.0
  %6206 = vmatpush1.msra.mxu0 0.0
  %6207 = vmatprep.subr.mxu0 0.0
  %6208 = vmatpush1.msra.mxu0 0.0
  %6209 = vmatprep.subr.mxu0 0.0
  %6210 = vmatpush1.msra.mxu0 0.0
  %6211 = vmatprep.subr.mxu0 0.0
  %6212 = vmatpush1.msra.mxu0 0.0
  %6213 = vmatprep.subr.mxu0 0.0
  %6214 = vmatpush1.msra.mxu0 0.0
  %6215 = vmatprep.subr.mxu0 0.0
  %6216 = vmatpush1.msra.mxu0 0.0
  %6217 = vmatprep.subr.mxu0 0.0
  %6218 = vmatpush1.msra.mxu0 0.0
  %6219 = vmatprep.subr.mxu0 0.0
  %6220 = vmatpush1.msra.mxu0 0.0
  %6221 = vmatprep.subr.mxu0 0.0
  %6222 = vmatpush1.msra.mxu0 0.0
  %6223 = vmatprep.subr.mxu0 0.0
  %6224 = vmatpush1.msra.mxu0 0.0
  %6225 = vmatprep.subr.mxu0 0.0
  %6226 = vmatpush1.msra.mxu0 0.0
  %6227 = vmatprep.subr.mxu0 0.0
  %6228 = vmatpush1.msra.mxu0 0.0
  %6229 = vmatprep.subr.mxu0 0.0
  %6230 = vmatpush1.msra.mxu0 0.0
  %6231 = vmatprep.subr.mxu0 0.0
  %6232 = vmatpush1.msra.mxu0 0.0
  %6233 = vmatprep.subr.mxu0 0.0
  %6234 = vmatpush1.msra.mxu0 0.0
  %6235 = vmatprep.subr.mxu0 0.0
  %6236 = vmatpush1.msra.mxu0 0.0
  %6237 = vmatprep.subr.mxu0 0.0
  %6238 = vmatpush1.msra.mxu0 0.0
  %6239 = vmatprep.subr.mxu0 0.0
  %6240 = vmatpush1.msra.mxu0 0.0
  %6241 = vmatprep.subr.mxu0 0.0
  %6242 = vmatpush1.msra.mxu0 0.0
  %6243 = vmatprep.subr.mxu0 0.0
  %6244 = vmatpush1.msra.mxu0 0.0
  %6245 = vmatprep.subr.mxu0 0.0
  %6246 = vmatpush1.msra.mxu0 0.0
  %6247 = vmatprep.subr.mxu0 0.0
  %6248 = vmatpush1.msra.mxu0 0.0
  %6249 = vmatprep.subr.mxu0 0.0
  %6250 = vmatpush1.msra.mxu0 0.0
  %6251 = vmatprep.subr.mxu0 0.0
  %6252 = vmatpush1.msra.mxu0 0.0
  %6253 = vmatprep.mubr.f32.mxu0 0.0
  %6254 = vmatmul.mubr.f32.gmra.mrb[0].mxu0 %v6116
  %v6255 = vpop.f32.mrb[0].mxu0
  %v6256 = vadd.f32 0.0, %v6255
  %v6257 = vpop.f32.mrb[0].mxu0
  %v6258 = vadd.f32 0.0, %v6257
  %6259 = vdwg.mxu0
  %v6260 = vmul.f32 %v6185, 2.0
  %v6261 = vmul.f32 %v6187, 2.0
  %v6262 = vmul.f32 %v6256, 2.0
  %v6263 = vmul.f32 %v6258, 2.0
  %v6264 = vsub.f32 %v1040, %v6260
  %v6265 = vsub.f32 %v1044, %v6261
  %v6266 = vsub.f32 %v1048, %v6262
  %v6267 = vsub.f32 %v1052, %v6263
  %v6268 = vsel %vm795, %v6264, inf
  %v6269 = vsel %vm795, %v6265, inf
  %v6270 = vsel %vm795, %v6266, inf
  %v6271 = vsel %vm795, %v6267, inf
  %v6272 = vmin.f32 %v6268, %v6269
  %v6273 = vmin.f32 %v6270, %v6271
  %v6274 = vmin.f32 %v6272, %v6273
  %6275 = vmin.xlane.f32.xlu0 %v6274
  %v6276 = vpop.xlane.xlu0 %6275
  %vm6277 = vcmp.le.f32.partialorder %v6264, %v6276
  %vm6278 = vcmp.le.f32.partialorder %v6265, %v6276
  %vm6279 = vcmp.le.f32.partialorder %v6266, %v6276
  %vm6280 = vcmp.le.f32.partialorder %v6267, %v6276
  %v6281 = vsel %vm6277, %v1071, 512
  %v6282 = vsel %vm6278, %v1072, 512
  %v6283 = vsel %vm6279, %v1073, 512
  %v6284 = vsel %vm6280, %v1074, 512
  %v6285 = vsel %vm795, %v6281, 2147483647
  %v6286 = vsel %vm795, %v6282, 2147483647
  %v6287 = vsel %vm795, %v6283, 2147483647
  %v6288 = vsel %vm795, %v6284, 2147483647
  %vm6289 = vcmp.lt.s32.totalorder %v6285, %v6286
  %v6290 = vsel %vm6289, %v6285, %v6286
  %vm6291 = vcmp.lt.s32.totalorder %v6287, %v6288
  %v6292 = vsel %vm6291, %v6287, %v6288
  %vm6293 = vcmp.lt.s32.totalorder %v6290, %v6292
  %v6294 = vsel %vm6293, %v6290, %v6292
  %v6295 = vand.u32 %v6294, 65535
  %v6296 = vshra.s32 %v6294, 16
  %v6297 = vcvt.s32.f32 %v6295
  %v6298 = vcvt.s32.f32 %v6296
  %6299 = vmin.xlane.f32.xlu0 %v6298
  %v6300 = vpop.xlane.xlu0 %6299
  %vm6301 = vcmp.eq.f32.partialorder %v6298, %v6300
  %v6302 = vsel %vm6301, %v6297, inf
  %6303 = vmin.xlane.f32.xlu0 %v6302
  %v6304 = vpop.xlane.xlu0 %6303
  %v6305 = vcvt.f32.s32 %v6304
  %v6306 = vcvt.f32.s32 %v6300
  %v6307 = vshll.u32 %v6306, 16
  %v6308 = vadd.s32 %v6307, %v6305
  %vm6309 = vcmp.eq.s32.totalorder %v1071, %v6308
  %vm6310 = vcmp.eq.s32.totalorder %v1072, %v6308
  %vm6311 = vcmp.eq.s32.totalorder %v1073, %v6308
  %vm6312 = vcmp.eq.s32.totalorder %v1074, %v6308
  %v6313 = vsel %vm6309, 1, 0
  %v6314 = vsel %vm6310, 1, 0
  %v6315 = vsel %vm6311, 1, 0
  %v6316 = vsel %vm6312, 1, 0
  %v6317 = vcvt.s32.f32 %v6313
  %v6318 = vcvt.s32.f32 %v6314
  %v6319 = vcvt.s32.f32 %v6315
  %v6320 = vcvt.s32.f32 %v6316
  %v6321 = vsel %vm795, %v6317, 0.0
  %v6322 = vrot.slane %v6321, 4
  %v6323 = vadd.f32 %v6321, %v6322
  %v6324 = vrot.slane %v6323, 2
  %v6325 = vadd.f32 %v6323, %v6324
  %v6326 = vrot.slane %v6325, 1
  %v6327 = vadd.f32 %v6325, %v6326
  %v6328 = vsel %vm795, %v6318, 0.0
  %v6329 = vrot.slane %v6328, 4
  %v6330 = vadd.f32 %v6328, %v6329
  %v6331 = vrot.slane %v6330, 2
  %v6332 = vadd.f32 %v6330, %v6331
  %v6333 = vrot.slane %v6332, 1
  %v6334 = vadd.f32 %v6332, %v6333
  %v6335 = vsel %vm795, %v6319, 0.0
  %v6336 = vrot.slane %v6335, 4
  %v6337 = vadd.f32 %v6335, %v6336
  %v6338 = vrot.slane %v6337, 2
  %v6339 = vadd.f32 %v6337, %v6338
  %v6340 = vrot.slane %v6339, 1
  %v6341 = vadd.f32 %v6339, %v6340
  %v6342 = vsel %vm795, %v6320, 0.0
  %v6343 = vrot.slane %v6342, 4
  %v6344 = vadd.f32 %v6342, %v6343
  %v6345 = vrot.slane %v6344, 2
  %v6346 = vadd.f32 %v6344, %v6345
  %v6347 = vrot.slane %v6346, 1
  %v6348 = vadd.f32 %v6346, %v6347
  %v6349 = vadd.f32 %v5948, %v6327
  %v6350 = vadd.f32 %v5949, %v6334
  %v6351 = vadd.f32 %v5950, %v6341
  %v6352 = vadd.f32 %v5951, %v6348
  %6353 = vmatprep.subr.mxu0 0.0
  %6354 = vmatpush1.msra.mxu0 %v799
  %6355 = vmatprep.subr.mxu0 0.0
  %6356 = vmatpush1.msra.mxu0 %v800
  %6357 = vmatprep.subr.mxu0 0.0
  %6358 = vmatpush1.msra.mxu0 %v801
  %6359 = vmatprep.subr.mxu0 0.0
  %6360 = vmatpush1.msra.mxu0 %v802
  %6361 = vmatprep.subr.mxu0 0.0
  %6362 = vmatpush1.msra.mxu0 %v803
  %6363 = vmatprep.subr.mxu0 0.0
  %6364 = vmatpush1.msra.mxu0 %v804
  %6365 = vmatprep.subr.mxu0 0.0
  %6366 = vmatpush1.msra.mxu0 %v805
  %6367 = vmatprep.subr.mxu0 0.0
  %6368 = vmatpush1.msra.mxu0 %v806
  %6369 = vmatprep.subr.mxu0 0.0
  %6370 = vmatpush1.msra.mxu0 %v807
  %6371 = vmatprep.subr.mxu0 0.0
  %6372 = vmatpush1.msra.mxu0 %v808
  %6373 = vmatprep.subr.mxu0 0.0
  %6374 = vmatpush1.msra.mxu0 %v809
  %6375 = vmatprep.subr.mxu0 0.0
  %6376 = vmatpush1.msra.mxu0 %v810
  %6377 = vmatprep.subr.mxu0 0.0
  %6378 = vmatpush1.msra.mxu0 %v811
  %6379 = vmatprep.subr.mxu0 0.0
  %6380 = vmatpush1.msra.mxu0 %v812
  %6381 = vmatprep.subr.mxu0 0.0
  %6382 = vmatpush1.msra.mxu0 %v813
  %6383 = vmatprep.subr.mxu0 0.0
  %6384 = vmatpush1.msra.mxu0 %v814
  %6385 = vmatprep.subr.mxu0 0.0
  %6386 = vmatpush1.msra.mxu0 %v815
  %6387 = vmatprep.subr.mxu0 0.0
  %6388 = vmatpush1.msra.mxu0 %v816
  %6389 = vmatprep.subr.mxu0 0.0
  %6390 = vmatpush1.msra.mxu0 %v817
  %6391 = vmatprep.subr.mxu0 0.0
  %6392 = vmatpush1.msra.mxu0 %v818
  %6393 = vmatprep.subr.mxu0 0.0
  %6394 = vmatpush1.msra.mxu0 %v819
  %6395 = vmatprep.subr.mxu0 0.0
  %6396 = vmatpush1.msra.mxu0 %v820
  %6397 = vmatprep.subr.mxu0 0.0
  %6398 = vmatpush1.msra.mxu0 %v821
  %6399 = vmatprep.subr.mxu0 0.0
  %6400 = vmatpush1.msra.mxu0 %v822
  %6401 = vmatprep.subr.mxu0 0.0
  %6402 = vmatpush1.msra.mxu0 %v823
  %6403 = vmatprep.subr.mxu0 0.0
  %6404 = vmatpush1.msra.mxu0 %v824
  %6405 = vmatprep.subr.mxu0 0.0
  %6406 = vmatpush1.msra.mxu0 %v825
  %6407 = vmatprep.subr.mxu0 0.0
  %6408 = vmatpush1.msra.mxu0 %v826
  %6409 = vmatprep.subr.mxu0 0.0
  %6410 = vmatpush1.msra.mxu0 %v827
  %6411 = vmatprep.subr.mxu0 0.0
  %6412 = vmatpush1.msra.mxu0 %v828
  %6413 = vmatprep.subr.mxu0 0.0
  %6414 = vmatpush1.msra.mxu0 %v829
  %6415 = vmatprep.subr.mxu0 0.0
  %6416 = vmatpush1.msra.mxu0 %v830
  %6417 = vmatprep.mubr.f32.mxu0 %v6318
  %6418 = vmatmul.mubr.f32.gmra.mrb[0].mxu0 %v6317
  %v6419 = vpop.f32.mrb[0].mxu0
  %v6420 = vadd.f32 0.0, %v6419
  %v6421 = vpop.f32.mrb[0].mxu0
  %6422 = vdwg.mxu0
  %6423 = vmatprep.subr.mxu0 0.0
  %6424 = vmatpush1.msra.mxu0 %v831
  %6425 = vmatprep.subr.mxu0 0.0
  %6426 = vmatpush1.msra.mxu0 %v832
  %6427 = vmatprep.subr.mxu0 0.0
  %6428 = vmatpush1.msra.mxu0 %v833
  %6429 = vmatprep.subr.mxu0 0.0
  %6430 = vmatpush1.msra.mxu0 %v834
  %6431 = vmatprep.subr.mxu0 0.0
  %6432 = vmatpush1.msra.mxu0 %v835
  %6433 = vmatprep.subr.mxu0 0.0
  %6434 = vmatpush1.msra.mxu0 %v836
  %6435 = vmatprep.subr.mxu0 0.0
  %6436 = vmatpush1.msra.mxu0 %v837
  %6437 = vmatprep.subr.mxu0 0.0
  %6438 = vmatpush1.msra.mxu0 %v838
  %6439 = vmatprep.subr.mxu0 0.0
  %6440 = vmatpush1.msra.mxu0 %v839
  %6441 = vmatprep.subr.mxu0 0.0
  %6442 = vmatpush1.msra.mxu0 %v840
  %6443 = vmatprep.subr.mxu0 0.0
  %6444 = vmatpush1.msra.mxu0 %v841
  %6445 = vmatprep.subr.mxu0 0.0
  %6446 = vmatpush1.msra.mxu0 %v842
  %6447 = vmatprep.subr.mxu0 0.0
  %6448 = vmatpush1.msra.mxu0 %v843
  %6449 = vmatprep.subr.mxu0 0.0
  %6450 = vmatpush1.msra.mxu0 %v844
  %6451 = vmatprep.subr.mxu0 0.0
  %6452 = vmatpush1.msra.mxu0 %v845
  %6453 = vmatprep.subr.mxu0 0.0
  %6454 = vmatpush1.msra.mxu0 %v846
  %6455 = vmatprep.subr.mxu0 0.0
  %6456 = vmatpush1.msra.mxu0 %v847
  %6457 = vmatprep.subr.mxu0 0.0
  %6458 = vmatpush1.msra.mxu0 %v848
  %6459 = vmatprep.subr.mxu0 0.0
  %6460 = vmatpush1.msra.mxu0 %v849
  %6461 = vmatprep.subr.mxu0 0.0
  %6462 = vmatpush1.msra.mxu0 %v850
  %6463 = vmatprep.subr.mxu0 0.0
  %6464 = vmatpush1.msra.mxu0 %v851
  %6465 = vmatprep.subr.mxu0 0.0
  %6466 = vmatpush1.msra.mxu0 %v852
  %6467 = vmatprep.subr.mxu0 0.0
  %6468 = vmatpush1.msra.mxu0 %v853
  %6469 = vmatprep.subr.mxu0 0.0
  %6470 = vmatpush1.msra.mxu0 %v854
  %6471 = vmatprep.subr.mxu0 0.0
  %6472 = vmatpush1.msra.mxu0 %v855
  %6473 = vmatprep.subr.mxu0 0.0
  %6474 = vmatpush1.msra.mxu0 %v856
  %6475 = vmatprep.subr.mxu0 0.0
  %6476 = vmatpush1.msra.mxu0 %v857
  %6477 = vmatprep.subr.mxu0 0.0
  %6478 = vmatpush1.msra.mxu0 %v858
  %6479 = vmatprep.subr.mxu0 0.0
  %6480 = vmatpush1.msra.mxu0 %v859
  %6481 = vmatprep.subr.mxu0 0.0
  %6482 = vmatpush1.msra.mxu0 %v860
  %6483 = vmatprep.subr.mxu0 0.0
  %6484 = vmatpush1.msra.mxu0 %v861
  %6485 = vmatprep.subr.mxu0 0.0
  %6486 = vmatpush1.msra.mxu0 %v862
  %6487 = vmatprep.mubr.f32.mxu0 %v6320
  %6488 = vmatmul.mubr.f32.gmra.mrb[0].mxu0 %v6319
  %v6489 = vpop.f32.mrb[0].mxu0
  %v6490 = vadd.f32 %v6420, %v6489
  %v6491 = vpop.f32.mrb[0].mxu0
  %6492 = vdwg.mxu0
  %v6495 = vunpack.c.l.s4 1983009808
  %v6496 = vunpack.c.0.s8 %v6495
  %v6497 = vlaneseq
  %v6498 = vshrl.u32 %v6497, 7
  %v6499 = vsub.s32 %v6496, %v6498
  %v6500 = vrot.slane %v6490, %v6499
  %6501 = vrot.lane.b32.xlu0 %v6500, 117
  %v6502 = vpop.permute.xlu0 %6501
  %vm6504 = vcmask 1025960
  %6505 = vst.msk [vmem:[#allocation3] sm:$0x3] %vm6504, %v6502
  %v6506 = vld [vmem:[#allocation2] sm:$0xf]
  %v6509 = vunpack.c.l.s4 1983009808
  %v6510 = vunpack.c.0.s8 %v6509
  %v6511 = vlaneseq
  %v6512 = vshrl.u32 %v6511, 7
  %v6513 = vsub.s32 %v6510, %v6512
  %v6514 = vrot.slane %v6506, %v6513
  %v6515 = vcombine.high %v6514, %v6514
  %6516 = vrot.lane.b32.xlu0 %v6514, 2
  %v6517 = vpop.permute.xlu0 %6516
  %6518 = vrot.lane.b32.xlu0 %v6515, 2
  %v6519 = vpop.permute.xlu0 %6518
  %vm6520 = vcmask 15360
  %v6521 = vsel %vm6520, %v6517, %v6519
  %v6522 = vsel %vm873, %v6521, 0
  %6524 = vmatprep.subr.mxu0 %v864
  %6525 = vmatpush1.msra.mxu0 %v863
  %6526 = vmatprep.subr.mxu0 %v882
  %6527 = vmatpush1.msra.mxu0 %v879
  %6528 = vmatprep.subr.mxu0 0.0
  %6529 = vmatpush1.msra.mxu0 0.0
  %6530 = vmatprep.subr.mxu0 0.0
  %6531 = vmatpush1.msra.mxu0 0.0
  %6532 = vmatprep.subr.mxu0 0.0
  %6533 = vmatpush1.msra.mxu0 0.0
  %6534 = vmatprep.subr.mxu0 0.0
  %6535 = vmatpush1.msra.mxu0 0.0
  %6536 = vmatprep.subr.mxu0 0.0
  %6537 = vmatpush1.msra.mxu0 0.0
  %6538 = vmatprep.subr.mxu0 0.0
  %6539 = vmatpush1.msra.mxu0 0.0
  %6540 = vmatprep.subr.mxu0 0.0
  %6541 = vmatpush1.msra.mxu0 0.0
  %6542 = vmatprep.subr.mxu0 0.0
  %6543 = vmatpush1.msra.mxu0 0.0
  %6544 = vmatprep.subr.mxu0 0.0
  %6545 = vmatpush1.msra.mxu0 0.0
  %6546 = vmatprep.subr.mxu0 0.0
  %6547 = vmatpush1.msra.mxu0 0.0
  %6548 = vmatprep.subr.mxu0 0.0
  %6549 = vmatpush1.msra.mxu0 0.0
  %6550 = vmatprep.subr.mxu0 0.0
  %6551 = vmatpush1.msra.mxu0 0.0
  %6552 = vmatprep.subr.mxu0 0.0
  %6553 = vmatpush1.msra.mxu0 0.0
  %6554 = vmatprep.subr.mxu0 0.0
  %6555 = vmatpush1.msra.mxu0 0.0
  %6556 = vmatprep.subr.mxu0 0.0
  %6557 = vmatpush1.msra.mxu0 0.0
  %6558 = vmatprep.subr.mxu0 0.0
  %6559 = vmatpush1.msra.mxu0 0.0
  %6560 = vmatprep.subr.mxu0 0.0
  %6561 = vmatpush1.msra.mxu0 0.0
  %6562 = vmatprep.subr.mxu0 0.0
  %6563 = vmatpush1.msra.mxu0 0.0
  %6564 = vmatprep.subr.mxu0 0.0
  %6565 = vmatpush1.msra.mxu0 0.0
  %6566 = vmatprep.subr.mxu0 0.0
  %6567 = vmatpush1.msra.mxu0 0.0
  %6568 = vmatprep.subr.mxu0 0.0
  %6569 = vmatpush1.msra.mxu0 0.0
  %6570 = vmatprep.subr.mxu0 0.0
  %6571 = vmatpush1.msra.mxu0 0.0
  %6572 = vmatprep.subr.mxu0 0.0
  %6573 = vmatpush1.msra.mxu0 0.0
  %6574 = vmatprep.subr.mxu0 0.0
  %6575 = vmatpush1.msra.mxu0 0.0
  %6576 = vmatprep.subr.mxu0 0.0
  %6577 = vmatpush1.msra.mxu0 0.0
  %6578 = vmatprep.subr.mxu0 0.0
  %6579 = vmatpush1.msra.mxu0 0.0
  %6580 = vmatprep.subr.mxu0 0.0
  %6581 = vmatpush1.msra.mxu0 0.0
  %6582 = vmatprep.subr.mxu0 0.0
  %6583 = vmatpush1.msra.mxu0 0.0
  %6584 = vmatprep.subr.mxu0 0.0
  %6585 = vmatpush1.msra.mxu0 0.0
  %6586 = vmatprep.subr.mxu0 0.0
  %6587 = vmatpush1.msra.mxu0 0.0
  %6588 = vmatprep.mubr.f32.mxu0 0.0
  %6589 = vmatmul.mubr.f32.gmra.mrb[0].mxu0 %v6522
  %v6590 = vpop.f32.mrb[0].mxu0
  %v6591 = vadd.f32 0.0, %v6590
  %v6592 = vpop.f32.mrb[0].mxu0
  %v6593 = vadd.f32 0.0, %v6592
  %6594 = vdwg.mxu0
  %6595 = vmatprep.subr.mxu0 %v866
  %6596 = vmatpush1.msra.mxu0 %v865
  %6597 = vmatprep.subr.mxu0 %v888
  %6598 = vmatpush1.msra.mxu0 %v885
  %6599 = vmatprep.subr.mxu0 0.0
  %6600 = vmatpush1.msra.mxu0 0.0
  %6601 = vmatprep.subr.mxu0 0.0
  %6602 = vmatpush1.msra.mxu0 0.0
  %6603 = vmatprep.subr.mxu0 0.0
  %6604 = vmatpush1.msra.mxu0 0.0
  %6605 = vmatprep.subr.mxu0 0.0
  %6606 = vmatpush1.msra.mxu0 0.0
  %6607 = vmatprep.subr.mxu0 0.0
  %6608 = vmatpush1.msra.mxu0 0.0
  %6609 = vmatprep.subr.mxu0 0.0
  %6610 = vmatpush1.msra.mxu0 0.0
  %6611 = vmatprep.subr.mxu0 0.0
  %6612 = vmatpush1.msra.mxu0 0.0
  %6613 = vmatprep.subr.mxu0 0.0
  %6614 = vmatpush1.msra.mxu0 0.0
  %6615 = vmatprep.subr.mxu0 0.0
  %6616 = vmatpush1.msra.mxu0 0.0
  %6617 = vmatprep.subr.mxu0 0.0
  %6618 = vmatpush1.msra.mxu0 0.0
  %6619 = vmatprep.subr.mxu0 0.0
  %6620 = vmatpush1.msra.mxu0 0.0
  %6621 = vmatprep.subr.mxu0 0.0
  %6622 = vmatpush1.msra.mxu0 0.0
  %6623 = vmatprep.subr.mxu0 0.0
  %6624 = vmatpush1.msra.mxu0 0.0
  %6625 = vmatprep.subr.mxu0 0.0
  %6626 = vmatpush1.msra.mxu0 0.0
  %6627 = vmatprep.subr.mxu0 0.0
  %6628 = vmatpush1.msra.mxu0 0.0
  %6629 = vmatprep.subr.mxu0 0.0
  %6630 = vmatpush1.msra.mxu0 0.0
  %6631 = vmatprep.subr.mxu0 0.0
  %6632 = vmatpush1.msra.mxu0 0.0
  %6633 = vmatprep.subr.mxu0 0.0
  %6634 = vmatpush1.msra.mxu0 0.0
  %6635 = vmatprep.subr.mxu0 0.0
  %6636 = vmatpush1.msra.mxu0 0.0
  %6637 = vmatprep.subr.mxu0 0.0
  %6638 = vmatpush1.msra.mxu0 0.0
  %6639 = vmatprep.subr.mxu0 0.0
  %6640 = vmatpush1.msra.mxu0 0.0
  %6641 = vmatprep.subr.mxu0 0.0
  %6642 = vmatpush1.msra.mxu0 0.0
  %6643 = vmatprep.subr.mxu0 0.0
  %6644 = vmatpush1.msra.mxu0 0.0
  %6645 = vmatprep.subr.mxu0 0.0
  %6646 = vmatpush1.msra.mxu0 0.0
  %6647 = vmatprep.subr.mxu0 0.0
  %6648 = vmatpush1.msra.mxu0 0.0
  %6649 = vmatprep.subr.mxu0 0.0
  %6650 = vmatpush1.msra.mxu0 0.0
  %6651 = vmatprep.subr.mxu0 0.0
  %6652 = vmatpush1.msra.mxu0 0.0
  %6653 = vmatprep.subr.mxu0 0.0
  %6654 = vmatpush1.msra.mxu0 0.0
  %6655 = vmatprep.subr.mxu0 0.0
  %6656 = vmatpush1.msra.mxu0 0.0
  %6657 = vmatprep.subr.mxu0 0.0
  %6658 = vmatpush1.msra.mxu0 0.0
  %6659 = vmatprep.mubr.f32.mxu0 0.0
  %6660 = vmatmul.mubr.f32.gmra.mrb[0].mxu0 %v6522
  %v6661 = vpop.f32.mrb[0].mxu0
  %v6662 = vadd.f32 0.0, %v6661
  %v6663 = vpop.f32.mrb[0].mxu0
  %v6664 = vadd.f32 0.0, %v6663
  %6665 = vdwg.mxu0
  %v6666 = vmul.f32 %v6591, 2.0
  %v6667 = vmul.f32 %v6593, 2.0
  %v6668 = vmul.f32 %v6662, 2.0
  %v6669 = vmul.f32 %v6664, 2.0
  %v6670 = vsub.f32 %v1040, %v6666
  %v6671 = vsub.f32 %v1044, %v6667
  %v6672 = vsub.f32 %v1048, %v6668
  %v6673 = vsub.f32 %v1052, %v6669
  %v6674 = vsel %vm795, %v6670, inf
  %v6675 = vsel %vm795, %v6671, inf
  %v6676 = vsel %vm795, %v6672, inf
  %v6677 = vsel %vm795, %v6673, inf
  %v6678 = vmin.f32 %v6674, %v6675
  %v6679 = vmin.f32 %v6676, %v6677
  %v6680 = vmin.f32 %v6678, %v6679
  %6681 = vmin.xlane.f32.xlu0 %v6680
  %v6682 = vpop.xlane.xlu0 %6681
  %vm6683 = vcmp.le.f32.partialorder %v6670, %v6682
  %vm6684 = vcmp.le.f32.partialorder %v6671, %v6682
  %vm6685 = vcmp.le.f32.partialorder %v6672, %v6682
  %vm6686 = vcmp.le.f32.partialorder %v6673, %v6682
  %v6687 = vsel %vm6683, %v1071, 512
  %v6688 = vsel %vm6684, %v1072, 512
  %v6689 = vsel %vm6685, %v1073, 512
  %v6690 = vsel %vm6686, %v1074, 512
  %v6691 = vsel %vm795, %v6687, 2147483647
  %v6692 = vsel %vm795, %v6688, 2147483647
  %v6693 = vsel %vm795, %v6689, 2147483647
  %v6694 = vsel %vm795, %v6690, 2147483647
  %vm6695 = vcmp.lt.s32.totalorder %v6691, %v6692
  %v6696 = vsel %vm6695, %v6691, %v6692
  %vm6697 = vcmp.lt.s32.totalorder %v6693, %v6694
  %v6698 = vsel %vm6697, %v6693, %v6694
  %vm6699 = vcmp.lt.s32.totalorder %v6696, %v6698
  %v6700 = vsel %vm6699, %v6696, %v6698
  %v6701 = vand.u32 %v6700, 65535
  %v6702 = vshra.s32 %v6700, 16
  %v6703 = vcvt.s32.f32 %v6701
  %v6704 = vcvt.s32.f32 %v6702
  %6705 = vmin.xlane.f32.xlu0 %v6704
  %v6706 = vpop.xlane.xlu0 %6705
  %vm6707 = vcmp.eq.f32.partialorder %v6704, %v6706
  %v6708 = vsel %vm6707, %v6703, inf
  %6709 = vmin.xlane.f32.xlu0 %v6708
  %v6710 = vpop.xlane.xlu0 %6709
  %v6711 = vcvt.f32.s32 %v6710
  %v6712 = vcvt.f32.s32 %v6706
  %v6713 = vshll.u32 %v6712, 16
  %v6714 = vadd.s32 %v6713, %v6711
  %vm6715 = vcmp.eq.s32.totalorder %v1071, %v6714
  %vm6716 = vcmp.eq.s32.totalorder %v1072, %v6714
  %vm6717 = vcmp.eq.s32.totalorder %v1073, %v6714
  %vm6718 = vcmp.eq.s32.totalorder %v1074, %v6714
  %v6719 = vsel %vm6715, 1, 0
  %v6720 = vsel %vm6716, 1, 0
  %v6721 = vsel %vm6717, 1, 0
  %v6722 = vsel %vm6718, 1, 0
  %v6723 = vcvt.s32.f32 %v6719
  %v6724 = vcvt.s32.f32 %v6720
  %v6725 = vcvt.s32.f32 %v6721
  %v6726 = vcvt.s32.f32 %v6722
  %v6727 = vsel %vm795, %v6723, 0.0
  %v6728 = vrot.slane %v6727, 4
  %v6729 = vadd.f32 %v6727, %v6728
  %v6730 = vrot.slane %v6729, 2
  %v6731 = vadd.f32 %v6729, %v6730
  %v6732 = vrot.slane %v6731, 1
  %v6733 = vadd.f32 %v6731, %v6732
  %v6734 = vsel %vm795, %v6724, 0.0
  %v6735 = vrot.slane %v6734, 4
  %v6736 = vadd.f32 %v6734, %v6735
  %v6737 = vrot.slane %v6736, 2
  %v6738 = vadd.f32 %v6736, %v6737
  %v6739 = vrot.slane %v6738, 1
  %v6740 = vadd.f32 %v6738, %v6739
  %v6741 = vsel %vm795, %v6725, 0.0
  %v6742 = vrot.slane %v6741, 4
  %v6743 = vadd.f32 %v6741, %v6742
  %v6744 = vrot.slane %v6743, 2
  %v6745 = vadd.f32 %v6743, %v6744
  %v6746 = vrot.slane %v6745, 1
  %v6747 = vadd.f32 %v6745, %v6746
  %v6748 = vsel %vm795, %v6726, 0.0
  %v6749 = vrot.slane %v6748, 4
  %v6750 = vadd.f32 %v6748, %v6749
  %v6751 = vrot.slane %v6750, 2
  %v6752 = vadd.f32 %v6750, %v6751
  %v6753 = vrot.slane %v6752, 1
  %v6754 = vadd.f32 %v6752, %v6753
  %v6755 = vadd.f32 %v6349, %v6733
  %v6756 = vadd.f32 %v6350, %v6740
  %v6757 = vadd.f32 %v6351, %v6747
  %v6758 = vadd.f32 %v6352, %v6754
  %6759 = vmatprep.subr.mxu0 0.0
  %6760 = vmatpush1.msra.mxu0 %v799
  %6761 = vmatprep.subr.mxu0 0.0
  %6762 = vmatpush1.msra.mxu0 %v800
  %6763 = vmatprep.subr.mxu0 0.0
  %6764 = vmatpush1.msra.mxu0 %v801
  %6765 = vmatprep.subr.mxu0 0.0
  %6766 = vmatpush1.msra.mxu0 %v802
  %6767 = vmatprep.subr.mxu0 0.0
  %6768 = vmatpush1.msra.mxu0 %v803
  %6769 = vmatprep.subr.mxu0 0.0
  %6770 = vmatpush1.msra.mxu0 %v804
  %6771 = vmatprep.subr.mxu0 0.0
  %6772 = vmatpush1.msra.mxu0 %v805
  %6773 = vmatprep.subr.mxu0 0.0
  %6774 = vmatpush1.msra.mxu0 %v806
  %6775 = vmatprep.subr.mxu0 0.0
  %6776 = vmatpush1.msra.mxu0 %v807
  %6777 = vmatprep.subr.mxu0 0.0
  %6778 = vmatpush1.msra.mxu0 %v808
  %6779 = vmatprep.subr.mxu0 0.0
  %6780 = vmatpush1.msra.mxu0 %v809
  %6781 = vmatprep.subr.mxu0 0.0
  %6782 = vmatpush1.msra.mxu0 %v810
  %6783 = vmatprep.subr.mxu0 0.0
  %6784 = vmatpush1.msra.mxu0 %v811
  %6785 = vmatprep.subr.mxu0 0.0
  %6786 = vmatpush1.msra.mxu0 %v812
  %6787 = vmatprep.subr.mxu0 0.0
  %6788 = vmatpush1.msra.mxu0 %v813
  %6789 = vmatprep.subr.mxu0 0.0
  %6790 = vmatpush1.msra.mxu0 %v814
  %6791 = vmatprep.subr.mxu0 0.0
  %6792 = vmatpush1.msra.mxu0 %v815
  %6793 = vmatprep.subr.mxu0 0.0
  %6794 = vmatpush1.msra.mxu0 %v816
  %6795 = vmatprep.subr.mxu0 0.0
  %6796 = vmatpush1.msra.mxu0 %v817
  %6797 = vmatprep.subr.mxu0 0.0
  %6798 = vmatpush1.msra.mxu0 %v818
  %6799 = vmatprep.subr.mxu0 0.0
  %6800 = vmatpush1.msra.mxu0 %v819
  %6801 = vmatprep.subr.mxu0 0.0
  %6802 = vmatpush1.msra.mxu0 %v820
  %6803 = vmatprep.subr.mxu0 0.0
  %6804 = vmatpush1.msra.mxu0 %v821
  %6805 = vmatprep.subr.mxu0 0.0
  %6806 = vmatpush1.msra.mxu0 %v822
  %6807 = vmatprep.subr.mxu0 0.0
  %6808 = vmatpush1.msra.mxu0 %v823
  %6809 = vmatprep.subr.mxu0 0.0
  %6810 = vmatpush1.msra.mxu0 %v824
  %6811 = vmatprep.subr.mxu0 0.0
  %6812 = vmatpush1.msra.mxu0 %v825
  %6813 = vmatprep.subr.mxu0 0.0
  %6814 = vmatpush1.msra.mxu0 %v826
  %6815 = vmatprep.subr.mxu0 0.0
  %6816 = vmatpush1.msra.mxu0 %v827
  %6817 = vmatprep.subr.mxu0 0.0
  %6818 = vmatpush1.msra.mxu0 %v828
  %6819 = vmatprep.subr.mxu0 0.0
  %6820 = vmatpush1.msra.mxu0 %v829
  %6821 = vmatprep.subr.mxu0 0.0
  %6822 = vmatpush1.msra.mxu0 %v830
  %6823 = vmatprep.mubr.f32.mxu0 %v6724
  %6824 = vmatmul.mubr.f32.gmra.mrb[0].mxu0 %v6723
  %v6825 = vpop.f32.mrb[0].mxu0
  %v6826 = vadd.f32 0.0, %v6825
  %v6827 = vpop.f32.mrb[0].mxu0
  %6828 = vdwg.mxu0
  %6829 = vmatprep.subr.mxu0 0.0
  %6830 = vmatpush1.msra.mxu0 %v831
  %6831 = vmatprep.subr.mxu0 0.0
  %6832 = vmatpush1.msra.mxu0 %v832
  %6833 = vmatprep.subr.mxu0 0.0
  %6834 = vmatpush1.msra.mxu0 %v833
  %6835 = vmatprep.subr.mxu0 0.0
  %6836 = vmatpush1.msra.mxu0 %v834
  %6837 = vmatprep.subr.mxu0 0.0
  %6838 = vmatpush1.msra.mxu0 %v835
  %6839 = vmatprep.subr.mxu0 0.0
  %6840 = vmatpush1.msra.mxu0 %v836
  %6841 = vmatprep.subr.mxu0 0.0
  %6842 = vmatpush1.msra.mxu0 %v837
  %6843 = vmatprep.subr.mxu0 0.0
  %6844 = vmatpush1.msra.mxu0 %v838
  %6845 = vmatprep.subr.mxu0 0.0
  %6846 = vmatpush1.msra.mxu0 %v839
  %6847 = vmatprep.subr.mxu0 0.0
  %6848 = vmatpush1.msra.mxu0 %v840
  %6849 = vmatprep.subr.mxu0 0.0
  %6850 = vmatpush1.msra.mxu0 %v841
  %6851 = vmatprep.subr.mxu0 0.0
  %6852 = vmatpush1.msra.mxu0 %v842
  %6853 = vmatprep.subr.mxu0 0.0
  %6854 = vmatpush1.msra.mxu0 %v843
  %6855 = vmatprep.subr.mxu0 0.0
  %6856 = vmatpush1.msra.mxu0 %v844
  %6857 = vmatprep.subr.mxu0 0.0
  %6858 = vmatpush1.msra.mxu0 %v845
  %6859 = vmatprep.subr.mxu0 0.0
  %6860 = vmatpush1.msra.mxu0 %v846
  %6861 = vmatprep.subr.mxu0 0.0
  %6862 = vmatpush1.msra.mxu0 %v847
  %6863 = vmatprep.subr.mxu0 0.0
  %6864 = vmatpush1.msra.mxu0 %v848
  %6865 = vmatprep.subr.mxu0 0.0
  %6866 = vmatpush1.msra.mxu0 %v849
  %6867 = vmatprep.subr.mxu0 0.0
  %6868 = vmatpush1.msra.mxu0 %v850
  %6869 = vmatprep.subr.mxu0 0.0
  %6870 = vmatpush1.msra.mxu0 %v851
  %6871 = vmatprep.subr.mxu0 0.0
  %6872 = vmatpush1.msra.mxu0 %v852
  %6873 = vmatprep.subr.mxu0 0.0
  %6874 = vmatpush1.msra.mxu0 %v853
  %6875 = vmatprep.subr.mxu0 0.0
  %6876 = vmatpush1.msra.mxu0 %v854
  %6877 = vmatprep.subr.mxu0 0.0
  %6878 = vmatpush1.msra.mxu0 %v855
  %6879 = vmatprep.subr.mxu0 0.0
  %6880 = vmatpush1.msra.mxu0 %v856
  %6881 = vmatprep.subr.mxu0 0.0
  %6882 = vmatpush1.msra.mxu0 %v857
  %6883 = vmatprep.subr.mxu0 0.0
  %6884 = vmatpush1.msra.mxu0 %v858
  %6885 = vmatprep.subr.mxu0 0.0
  %6886 = vmatpush1.msra.mxu0 %v859
  %6887 = vmatprep.subr.mxu0 0.0
  %6888 = vmatpush1.msra.mxu0 %v860
  %6889 = vmatprep.subr.mxu0 0.0
  %6890 = vmatpush1.msra.mxu0 %v861
  %6891 = vmatprep.subr.mxu0 0.0
  %6892 = vmatpush1.msra.mxu0 %v862
  %6893 = vmatprep.mubr.f32.mxu0 %v6726
  %6894 = vmatmul.mubr.f32.gmra.mrb[0].mxu0 %v6725
  %v6895 = vpop.f32.mrb[0].mxu0
  %v6896 = vadd.f32 %v6826, %v6895
  %v6897 = vpop.f32.mrb[0].mxu0
  %6898 = vdwg.mxu0
  %v6901 = vunpack.c.l.s4 1983009808
  %v6902 = vunpack.c.0.s8 %v6901
  %v6903 = vlaneseq
  %v6904 = vshrl.u32 %v6903, 7
  %v6905 = vsub.s32 %v6902, %v6904
  %v6906 = vrot.slane %v6896, %v6905
  %6907 = vrot.lane.b32.xlu0 %v6906, 126
  %v6908 = vpop.permute.xlu0 %6907
  %v6909 = vrot.slane %v6908, 6
  %vm6910 = vcmask 1031168
  %v6911 = vsel %vm6910, %v6909, %v6908
  %vm6913 = vcmask 1042416
  %vm6914 = vcmask 52226
  %vm6915 = vmor %vm6914, %vm6913
  %6916 = vst.msk [vmem:[#allocation3] sm:$0xf] %vm6915, %v6911
  %v6917 = vld [vmem:[#allocation2 + $0x2] sm:$0x3]
  %v6920 = vunpack.c.l.s4 1983009808
  %v6921 = vunpack.c.0.s8 %v6920
  %v6922 = vlaneseq
  %v6923 = vshrl.u32 %v6922, 7
  %v6924 = vsub.s32 %v6921, %v6923
  %v6925 = vrot.slane %v6917, %v6924
  %6926 = vrot.lane.b32.xlu0 %v6925, 121
  %v6927 = vpop.permute.xlu0 %6926
  %v6928 = vsel %vm873, %v6927, 0
  %6930 = vmatprep.subr.mxu0 %v864
  %6931 = vmatpush1.msra.mxu0 %v863
  %6932 = vmatprep.subr.mxu0 %v882
  %6933 = vmatpush1.msra.mxu0 %v879
  %6934 = vmatprep.subr.mxu0 0.0
  %6935 = vmatpush1.msra.mxu0 0.0
  %6936 = vmatprep.subr.mxu0 0.0
  %6937 = vmatpush1.msra.mxu0 0.0
  %6938 = vmatprep.subr.mxu0 0.0
  %6939 = vmatpush1.msra.mxu0 0.0
  %6940 = vmatprep.subr.mxu0 0.0
  %6941 = vmatpush1.msra.mxu0 0.0
  %6942 = vmatprep.subr.mxu0 0.0
  %6943 = vmatpush1.msra.mxu0 0.0
  %6944 = vmatprep.subr.mxu0 0.0
  %6945 = vmatpush1.msra.mxu0 0.0
  %6946 = vmatprep.subr.mxu0 0.0
  %6947 = vmatpush1.msra.mxu0 0.0
  %6948 = vmatprep.subr.mxu0 0.0
  %6949 = vmatpush1.msra.mxu0 0.0
  %6950 = vmatprep.subr.mxu0 0.0
  %6951 = vmatpush1.msra.mxu0 0.0
  %6952 = vmatprep.subr.mxu0 0.0
  %6953 = vmatpush1.msra.mxu0 0.0
  %6954 = vmatprep.subr.mxu0 0.0
  %6955 = vmatpush1.msra.mxu0 0.0
  %6956 = vmatprep.subr.mxu0 0.0
  %6957 = vmatpush1.msra.mxu0 0.0
  %6958 = vmatprep.subr.mxu0 0.0
  %6959 = vmatpush1.msra.mxu0 0.0
  %6960 = vmatprep.subr.mxu0 0.0
  %6961 = vmatpush1.msra.mxu0 0.0
  %6962 = vmatprep.subr.mxu0 0.0
  %6963 = vmatpush1.msra.mxu0 0.0
  %6964 = vmatprep.subr.mxu0 0.0
  %6965 = vmatpush1.msra.mxu0 0.0
  %6966 = vmatprep.subr.mxu0 0.0
  %6967 = vmatpush1.msra.mxu0 0.0
  %6968 = vmatprep.subr.mxu0 0.0
  %6969 = vmatpush1.msra.mxu0 0.0
  %6970 = vmatprep.subr.mxu0 0.0
  %6971 = vmatpush1.msra.mxu0 0.0
  %6972 = vmatprep.subr.mxu0 0.0
  %6973 = vmatpush1.msra.mxu0 0.0
  %6974 = vmatprep.subr.mxu0 0.0
  %6975 = vmatpush1.msra.mxu0 0.0
  %6976 = vmatprep.subr.mxu0 0.0
  %6977 = vmatpush1.msra.mxu0 0.0
  %6978 = vmatprep.subr.mxu0 0.0
  %6979 = vmatpush1.msra.mxu0 0.0
  %6980 = vmatprep.subr.mxu0 0.0
  %6981 = vmatpush1.msra.mxu0 0.0
  %6982 = vmatprep.subr.mxu0 0.0
  %6983 = vmatpush1.msra.mxu0 0.0
  %6984 = vmatprep.subr.mxu0 0.0
  %6985 = vmatpush1.msra.mxu0 0.0
  %6986 = vmatprep.subr.mxu0 0.0
  %6987 = vmatpush1.msra.mxu0 0.0
  %6988 = vmatprep.subr.mxu0 0.0
  %6989 = vmatpush1.msra.mxu0 0.0
  %6990 = vmatprep.subr.mxu0 0.0
  %6991 = vmatpush1.msra.mxu0 0.0
  %6992 = vmatprep.subr.mxu0 0.0
  %6993 = vmatpush1.msra.mxu0 0.0
  %6994 = vmatprep.mubr.f32.mxu0 0.0
  %6995 = vmatmul.mubr.f32.gmra.mrb[0].mxu0 %v6928
  %v6996 = vpop.f32.mrb[0].mxu0
  %v6997 = vadd.f32 0.0, %v6996
  %v6998 = vpop.f32.mrb[0].mxu0
  %v6999 = vadd.f32 0.0, %v6998
  %7000 = vdwg.mxu0
  %7001 = vmatprep.subr.mxu0 %v866
  %7002 = vmatpush1.msra.mxu0 %v865
  %7003 = vmatprep.subr.mxu0 %v888
  %7004 = vmatpush1.msra.mxu0 %v885
  %7005 = vmatprep.subr.mxu0 0.0
  %7006 = vmatpush1.msra.mxu0 0.0
  %7007 = vmatprep.subr.mxu0 0.0
  %7008 = vmatpush1.msra.mxu0 0.0
  %7009 = vmatprep.subr.mxu0 0.0
  %7010 = vmatpush1.msra.mxu0 0.0
  %7011 = vmatprep.subr.mxu0 0.0
  %7012 = vmatpush1.msra.mxu0 0.0
  %7013 = vmatprep.subr.mxu0 0.0
  %7014 = vmatpush1.msra.mxu0 0.0
  %7015 = vmatprep.subr.mxu0 0.0
  %7016 = vmatpush1.msra.mxu0 0.0
  %7017 = vmatprep.subr.mxu0 0.0
  %7018 = vmatpush1.msra.mxu0 0.0
  %7019 = vmatprep.subr.mxu0 0.0
  %7020 = vmatpush1.msra.mxu0 0.0
  %7021 = vmatprep.subr.mxu0 0.0
  %7022 = vmatpush1.msra.mxu0 0.0
  %7023 = vmatprep.subr.mxu0 0.0
  %7024 = vmatpush1.msra.mxu0 0.0
  %7025 = vmatprep.subr.mxu0 0.0
  %7026 = vmatpush1.msra.mxu0 0.0
  %7027 = vmatprep.subr.mxu0 0.0
  %7028 = vmatpush1.msra.mxu0 0.0
  %7029 = vmatprep.subr.mxu0 0.0
  %7030 = vmatpush1.msra.mxu0 0.0
  %7031 = vmatprep.subr.mxu0 0.0
  %7032 = vmatpush1.msra.mxu0 0.0
  %7033 = vmatprep.subr.mxu0 0.0
  %7034 = vmatpush1.msra.mxu0 0.0
  %7035 = vmatprep.subr.mxu0 0.0
  %7036 = vmatpush1.msra.mxu0 0.0
  %7037 = vmatprep.subr.mxu0 0.0
  %7038 = vmatpush1.msra.mxu0 0.0
  %7039 = vmatprep.subr.mxu0 0.0
  %7040 = vmatpush1.msra.mxu0 0.0
  %7041 = vmatprep.subr.mxu0 0.0
  %7042 = vmatpush1.msra.mxu0 0.0
  %7043 = vmatprep.subr.mxu0 0.0
  %7044 = vmatpush1.msra.mxu0 0.0
  %7045 = vmatprep.subr.mxu0 0.0
  %7046 = vmatpush1.msra.mxu0 0.0
  %7047 = vmatprep.subr.mxu0 0.0
  %7048 = vmatpush1.msra.mxu0 0.0
  %7049 = vmatprep.subr.mxu0 0.0
  %7050 = vmatpush1.msra.mxu0 0.0
  %7051 = vmatprep.subr.mxu0 0.0
  %7052 = vmatpush1.msra.mxu0 0.0
  %7053 = vmatprep.subr.mxu0 0.0
  %7054 = vmatpush1.msra.mxu0 0.0
  %7055 = vmatprep.subr.mxu0 0.0
  %7056 = vmatpush1.msra.mxu0 0.0
  %7057 = vmatprep.subr.mxu0 0.0
  %7058 = vmatpush1.msra.mxu0 0.0
  %7059 = vmatprep.subr.mxu0 0.0
  %7060 = vmatpush1.msra.mxu0 0.0
  %7061 = vmatprep.subr.mxu0 0.0
  %7062 = vmatpush1.msra.mxu0 0.0
  %7063 = vmatprep.subr.mxu0 0.0
  %7064 = vmatpush1.msra.mxu0 0.0
  %7065 = vmatprep.mubr.f32.mxu0 0.0
  %7066 = vmatmul.mubr.f32.gmra.mrb[0].mxu0 %v6928
  %v7067 = vpop.f32.mrb[0].mxu0
  %v7068 = vadd.f32 0.0, %v7067
  %v7069 = vpop.f32.mrb[0].mxu0
  %v7070 = vadd.f32 0.0, %v7069
  %7071 = vdwg.mxu0
  %v7072 = vmul.f32 %v6997, 2.0
  %v7073 = vmul.f32 %v6999, 2.0
  %v7074 = vmul.f32 %v7068, 2.0
  %v7075 = vmul.f32 %v7070, 2.0
  %v7076 = vsub.f32 %v1040, %v7072
  %v7077 = vsub.f32 %v1044, %v7073
  %v7078 = vsub.f32 %v1048, %v7074
  %v7079 = vsub.f32 %v1052, %v7075
  %v7080 = vsel %vm795, %v7076, inf
  %v7081 = vsel %vm795, %v7077, inf
  %v7082 = vsel %vm795, %v7078, inf
  %v7083 = vsel %vm795, %v7079, inf
  %v7084 = vmin.f32 %v7080, %v7081
  %v7085 = vmin.f32 %v7082, %v7083
  %v7086 = vmin.f32 %v7084, %v7085
  %7087 = vmin.xlane.f32.xlu0 %v7086
  %v7088 = vpop.xlane.xlu0 %7087
  %vm7089 = vcmp.le.f32.partialorder %v7076, %v7088
  %vm7090 = vcmp.le.f32.partialorder %v7077, %v7088
  %vm7091 = vcmp.le.f32.partialorder %v7078, %v7088
  %vm7092 = vcmp.le.f32.partialorder %v7079, %v7088
  %v7093 = vsel %vm7089, %v1071, 512
  %v7094 = vsel %vm7090, %v1072, 512
  %v7095 = vsel %vm7091, %v1073, 512
  %v7096 = vsel %vm7092, %v1074, 512
  %v7097 = vsel %vm795, %v7093, 2147483647
  %v7098 = vsel %vm795, %v7094, 2147483647
  %v7099 = vsel %vm795, %v7095, 2147483647
  %v7100 = vsel %vm795, %v7096, 2147483647
  %vm7101 = vcmp.lt.s32.totalorder %v7097, %v7098
  %v7102 = vsel %vm7101, %v7097, %v7098
  %vm7103 = vcmp.lt.s32.totalorder %v7099, %v7100
  %v7104 = vsel %vm7103, %v7099, %v7100
  %vm7105 = vcmp.lt.s32.totalorder %v7102, %v7104
  %v7106 = vsel %vm7105, %v7102, %v7104
  %v7107 = vand.u32 %v7106, 65535
  %v7108 = vshra.s32 %v7106, 16
  %v7109 = vcvt.s32.f32 %v7107
  %v7110 = vcvt.s32.f32 %v7108
  %7111 = vmin.xlane.f32.xlu0 %v7110
  %v7112 = vpop.xlane.xlu0 %7111
  %vm7113 = vcmp.eq.f32.partialorder %v7110, %v7112
  %v7114 = vsel %vm7113, %v7109, inf
  %7115 = vmin.xlane.f32.xlu0 %v7114
  %v7116 = vpop.xlane.xlu0 %7115
  %v7117 = vcvt.f32.s32 %v7116
  %v7118 = vcvt.f32.s32 %v7112
  %v7119 = vshll.u32 %v7118, 16
  %v7120 = vadd.s32 %v7119, %v7117
  %vm7121 = vcmp.eq.s32.totalorder %v1071, %v7120
  %vm7122 = vcmp.eq.s32.totalorder %v1072, %v7120
  %vm7123 = vcmp.eq.s32.totalorder %v1073, %v7120
  %vm7124 = vcmp.eq.s32.totalorder %v1074, %v7120
  %v7125 = vsel %vm7121, 1, 0
  %v7126 = vsel %vm7122, 1, 0
  %v7127 = vsel %vm7123, 1, 0
  %v7128 = vsel %vm7124, 1, 0
  %v7129 = vcvt.s32.f32 %v7125
  %v7130 = vcvt.s32.f32 %v7126
  %v7131 = vcvt.s32.f32 %v7127
  %v7132 = vcvt.s32.f32 %v7128
  %v7133 = vsel %vm795, %v7129, 0.0
  %v7134 = vrot.slane %v7133, 4
  %v7135 = vadd.f32 %v7133, %v7134
  %v7136 = vrot.slane %v7135, 2
  %v7137 = vadd.f32 %v7135, %v7136
  %v7138 = vrot.slane %v7137, 1
  %v7139 = vadd.f32 %v7137, %v7138
  %v7140 = vsel %vm795, %v7130, 0.0
  %v7141 = vrot.slane %v7140, 4
  %v7142 = vadd.f32 %v7140, %v7141
  %v7143 = vrot.slane %v7142, 2
  %v7144 = vadd.f32 %v7142, %v7143
  %v7145 = vrot.slane %v7144, 1
  %v7146 = vadd.f32 %v7144, %v7145
  %v7147 = vsel %vm795, %v7131, 0.0
  %v7148 = vrot.slane %v7147, 4
  %v7149 = vadd.f32 %v7147, %v7148
  %v7150 = vrot.slane %v7149, 2
  %v7151 = vadd.f32 %v7149, %v7150
  %v7152 = vrot.slane %v7151, 1
  %v7153 = vadd.f32 %v7151, %v7152
  %v7154 = vsel %vm795, %v7132, 0.0
  %v7155 = vrot.slane %v7154, 4
  %v7156 = vadd.f32 %v7154, %v7155
  %v7157 = vrot.slane %v7156, 2
  %v7158 = vadd.f32 %v7156, %v7157
  %v7159 = vrot.slane %v7158, 1
  %v7160 = vadd.f32 %v7158, %v7159
  %v7161 = vadd.f32 %v6755, %v7139
  %v7162 = vadd.f32 %v6756, %v7146
  %v7163 = vadd.f32 %v6757, %v7153
  %v7164 = vadd.f32 %v6758, %v7160
  %7165 = vmatprep.subr.mxu0 0.0
  %7166 = vmatpush1.msra.mxu0 %v799
  %7167 = vmatprep.subr.mxu0 0.0
  %7168 = vmatpush1.msra.mxu0 %v800
  %7169 = vmatprep.subr.mxu0 0.0
  %7170 = vmatpush1.msra.mxu0 %v801
  %7171 = vmatprep.subr.mxu0 0.0
  %7172 = vmatpush1.msra.mxu0 %v802
  %7173 = vmatprep.subr.mxu0 0.0
  %7174 = vmatpush1.msra.mxu0 %v803
  %7175 = vmatprep.subr.mxu0 0.0
  %7176 = vmatpush1.msra.mxu0 %v804
  %7177 = vmatprep.subr.mxu0 0.0
  %7178 = vmatpush1.msra.mxu0 %v805
  %7179 = vmatprep.subr.mxu0 0.0
  %7180 = vmatpush1.msra.mxu0 %v806
  %7181 = vmatprep.subr.mxu0 0.0
  %7182 = vmatpush1.msra.mxu0 %v807
  %7183 = vmatprep.subr.mxu0 0.0
  %7184 = vmatpush1.msra.mxu0 %v808
  %7185 = vmatprep.subr.mxu0 0.0
  %7186 = vmatpush1.msra.mxu0 %v809
  %7187 = vmatprep.subr.mxu0 0.0
  %7188 = vmatpush1.msra.mxu0 %v810
  %7189 = vmatprep.subr.mxu0 0.0
  %7190 = vmatpush1.msra.mxu0 %v811
  %7191 = vmatprep.subr.mxu0 0.0
  %7192 = vmatpush1.msra.mxu0 %v812
  %7193 = vmatprep.subr.mxu0 0.0
  %7194 = vmatpush1.msra.mxu0 %v813
  %7195 = vmatprep.subr.mxu0 0.0
  %7196 = vmatpush1.msra.mxu0 %v814
  %7197 = vmatprep.subr.mxu0 0.0
  %7198 = vmatpush1.msra.mxu0 %v815
  %7199 = vmatprep.subr.mxu0 0.0
  %7200 = vmatpush1.msra.mxu0 %v816
  %7201 = vmatprep.subr.mxu0 0.0
  %7202 = vmatpush1.msra.mxu0 %v817
  %7203 = vmatprep.subr.mxu0 0.0
  %7204 = vmatpush1.msra.mxu0 %v818
  %7205 = vmatprep.subr.mxu0 0.0
  %7206 = vmatpush1.msra.mxu0 %v819
  %7207 = vmatprep.subr.mxu0 0.0
  %7208 = vmatpush1.msra.mxu0 %v820
  %7209 = vmatprep.subr.mxu0 0.0
  %7210 = vmatpush1.msra.mxu0 %v821
  %7211 = vmatprep.subr.mxu0 0.0
  %7212 = vmatpush1.msra.mxu0 %v822
  %7213 = vmatprep.subr.mxu0 0.0
  %7214 = vmatpush1.msra.mxu0 %v823
  %7215 = vmatprep.subr.mxu0 0.0
  %7216 = vmatpush1.msra.mxu0 %v824
  %7217 = vmatprep.subr.mxu0 0.0
  %7218 = vmatpush1.msra.mxu0 %v825
  %7219 = vmatprep.subr.mxu0 0.0
  %7220 = vmatpush1.msra.mxu0 %v826
  %7221 = vmatprep.subr.mxu0 0.0
  %7222 = vmatpush1.msra.mxu0 %v827
  %7223 = vmatprep.subr.mxu0 0.0
  %7224 = vmatpush1.msra.mxu0 %v828
  %7225 = vmatprep.subr.mxu0 0.0
  %7226 = vmatpush1.msra.mxu0 %v829
  %7227 = vmatprep.subr.mxu0 0.0
  %7228 = vmatpush1.msra.mxu0 %v830
  %7229 = vmatprep.mubr.f32.mxu0 %v7130
  %7230 = vmatmul.mubr.f32.gmra.mrb[0].mxu0 %v7129
  %v7231 = vpop.f32.mrb[0].mxu0
  %v7232 = vadd.f32 0.0, %v7231
  %v7233 = vpop.f32.mrb[0].mxu0
  %7234 = vdwg.mxu0
  %7235 = vmatprep.subr.mxu0 0.0
  %7236 = vmatpush1.msra.mxu0 %v831
  %7237 = vmatprep.subr.mxu0 0.0
  %7238 = vmatpush1.msra.mxu0 %v832
  %7239 = vmatprep.subr.mxu0 0.0
  %7240 = vmatpush1.msra.mxu0 %v833
  %7241 = vmatprep.subr.mxu0 0.0
  %7242 = vmatpush1.msra.mxu0 %v834
  %7243 = vmatprep.subr.mxu0 0.0
  %7244 = vmatpush1.msra.mxu0 %v835
  %7245 = vmatprep.subr.mxu0 0.0
  %7246 = vmatpush1.msra.mxu0 %v836
  %7247 = vmatprep.subr.mxu0 0.0
  %7248 = vmatpush1.msra.mxu0 %v837
  %7249 = vmatprep.subr.mxu0 0.0
  %7250 = vmatpush1.msra.mxu0 %v838
  %7251 = vmatprep.subr.mxu0 0.0
  %7252 = vmatpush1.msra.mxu0 %v839
  %7253 = vmatprep.subr.mxu0 0.0
  %7254 = vmatpush1.msra.mxu0 %v840
  %7255 = vmatprep.subr.mxu0 0.0
  %7256 = vmatpush1.msra.mxu0 %v841
  %7257 = vmatprep.subr.mxu0 0.0
  %7258 = vmatpush1.msra.mxu0 %v842
  %7259 = vmatprep.subr.mxu0 0.0
  %7260 = vmatpush1.msra.mxu0 %v843
  %7261 = vmatprep.subr.mxu0 0.0
  %7262 = vmatpush1.msra.mxu0 %v844
  %7263 = vmatprep.subr.mxu0 0.0
  %7264 = vmatpush1.msra.mxu0 %v845
  %7265 = vmatprep.subr.mxu0 0.0
  %7266 = vmatpush1.msra.mxu0 %v846
  %7267 = vmatprep.subr.mxu0 0.0
  %7268 = vmatpush1.msra.mxu0 %v847
  %7269 = vmatprep.subr.mxu0 0.0
  %7270 = vmatpush1.msra.mxu0 %v848
  %7271 = vmatprep.subr.mxu0 0.0
  %7272 = vmatpush1.msra.mxu0 %v849
  %7273 = vmatprep.subr.mxu0 0.0
  %7274 = vmatpush1.msra.mxu0 %v850
  %7275 = vmatprep.subr.mxu0 0.0
  %7276 = vmatpush1.msra.mxu0 %v851
  %7277 = vmatprep.subr.mxu0 0.0
  %7278 = vmatpush1.msra.mxu0 %v852
  %7279 = vmatprep.subr.mxu0 0.0
  %7280 = vmatpush1.msra.mxu0 %v853
  %7281 = vmatprep.subr.mxu0 0.0
  %7282 = vmatpush1.msra.mxu0 %v854
  %7283 = vmatprep.subr.mxu0 0.0
  %7284 = vmatpush1.msra.mxu0 %v855
  %7285 = vmatprep.subr.mxu0 0.0
  %7286 = vmatpush1.msra.mxu0 %v856
  %7287 = vmatprep.subr.mxu0 0.0
  %7288 = vmatpush1.msra.mxu0 %v857
  %7289 = vmatprep.subr.mxu0 0.0
  %7290 = vmatpush1.msra.mxu0 %v858
  %7291 = vmatprep.subr.mxu0 0.0
  %7292 = vmatpush1.msra.mxu0 %v859
  %7293 = vmatprep.subr.mxu0 0.0
  %7294 = vmatpush1.msra.mxu0 %v860
  %7295 = vmatprep.subr.mxu0 0.0
  %7296 = vmatpush1.msra.mxu0 %v861
  %7297 = vmatprep.subr.mxu0 0.0
  %7298 = vmatpush1.msra.mxu0 %v862
  %7299 = vmatprep.mubr.f32.mxu0 %v7132
  %7300 = vmatmul.mubr.f32.gmra.mrb[0].mxu0 %v7131
  %v7301 = vpop.f32.mrb[0].mxu0
  %v7302 = vadd.f32 %v7232, %v7301
  %v7303 = vpop.f32.mrb[0].mxu0
  %7304 = vdwg.mxu0
  %v7307 = vunpack.c.l.s4 1983009808
  %v7308 = vunpack.c.0.s8 %v7307
  %v7309 = vlaneseq
  %v7310 = vshrl.u32 %v7309, 7
  %v7311 = vsub.s32 %v7308, %v7310
  %v7312 = vrot.slane %v7302, %v7311
  %7313 = vrot.lane.b32.xlu0 %v7312, 7
  %v7314 = vpop.permute.xlu0 %7313
  %vm7316 = vcmask 123960
  %7317 = vst.msk [vmem:[#allocation3 + $0x2] sm:$0x3] %vm7316, %v7314
  %v7318 = vld [vmem:[#allocation3] sm:$0xf]
  %v7319 = vsub.f32 %v7318, %v793
  %v7320 = vmul.f32 %v7319, %v7319
  %v7323 = vunpack.c.l.s4 1983009808
  %v7324 = vunpack.c.0.s8 %v7323
  %v7325 = vlaneseq
  %v7326 = vshrl.u32 %v7325, 7
  %v7327 = vsub.s32 %v7324, %v7326
  %v7328 = vrot.slane %v7320, %v7327
  %v7329 = vcombine.high %v7328, %v7328
  %v7332 = vsel %vm795, %v7328, 0.0
  %vm7333 = vcmask 123904
  %v7334 = vsel %vm7333, %v7329, 0.0
  %v7335 = vadd.f32 %v7332, %v7334
  %7336 = vadd.xlane.f32.xlu0 %v7335
  %v7337 = vpop.xlane.xlu0 %7336
  %v7338 = vrot.slane %v7337, 4
  %v7339 = vadd.f32 %v7337, %v7338
  %v7340 = vrot.slane %v7339, 2
  %v7341 = vadd.f32 %v7339, %v7340
  %v7342 = vrot.slane %v7341, 1
  %v7343 = vadd.f32 %v7341, %v7342
  %s7344 = vtos %v7343
  %v7345 = vstv %s7344
  %v7346 = vmul.f32 %v7345, 0.00086805556
  %v7347 = vmul.f32 %v7161, 0.03125
  %v7348 = vmul.f32 %v7162, 0.03125
  %v7349 = vmul.f32 %v7163, 0.03125
  %v7350 = vmul.f32 %v7164, 0.03125
  %v7351 = vadd.f32 %v7347, 1e-10
  %v7352 = vadd.f32 %v7348, 1e-10
  %v7353 = vadd.f32 %v7349, 1e-10
  %v7354 = vadd.f32 %v7350, 1e-10
  %v7355 = vlog2.pop %v7351
  %v7356 = vmul.f32 %v7355, 0.6931472
  %v7357 = vlog2.pop %v7352
  %v7358 = vmul.f32 %v7357, 0.6931472
  %v7359 = vlog2.pop %v7353
  %v7360 = vmul.f32 %v7359, 0.6931472
  %v7361 = vlog2.pop %v7354
  %v7362 = vmul.f32 %v7361, 0.6931472
  %v7363 = vmul.f32 %v7347, %v7356
  %v7364 = vmul.f32 %v7348, %v7358
  %v7365 = vmul.f32 %v7349, %v7360
  %v7366 = vmul.f32 %v7350, %v7362
  %v7367 = vadd.f32 %v7363, %v7364
  %v7368 = vadd.f32 %v7367, %v7365
  %v7369 = vadd.f32 %v7368, %v7366
  %7370 = vadd.xlane.f32.xlu0 %v7369
  %v7371 = vpop.xlane.xlu0 %7370
  %v7372 = vsub.f32 0.0, %v7371
  %v7373 = vmul.f32 %v7372, 1.442695
  %v7374 = vpow.pop %v7373
  %v7377 = vunpack.c.l.s4 1983009808
  %v7378 = vunpack.c.0.s8 %v7377
  %v7379 = vlaneseq
  %v7380 = vshrl.u32 %v7379, 7
  %v7381 = vsub.s32 %v7378, %v7380
  %v7382 = vrot.slane %v7318, %v7381
  %v7383 = vcombine.high %v7382, %v7382
  %v7386 = vpack.c.bf16 %v7382, %v7382
  %v7387 = vpack.c.bf16 %v7383, %v7383
  %v7388 = vld [vmem:[%s6] sm:$0xff]
  %v7389 = vld [vmem:[%s6 + $0x8] sm:$0xff]
  %v7390 = vld [vmem:[%s6 + $0x10] sm:$0xff]
  %v7391 = vld [vmem:[%s6 + $0x18] sm:$0xff]
  %v7392 = vld [vmem:[%s6 + $0x20] sm:$0xff]
  %v7393 = vld [vmem:[%s6 + $0x28] sm:$0xff]
  %v7394 = vld [vmem:[%s6 + $0x30] sm:$0xff]
  %v7395 = vld [vmem:[%s6 + $0x38] sm:$0xff]
  %v7396 = vld [vmem:[%s6 + $0x40] sm:$0xff]
  %v7397 = vld [vmem:[%s6 + $0x48] sm:$0xff]
  %v7398 = vld [vmem:[%s6 + $0x50] sm:$0xff]
  %v7399 = vld [vmem:[%s6 + $0x58] sm:$0xff]
  %v7400 = vld [vmem:[%s6 + $0x60] sm:$0xff]
  %v7401 = vld [vmem:[%s6 + $0x68] sm:$0xff]
  %v7402 = vld [vmem:[%s6 + $0x70] sm:$0xff]
  %v7403 = vld [vmem:[%s6 + $0x78] sm:$0xff]
  %v7404 = vld [vmem:[%s6 + $0x80] sm:$0xff]
  %v7405 = vld [vmem:[%s6 + $0x88] sm:$0xff]
  %v7406 = vld [vmem:[%s6 + $0x90] sm:$0xff]
  %v7407 = vld [vmem:[%s6 + $0x98] sm:$0xff]
  %v7408 = vld [vmem:[%s6 + $0xa0] sm:$0xff]
  %v7409 = vld [vmem:[%s6 + $0xa8] sm:$0xff]
  %v7410 = vld [vmem:[%s6 + $0xb0] sm:$0xff]
  %v7411 = vld [vmem:[%s6 + $0xb8] sm:$0xff]
  %v7412 = vld [vmem:[%s6 + $0xc0] sm:$0xff]
  %v7413 = vld [vmem:[%s6 + $0xc8] sm:$0xff]
  %v7414 = vld [vmem:[%s6 + $0xd0] sm:$0xff]
  %v7415 = vld [vmem:[%s6 + $0xd8] sm:$0xff]
  %v7416 = vld [vmem:[%s6 + $0xe0] sm:$0xff]
  %v7417 = vld [vmem:[%s6 + $0xe8] sm:$0xff]
  %v7418 = vld [vmem:[%s6 + $0xf0] sm:$0xff]
  %v7419 = vld [vmem:[%s6 + $0xf8] sm:$0xff]
  %v7420 = vld [vmem:[%s6 + $0x100] sm:$0xff]
  %v7421 = vld [vmem:[%s6 + $0x108] sm:$0xff]
  %v7422 = vld [vmem:[%s6 + $0x110] sm:$0xff]
  %v7423 = vld [vmem:[%s6 + $0x118] sm:$0xff]
  %v7424 = vld [vmem:[%s6 + $0x120] sm:$0xff]
  %v7425 = vld [vmem:[%s6 + $0x128] sm:$0xff]
  %v7426 = vld [vmem:[%s6 + $0x130] sm:$0xff]
  %v7427 = vld [vmem:[%s6 + $0x138] sm:$0xff]
  %v7428 = vld [vmem:[%s6 + $0x140] sm:$0xff]
  %v7429 = vld [vmem:[%s6 + $0x148] sm:$0xff]
  %v7430 = vld [vmem:[%s6 + $0x150] sm:$0xff]
  %v7431 = vld [vmem:[%s6 + $0x158] sm:$0xff]
  %v7432 = vld [vmem:[%s6 + $0x160] sm:$0xff]
  %v7433 = vld [vmem:[%s6 + $0x168] sm:$0xff]
  %v7434 = vld [vmem:[%s6 + $0x170] sm:$0xff]
  %v7435 = vld [vmem:[%s6 + $0x178] sm:$0xff]
  %v7436 = vld [vmem:[%s6 + $0x180] sm:$0xff]
  %v7437 = vld [vmem:[%s6 + $0x188] sm:$0xff]
  %v7438 = vld [vmem:[%s6 + $0x190] sm:$0xff]
  %v7439 = vld [vmem:[%s6 + $0x198] sm:$0xff]
  %v7440 = vld [vmem:[%s6 + $0x1a0] sm:$0xff]
  %v7441 = vld [vmem:[%s6 + $0x1a8] sm:$0xff]
  %v7442 = vld [vmem:[%s7] sm:$0x3f]
  %v7444 = vlaneseq
  %v7445 = vshrl.u32 %v7444, 7
  %v7446 = vsub.s32 0, %v7445
  %v7447 = vrot.slane %v7442, %v7446
  %v7448 = vlaneseq
  %v7449 = vshrl.u32 %v7448, 7
  %v7450 = vsub.s32 1, %v7449
  %v7451 = vrot.slane %v7442, %v7450
  %v7452 = vlaneseq
  %v7453 = vshrl.u32 %v7452, 7
  %v7454 = vsub.s32 2, %v7453
  %v7455 = vrot.slane %v7442, %v7454
  %v7456 = vlaneseq
  %v7457 = vshrl.u32 %v7456, 7
  %v7458 = vsub.s32 3, %v7457
  %v7459 = vrot.slane %v7442, %v7458
  %v7460 = vlaneseq
  %v7461 = vshrl.u32 %v7460, 7
  %v7462 = vsub.s32 4, %v7461
  %v7463 = vrot.slane %v7442, %v7462
  %v7464 = vlaneseq
  %v7465 = vshrl.u32 %v7464, 7
  %v7466 = vsub.s32 5, %v7465
  %v7467 = vrot.slane %v7442, %v7466
  %v7528 = vunpack.c.l.b16 %v7388
  %v7529 = vunpack.c.h.b16 %v7388
  %v7530 = vunpack.c.l.b16 %v7389
  %v7531 = vunpack.c.h.b16 %v7389
  %v7532 = vunpack.c.l.b16 %v7390
  %v7533 = vunpack.c.h.b16 %v7390
  %v7534 = vunpack.c.l.b16 %v7391
  %v7535 = vunpack.c.h.b16 %v7391
  %v7536 = vunpack.c.l.b16 %v7392
  %v7537 = vunpack.c.h.b16 %v7392
  %v7538 = vunpack.c.l.b16 %v7393
  %v7539 = vunpack.c.h.b16 %v7393
  %v7540 = vunpack.c.l.b16 %v7394
  %v7541 = vunpack.c.h.b16 %v7394
  %v7542 = vunpack.c.l.b16 %v7395
  %v7543 = vunpack.c.h.b16 %v7395
  %v7544 = vunpack.c.l.b16 %v7396
  %v7545 = vunpack.c.h.b16 %v7396
  %v7546 = vunpack.c.l.b16 %v7397
  %v7547 = vunpack.c.h.b16 %v7397
  %v7548 = vunpack.c.l.b16 %v7398
  %v7549 = vunpack.c.h.b16 %v7398
  %v7550 = vunpack.c.l.b16 %v7399
  %v7551 = vunpack.c.h.b16 %v7399
  %v7552 = vunpack.c.l.b16 %v7400
  %v7553 = vunpack.c.h.b16 %v7400
  %v7554 = vunpack.c.l.b16 %v7401
  %v7555 = vunpack.c.h.b16 %v7401
  %v7556 = vunpack.c.l.b16 %v7402
  %v7557 = vunpack.c.h.b16 %v7402
  %v7558 = vunpack.c.l.b16 %v7403
  %v7559 = vunpack.c.h.b16 %v7403
  %v7560 = vunpack.c.l.b16 %v7404
  %v7561 = vunpack.c.h.b16 %v7404
  %v7562 = vunpack.c.l.b16 %v7405
  %v7563 = vunpack.c.h.b16 %v7405
  %v7564 = vunpack.c.l.b16 %v7406
  %v7565 = vunpack.c.h.b16 %v7406
  %v7566 = vunpack.c.l.b16 %v7407
  %v7567 = vunpack.c.h.b16 %v7407
  %v7568 = vunpack.c.l.b16 %v7408
  %v7569 = vunpack.c.h.b16 %v7408
  %v7570 = vunpack.c.l.b16 %v7409
  %v7571 = vunpack.c.h.b16 %v7409
  %v7572 = vunpack.c.l.b16 %v7410
  %v7573 = vunpack.c.h.b16 %v7410
  %v7574 = vunpack.c.l.b16 %v7411
  %v7575 = vunpack.c.h.b16 %v7411
  %v7576 = vunpack.c.l.b16 %v7412
  %v7577 = vunpack.c.h.b16 %v7412
  %v7578 = vunpack.c.l.b16 %v7413
  %v7579 = vunpack.c.h.b16 %v7413
  %v7580 = vunpack.c.l.b16 %v7414
  %v7581 = vunpack.c.h.b16 %v7414
  %v7582 = vunpack.c.l.b16 %v7415
  %v7583 = vunpack.c.h.b16 %v7415
  %v7584 = vunpack.c.l.b16 %v7416
  %v7585 = vunpack.c.h.b16 %v7416
  %v7586 = vunpack.c.l.b16 %v7417
  %v7587 = vunpack.c.h.b16 %v7417
  %v7588 = vunpack.c.l.b16 %v7418
  %v7589 = vunpack.c.h.b16 %v7418
  %v7590 = vunpack.c.l.b16 %v7419
  %v7591 = vunpack.c.h.b16 %v7419
  %v7592 = vunpack.c.l.b16 %v7420
  %v7593 = vunpack.c.h.b16 %v7420
  %v7594 = vunpack.c.l.b16 %v7421
  %v7595 = vunpack.c.h.b16 %v7421
  %v7596 = vunpack.c.l.b16 %v7422
  %v7597 = vunpack.c.h.b16 %v7422
  %v7598 = vunpack.c.l.b16 %v7423
  %v7599 = vunpack.c.h.b16 %v7423
  %v7600 = vunpack.c.l.b16 %v7424
  %v7601 = vunpack.c.h.b16 %v7424
  %v7602 = vunpack.c.l.b16 %v7425
  %v7603 = vunpack.c.h.b16 %v7425
  %v7604 = vunpack.c.l.b16 %v7426
  %v7605 = vunpack.c.h.b16 %v7426
  %v7606 = vunpack.c.l.b16 %v7427
  %v7607 = vunpack.c.h.b16 %v7427
  %v7608 = vunpack.c.l.b16 %v7428
  %v7609 = vunpack.c.h.b16 %v7428
  %v7610 = vunpack.c.l.b16 %v7429
  %v7611 = vunpack.c.h.b16 %v7429
  %v7612 = vunpack.c.l.b16 %v7430
  %v7613 = vunpack.c.h.b16 %v7430
  %v7614 = vunpack.c.l.b16 %v7431
  %v7615 = vunpack.c.h.b16 %v7431
  %v7616 = vunpack.c.l.b16 %v7432
  %v7617 = vunpack.c.h.b16 %v7432
  %v7618 = vunpack.c.l.b16 %v7433
  %v7619 = vunpack.c.h.b16 %v7433
  %v7620 = vunpack.c.l.b16 %v7434
  %v7621 = vunpack.c.h.b16 %v7434
  %v7622 = vunpack.c.l.b16 %v7435
  %v7623 = vunpack.c.h.b16 %v7435
  %v7624 = vunpack.c.l.b16 %v7436
  %v7625 = vunpack.c.h.b16 %v7436
  %v7626 = vunpack.c.l.b16 %v7437
  %v7627 = vunpack.c.h.b16 %v7437
  %v7628 = vunpack.c.l.b16 %v7438
  %v7629 = vunpack.c.h.b16 %v7438
  %v7630 = vunpack.c.l.b16 %v7439
  %v7631 = vunpack.c.h.b16 %v7439
  %v7632 = vunpack.c.l.b16 %v7440
  %v7633 = vunpack.c.h.b16 %v7440
  %v7634 = vunpack.c.l.b16 %v7441
  %v7635 = vunpack.c.h.b16 %v7441
  %v7636 = vpack.c.b16 %v7534, %v7528
  %v7637 = vpack.c.b16 %v7535, %v7529
  %v7638 = vpack.c.b16 %v7536, %v7530
  %v7639 = vpack.c.b16 %v7537, %v7531
  %v7640 = vpack.c.b16 %v7538, %v7532
  %v7641 = vpack.c.b16 %v7539, %v7533
  %v7642 = vpack.c.b16 %v7546, %v7540
  %v7643 = vpack.c.b16 %v7547, %v7541
  %v7644 = vpack.c.b16 %v7548, %v7542
  %v7645 = vpack.c.b16 %v7549, %v7543
  %v7646 = vpack.c.b16 %v7550, %v7544
  %v7647 = vpack.c.b16 %v7551, %v7545
  %v7648 = vpack.c.b16 %v7558, %v7552
  %v7649 = vpack.c.b16 %v7559, %v7553
  %v7650 = vpack.c.b16 %v7560, %v7554
  %v7651 = vpack.c.b16 %v7561, %v7555
  %v7652 = vpack.c.b16 %v7562, %v7556
  %v7653 = vpack.c.b16 %v7563, %v7557
  %v7654 = vpack.c.b16 %v7570, %v7564
  %v7655 = vpack.c.b16 %v7571, %v7565
  %v7656 = vpack.c.b16 %v7572, %v7566
  %v7657 = vpack.c.b16 %v7573, %v7567
  %v7658 = vpack.c.b16 %v7574, %v7568
  %v7659 = vpack.c.b16 %v7575, %v7569
  %v7660 = vpack.c.b16 %v7582, %v7576
  %v7661 = vpack.c.b16 %v7583, %v7577
  %v7662 = vpack.c.b16 %v7584, %v7578
  %v7663 = vpack.c.b16 %v7585, %v7579
  %v7664 = vpack.c.b16 %v7586, %v7580
  %v7665 = vpack.c.b16 %v7587, %v7581
  %v7666 = vpack.c.b16 %v7594, %v7588
  %v7667 = vpack.c.b16 %v7595, %v7589
  %v7668 = vpack.c.b16 %v7596, %v7590
  %v7669 = vpack.c.b16 %v7597, %v7591
  %v7670 = vpack.c.b16 %v7598, %v7592
  %v7671 = vpack.c.b16 %v7599, %v7593
  %v7672 = vpack.c.b16 %v7606, %v7600
  %v7673 = vpack.c.b16 %v7607, %v7601
  %v7674 = vpack.c.b16 %v7608, %v7602
  %v7675 = vpack.c.b16 %v7609, %v7603
  %v7676 = vpack.c.b16 %v7610, %v7604
  %v7677 = vpack.c.b16 %v7611, %v7605
  %v7678 = vpack.c.b16 %v7618, %v7612
  %v7679 = vpack.c.b16 %v7619, %v7613
  %v7680 = vpack.c.b16 %v7620, %v7614
  %v7681 = vpack.c.b16 %v7621, %v7615
  %v7682 = vpack.c.b16 %v7622, %v7616
  %v7683 = vpack.c.b16 %v7623, %v7617
  %v7684 = vpack.c.b16 %v7630, %v7624
  %v7685 = vpack.c.b16 %v7631, %v7625
  %v7686 = vpack.c.b16 %v7632, %v7626
  %v7687 = vpack.c.b16 %v7633, %v7627
  %v7688 = vpack.c.b16 %v7634, %v7628
  %v7689 = vpack.c.b16 %v7635, %v7629
  %vm7744 = vcmask 130048
  %v7746 = vsel %vm7744, %v7387, 0
  %7748 = vmatprep.subr.bf16.mxu0 %v7637
  %7749 = vmatpush1.bf16.msra.mxu0 %v7636
  %7750 = vmatprep.subr.bf16.mxu0 %v7643
  %7751 = vmatpush1.bf16.msra.mxu0 %v7642
  %7752 = vmatprep.subr.bf16.mxu0 %v7649
  %7753 = vmatpush1.bf16.msra.mxu0 %v7648
  %7754 = vmatprep.subr.bf16.mxu0 %v7655
  %7755 = vmatpush1.bf16.msra.mxu0 %v7654
  %7756 = vmatprep.subr.bf16.mxu0 %v7661
  %7757 = vmatpush1.bf16.msra.mxu0 %v7660
  %7758 = vmatprep.subr.bf16.mxu0 %v7667
  %7759 = vmatpush1.bf16.msra.mxu0 %v7666
  %7760 = vmatprep.subr.bf16.mxu0 %v7673
  %7761 = vmatpush1.bf16.msra.mxu0 %v7672
  %7762 = vmatprep.subr.bf16.mxu0 %v7679
  %7763 = vmatpush1.bf16.msra.mxu0 %v7678
  %7764 = vmatprep.subr.bf16.mxu0 %v7685
  %7765 = vmatpush1.bf16.msra.mxu0 %v7684
  %7766 = vmatprep.subr.bf16.mxu0 0
  %7767 = vmatpush1.bf16.msra.mxu0 0
  %7768 = vmatprep.subr.bf16.mxu0 0
  %7769 = vmatpush1.bf16.msra.mxu0 0
  %7770 = vmatprep.subr.bf16.mxu0 0
  %7771 = vmatpush1.bf16.msra.mxu0 0
  %7772 = vmatprep.subr.bf16.mxu0 0
  %7773 = vmatpush1.bf16.msra.mxu0 0
  %7774 = vmatprep.subr.bf16.mxu0 0
  %7775 = vmatpush1.bf16.msra.mxu0 0
  %7776 = vmatprep.subr.bf16.mxu0 0
  %7777 = vmatpush1.bf16.msra.mxu0 0
  %7778 = vmatprep.subr.bf16.mxu0 0
  %7779 = vmatpush1.bf16.msra.mxu0 0
  %7780 = vmatprep.mubr.bf16.mxu0 %v7746
  %7781 = vmatmul.mubr.bf16.gmra.mrb[0].mxu0 %v7386
  %v7782 = vpop.f32.mrb[0].mxu0
  %v7783 = vadd.f32 %v7447, %v7782
  %v7784 = vpop.f32.mrb[0].mxu0
  %v7785 = vadd.f32 %v7451, %v7784
  %v7786 = vpop.f32.mrb[0].mxu0
  %v7787 = vpop.f32.mrb[0].mxu0
  %7788 = vdwg.mxu0
  %7789 = vmatprep.subr.bf16.mxu0 %v7639
  %7790 = vmatpush1.bf16.msra.mxu0 %v7638
  %7791 = vmatprep.subr.bf16.mxu0 %v7645
  %7792 = vmatpush1.bf16.msra.mxu0 %v7644
  %7793 = vmatprep.subr.bf16.mxu0 %v7651
  %7794 = vmatpush1.bf16.msra.mxu0 %v7650
  %7795 = vmatprep.subr.bf16.mxu0 %v7657
  %7796 = vmatpush1.bf16.msra.mxu0 %v7656
  %7797 = vmatprep.subr.bf16.mxu0 %v7663
  %7798 = vmatpush1.bf16.msra.mxu0 %v7662
  %7799 = vmatprep.subr.bf16.mxu0 %v7669
  %7800 = vmatpush1.bf16.msra.mxu0 %v7668
  %7801 = vmatprep.subr.bf16.mxu0 %v7675
  %7802 = vmatpush1.bf16.msra.mxu0 %v7674
  %7803 = vmatprep.subr.bf16.mxu0 %v7681
  %7804 = vmatpush1.bf16.msra.mxu0 %v7680
  %7805 = vmatprep.subr.bf16.mxu0 %v7687
  %7806 = vmatpush1.bf16.msra.mxu0 %v7686
  %7807 = vmatprep.subr.bf16.mxu0 0
  %7808 = vmatpush1.bf16.msra.mxu0 0
  %7809 = vmatprep.subr.bf16.mxu0 0
  %7810 = vmatpush1.bf16.msra.mxu0 0
  %7811 = vmatprep.subr.bf16.mxu0 0
  %7812 = vmatpush1.bf16.msra.mxu0 0
  %7813 = vmatprep.subr.bf16.mxu0 0
  %7814 = vmatpush1.bf16.msra.mxu0 0
  %7815 = vmatprep.subr.bf16.mxu0 0
  %7816 = vmatpush1.bf16.msra.mxu0 0
  %7817 = vmatprep.subr.bf16.mxu0 0
  %7818 = vmatpush1.bf16.msra.mxu0 0
  %7819 = vmatprep.subr.bf16.mxu0 0
  %7820 = vmatpush1.bf16.msra.mxu0 0
  %7821 = vmatprep.mubr.bf16.mxu0 %v7746
  %7822 = vmatmul.mubr.bf16.gmra.mrb[0].mxu0 %v7386
  %v7823 = vpop.f32.mrb[0].mxu0
  %v7824 = vadd.f32 %v7455, %v7823
  %v7825 = vpop.f32.mrb[0].mxu0
  %v7826 = vadd.f32 %v7459, %v7825
  %v7827 = vpop.f32.mrb[0].mxu0
  %v7828 = vpop.f32.mrb[0].mxu0
  %7829 = vdwg.mxu0
  %7830 = vmatprep.subr.bf16.mxu0 %v7641
  %7831 = vmatpush1.bf16.msra.mxu0 %v7640
  %7832 = vmatprep.subr.bf16.mxu0 %v7647
  %7833 = vmatpush1.bf16.msra.mxu0 %v7646
  %7834 = vmatprep.subr.bf16.mxu0 %v7653
  %7835 = vmatpush1.bf16.msra.mxu0 %v7652
  %7836 = vmatprep.subr.bf16.mxu0 %v7659
  %7837 = vmatpush1.bf16.msra.mxu0 %v7658
  %7838 = vmatprep.subr.bf16.mxu0 %v7665
  %7839 = vmatpush1.bf16.msra.mxu0 %v7664
  %7840 = vmatprep.subr.bf16.mxu0 %v7671
  %7841 = vmatpush1.bf16.msra.mxu0 %v7670
  %7842 = vmatprep.subr.bf16.mxu0 %v7677
  %7843 = vmatpush1.bf16.msra.mxu0 %v7676
  %7844 = vmatprep.subr.bf16.mxu0 %v7683
  %7845 = vmatpush1.bf16.msra.mxu0 %v7682
  %7846 = vmatprep.subr.bf16.mxu0 %v7689
  %7847 = vmatpush1.bf16.msra.mxu0 %v7688
  %7848 = vmatprep.subr.bf16.mxu0 0
  %7849 = vmatpush1.bf16.msra.mxu0 0
  %7850 = vmatprep.subr.bf16.mxu0 0
  %7851 = vmatpush1.bf16.msra.mxu0 0
  %7852 = vmatprep.subr.bf16.mxu0 0
  %7853 = vmatpush1.bf16.msra.mxu0 0
  %7854 = vmatprep.subr.bf16.mxu0 0
  %7855 = vmatpush1.bf16.msra.mxu0 0
  %7856 = vmatprep.subr.bf16.mxu0 0
  %7857 = vmatpush1.bf16.msra.mxu0 0
  %7858 = vmatprep.subr.bf16.mxu0 0
  %7859 = vmatpush1.bf16.msra.mxu0 0
  %7860 = vmatprep.subr.bf16.mxu0 0
  %7861 = vmatpush1.bf16.msra.mxu0 0
  %7862 = vmatprep.mubr.bf16.mxu0 %v7746
  %7863 = vmatmul.mubr.bf16.gmra.mrb[0].mxu0 %v7386
  %v7864 = vpop.f32.mrb[0].mxu0
  %v7865 = vadd.f32 %v7463, %v7864
  %v7866 = vpop.f32.mrb[0].mxu0
  %v7867 = vadd.f32 %v7467, %v7866
  %v7868 = vpop.f32.mrb[0].mxu0
  %v7869 = vpop.f32.mrb[0].mxu0
  %7870 = vdwg.mxu0
  %v7877 = vcombine.low %v7783, %v7785
  %v7878 = vcombine.low %v7824, %v7826
  %v7880 = vunpack.c.l.s4 1983009808
  %v7881 = vunpack.c.0.s8 %v7880
  %v7882 = vlaneseq
  %v7883 = vshrl.u32 %v7882, 7
  %v7884 = vsub.s32 %v7881, %v7883
  %v7885 = vrot.slane %v7877, %v7884
  %v7887 = vunpack.c.l.s4 1983009808
  %v7888 = vunpack.c.0.s8 %v7887
  %v7889 = vlaneseq
  %v7890 = vshrl.u32 %v7889, 7
  %v7891 = vsub.s32 %v7888, %v7890
  %v7892 = vrot.slane %v7878, %v7891
  %v7893 = vcombine.low %v7885, %v7892
  %v7894 = vcombine.low %v7865, %v7867
  %v7896 = vunpack.c.l.s4 1983009808
  %v7897 = vunpack.c.0.s8 %v7896
  %v7898 = vlaneseq
  %v7899 = vshrl.u32 %v7898, 7
  %v7900 = vsub.s32 %v7897, %v7899
  %v7901 = vrot.slane %v7894, %v7900
  %7904 = vst [vmem:[%s8] sm:$0xff] %v7893
  %7905 = vst [vmem:[%s8 + $0x8] sm:$0xf] %v7901
  %vm7906 = vcmp.eq.s32.totalorder %v1071, 0
  %vm7907 = vcmp.eq.s32.totalorder %v1071, 1
  %v7908 = vsel %vm7907, %v7374, 0.0
  %v7909 = vsel %vm7906, %v7346, %v7908
  %7910 = vst [vmem:[%s9] sm:$0x1] %v7909
  // Predicated region
  $region34: #{mesh_vq_vae_forward.1} parent=0 // pred_check
    _
  $region35: #{mesh_vq_vae_forward.1} parent=0 // pred_check_branch
    %7912 = sbr.rel (0) target = $region37
  $region36: #{mesh_vq_vae_forward.1} parent=0 // pred_region
    _
  $region37: #{mesh_vq_vae_forward.1} parent=0 // pred_fallthru
    _
  // Predicated region
  $region38: #{mesh_vq_vae_forward.1} parent=0 // pred_check
    _
  $region39: #{mesh_vq_vae_forward.1} parent=0 // pred_check_branch
    %7914 = sbr.rel (0) target = $region41
  $region40: #{mesh_vq_vae_forward.1} parent=0 // pred_region
    _
  $region41: #{mesh_vq_vae_forward.1} parent=0 // pred_fallthru
    _
  // Predicated region
  $region42: #{mesh_vq_vae_forward.1} parent=0 // pred_check
    _
  $region43: #{mesh_vq_vae_forward.1} parent=0 // pred_check_branch
    %7916 = sbr.rel (0) target = $region45
  $region44: #{mesh_vq_vae_forward.1} parent=0 // pred_region
    _
  $region45: #{mesh_vq_vae_forward.1} parent=0 // pred_fallthru
    _
  // Predicated region
  $region46: #{mesh_vq_vae_forward.1} parent=0 // pred_check
    _
  $region47: #{mesh_vq_vae_forward.1} parent=0 // pred_check_branch
    %7918 = sbr.rel (0) target = $region49
  $region48: #{mesh_vq_vae_forward.1} parent=0 // pred_region
    _
  $region49: #{mesh_vq_vae_forward.1} parent=0 // pred_fallthru
    _

</llo_original>
